<compile_context>
chip_gen: v6e
topology: v6e:2x2x1
jax: 0.10.0
libtpu: 0.0.40
codegen_flags: <defaults>
</compile_context>

<pallas_src>
import jax
import jax.numpy as jnp
from jax import lax
from jax.experimental import pallas as pl
from jax.experimental.pallas import tpu as pltpu

LN_EPS = 1e-5


def _sigmoid(x):
    # sigmoid(x) = 0.5*tanh(0.5*x) + 0.5 : one EUP op instead of exp+rcp chain.
    return 0.5 * jnp.tanh(0.5 * x) + 0.5


def _ln_swish(h, gamma, beta):
    # Single-pass LayerNorm over the last dim (safe here: inputs are bounded),
    # then Swish (y * sigmoid(y)) with the tanh-form sigmoid.
    mu = jnp.mean(h, axis=-1, keepdims=True)
    ms = jnp.mean(h * h, axis=-1, keepdims=True)
    var = ms - mu * mu
    y = (h - mu) * lax.rsqrt(var + LN_EPS) * gamma + beta
    return y * _sigmoid(y)


def _make_kernel(T, B, H):

    def run_layer(proj_in_ref, whh_ref, h, c,
                  gamma_ref=None, beta_ref=None,
                  next_wih_ref=None, next_b_ref=None, proj_out_ref=None):
        """One LSTM layer's serial recurrence.

        Only proj_in[t] + h @ W_hh -> gates -> (c, h) sits on the critical
        path.  When proj_out_ref is given, the NEXT layer's input projection
        of this step's LayerNorm+Swish output is issued inside the same step
        body; it is independent of step t+1's recurrence, so the scheduler can
        overlap it with the next serial matmul.
        """
        store_next = proj_out_ref is not None
        if store_next:
            gamma = gamma_ref[...]       # (1, H)  hoisted out of the loop
            beta = beta_ref[...]
            nb = next_b_ref[...]         # (1, 4H) pre-summed bias, next layer
        h_bf = h.astype(jnp.bfloat16)
        for t in range(T):               # static unroll (T is compile-time)
            gates = (proj_in_ref[pl.ds(t * B, B), :]
                     + jnp.dot(h_bf, whh_ref[...],
                               preferred_element_type=jnp.float32))
            # gate order [i, f, o, g]: one fused sigmoid over (B, 3H), one tanh.
            sfo = _sigmoid(gates[:, :3 * H])
            i_g = sfo[:, :H]
            f_g = sfo[:, H:2 * H]
            o_g = sfo[:, 2 * H:]
            g_g = jnp.tanh(gates[:, 3 * H:])
            c = f_g * c + i_g * g_g
            h = o_g * jnp.tanh(c)
            h_bf = h.astype(jnp.bfloat16)
            if store_next:
                y_bf = _ln_swish(h, gamma, beta).astype(jnp.bfloat16)
                proj_out_ref[pl.ds(t * B, B), :] = (
                    jnp.dot(y_bf, next_wih_ref[...],
                            preferred_element_type=jnp.float32) + nb)
        return h, c

    def kernel(proj0_ref,
               whh0, g0, be0,
               wih1, b1, whh1, g1, be1,
               wih2, b2, whh2, g2, be2,
               gf, bef, fcw, fcb,
               out_ref,
               proj1_ref, proj2_ref):
        zero = jnp.zeros((B, H), jnp.float32)

        # The three recurrences must run back-to-back (hidden state chains
        # across layers), so no cross-layer wavefront is possible.

        # ---- layer 0: projections precomputed in the wrapper; zero state;
        #      per-step LN+Swish feeds layer 1's projections into proj1_ref.
        h, c = run_layer(proj0_ref, whh0, zero, zero,
                         g0, be0, wih1, b1, proj1_ref)

        # ---- layer 1: hidden chained from layer 0; per-step LN+Swish feeds
        #      layer 2's projections (2x residual folded into wih2) -> proj2.
        h, c = run_layer(proj1_ref, whh1, h, c,
                         g1, be1, wih2, b2, proj2_ref)

        # ---- layer 2: only its final hidden state is consumed downstream,
        #      so no per-step LN+Swish / projection.
        h, c = run_layer(proj2_ref, whh2, h, c)

        # Layer-2 LN+Swish on the last step, final LN+Swish, then FC(H -> 1).
        y = _ln_swish(h, g2[...], be2[...])
        y = _ln_swish(y, gf[...], bef[...])
        out_ref[...] = jnp.sum(y * fcw[...], axis=-1, keepdims=True) + fcb[...]

    return kernel


def enhanced_lstm_forward(x, params):
    """x: (B, T, input_size), batch-first as in PyTorch.  Returns (B,)."""
    B, T, IN = x.shape
    H = params["hidden_size"]
    l0, l1, l2 = params["layers"]

    # Time-major, flattened to (T*B, IN).  The layer-0 input projection
    # (K = IN = 4, degenerate for the MXU) is done here in XLA.
    x_tm = jnp.transpose(x, (1, 0, 2)).reshape(T * B, IN).astype(jnp.float32)
    proj0 = x_tm @ l0["w_ih_t"] + l0["b"]               # (T*B, 4H) f32

    inputs = [proj0,
              l0["w_hh_t"], l0["gamma"], l0["beta"],
              l1["w_ih_t"], l1["b"], l1["w_hh_t"], l1["gamma"], l1["beta"],
              l2["w_ih_t"], l2["b"], l2["w_hh_t"], l2["gamma"], l2["beta"],
              params["gamma_f"], params["beta_f"],
              params["fc_w"], params["fc_b"]]

    vmem = pl.BlockSpec(memory_space=pltpu.MemorySpace.VMEM)
    out = pl.pallas_call(
        _make_kernel(T, B, H),
        out_shape=jax.ShapeDtypeStruct((B, 1), jnp.float32),
        in_specs=[vmem] * len(inputs),
        out_specs=vmem,
        # next-layer projection buffers, filled inside layers 0 / 1's loops
        scratch_shapes=[pltpu.VMEM((T * B, 4 * H), jnp.float32),
                        pltpu.VMEM((T * B, 4 * H), jnp.float32)],
    )(*inputs)
    # PyTorch: out.squeeze(); diverges only for B == 1 (torch returns 0-d).
    return jnp.squeeze(out, axis=-1)


def init_params(key, input_size, hidden_size, num_layers=3):
    """Synthetic PyTorch-style init (U(-1/sqrt(H), 1/sqrt(H))), then kernel
    weight prep: gate reorder [i,f,g,o] -> [i,f,o,g], transpose to (K, 4H),
    bias pre-sum (b_ih + b_hh), layer-2 residual 2x folded into its W_ih,
    bf16 cast for in-kernel matmul operands (layer-0 W_ih stays f32: it is
    applied in the XLA wrapper)."""
    assert num_layers == 3
    H = hidden_size
    bound = 1.0 / jnp.sqrt(jnp.float32(H))

    def reorder(w):  # (4H, X) in PyTorch order [i,f,g,o] -> [i,f,o,g]
        w4 = w.reshape(4, H, -1)
        return jnp.concatenate([w4[0], w4[1], w4[3], w4[2]], axis=0)

    layers = []
    for layer_idx in range(num_layers):
        in_sz = input_size if layer_idx == 0 else H
        key, k1, k2, k3, k4 = jax.random.split(key, 5)
        w_ih = jax.random.uniform(k1, (4 * H, in_sz), jnp.float32, -bound, bound)
        w_hh = jax.random.uniform(k2, (4 * H, H), jnp.float32, -bound, bound)
        b_ih = jax.random.uniform(k3, (4 * H,), jnp.float32, -bound, bound)
        b_hh = jax.random.uniform(k4, (4 * H,), jnp.float32, -bound, bound)

        w_ih_r = reorder(w_ih)                                   # (4H, in)
        w_hh_r = reorder(w_hh)                                   # (4H, H)
        b_r = reorder((b_ih + b_hh)[:, None])[:, 0].reshape(1, 4 * H)

        # Layer 2's input is out1 + residual = 2*out1 -> fold 2x into W_ih
        # only (bias is added after the residual sum, so it is NOT scaled).
        scale = 2.0 if layer_idx == 2 else 1.0
        w_ih_t = scale * w_ih_r.T                                # (in, 4H)
        if layer_idx > 0:
            w_ih_t = w_ih_t.astype(jnp.bfloat16)   # in-kernel matmul operand

        layers.append(dict(
            w_ih_t=w_ih_t,
            w_hh_t=w_hh_r.T.astype(jnp.bfloat16),                # (H, 4H)
            b=b_r.astype(jnp.float32),                           # (1, 4H)
            gamma=jnp.ones((1, H), jnp.float32),                 # LN defaults
            beta=jnp.zeros((1, H), jnp.float32),
        ))
    key, kw, kb = jax.random.split(key, 3)
    fc_bound = 1.0 / jnp.sqrt(jnp.float32(H))
    fc_w = jax.random.uniform(kw, (1, H), jnp.float32, -fc_bound, fc_bound)
    fc_b = jax.random.uniform(kb, (1, 1), jnp.float32, -fc_bound, fc_bound)
    return dict(
        hidden_size=H,
        layers=layers,
        gamma_f=jnp.ones((1, H), jnp.float32),
        beta_f=jnp.zeros((1, H), jnp.float32),
        fc_w=fc_w,
        fc_b=fc_b,
    )


if __name__ == "__main__":
    B, T, IN, H = 8, 8, 4, 128   # small, TPU-tile-friendly shapes
    key = jax.random.PRNGKey(0)
    k_x, k_p = jax.random.split(key)
    x = jax.random.normal(k_x, (B, T, IN), jnp.float32)
    params = init_params(k_p, IN, H, num_layers=3)

    y = enhanced_lstm_forward(x, params)
    y = jax.block_until_ready(y)
    assert y.shape == (B,), y.shape
    assert bool(jnp.all(jnp.isfinite(y)))
    print("KERNEL_OK")
</pallas_src>

<mosaic_0001>
module attributes {stable_mosaic.version = 11 : i64} {
  func.func @kernel(%arg0: memref<64x512xf32, #tpu.memory_space<vmem>>, %arg1: memref<128x512xbf16, #tpu.memory_space<vmem>>, %arg2: memref<1x128xf32, #tpu.memory_space<vmem>>, %arg3: memref<1x128xf32, #tpu.memory_space<vmem>>, %arg4: memref<128x512xbf16, #tpu.memory_space<vmem>>, %arg5: memref<1x512xf32, #tpu.memory_space<vmem>>, %arg6: memref<128x512xbf16, #tpu.memory_space<vmem>>, %arg7: memref<1x128xf32, #tpu.memory_space<vmem>>, %arg8: memref<1x128xf32, #tpu.memory_space<vmem>>, %arg9: memref<128x512xbf16, #tpu.memory_space<vmem>>, %arg10: memref<1x512xf32, #tpu.memory_space<vmem>>, %arg11: memref<128x512xbf16, #tpu.memory_space<vmem>>, %arg12: memref<1x128xf32, #tpu.memory_space<vmem>>, %arg13: memref<1x128xf32, #tpu.memory_space<vmem>>, %arg14: memref<1x128xf32, #tpu.memory_space<vmem>>, %arg15: memref<1x128xf32, #tpu.memory_space<vmem>>, %arg16: memref<1x128xf32, #tpu.memory_space<vmem>>, %arg17: memref<1x1xf32, #tpu.memory_space<vmem>>, %arg18: memref<8x1xf32, #tpu.memory_space<vmem>>, %arg19: memref<64x512xf32, #tpu.memory_space<vmem>>, %arg20: memref<64x512xf32, #tpu.memory_space<vmem>>) attributes {dimension_semantics = [], scalar_prefetch = 0 : i64, scratch_operands = 2 : i64, tpu.core_type = #tpu.core_type<tc>} {
    %cst = arith.constant 0.000000e+00 : f32
    %0 = vector.broadcast %cst : f32 to vector<8x128xf32>
    %c0 = arith.constant 0 : index
    %c0_0 = arith.constant 0 : index
    %1 = vector.load %arg2[%c0, %c0_0] : memref<1x128xf32, #tpu.memory_space<vmem>>, vector<1x128xf32>
    %c0_1 = arith.constant 0 : index
    %c0_2 = arith.constant 0 : index
    %2 = vector.load %arg3[%c0_1, %c0_2] : memref<1x128xf32, #tpu.memory_space<vmem>>, vector<1x128xf32>
    %c0_3 = arith.constant 0 : index
    %c0_4 = arith.constant 0 : index
    %3 = vector.load %arg5[%c0_3, %c0_4] : memref<1x512xf32, #tpu.memory_space<vmem>>, vector<1x512xf32>
    %4 = arith.truncf %0 : vector<8x128xf32> to vector<8x128xbf16>
    %c0_5 = arith.constant 0 : index
    %c0_6 = arith.constant 0 : index
    %5 = vector.load %arg0[%c0_5, %c0_6] : memref<64x512xf32, #tpu.memory_space<vmem>>, vector<8x512xf32>
    %c0_7 = arith.constant 0 : index
    %c0_8 = arith.constant 0 : index
    %6 = vector.load %arg1[%c0_7, %c0_8] : memref<128x512xbf16, #tpu.memory_space<vmem>>, vector<128x512xbf16>
    %cst_9 = arith.constant dense<0.000000e+00> : vector<8x512xf32>
    %7 = tpu.matmul %4, %6, %cst_9 {dimension_numbers = #tpu.dot_dimension_numbers<[1], [0], [0], [1], [0, 0, 1, 1], [], []>} : vector<8x128xbf16>, vector<128x512xbf16>, vector<8x512xf32> -> vector<8x512xf32>
    %8 = arith.addf %5, %7 : vector<8x512xf32>
    %9 = vector.extract_strided_slice %8 {offsets = [0, 0], sizes = [8, 384], strides = [1, 1]} : vector<8x512xf32> to vector<8x384xf32>
    %cst_10 = arith.constant 5.000000e-01 : f32
    %10 = vector.broadcast %cst_10 : f32 to vector<8x384xf32>
    %11 = arith.mulf %10, %9 : vector<8x384xf32>
    %12 = math.tanh %11 : vector<8x384xf32>
    %cst_11 = arith.constant 5.000000e-01 : f32
    %13 = vector.broadcast %cst_11 : f32 to vector<8x384xf32>
    %14 = arith.mulf %13, %12 : vector<8x384xf32>
    %cst_12 = arith.constant 5.000000e-01 : f32
    %15 = vector.broadcast %cst_12 : f32 to vector<8x384xf32>
    %16 = arith.addf %14, %15 : vector<8x384xf32>
    %17 = vector.extract_strided_slice %16 {offsets = [0, 0], sizes = [8, 128], strides = [1, 1]} : vector<8x384xf32> to vector<8x128xf32>
    %18 = vector.extract_strided_slice %16 {offsets = [0, 128], sizes = [8, 128], strides = [1, 1]} : vector<8x384xf32> to vector<8x128xf32>
    %19 = vector.extract_strided_slice %16 {offsets = [0, 256], sizes = [8, 128], strides = [1, 1]} : vector<8x384xf32> to vector<8x128xf32>
    %20 = vector.extract_strided_slice %8 {offsets = [0, 384], sizes = [8, 128], strides = [1, 1]} : vector<8x512xf32> to vector<8x128xf32>
    %21 = math.tanh %20 : vector<8x128xf32>
    %22 = arith.mulf %18, %0 : vector<8x128xf32>
    %23 = arith.mulf %17, %21 : vector<8x128xf32>
    %24 = arith.addf %22, %23 : vector<8x128xf32>
    %25 = math.tanh %24 : vector<8x128xf32>
    %26 = arith.mulf %19, %25 : vector<8x128xf32>
    %27 = arith.truncf %26 : vector<8x128xf32> to vector<8x128xbf16>
    %cst_13 = arith.constant dense<0.000000e+00> : vector<8xf32>
    %28 = vector.multi_reduction <add>, %26, %cst_13 [1] : vector<8x128xf32> to vector<8xf32>
    %29 = vector.shape_cast %28 : vector<8xf32> to vector<8x1xf32>
    %cst_14 = arith.constant 1.280000e+02 : f32
    %30 = vector.broadcast %cst_14 : f32 to vector<8x1xf32>
    %31 = arith.divf %29, %30 : vector<8x1xf32>
    %32 = arith.mulf %26, %26 : vector<8x128xf32>
    %cst_15 = arith.constant dense<0.000000e+00> : vector<8xf32>
    %33 = vector.multi_reduction <add>, %32, %cst_15 [1] : vector<8x128xf32> to vector<8xf32>
    %34 = vector.shape_cast %33 : vector<8xf32> to vector<8x1xf32>
    %cst_16 = arith.constant 1.280000e+02 : f32
    %35 = vector.broadcast %cst_16 : f32 to vector<8x1xf32>
    %36 = arith.divf %34, %35 : vector<8x1xf32>
    %37 = arith.mulf %31, %31 : vector<8x1xf32>
    %38 = arith.subf %36, %37 : vector<8x1xf32>
    %39 = vector.broadcast %31 : vector<8x1xf32> to vector<8x128xf32>
    %40 = arith.subf %26, %39 : vector<8x128xf32>
    %cst_17 = arith.constant 9.99999974E-6 : f32
    %41 = vector.broadcast %cst_17 : f32 to vector<8x1xf32>
    %42 = arith.addf %38, %41 : vector<8x1xf32>
    %43 = math.rsqrt %42 : vector<8x1xf32>
    %44 = vector.broadcast %43 : vector<8x1xf32> to vector<8x128xf32>
    %45 = arith.mulf %40, %44 : vector<8x128xf32>
    %46 = vector.broadcast %1 : vector<1x128xf32> to vector<8x128xf32>
    %47 = arith.mulf %45, %46 : vector<8x128xf32>
    %48 = vector.broadcast %2 : vector<1x128xf32> to vector<8x128xf32>
    %49 = arith.addf %47, %48 : vector<8x128xf32>
    %cst_18 = arith.constant 5.000000e-01 : f32
    %50 = vector.broadcast %cst_18 : f32 to vector<8x128xf32>
    %51 = arith.mulf %50, %49 : vector<8x128xf32>
    %52 = math.tanh %51 : vector<8x128xf32>
    %cst_19 = arith.constant 5.000000e-01 : f32
    %53 = vector.broadcast %cst_19 : f32 to vector<8x128xf32>
    %54 = arith.mulf %53, %52 : vector<8x128xf32>
    %cst_20 = arith.constant 5.000000e-01 : f32
    %55 = vector.broadcast %cst_20 : f32 to vector<8x128xf32>
    %56 = arith.addf %54, %55 : vector<8x128xf32>
    %57 = arith.mulf %49, %56 : vector<8x128xf32>
    %58 = arith.truncf %57 : vector<8x128xf32> to vector<8x128xbf16>
    %c0_21 = arith.constant 0 : index
    %c0_22 = arith.constant 0 : index
    %59 = vector.load %arg4[%c0_21, %c0_22] : memref<128x512xbf16, #tpu.memory_space<vmem>>, vector<128x512xbf16>
    %cst_23 = arith.constant dense<0.000000e+00> : vector<8x512xf32>
    %60 = tpu.matmul %58, %59, %cst_23 {dimension_numbers = #tpu.dot_dimension_numbers<[1], [0], [0], [1], [0, 0, 1, 1], [], []>} : vector<8x128xbf16>, vector<128x512xbf16>, vector<8x512xf32> -> vector<8x512xf32>
    %61 = vector.broadcast %3 : vector<1x512xf32> to vector<8x512xf32>
    %62 = arith.addf %60, %61 : vector<8x512xf32>
    %c0_24 = arith.constant 0 : index
    %c0_25 = arith.constant 0 : index
    %63 = vector.load %arg19[%c0_24, %c0_25] : memref<64x512xf32, #tpu.memory_space<vmem>>, vector<8x512xf32>
    tpu.vector_store %arg19[%c0_24, %c0_25], %62 {strides = array<i32>} : memref<64x512xf32, #tpu.memory_space<vmem>>, vector<8x512xf32>,
    %c8 = arith.constant 8 : index
    %c0_26 = arith.constant 0 : index
    %64 = vector.load %arg0[%c8, %c0_26] : memref<64x512xf32, #tpu.memory_space<vmem>>, vector<8x512xf32>
    %c0_27 = arith.constant 0 : index
    %c0_28 = arith.constant 0 : index
    %65 = vector.load %arg1[%c0_27, %c0_28] : memref<128x512xbf16, #tpu.memory_space<vmem>>, vector<128x512xbf16>
    %cst_29 = arith.constant dense<0.000000e+00> : vector<8x512xf32>
    %66 = tpu.matmul %27, %65, %cst_29 {dimension_numbers = #tpu.dot_dimension_numbers<[1], [0], [0], [1], [0, 0, 1, 1], [], []>} : vector<8x128xbf16>, vector<128x512xbf16>, vector<8x512xf32> -> vector<8x512xf32>
    %67 = arith.addf %64, %66 : vector<8x512xf32>
    %68 = vector.extract_strided_slice %67 {offsets = [0, 0], sizes = [8, 384], strides = [1, 1]} : vector<8x512xf32> to vector<8x384xf32>
    %cst_30 = arith.constant 5.000000e-01 : f32
    %69 = vector.broadcast %cst_30 : f32 to vector<8x384xf32>
    %70 = arith.mulf %69, %68 : vector<8x384xf32>
    %71 = math.tanh %70 : vector<8x384xf32>
    %cst_31 = arith.constant 5.000000e-01 : f32
    %72 = vector.broadcast %cst_31 : f32 to vector<8x384xf32>
    %73 = arith.mulf %72, %71 : vector<8x384xf32>
    %cst_32 = arith.constant 5.000000e-01 : f32
    %74 = vector.broadcast %cst_32 : f32 to vector<8x384xf32>
    %75 = arith.addf %73, %74 : vector<8x384xf32>
    %76 = vector.extract_strided_slice %75 {offsets = [0, 0], sizes = [8, 128], strides = [1, 1]} : vector<8x384xf32> to vector<8x128xf32>
    %77 = vector.extract_strided_slice %75 {offsets = [0, 128], sizes = [8, 128], strides = [1, 1]} : vector<8x384xf32> to vector<8x128xf32>
    %78 = vector.extract_strided_slice %75 {offsets = [0, 256], sizes = [8, 128], strides = [1, 1]} : vector<8x384xf32> to vector<8x128xf32>
    %79 = vector.extract_strided_slice %67 {offsets = [0, 384], sizes = [8, 128], strides = [1, 1]} : vector<8x512xf32> to vector<8x128xf32>
    %80 = math.tanh %79 : vector<8x128xf32>
    %81 = arith.mulf %77, %24 : vector<8x128xf32>
    %82 = arith.mulf %76, %80 : vector<8x128xf32>
    %83 = arith.addf %81, %82 : vector<8x128xf32>
    %84 = math.tanh %83 : vector<8x128xf32>
    %85 = arith.mulf %78, %84 : vector<8x128xf32>
    %86 = arith.truncf %85 : vector<8x128xf32> to vector<8x128xbf16>
    %cst_33 = arith.constant dense<0.000000e+00> : vector<8xf32>
    %87 = vector.multi_reduction <add>, %85, %cst_33 [1] : vector<8x128xf32> to vector<8xf32>
    %88 = vector.shape_cast %87 : vector<8xf32> to vector<8x1xf32>
    %cst_34 = arith.constant 1.280000e+02 : f32
    %89 = vector.broadcast %cst_34 : f32 to vector<8x1xf32>
    %90 = arith.divf %88, %89 : vector<8x1xf32>
    %91 = arith.mulf %85, %85 : vector<8x128xf32>
    %cst_35 = arith.constant dense<0.000000e+00> : vector<8xf32>
    %92 = vector.multi_reduction <add>, %91, %cst_35 [1] : vector<8x128xf32> to vector<8xf32>
    %93 = vector.shape_cast %92 : vector<8xf32> to vector<8x1xf32>
    %cst_36 = arith.constant 1.280000e+02 : f32
    %94 = vector.broadcast %cst_36 : f32 to vector<8x1xf32>
    %95 = arith.divf %93, %94 : vector<8x1xf32>
    %96 = arith.mulf %90, %90 : vector<8x1xf32>
    %97 = arith.subf %95, %96 : vector<8x1xf32>
    %98 = vector.broadcast %90 : vector<8x1xf32> to vector<8x128xf32>
    %99 = arith.subf %85, %98 : vector<8x128xf32>
    %cst_37 = arith.constant 9.99999974E-6 : f32
    %100 = vector.broadcast %cst_37 : f32 to vector<8x1xf32>
    %101 = arith.addf %97, %100 : vector<8x1xf32>
    %102 = math.rsqrt %101 : vector<8x1xf32>
    %103 = vector.broadcast %102 : vector<8x1xf32> to vector<8x128xf32>
    %104 = arith.mulf %99, %103 : vector<8x128xf32>
    %105 = vector.broadcast %1 : vector<1x128xf32> to vector<8x128xf32>
    %106 = arith.mulf %104, %105 : vector<8x128xf32>
    %107 = vector.broadcast %2 : vector<1x128xf32> to vector<8x128xf32>
    %108 = arith.addf %106, %107 : vector<8x128xf32>
    %cst_38 = arith.constant 5.000000e-01 : f32
    %109 = vector.broadcast %cst_38 : f32 to vector<8x128xf32>
    %110 = arith.mulf %109, %108 : vector<8x128xf32>
    %111 = math.tanh %110 : vector<8x128xf32>
    %cst_39 = arith.constant 5.000000e-01 : f32
    %112 = vector.broadcast %cst_39 : f32 to vector<8x128xf32>
    %113 = arith.mulf %112, %111 : vector<8x128xf32>
    %cst_40 = arith.constant 5.000000e-01 : f32
    %114 = vector.broadcast %cst_40 : f32 to vector<8x128xf32>
    %115 = arith.addf %113, %114 : vector<8x128xf32>
    %116 = arith.mulf %108, %115 : vector<8x128xf32>
    %117 = arith.truncf %116 : vector<8x128xf32> to vector<8x128xbf16>
    %c0_41 = arith.constant 0 : index
    %c0_42 = arith.constant 0 : index
    %118 = vector.load %arg4[%c0_41, %c0_42] : memref<128x512xbf16, #tpu.memory_space<vmem>>, vector<128x512xbf16>
    %cst_43 = arith.constant dense<0.000000e+00> : vector<8x512xf32>
    %119 = tpu.matmul %117, %118, %cst_43 {dimension_numbers = #tpu.dot_dimension_numbers<[1], [0], [0], [1], [0, 0, 1, 1], [], []>} : vector<8x128xbf16>, vector<128x512xbf16>, vector<8x512xf32> -> vector<8x512xf32>
    %120 = vector.broadcast %3 : vector<1x512xf32> to vector<8x512xf32>
    %121 = arith.addf %119, %120 : vector<8x512xf32>
    %c8_44 = arith.constant 8 : index
    %c0_45 = arith.constant 0 : index
    %122 = vector.load %arg19[%c8_44, %c0_45] : memref<64x512xf32, #tpu.memory_space<vmem>>, vector<8x512xf32>
    tpu.vector_store %arg19[%c8_44, %c0_45], %121 {strides = array<i32>} : memref<64x512xf32, #tpu.memory_space<vmem>>, vector<8x512xf32>,
    %c16 = arith.constant 16 : index
    %c0_46 = arith.constant 0 : index
    %123 = vector.load %arg0[%c16, %c0_46] : memref<64x512xf32, #tpu.memory_space<vmem>>, vector<8x512xf32>
    %c0_47 = arith.constant 0 : index
    %c0_48 = arith.constant 0 : index
    %124 = vector.load %arg1[%c0_47, %c0_48] : memref<128x512xbf16, #tpu.memory_space<vmem>>, vector<128x512xbf16>
    %cst_49 = arith.constant dense<0.000000e+00> : vector<8x512xf32>
    %125 = tpu.matmul %86, %124, %cst_49 {dimension_numbers = #tpu.dot_dimension_numbers<[1], [0], [0], [1], [0, 0, 1, 1], [], []>} : vector<8x128xbf16>, vector<128x512xbf16>, vector<8x512xf32> -> vector<8x512xf32>
    %126 = arith.addf %123, %125 : vector<8x512xf32>
    %127 = vector.extract_strided_slice %126 {offsets = [0, 0], sizes = [8, 384], strides = [1, 1]} : vector<8x512xf32> to vector<8x384xf32>
    %cst_50 = arith.constant 5.000000e-01 : f32
    %128 = vector.broadcast %cst_50 : f32 to vector<8x384xf32>
    %129 = arith.mulf %128, %127 : vector<8x384xf32>
    %130 = math.tanh %129 : vector<8x384xf32>
    %cst_51 = arith.constant 5.000000e-01 : f32
    %131 = vector.broadcast %cst_51 : f32 to vector<8x384xf32>
    %132 = arith.mulf %131, %130 : vector<8x384xf32>
    %cst_52 = arith.constant 5.000000e-01 : f32
    %133 = vector.broadcast %cst_52 : f32 to vector<8x384xf32>
    %134 = arith.addf %132, %133 : vector<8x384xf32>
    %135 = vector.extract_strided_slice %134 {offsets = [0, 0], sizes = [8, 128], strides = [1, 1]} : vector<8x384xf32> to vector<8x128xf32>
    %136 = vector.extract_strided_slice %134 {offsets = [0, 128], sizes = [8, 128], strides = [1, 1]} : vector<8x384xf32> to vector<8x128xf32>
    %137 = vector.extract_strided_slice %134 {offsets = [0, 256], sizes = [8, 128], strides = [1, 1]} : vector<8x384xf32> to vector<8x128xf32>
    %138 = vector.extract_strided_slice %126 {offsets = [0, 384], sizes = [8, 128], strides = [1, 1]} : vector<8x512xf32> to vector<8x128xf32>
    %139 = math.tanh %138 : vector<8x128xf32>
    %140 = arith.mulf %136, %83 : vector<8x128xf32>
    %141 = arith.mulf %135, %139 : vector<8x128xf32>
    %142 = arith.addf %140, %141 : vector<8x128xf32>
    %143 = math.tanh %142 : vector<8x128xf32>
    %144 = arith.mulf %137, %143 : vector<8x128xf32>
    %145 = arith.truncf %144 : vector<8x128xf32> to vector<8x128xbf16>
    %cst_53 = arith.constant dense<0.000000e+00> : vector<8xf32>
    %146 = vector.multi_reduction <add>, %144, %cst_53 [1] : vector<8x128xf32> to vector<8xf32>
    %147 = vector.shape_cast %146 : vector<8xf32> to vector<8x1xf32>
    %cst_54 = arith.constant 1.280000e+02 : f32
    %148 = vector.broadcast %cst_54 : f32 to vector<8x1xf32>
    %149 = arith.divf %147, %148 : vector<8x1xf32>
    %150 = arith.mulf %144, %144 : vector<8x128xf32>
    %cst_55 = arith.constant dense<0.000000e+00> : vector<8xf32>
    %151 = vector.multi_reduction <add>, %150, %cst_55 [1] : vector<8x128xf32> to vector<8xf32>
    %152 = vector.shape_cast %151 : vector<8xf32> to vector<8x1xf32>
    %cst_56 = arith.constant 1.280000e+02 : f32
    %153 = vector.broadcast %cst_56 : f32 to vector<8x1xf32>
    %154 = arith.divf %152, %153 : vector<8x1xf32>
    %155 = arith.mulf %149, %149 : vector<8x1xf32>
    %156 = arith.subf %154, %155 : vector<8x1xf32>
    %157 = vector.broadcast %149 : vector<8x1xf32> to vector<8x128xf32>
    %158 = arith.subf %144, %157 : vector<8x128xf32>
    %cst_57 = arith.constant 9.99999974E-6 : f32
    %159 = vector.broadcast %cst_57 : f32 to vector<8x1xf32>
    %160 = arith.addf %156, %159 : vector<8x1xf32>
    %161 = math.rsqrt %160 : vector<8x1xf32>
    %162 = vector.broadcast %161 : vector<8x1xf32> to vector<8x128xf32>
    %163 = arith.mulf %158, %162 : vector<8x128xf32>
    %164 = vector.broadcast %1 : vector<1x128xf32> to vector<8x128xf32>
    %165 = arith.mulf %163, %164 : vector<8x128xf32>
    %166 = vector.broadcast %2 : vector<1x128xf32> to vector<8x128xf32>
    %167 = arith.addf %165, %166 : vector<8x128xf32>
    %cst_58 = arith.constant 5.000000e-01 : f32
    %168 = vector.broadcast %cst_58 : f32 to vector<8x128xf32>
    %169 = arith.mulf %168, %167 : vector<8x128xf32>
    %170 = math.tanh %169 : vector<8x128xf32>
    %cst_59 = arith.constant 5.000000e-01 : f32
    %171 = vector.broadcast %cst_59 : f32 to vector<8x128xf32>
    %172 = arith.mulf %171, %170 : vector<8x128xf32>
    %cst_60 = arith.constant 5.000000e-01 : f32
    %173 = vector.broadcast %cst_60 : f32 to vector<8x128xf32>
    %174 = arith.addf %172, %173 : vector<8x128xf32>
    %175 = arith.mulf %167, %174 : vector<8x128xf32>
    %176 = arith.truncf %175 : vector<8x128xf32> to vector<8x128xbf16>
    %c0_61 = arith.constant 0 : index
    %c0_62 = arith.constant 0 : index
    %177 = vector.load %arg4[%c0_61, %c0_62] : memref<128x512xbf16, #tpu.memory_space<vmem>>, vector<128x512xbf16>
    %cst_63 = arith.constant dense<0.000000e+00> : vector<8x512xf32>
    %178 = tpu.matmul %176, %177, %cst_63 {dimension_numbers = #tpu.dot_dimension_numbers<[1], [0], [0], [1], [0, 0, 1, 1], [], []>} : vector<8x128xbf16>, vector<128x512xbf16>, vector<8x512xf32> -> vector<8x512xf32>
    %179 = vector.broadcast %3 : vector<1x512xf32> to vector<8x512xf32>
    %180 = arith.addf %178, %179 : vector<8x512xf32>
    %c16_64 = arith.constant 16 : index
    %c0_65 = arith.constant 0 : index
    %181 = vector.load %arg19[%c16_64, %c0_65] : memref<64x512xf32, #tpu.memory_space<vmem>>, vector<8x512xf32>
    tpu.vector_store %arg19[%c16_64, %c0_65], %180 {strides = array<i32>} : memref<64x512xf32, #tpu.memory_space<vmem>>, vector<8x512xf32>,
    %c24 = arith.constant 24 : index
    %c0_66 = arith.constant 0 : index
    %182 = vector.load %arg0[%c24, %c0_66] : memref<64x512xf32, #tpu.memory_space<vmem>>, vector<8x512xf32>
    %c0_67 = arith.constant 0 : index
    %c0_68 = arith.constant 0 : index
    %183 = vector.load %arg1[%c0_67, %c0_68] : memref<128x512xbf16, #tpu.memory_space<vmem>>, vector<128x512xbf16>
    %cst_69 = arith.constant dense<0.000000e+00> : vector<8x512xf32>
    %184 = tpu.matmul %145, %183, %cst_69 {dimension_numbers = #tpu.dot_dimension_numbers<[1], [0], [0], [1], [0, 0, 1, 1], [], []>} : vector<8x128xbf16>, vector<128x512xbf16>, vector<8x512xf32> -> vector<8x512xf32>
    %185 = arith.addf %182, %184 : vector<8x512xf32>
    %186 = vector.extract_strided_slice %185 {offsets = [0, 0], sizes = [8, 384], strides = [1, 1]} : vector<8x512xf32> to vector<8x384xf32>
    %cst_70 = arith.constant 5.000000e-01 : f32
    %187 = vector.broadcast %cst_70 : f32 to vector<8x384xf32>
    %188 = arith.mulf %187, %186 : vector<8x384xf32>
    %189 = math.tanh %188 : vector<8x384xf32>
    %cst_71 = arith.constant 5.000000e-01 : f32
    %190 = vector.broadcast %cst_71 : f32 to vector<8x384xf32>
    %191 = arith.mulf %190, %189 : vector<8x384xf32>
    %cst_72 = arith.constant 5.000000e-01 : f32
    %192 = vector.broadcast %cst_72 : f32 to vector<8x384xf32>
    %193 = arith.addf %191, %192 : vector<8x384xf32>
    %194 = vector.extract_strided_slice %193 {offsets = [0, 0], sizes = [8, 128], strides = [1, 1]} : vector<8x384xf32> to vector<8x128xf32>
    %195 = vector.extract_strided_slice %193 {offsets = [0, 128], sizes = [8, 128], strides = [1, 1]} : vector<8x384xf32> to vector<8x128xf32>
    %196 = vector.extract_strided_slice %193 {offsets = [0, 256], sizes = [8, 128], strides = [1, 1]} : vector<8x384xf32> to vector<8x128xf32>
    %197 = vector.extract_strided_slice %185 {offsets = [0, 384], sizes = [8, 128], strides = [1, 1]} : vector<8x512xf32> to vector<8x128xf32>
    %198 = math.tanh %197 : vector<8x128xf32>
    %199 = arith.mulf %195, %142 : vector<8x128xf32>
    %200 = arith.mulf %194, %198 : vector<8x128xf32>
    %201 = arith.addf %199, %200 : vector<8x128xf32>
    %202 = math.tanh %201 : vector<8x128xf32>
    %203 = arith.mulf %196, %202 : vector<8x128xf32>
    %204 = arith.truncf %203 : vector<8x128xf32> to vector<8x128xbf16>
    %cst_73 = arith.constant dense<0.000000e+00> : vector<8xf32>
    %205 = vector.multi_reduction <add>, %203, %cst_73 [1] : vector<8x128xf32> to vector<8xf32>
    %206 = vector.shape_cast %205 : vector<8xf32> to vector<8x1xf32>
    %cst_74 = arith.constant 1.280000e+02 : f32
    %207 = vector.broadcast %cst_74 : f32 to vector<8x1xf32>
    %208 = arith.divf %206, %207 : vector<8x1xf32>
    %209 = arith.mulf %203, %203 : vector<8x128xf32>
    %cst_75 = arith.constant dense<0.000000e+00> : vector<8xf32>
    %210 = vector.multi_reduction <add>, %209, %cst_75 [1] : vector<8x128xf32> to vector<8xf32>
    %211 = vector.shape_cast %210 : vector<8xf32> to vector<8x1xf32>
    %cst_76 = arith.constant 1.280000e+02 : f32
    %212 = vector.broadcast %cst_76 : f32 to vector<8x1xf32>
    %213 = arith.divf %211, %212 : vector<8x1xf32>
    %214 = arith.mulf %208, %208 : vector<8x1xf32>
    %215 = arith.subf %213, %214 : vector<8x1xf32>
    %216 = vector.broadcast %208 : vector<8x1xf32> to vector<8x128xf32>
    %217 = arith.subf %203, %216 : vector<8x128xf32>
    %cst_77 = arith.constant 9.99999974E-6 : f32
    %218 = vector.broadcast %cst_77 : f32 to vector<8x1xf32>
    %219 = arith.addf %215, %218 : vector<8x1xf32>
    %220 = math.rsqrt %219 : vector<8x1xf32>
    %221 = vector.broadcast %220 : vector<8x1xf32> to vector<8x128xf32>
    %222 = arith.mulf %217, %221 : vector<8x128xf32>
    %223 = vector.broadcast %1 : vector<1x128xf32> to vector<8x128xf32>
    %224 = arith.mulf %222, %223 : vector<8x128xf32>
    %225 = vector.broadcast %2 : vector<1x128xf32> to vector<8x128xf32>
    %226 = arith.addf %224, %225 : vector<8x128xf32>
    %cst_78 = arith.constant 5.000000e-01 : f32
    %227 = vector.broadcast %cst_78 : f32 to vector<8x128xf32>
    %228 = arith.mulf %227, %226 : vector<8x128xf32>
    %229 = math.tanh %228 : vector<8x128xf32>
    %cst_79 = arith.constant 5.000000e-01 : f32
    %230 = vector.broadcast %cst_79 : f32 to vector<8x128xf32>
    %231 = arith.mulf %230, %229 : vector<8x128xf32>
    %cst_80 = arith.constant 5.000000e-01 : f32
    %232 = vector.broadcast %cst_80 : f32 to vector<8x128xf32>
    %233 = arith.addf %231, %232 : vector<8x128xf32>
    %234 = arith.mulf %226, %233 : vector<8x128xf32>
    %235 = arith.truncf %234 : vector<8x128xf32> to vector<8x128xbf16>
    %c0_81 = arith.constant 0 : index
    %c0_82 = arith.constant 0 : index
    %236 = vector.load %arg4[%c0_81, %c0_82] : memref<128x512xbf16, #tpu.memory_space<vmem>>, vector<128x512xbf16>
    %cst_83 = arith.constant dense<0.000000e+00> : vector<8x512xf32>
    %237 = tpu.matmul %235, %236, %cst_83 {dimension_numbers = #tpu.dot_dimension_numbers<[1], [0], [0], [1], [0, 0, 1, 1], [], []>} : vector<8x128xbf16>, vector<128x512xbf16>, vector<8x512xf32> -> vector<8x512xf32>
    %238 = vector.broadcast %3 : vector<1x512xf32> to vector<8x512xf32>
    %239 = arith.addf %237, %238 : vector<8x512xf32>
    %c24_84 = arith.constant 24 : index
    %c0_85 = arith.constant 0 : index
    %240 = vector.load %arg19[%c24_84, %c0_85] : memref<64x512xf32, #tpu.memory_space<vmem>>, vector<8x512xf32>
    tpu.vector_store %arg19[%c24_84, %c0_85], %239 {strides = array<i32>} : memref<64x512xf32, #tpu.memory_space<vmem>>, vector<8x512xf32>,
    %c32 = arith.constant 32 : index
    %c0_86 = arith.constant 0 : index
    %241 = vector.load %arg0[%c32, %c0_86] : memref<64x512xf32, #tpu.memory_space<vmem>>, vector<8x512xf32>
    %c0_87 = arith.constant 0 : index
    %c0_88 = arith.constant 0 : index
    %242 = vector.load %arg1[%c0_87, %c0_88] : memref<128x512xbf16, #tpu.memory_space<vmem>>, vector<128x512xbf16>
    %cst_89 = arith.constant dense<0.000000e+00> : vector<8x512xf32>
    %243 = tpu.matmul %204, %242, %cst_89 {dimension_numbers = #tpu.dot_dimension_numbers<[1], [0], [0], [1], [0, 0, 1, 1], [], []>} : vector<8x128xbf16>, vector<128x512xbf16>, vector<8x512xf32> -> vector<8x512xf32>
    %244 = arith.addf %241, %243 : vector<8x512xf32>
    %245 = vector.extract_strided_slice %244 {offsets = [0, 0], sizes = [8, 384], strides = [1, 1]} : vector<8x512xf32> to vector<8x384xf32>
    %cst_90 = arith.constant 5.000000e-01 : f32
    %246 = vector.broadcast %cst_90 : f32 to vector<8x384xf32>
    %247 = arith.mulf %246, %245 : vector<8x384xf32>
    %248 = math.tanh %247 : vector<8x384xf32>
    %cst_91 = arith.constant 5.000000e-01 : f32
    %249 = vector.broadcast %cst_91 : f32 to vector<8x384xf32>
    %250 = arith.mulf %249, %248 : vector<8x384xf32>
    %cst_92 = arith.constant 5.000000e-01 : f32
    %251 = vector.broadcast %cst_92 : f32 to vector<8x384xf32>
    %252 = arith.addf %250, %251 : vector<8x384xf32>
    %253 = vector.extract_strided_slice %252 {offsets = [0, 0], sizes = [8, 128], strides = [1, 1]} : vector<8x384xf32> to vector<8x128xf32>
    %254 = vector.extract_strided_slice %252 {offsets = [0, 128], sizes = [8, 128], strides = [1, 1]} : vector<8x384xf32> to vector<8x128xf32>
    %255 = vector.extract_strided_slice %252 {offsets = [0, 256], sizes = [8, 128], strides = [1, 1]} : vector<8x384xf32> to vector<8x128xf32>
    %256 = vector.extract_strided_slice %244 {offsets = [0, 384], sizes = [8, 128], strides = [1, 1]} : vector<8x512xf32> to vector<8x128xf32>
    %257 = math.tanh %256 : vector<8x128xf32>
    %258 = arith.mulf %254, %201 : vector<8x128xf32>
    %259 = arith.mulf %253, %257 : vector<8x128xf32>
    %260 = arith.addf %258, %259 : vector<8x128xf32>
    %261 = math.tanh %260 : vector<8x128xf32>
    %262 = arith.mulf %255, %261 : vector<8x128xf32>
    %263 = arith.truncf %262 : vector<8x128xf32> to vector<8x128xbf16>
    %cst_93 = arith.constant dense<0.000000e+00> : vector<8xf32>
    %264 = vector.multi_reduction <add>, %262, %cst_93 [1] : vector<8x128xf32> to vector<8xf32>
    %265 = vector.shape_cast %264 : vector<8xf32> to vector<8x1xf32>
    %cst_94 = arith.constant 1.280000e+02 : f32
    %266 = vector.broadcast %cst_94 : f32 to vector<8x1xf32>
    %267 = arith.divf %265, %266 : vector<8x1xf32>
    %268 = arith.mulf %262, %262 : vector<8x128xf32>
    %cst_95 = arith.constant dense<0.000000e+00> : vector<8xf32>
    %269 = vector.multi_reduction <add>, %268, %cst_95 [1] : vector<8x128xf32> to vector<8xf32>
    %270 = vector.shape_cast %269 : vector<8xf32> to vector<8x1xf32>
    %cst_96 = arith.constant 1.280000e+02 : f32
    %271 = vector.broadcast %cst_96 : f32 to vector<8x1xf32>
    %272 = arith.divf %270, %271 : vector<8x1xf32>
    %273 = arith.mulf %267, %267 : vector<8x1xf32>
    %274 = arith.subf %272, %273 : vector<8x1xf32>
    %275 = vector.broadcast %267 : vector<8x1xf32> to vector<8x128xf32>
    %276 = arith.subf %262, %275 : vector<8x128xf32>
    %cst_97 = arith.constant 9.99999974E-6 : f32
    %277 = vector.broadcast %cst_97 : f32 to vector<8x1xf32>
    %278 = arith.addf %274, %277 : vector<8x1xf32>
    %279 = math.rsqrt %278 : vector<8x1xf32>
    %280 = vector.broadcast %279 : vector<8x1xf32> to vector<8x128xf32>
    %281 = arith.mulf %276, %280 : vector<8x128xf32>
    %282 = vector.broadcast %1 : vector<1x128xf32> to vector<8x128xf32>
    %283 = arith.mulf %281, %282 : vector<8x128xf32>
    %284 = vector.broadcast %2 : vector<1x128xf32> to vector<8x128xf32>
    %285 = arith.addf %283, %284 : vector<8x128xf32>
    %cst_98 = arith.constant 5.000000e-01 : f32
    %286 = vector.broadcast %cst_98 : f32 to vector<8x128xf32>
    %287 = arith.mulf %286, %285 : vector<8x128xf32>
    %288 = math.tanh %287 : vector<8x128xf32>
    %cst_99 = arith.constant 5.000000e-01 : f32
    %289 = vector.broadcast %cst_99 : f32 to vector<8x128xf32>
    %290 = arith.mulf %289, %288 : vector<8x128xf32>
    %cst_100 = arith.constant 5.000000e-01 : f32
    %291 = vector.broadcast %cst_100 : f32 to vector<8x128xf32>
    %292 = arith.addf %290, %291 : vector<8x128xf32>
    %293 = arith.mulf %285, %292 : vector<8x128xf32>
    %294 = arith.truncf %293 : vector<8x128xf32> to vector<8x128xbf16>
    %c0_101 = arith.constant 0 : index
    %c0_102 = arith.constant 0 : index
    %295 = vector.load %arg4[%c0_101, %c0_102] : memref<128x512xbf16, #tpu.memory_space<vmem>>, vector<128x512xbf16>
    %cst_103 = arith.constant dense<0.000000e+00> : vector<8x512xf32>
    %296 = tpu.matmul %294, %295, %cst_103 {dimension_numbers = #tpu.dot_dimension_numbers<[1], [0], [0], [1], [0, 0, 1, 1], [], []>} : vector<8x128xbf16>, vector<128x512xbf16>, vector<8x512xf32> -> vector<8x512xf32>
    %297 = vector.broadcast %3 : vector<1x512xf32> to vector<8x512xf32>
    %298 = arith.addf %296, %297 : vector<8x512xf32>
    %c32_104 = arith.constant 32 : index
    %c0_105 = arith.constant 0 : index
    %299 = vector.load %arg19[%c32_104, %c0_105] : memref<64x512xf32, #tpu.memory_space<vmem>>, vector<8x512xf32>
    tpu.vector_store %arg19[%c32_104, %c0_105], %298 {strides = array<i32>} : memref<64x512xf32, #tpu.memory_space<vmem>>, vector<8x512xf32>,
    %c40 = arith.constant 40 : index
    %c0_106 = arith.constant 0 : index
    %300 = vector.load %arg0[%c40, %c0_106] : memref<64x512xf32, #tpu.memory_space<vmem>>, vector<8x512xf32>
    %c0_107 = arith.constant 0 : index
    %c0_108 = arith.constant 0 : index
    %301 = vector.load %arg1[%c0_107, %c0_108] : memref<128x512xbf16, #tpu.memory_space<vmem>>, vector<128x512xbf16>
    %cst_109 = arith.constant dense<0.000000e+00> : vector<8x512xf32>
    %302 = tpu.matmul %263, %301, %cst_109 {dimension_numbers = #tpu.dot_dimension_numbers<[1], [0], [0], [1], [0, 0, 1, 1], [], []>} : vector<8x128xbf16>, vector<128x512xbf16>, vector<8x512xf32> -> vector<8x512xf32>
    %303 = arith.addf %300, %302 : vector<8x512xf32>
    %304 = vector.extract_strided_slice %303 {offsets = [0, 0], sizes = [8, 384], strides = [1, 1]} : vector<8x512xf32> to vector<8x384xf32>
    %cst_110 = arith.constant 5.000000e-01 : f32
    %305 = vector.broadcast %cst_110 : f32 to vector<8x384xf32>
    %306 = arith.mulf %305, %304 : vector<8x384xf32>
    %307 = math.tanh %306 : vector<8x384xf32>
    %cst_111 = arith.constant 5.000000e-01 : f32
    %308 = vector.broadcast %cst_111 : f32 to vector<8x384xf32>
    %309 = arith.mulf %308, %307 : vector<8x384xf32>
    %cst_112 = arith.constant 5.000000e-01 : f32
    %310 = vector.broadcast %cst_112 : f32 to vector<8x384xf32>
    %311 = arith.addf %309, %310 : vector<8x384xf32>
    %312 = vector.extract_strided_slice %311 {offsets = [0, 0], sizes = [8, 128], strides = [1, 1]} : vector<8x384xf32> to vector<8x128xf32>
    %313 = vector.extract_strided_slice %311 {offsets = [0, 128], sizes = [8, 128], strides = [1, 1]} : vector<8x384xf32> to vector<8x128xf32>
    %314 = vector.extract_strided_slice %311 {offsets = [0, 256], sizes = [8, 128], strides = [1, 1]} : vector<8x384xf32> to vector<8x128xf32>
    %315 = vector.extract_strided_slice %303 {offsets = [0, 384], sizes = [8, 128], strides = [1, 1]} : vector<8x512xf32> to vector<8x128xf32>
    %316 = math.tanh %315 : vector<8x128xf32>
    %317 = arith.mulf %313, %260 : vector<8x128xf32>
    %318 = arith.mulf %312, %316 : vector<8x128xf32>
    %319 = arith.addf %317, %318 : vector<8x128xf32>
    %320 = math.tanh %319 : vector<8x128xf32>
    %321 = arith.mulf %314, %320 : vector<8x128xf32>
    %322 = arith.truncf %321 : vector<8x128xf32> to vector<8x128xbf16>
    %cst_113 = arith.constant dense<0.000000e+00> : vector<8xf32>
    %323 = vector.multi_reduction <add>, %321, %cst_113 [1] : vector<8x128xf32> to vector<8xf32>
    %324 = vector.shape_cast %323 : vector<8xf32> to vector<8x1xf32>
    %cst_114 = arith.constant 1.280000e+02 : f32
    %325 = vector.broadcast %cst_114 : f32 to vector<8x1xf32>
    %326 = arith.divf %324, %325 : vector<8x1xf32>
    %327 = arith.mulf %321, %321 : vector<8x128xf32>
    %cst_115 = arith.constant dense<0.000000e+00> : vector<8xf32>
    %328 = vector.multi_reduction <add>, %327, %cst_115 [1] : vector<8x128xf32> to vector<8xf32>
    %329 = vector.shape_cast %328 : vector<8xf32> to vector<8x1xf32>
    %cst_116 = arith.constant 1.280000e+02 : f32
    %330 = vector.broadcast %cst_116 : f32 to vector<8x1xf32>
    %331 = arith.divf %329, %330 : vector<8x1xf32>
    %332 = arith.mulf %326, %326 : vector<8x1xf32>
    %333 = arith.subf %331, %332 : vector<8x1xf32>
    %334 = vector.broadcast %326 : vector<8x1xf32> to vector<8x128xf32>
    %335 = arith.subf %321, %334 : vector<8x128xf32>
    %cst_117 = arith.constant 9.99999974E-6 : f32
    %336 = vector.broadcast %cst_117 : f32 to vector<8x1xf32>
    %337 = arith.addf %333, %336 : vector<8x1xf32>
    %338 = math.rsqrt %337 : vector<8x1xf32>
    %339 = vector.broadcast %338 : vector<8x1xf32> to vector<8x128xf32>
    %340 = arith.mulf %335, %339 : vector<8x128xf32>
    %341 = vector.broadcast %1 : vector<1x128xf32> to vector<8x128xf32>
    %342 = arith.mulf %340, %341 : vector<8x128xf32>
    %343 = vector.broadcast %2 : vector<1x128xf32> to vector<8x128xf32>
    %344 = arith.addf %342, %343 : vector<8x128xf32>
    %cst_118 = arith.constant 5.000000e-01 : f32
    %345 = vector.broadcast %cst_118 : f32 to vector<8x128xf32>
    %346 = arith.mulf %345, %344 : vector<8x128xf32>
    %347 = math.tanh %346 : vector<8x128xf32>
    %cst_119 = arith.constant 5.000000e-01 : f32
    %348 = vector.broadcast %cst_119 : f32 to vector<8x128xf32>
    %349 = arith.mulf %348, %347 : vector<8x128xf32>
    %cst_120 = arith.constant 5.000000e-01 : f32
    %350 = vector.broadcast %cst_120 : f32 to vector<8x128xf32>
    %351 = arith.addf %349, %350 : vector<8x128xf32>
    %352 = arith.mulf %344, %351 : vector<8x128xf32>
    %353 = arith.truncf %352 : vector<8x128xf32> to vector<8x128xbf16>
    %c0_121 = arith.constant 0 : index
    %c0_122 = arith.constant 0 : index
    %354 = vector.load %arg4[%c0_121, %c0_122] : memref<128x512xbf16, #tpu.memory_space<vmem>>, vector<128x512xbf16>
    %cst_123 = arith.constant dense<0.000000e+00> : vector<8x512xf32>
    %355 = tpu.matmul %353, %354, %cst_123 {dimension_numbers = #tpu.dot_dimension_numbers<[1], [0], [0], [1], [0, 0, 1, 1], [], []>} : vector<8x128xbf16>, vector<128x512xbf16>, vector<8x512xf32> -> vector<8x512xf32>
    %356 = vector.broadcast %3 : vector<1x512xf32> to vector<8x512xf32>
    %357 = arith.addf %355, %356 : vector<8x512xf32>
    %c40_124 = arith.constant 40 : index
    %c0_125 = arith.constant 0 : index
    %358 = vector.load %arg19[%c40_124, %c0_125] : memref<64x512xf32, #tpu.memory_space<vmem>>, vector<8x512xf32>
    tpu.vector_store %arg19[%c40_124, %c0_125], %357 {strides = array<i32>} : memref<64x512xf32, #tpu.memory_space<vmem>>, vector<8x512xf32>,
    %c48 = arith.constant 48 : index
    %c0_126 = arith.constant 0 : index
    %359 = vector.load %arg0[%c48, %c0_126] : memref<64x512xf32, #tpu.memory_space<vmem>>, vector<8x512xf32>
    %c0_127 = arith.constant 0 : index
    %c0_128 = arith.constant 0 : index
    %360 = vector.load %arg1[%c0_127, %c0_128] : memref<128x512xbf16, #tpu.memory_space<vmem>>, vector<128x512xbf16>
    %cst_129 = arith.constant dense<0.000000e+00> : vector<8x512xf32>
    %361 = tpu.matmul %322, %360, %cst_129 {dimension_numbers = #tpu.dot_dimension_numbers<[1], [0], [0], [1], [0, 0, 1, 1], [], []>} : vector<8x128xbf16>, vector<128x512xbf16>, vector<8x512xf32> -> vector<8x512xf32>
    %362 = arith.addf %359, %361 : vector<8x512xf32>
    %363 = vector.extract_strided_slice %362 {offsets = [0, 0], sizes = [8, 384], strides = [1, 1]} : vector<8x512xf32> to vector<8x384xf32>
    %cst_130 = arith.constant 5.000000e-01 : f32
    %364 = vector.broadcast %cst_130 : f32 to vector<8x384xf32>
    %365 = arith.mulf %364, %363 : vector<8x384xf32>
    %366 = math.tanh %365 : vector<8x384xf32>
    %cst_131 = arith.constant 5.000000e-01 : f32
    %367 = vector.broadcast %cst_131 : f32 to vector<8x384xf32>
    %368 = arith.mulf %367, %366 : vector<8x384xf32>
    %cst_132 = arith.constant 5.000000e-01 : f32
    %369 = vector.broadcast %cst_132 : f32 to vector<8x384xf32>
    %370 = arith.addf %368, %369 : vector<8x384xf32>
    %371 = vector.extract_strided_slice %370 {offsets = [0, 0], sizes = [8, 128], strides = [1, 1]} : vector<8x384xf32> to vector<8x128xf32>
    %372 = vector.extract_strided_slice %370 {offsets = [0, 128], sizes = [8, 128], strides = [1, 1]} : vector<8x384xf32> to vector<8x128xf32>
    %373 = vector.extract_strided_slice %370 {offsets = [0, 256], sizes = [8, 128], strides = [1, 1]} : vector<8x384xf32> to vector<8x128xf32>
    %374 = vector.extract_strided_slice %362 {offsets = [0, 384], sizes = [8, 128], strides = [1, 1]} : vector<8x512xf32> to vector<8x128xf32>
    %375 = math.tanh %374 : vector<8x128xf32>
    %376 = arith.mulf %372, %319 : vector<8x128xf32>
    %377 = arith.mulf %371, %375 : vector<8x128xf32>
    %378 = arith.addf %376, %377 : vector<8x128xf32>
    %379 = math.tanh %378 : vector<8x128xf32>
    %380 = arith.mulf %373, %379 : vector<8x128xf32>
    %381 = arith.truncf %380 : vector<8x128xf32> to vector<8x128xbf16>
    %cst_133 = arith.constant dense<0.000000e+00> : vector<8xf32>
    %382 = vector.multi_reduction <add>, %380, %cst_133 [1] : vector<8x128xf32> to vector<8xf32>
    %383 = vector.shape_cast %382 : vector<8xf32> to vector<8x1xf32>
    %cst_134 = arith.constant 1.280000e+02 : f32
    %384 = vector.broadcast %cst_134 : f32 to vector<8x1xf32>
    %385 = arith.divf %383, %384 : vector<8x1xf32>
    %386 = arith.mulf %380, %380 : vector<8x128xf32>
    %cst_135 = arith.constant dense<0.000000e+00> : vector<8xf32>
    %387 = vector.multi_reduction <add>, %386, %cst_135 [1] : vector<8x128xf32> to vector<8xf32>
    %388 = vector.shape_cast %387 : vector<8xf32> to vector<8x1xf32>
    %cst_136 = arith.constant 1.280000e+02 : f32
    %389 = vector.broadcast %cst_136 : f32 to vector<8x1xf32>
    %390 = arith.divf %388, %389 : vector<8x1xf32>
    %391 = arith.mulf %385, %385 : vector<8x1xf32>
    %392 = arith.subf %390, %391 : vector<8x1xf32>
    %393 = vector.broadcast %385 : vector<8x1xf32> to vector<8x128xf32>
    %394 = arith.subf %380, %393 : vector<8x128xf32>
    %cst_137 = arith.constant 9.99999974E-6 : f32
    %395 = vector.broadcast %cst_137 : f32 to vector<8x1xf32>
    %396 = arith.addf %392, %395 : vector<8x1xf32>
    %397 = math.rsqrt %396 : vector<8x1xf32>
    %398 = vector.broadcast %397 : vector<8x1xf32> to vector<8x128xf32>
    %399 = arith.mulf %394, %398 : vector<8x128xf32>
    %400 = vector.broadcast %1 : vector<1x128xf32> to vector<8x128xf32>
    %401 = arith.mulf %399, %400 : vector<8x128xf32>
    %402 = vector.broadcast %2 : vector<1x128xf32> to vector<8x128xf32>
    %403 = arith.addf %401, %402 : vector<8x128xf32>
    %cst_138 = arith.constant 5.000000e-01 : f32
    %404 = vector.broadcast %cst_138 : f32 to vector<8x128xf32>
    %405 = arith.mulf %404, %403 : vector<8x128xf32>
    %406 = math.tanh %405 : vector<8x128xf32>
    %cst_139 = arith.constant 5.000000e-01 : f32
    %407 = vector.broadcast %cst_139 : f32 to vector<8x128xf32>
    %408 = arith.mulf %407, %406 : vector<8x128xf32>
    %cst_140 = arith.constant 5.000000e-01 : f32
    %409 = vector.broadcast %cst_140 : f32 to vector<8x128xf32>
    %410 = arith.addf %408, %409 : vector<8x128xf32>
    %411 = arith.mulf %403, %410 : vector<8x128xf32>
    %412 = arith.truncf %411 : vector<8x128xf32> to vector<8x128xbf16>
    %c0_141 = arith.constant 0 : index
    %c0_142 = arith.constant 0 : index
    %413 = vector.load %arg4[%c0_141, %c0_142] : memref<128x512xbf16, #tpu.memory_space<vmem>>, vector<128x512xbf16>
    %cst_143 = arith.constant dense<0.000000e+00> : vector<8x512xf32>
    %414 = tpu.matmul %412, %413, %cst_143 {dimension_numbers = #tpu.dot_dimension_numbers<[1], [0], [0], [1], [0, 0, 1, 1], [], []>} : vector<8x128xbf16>, vector<128x512xbf16>, vector<8x512xf32> -> vector<8x512xf32>
    %415 = vector.broadcast %3 : vector<1x512xf32> to vector<8x512xf32>
    %416 = arith.addf %414, %415 : vector<8x512xf32>
    %c48_144 = arith.constant 48 : index
    %c0_145 = arith.constant 0 : index
    %417 = vector.load %arg19[%c48_144, %c0_145] : memref<64x512xf32, #tpu.memory_space<vmem>>, vector<8x512xf32>
    tpu.vector_store %arg19[%c48_144, %c0_145], %416 {strides = array<i32>} : memref<64x512xf32, #tpu.memory_space<vmem>>, vector<8x512xf32>,
    %c56 = arith.constant 56 : index
    %c0_146 = arith.constant 0 : index
    %418 = vector.load %arg0[%c56, %c0_146] : memref<64x512xf32, #tpu.memory_space<vmem>>, vector<8x512xf32>
    %c0_147 = arith.constant 0 : index
    %c0_148 = arith.constant 0 : index
    %419 = vector.load %arg1[%c0_147, %c0_148] : memref<128x512xbf16, #tpu.memory_space<vmem>>, vector<128x512xbf16>
    %cst_149 = arith.constant dense<0.000000e+00> : vector<8x512xf32>
    %420 = tpu.matmul %381, %419, %cst_149 {dimension_numbers = #tpu.dot_dimension_numbers<[1], [0], [0], [1], [0, 0, 1, 1], [], []>} : vector<8x128xbf16>, vector<128x512xbf16>, vector<8x512xf32> -> vector<8x512xf32>
    %421 = arith.addf %418, %420 : vector<8x512xf32>
    %422 = vector.extract_strided_slice %421 {offsets = [0, 0], sizes = [8, 384], strides = [1, 1]} : vector<8x512xf32> to vector<8x384xf32>
    %cst_150 = arith.constant 5.000000e-01 : f32
    %423 = vector.broadcast %cst_150 : f32 to vector<8x384xf32>
    %424 = arith.mulf %423, %422 : vector<8x384xf32>
    %425 = math.tanh %424 : vector<8x384xf32>
    %cst_151 = arith.constant 5.000000e-01 : f32
    %426 = vector.broadcast %cst_151 : f32 to vector<8x384xf32>
    %427 = arith.mulf %426, %425 : vector<8x384xf32>
    %cst_152 = arith.constant 5.000000e-01 : f32
    %428 = vector.broadcast %cst_152 : f32 to vector<8x384xf32>
    %429 = arith.addf %427, %428 : vector<8x384xf32>
    %430 = vector.extract_strided_slice %429 {offsets = [0, 0], sizes = [8, 128], strides = [1, 1]} : vector<8x384xf32> to vector<8x128xf32>
    %431 = vector.extract_strided_slice %429 {offsets = [0, 128], sizes = [8, 128], strides = [1, 1]} : vector<8x384xf32> to vector<8x128xf32>
    %432 = vector.extract_strided_slice %429 {offsets = [0, 256], sizes = [8, 128], strides = [1, 1]} : vector<8x384xf32> to vector<8x128xf32>
    %433 = vector.extract_strided_slice %421 {offsets = [0, 384], sizes = [8, 128], strides = [1, 1]} : vector<8x512xf32> to vector<8x128xf32>
    %434 = math.tanh %433 : vector<8x128xf32>
    %435 = arith.mulf %431, %378 : vector<8x128xf32>
    %436 = arith.mulf %430, %434 : vector<8x128xf32>
    %437 = arith.addf %435, %436 : vector<8x128xf32>
    %438 = math.tanh %437 : vector<8x128xf32>
    %439 = arith.mulf %432, %438 : vector<8x128xf32>
    %cst_153 = arith.constant dense<0.000000e+00> : vector<8xf32>
    %440 = vector.multi_reduction <add>, %439, %cst_153 [1] : vector<8x128xf32> to vector<8xf32>
    %441 = vector.shape_cast %440 : vector<8xf32> to vector<8x1xf32>
    %cst_154 = arith.constant 1.280000e+02 : f32
    %442 = vector.broadcast %cst_154 : f32 to vector<8x1xf32>
    %443 = arith.divf %441, %442 : vector<8x1xf32>
    %444 = arith.mulf %439, %439 : vector<8x128xf32>
    %cst_155 = arith.constant dense<0.000000e+00> : vector<8xf32>
    %445 = vector.multi_reduction <add>, %444, %cst_155 [1] : vector<8x128xf32> to vector<8xf32>
    %446 = vector.shape_cast %445 : vector<8xf32> to vector<8x1xf32>
    %cst_156 = arith.constant 1.280000e+02 : f32
    %447 = vector.broadcast %cst_156 : f32 to vector<8x1xf32>
    %448 = arith.divf %446, %447 : vector<8x1xf32>
    %449 = arith.mulf %443, %443 : vector<8x1xf32>
    %450 = arith.subf %448, %449 : vector<8x1xf32>
    %451 = vector.broadcast %443 : vector<8x1xf32> to vector<8x128xf32>
    %452 = arith.subf %439, %451 : vector<8x128xf32>
    %cst_157 = arith.constant 9.99999974E-6 : f32
    %453 = vector.broadcast %cst_157 : f32 to vector<8x1xf32>
    %454 = arith.addf %450, %453 : vector<8x1xf32>
    %455 = math.rsqrt %454 : vector<8x1xf32>
    %456 = vector.broadcast %455 : vector<8x1xf32> to vector<8x128xf32>
    %457 = arith.mulf %452, %456 : vector<8x128xf32>
    %458 = vector.broadcast %1 : vector<1x128xf32> to vector<8x128xf32>
    %459 = arith.mulf %457, %458 : vector<8x128xf32>
    %460 = vector.broadcast %2 : vector<1x128xf32> to vector<8x128xf32>
    %461 = arith.addf %459, %460 : vector<8x128xf32>
    %cst_158 = arith.constant 5.000000e-01 : f32
    %462 = vector.broadcast %cst_158 : f32 to vector<8x128xf32>
    %463 = arith.mulf %462, %461 : vector<8x128xf32>
    %464 = math.tanh %463 : vector<8x128xf32>
    %cst_159 = arith.constant 5.000000e-01 : f32
    %465 = vector.broadcast %cst_159 : f32 to vector<8x128xf32>
    %466 = arith.mulf %465, %464 : vector<8x128xf32>
    %cst_160 = arith.constant 5.000000e-01 : f32
    %467 = vector.broadcast %cst_160 : f32 to vector<8x128xf32>
    %468 = arith.addf %466, %467 : vector<8x128xf32>
    %469 = arith.mulf %461, %468 : vector<8x128xf32>
    %470 = arith.truncf %469 : vector<8x128xf32> to vector<8x128xbf16>
    %c0_161 = arith.constant 0 : index
    %c0_162 = arith.constant 0 : index
    %471 = vector.load %arg4[%c0_161, %c0_162] : memref<128x512xbf16, #tpu.memory_space<vmem>>, vector<128x512xbf16>
    %cst_163 = arith.constant dense<0.000000e+00> : vector<8x512xf32>
    %472 = tpu.matmul %470, %471, %cst_163 {dimension_numbers = #tpu.dot_dimension_numbers<[1], [0], [0], [1], [0, 0, 1, 1], [], []>} : vector<8x128xbf16>, vector<128x512xbf16>, vector<8x512xf32> -> vector<8x512xf32>
    %473 = vector.broadcast %3 : vector<1x512xf32> to vector<8x512xf32>
    %474 = arith.addf %472, %473 : vector<8x512xf32>
    %c56_164 = arith.constant 56 : index
    %c0_165 = arith.constant 0 : index
    %475 = vector.load %arg19[%c56_164, %c0_165] : memref<64x512xf32, #tpu.memory_space<vmem>>, vector<8x512xf32>
    tpu.vector_store %arg19[%c56_164, %c0_165], %474 {strides = array<i32>} : memref<64x512xf32, #tpu.memory_space<vmem>>, vector<8x512xf32>,
    %c0_166 = arith.constant 0 : index
    %c0_167 = arith.constant 0 : index
    %476 = vector.load %arg7[%c0_166, %c0_167] : memref<1x128xf32, #tpu.memory_space<vmem>>, vector<1x128xf32>
    %c0_168 = arith.constant 0 : index
    %c0_169 = arith.constant 0 : index
    %477 = vector.load %arg8[%c0_168, %c0_169] : memref<1x128xf32, #tpu.memory_space<vmem>>, vector<1x128xf32>
    %c0_170 = arith.constant 0 : index
    %c0_171 = arith.constant 0 : index
    %478 = vector.load %arg10[%c0_170, %c0_171] : memref<1x512xf32, #tpu.memory_space<vmem>>, vector<1x512xf32>
    %479 = arith.truncf %439 : vector<8x128xf32> to vector<8x128xbf16>
    %c0_172 = arith.constant 0 : index
    %c0_173 = arith.constant 0 : index
    %480 = vector.load %arg19[%c0_172, %c0_173] : memref<64x512xf32, #tpu.memory_space<vmem>>, vector<8x512xf32>
    %c0_174 = arith.constant 0 : index
    %c0_175 = arith.constant 0 : index
    %481 = vector.load %arg6[%c0_174, %c0_175] : memref<128x512xbf16, #tpu.memory_space<vmem>>, vector<128x512xbf16>
    %cst_176 = arith.constant dense<0.000000e+00> : vector<8x512xf32>
    %482 = tpu.matmul %479, %481, %cst_176 {dimension_numbers = #tpu.dot_dimension_numbers<[1], [0], [0], [1], [0, 0, 1, 1], [], []>} : vector<8x128xbf16>, vector<128x512xbf16>, vector<8x512xf32> -> vector<8x512xf32>
    %483 = arith.addf %480, %482 : vector<8x512xf32>
    %484 = vector.extract_strided_slice %483 {offsets = [0, 0], sizes = [8, 384], strides = [1, 1]} : vector<8x512xf32> to vector<8x384xf32>
    %cst_177 = arith.constant 5.000000e-01 : f32
    %485 = vector.broadcast %cst_177 : f32 to vector<8x384xf32>
    %486 = arith.mulf %485, %484 : vector<8x384xf32>
    %487 = math.tanh %486 : vector<8x384xf32>
    %cst_178 = arith.constant 5.000000e-01 : f32
    %488 = vector.broadcast %cst_178 : f32 to vector<8x384xf32>
    %489 = arith.mulf %488, %487 : vector<8x384xf32>
    %cst_179 = arith.constant 5.000000e-01 : f32
    %490 = vector.broadcast %cst_179 : f32 to vector<8x384xf32>
    %491 = arith.addf %489, %490 : vector<8x384xf32>
    %492 = vector.extract_strided_slice %491 {offsets = [0, 0], sizes = [8, 128], strides = [1, 1]} : vector<8x384xf32> to vector<8x128xf32>
    %493 = vector.extract_strided_slice %491 {offsets = [0, 128], sizes = [8, 128], strides = [1, 1]} : vector<8x384xf32> to vector<8x128xf32>
    %494 = vector.extract_strided_slice %491 {offsets = [0, 256], sizes = [8, 128], strides = [1, 1]} : vector<8x384xf32> to vector<8x128xf32>
    %495 = vector.extract_strided_slice %483 {offsets = [0, 384], sizes = [8, 128], strides = [1, 1]} : vector<8x512xf32> to vector<8x128xf32>
    %496 = math.tanh %495 : vector<8x128xf32>
    %497 = arith.mulf %493, %437 : vector<8x128xf32>
    %498 = arith.mulf %492, %496 : vector<8x128xf32>
    %499 = arith.addf %497, %498 : vector<8x128xf32>
    %500 = math.tanh %499 : vector<8x128xf32>
    %501 = arith.mulf %494, %500 : vector<8x128xf32>
    %502 = arith.truncf %501 : vector<8x128xf32> to vector<8x128xbf16>
    %cst_180 = arith.constant dense<0.000000e+00> : vector<8xf32>
    %503 = vector.multi_reduction <add>, %501, %cst_180 [1] : vector<8x128xf32> to vector<8xf32>
    %504 = vector.shape_cast %503 : vector<8xf32> to vector<8x1xf32>
    %cst_181 = arith.constant 1.280000e+02 : f32
    %505 = vector.broadcast %cst_181 : f32 to vector<8x1xf32>
    %506 = arith.divf %504, %505 : vector<8x1xf32>
    %507 = arith.mulf %501, %501 : vector<8x128xf32>
    %cst_182 = arith.constant dense<0.000000e+00> : vector<8xf32>
    %508 = vector.multi_reduction <add>, %507, %cst_182 [1] : vector<8x128xf32> to vector<8xf32>
    %509 = vector.shape_cast %508 : vector<8xf32> to vector<8x1xf32>
    %cst_183 = arith.constant 1.280000e+02 : f32
    %510 = vector.broadcast %cst_183 : f32 to vector<8x1xf32>
    %511 = arith.divf %509, %510 : vector<8x1xf32>
    %512 = arith.mulf %506, %506 : vector<8x1xf32>
    %513 = arith.subf %511, %512 : vector<8x1xf32>
    %514 = vector.broadcast %506 : vector<8x1xf32> to vector<8x128xf32>
    %515 = arith.subf %501, %514 : vector<8x128xf32>
    %cst_184 = arith.constant 9.99999974E-6 : f32
    %516 = vector.broadcast %cst_184 : f32 to vector<8x1xf32>
    %517 = arith.addf %513, %516 : vector<8x1xf32>
    %518 = math.rsqrt %517 : vector<8x1xf32>
    %519 = vector.broadcast %518 : vector<8x1xf32> to vector<8x128xf32>
    %520 = arith.mulf %515, %519 : vector<8x128xf32>
    %521 = vector.broadcast %476 : vector<1x128xf32> to vector<8x128xf32>
    %522 = arith.mulf %520, %521 : vector<8x128xf32>
    %523 = vector.broadcast %477 : vector<1x128xf32> to vector<8x128xf32>
    %524 = arith.addf %522, %523 : vector<8x128xf32>
    %cst_185 = arith.constant 5.000000e-01 : f32
    %525 = vector.broadcast %cst_185 : f32 to vector<8x128xf32>
    %526 = arith.mulf %525, %524 : vector<8x128xf32>
    %527 = math.tanh %526 : vector<8x128xf32>
    %cst_186 = arith.constant 5.000000e-01 : f32
    %528 = vector.broadcast %cst_186 : f32 to vector<8x128xf32>
    %529 = arith.mulf %528, %527 : vector<8x128xf32>
    %cst_187 = arith.constant 5.000000e-01 : f32
    %530 = vector.broadcast %cst_187 : f32 to vector<8x128xf32>
    %531 = arith.addf %529, %530 : vector<8x128xf32>
    %532 = arith.mulf %524, %531 : vector<8x128xf32>
    %533 = arith.truncf %532 : vector<8x128xf32> to vector<8x128xbf16>
    %c0_188 = arith.constant 0 : index
    %c0_189 = arith.constant 0 : index
    %534 = vector.load %arg9[%c0_188, %c0_189] : memref<128x512xbf16, #tpu.memory_space<vmem>>, vector<128x512xbf16>
    %cst_190 = arith.constant dense<0.000000e+00> : vector<8x512xf32>
    %535 = tpu.matmul %533, %534, %cst_190 {dimension_numbers = #tpu.dot_dimension_numbers<[1], [0], [0], [1], [0, 0, 1, 1], [], []>} : vector<8x128xbf16>, vector<128x512xbf16>, vector<8x512xf32> -> vector<8x512xf32>
    %536 = vector.broadcast %478 : vector<1x512xf32> to vector<8x512xf32>
    %537 = arith.addf %535, %536 : vector<8x512xf32>
    %c0_191 = arith.constant 0 : index
    %c0_192 = arith.constant 0 : index
    %538 = vector.load %arg20[%c0_191, %c0_192] : memref<64x512xf32, #tpu.memory_space<vmem>>, vector<8x512xf32>
    tpu.vector_store %arg20[%c0_191, %c0_192], %537 {strides = array<i32>} : memref<64x512xf32, #tpu.memory_space<vmem>>, vector<8x512xf32>,
    %c8_193 = arith.constant 8 : index
    %c0_194 = arith.constant 0 : index
    %539 = vector.load %arg19[%c8_193, %c0_194] : memref<64x512xf32, #tpu.memory_space<vmem>>, vector<8x512xf32>
    %c0_195 = arith.constant 0 : index
    %c0_196 = arith.constant 0 : index
    %540 = vector.load %arg6[%c0_195, %c0_196] : memref<128x512xbf16, #tpu.memory_space<vmem>>, vector<128x512xbf16>
    %cst_197 = arith.constant dense<0.000000e+00> : vector<8x512xf32>
    %541 = tpu.matmul %502, %540, %cst_197 {dimension_numbers = #tpu.dot_dimension_numbers<[1], [0], [0], [1], [0, 0, 1, 1], [], []>} : vector<8x128xbf16>, vector<128x512xbf16>, vector<8x512xf32> -> vector<8x512xf32>
    %542 = arith.addf %539, %541 : vector<8x512xf32>
    %543 = vector.extract_strided_slice %542 {offsets = [0, 0], sizes = [8, 384], strides = [1, 1]} : vector<8x512xf32> to vector<8x384xf32>
    %cst_198 = arith.constant 5.000000e-01 : f32
    %544 = vector.broadcast %cst_198 : f32 to vector<8x384xf32>
    %545 = arith.mulf %544, %543 : vector<8x384xf32>
    %546 = math.tanh %545 : vector<8x384xf32>
    %cst_199 = arith.constant 5.000000e-01 : f32
    %547 = vector.broadcast %cst_199 : f32 to vector<8x384xf32>
    %548 = arith.mulf %547, %546 : vector<8x384xf32>
    %cst_200 = arith.constant 5.000000e-01 : f32
    %549 = vector.broadcast %cst_200 : f32 to vector<8x384xf32>
    %550 = arith.addf %548, %549 : vector<8x384xf32>
    %551 = vector.extract_strided_slice %550 {offsets = [0, 0], sizes = [8, 128], strides = [1, 1]} : vector<8x384xf32> to vector<8x128xf32>
    %552 = vector.extract_strided_slice %550 {offsets = [0, 128], sizes = [8, 128], strides = [1, 1]} : vector<8x384xf32> to vector<8x128xf32>
    %553 = vector.extract_strided_slice %550 {offsets = [0, 256], sizes = [8, 128], strides = [1, 1]} : vector<8x384xf32> to vector<8x128xf32>
    %554 = vector.extract_strided_slice %542 {offsets = [0, 384], sizes = [8, 128], strides = [1, 1]} : vector<8x512xf32> to vector<8x128xf32>
    %555 = math.tanh %554 : vector<8x128xf32>
    %556 = arith.mulf %552, %499 : vector<8x128xf32>
    %557 = arith.mulf %551, %555 : vector<8x128xf32>
    %558 = arith.addf %556, %557 : vector<8x128xf32>
    %559 = math.tanh %558 : vector<8x128xf32>
    %560 = arith.mulf %553, %559 : vector<8x128xf32>
    %561 = arith.truncf %560 : vector<8x128xf32> to vector<8x128xbf16>
    %cst_201 = arith.constant dense<0.000000e+00> : vector<8xf32>
    %562 = vector.multi_reduction <add>, %560, %cst_201 [1] : vector<8x128xf32> to vector<8xf32>
    %563 = vector.shape_cast %562 : vector<8xf32> to vector<8x1xf32>
    %cst_202 = arith.constant 1.280000e+02 : f32
    %564 = vector.broadcast %cst_202 : f32 to vector<8x1xf32>
    %565 = arith.divf %563, %564 : vector<8x1xf32>
    %566 = arith.mulf %560, %560 : vector<8x128xf32>
    %cst_203 = arith.constant dense<0.000000e+00> : vector<8xf32>
    %567 = vector.multi_reduction <add>, %566, %cst_203 [1] : vector<8x128xf32> to vector<8xf32>
    %568 = vector.shape_cast %567 : vector<8xf32> to vector<8x1xf32>
    %cst_204 = arith.constant 1.280000e+02 : f32
    %569 = vector.broadcast %cst_204 : f32 to vector<8x1xf32>
    %570 = arith.divf %568, %569 : vector<8x1xf32>
    %571 = arith.mulf %565, %565 : vector<8x1xf32>
    %572 = arith.subf %570, %571 : vector<8x1xf32>
    %573 = vector.broadcast %565 : vector<8x1xf32> to vector<8x128xf32>
    %574 = arith.subf %560, %573 : vector<8x128xf32>
    %cst_205 = arith.constant 9.99999974E-6 : f32
    %575 = vector.broadcast %cst_205 : f32 to vector<8x1xf32>
    %576 = arith.addf %572, %575 : vector<8x1xf32>
    %577 = math.rsqrt %576 : vector<8x1xf32>
    %578 = vector.broadcast %577 : vector<8x1xf32> to vector<8x128xf32>
    %579 = arith.mulf %574, %578 : vector<8x128xf32>
    %580 = vector.broadcast %476 : vector<1x128xf32> to vector<8x128xf32>
    %581 = arith.mulf %579, %580 : vector<8x128xf32>
    %582 = vector.broadcast %477 : vector<1x128xf32> to vector<8x128xf32>
    %583 = arith.addf %581, %582 : vector<8x128xf32>
    %cst_206 = arith.constant 5.000000e-01 : f32
    %584 = vector.broadcast %cst_206 : f32 to vector<8x128xf32>
    %585 = arith.mulf %584, %583 : vector<8x128xf32>
    %586 = math.tanh %585 : vector<8x128xf32>
    %cst_207 = arith.constant 5.000000e-01 : f32
    %587 = vector.broadcast %cst_207 : f32 to vector<8x128xf32>
    %588 = arith.mulf %587, %586 : vector<8x128xf32>
    %cst_208 = arith.constant 5.000000e-01 : f32
    %589 = vector.broadcast %cst_208 : f32 to vector<8x128xf32>
    %590 = arith.addf %588, %589 : vector<8x128xf32>
    %591 = arith.mulf %583, %590 : vector<8x128xf32>
    %592 = arith.truncf %591 : vector<8x128xf32> to vector<8x128xbf16>
    %c0_209 = arith.constant 0 : index
    %c0_210 = arith.constant 0 : index
    %593 = vector.load %arg9[%c0_209, %c0_210] : memref<128x512xbf16, #tpu.memory_space<vmem>>, vector<128x512xbf16>
    %cst_211 = arith.constant dense<0.000000e+00> : vector<8x512xf32>
    %594 = tpu.matmul %592, %593, %cst_211 {dimension_numbers = #tpu.dot_dimension_numbers<[1], [0], [0], [1], [0, 0, 1, 1], [], []>} : vector<8x128xbf16>, vector<128x512xbf16>, vector<8x512xf32> -> vector<8x512xf32>
    %595 = vector.broadcast %478 : vector<1x512xf32> to vector<8x512xf32>
    %596 = arith.addf %594, %595 : vector<8x512xf32>
    %c8_212 = arith.constant 8 : index
    %c0_213 = arith.constant 0 : index
    %597 = vector.load %arg20[%c8_212, %c0_213] : memref<64x512xf32, #tpu.memory_space<vmem>>, vector<8x512xf32>
    tpu.vector_store %arg20[%c8_212, %c0_213], %596 {strides = array<i32>} : memref<64x512xf32, #tpu.memory_space<vmem>>, vector<8x512xf32>,
    %c16_214 = arith.constant 16 : index
    %c0_215 = arith.constant 0 : index
    %598 = vector.load %arg19[%c16_214, %c0_215] : memref<64x512xf32, #tpu.memory_space<vmem>>, vector<8x512xf32>
    %c0_216 = arith.constant 0 : index
    %c0_217 = arith.constant 0 : index
    %599 = vector.load %arg6[%c0_216, %c0_217] : memref<128x512xbf16, #tpu.memory_space<vmem>>, vector<128x512xbf16>
    %cst_218 = arith.constant dense<0.000000e+00> : vector<8x512xf32>
    %600 = tpu.matmul %561, %599, %cst_218 {dimension_numbers = #tpu.dot_dimension_numbers<[1], [0], [0], [1], [0, 0, 1, 1], [], []>} : vector<8x128xbf16>, vector<128x512xbf16>, vector<8x512xf32> -> vector<8x512xf32>
    %601 = arith.addf %598, %600 : vector<8x512xf32>
    %602 = vector.extract_strided_slice %601 {offsets = [0, 0], sizes = [8, 384], strides = [1, 1]} : vector<8x512xf32> to vector<8x384xf32>
    %cst_219 = arith.constant 5.000000e-01 : f32
    %603 = vector.broadcast %cst_219 : f32 to vector<8x384xf32>
    %604 = arith.mulf %603, %602 : vector<8x384xf32>
    %605 = math.tanh %604 : vector<8x384xf32>
    %cst_220 = arith.constant 5.000000e-01 : f32
    %606 = vector.broadcast %cst_220 : f32 to vector<8x384xf32>
    %607 = arith.mulf %606, %605 : vector<8x384xf32>
    %cst_221 = arith.constant 5.000000e-01 : f32
    %608 = vector.broadcast %cst_221 : f32 to vector<8x384xf32>
    %609 = arith.addf %607, %608 : vector<8x384xf32>
    %610 = vector.extract_strided_slice %609 {offsets = [0, 0], sizes = [8, 128], strides = [1, 1]} : vector<8x384xf32> to vector<8x128xf32>
    %611 = vector.extract_strided_slice %609 {offsets = [0, 128], sizes = [8, 128], strides = [1, 1]} : vector<8x384xf32> to vector<8x128xf32>
    %612 = vector.extract_strided_slice %609 {offsets = [0, 256], sizes = [8, 128], strides = [1, 1]} : vector<8x384xf32> to vector<8x128xf32>
    %613 = vector.extract_strided_slice %601 {offsets = [0, 384], sizes = [8, 128], strides = [1, 1]} : vector<8x512xf32> to vector<8x128xf32>
    %614 = math.tanh %613 : vector<8x128xf32>
    %615 = arith.mulf %611, %558 : vector<8x128xf32>
    %616 = arith.mulf %610, %614 : vector<8x128xf32>
    %617 = arith.addf %615, %616 : vector<8x128xf32>
    %618 = math.tanh %617 : vector<8x128xf32>
    %619 = arith.mulf %612, %618 : vector<8x128xf32>
    %620 = arith.truncf %619 : vector<8x128xf32> to vector<8x128xbf16>
    %cst_222 = arith.constant dense<0.000000e+00> : vector<8xf32>
    %621 = vector.multi_reduction <add>, %619, %cst_222 [1] : vector<8x128xf32> to vector<8xf32>
    %622 = vector.shape_cast %621 : vector<8xf32> to vector<8x1xf32>
    %cst_223 = arith.constant 1.280000e+02 : f32
    %623 = vector.broadcast %cst_223 : f32 to vector<8x1xf32>
    %624 = arith.divf %622, %623 : vector<8x1xf32>
    %625 = arith.mulf %619, %619 : vector<8x128xf32>
    %cst_224 = arith.constant dense<0.000000e+00> : vector<8xf32>
    %626 = vector.multi_reduction <add>, %625, %cst_224 [1] : vector<8x128xf32> to vector<8xf32>
    %627 = vector.shape_cast %626 : vector<8xf32> to vector<8x1xf32>
    %cst_225 = arith.constant 1.280000e+02 : f32
    %628 = vector.broadcast %cst_225 : f32 to vector<8x1xf32>
    %629 = arith.divf %627, %628 : vector<8x1xf32>
    %630 = arith.mulf %624, %624 : vector<8x1xf32>
    %631 = arith.subf %629, %630 : vector<8x1xf32>
    %632 = vector.broadcast %624 : vector<8x1xf32> to vector<8x128xf32>
    %633 = arith.subf %619, %632 : vector<8x128xf32>
    %cst_226 = arith.constant 9.99999974E-6 : f32
    %634 = vector.broadcast %cst_226 : f32 to vector<8x1xf32>
    %635 = arith.addf %631, %634 : vector<8x1xf32>
    %636 = math.rsqrt %635 : vector<8x1xf32>
    %637 = vector.broadcast %636 : vector<8x1xf32> to vector<8x128xf32>
    %638 = arith.mulf %633, %637 : vector<8x128xf32>
    %639 = vector.broadcast %476 : vector<1x128xf32> to vector<8x128xf32>
    %640 = arith.mulf %638, %639 : vector<8x128xf32>
    %641 = vector.broadcast %477 : vector<1x128xf32> to vector<8x128xf32>
    %642 = arith.addf %640, %641 : vector<8x128xf32>
    %cst_227 = arith.constant 5.000000e-01 : f32
    %643 = vector.broadcast %cst_227 : f32 to vector<8x128xf32>
    %644 = arith.mulf %643, %642 : vector<8x128xf32>
    %645 = math.tanh %644 : vector<8x128xf32>
    %cst_228 = arith.constant 5.000000e-01 : f32
    %646 = vector.broadcast %cst_228 : f32 to vector<8x128xf32>
    %647 = arith.mulf %646, %645 : vector<8x128xf32>
    %cst_229 = arith.constant 5.000000e-01 : f32
    %648 = vector.broadcast %cst_229 : f32 to vector<8x128xf32>
    %649 = arith.addf %647, %648 : vector<8x128xf32>
    %650 = arith.mulf %642, %649 : vector<8x128xf32>
    %651 = arith.truncf %650 : vector<8x128xf32> to vector<8x128xbf16>
    %c0_230 = arith.constant 0 : index
    %c0_231 = arith.constant 0 : index
    %652 = vector.load %arg9[%c0_230, %c0_231] : memref<128x512xbf16, #tpu.memory_space<vmem>>, vector<128x512xbf16>
    %cst_232 = arith.constant dense<0.000000e+00> : vector<8x512xf32>
    %653 = tpu.matmul %651, %652, %cst_232 {dimension_numbers = #tpu.dot_dimension_numbers<[1], [0], [0], [1], [0, 0, 1, 1], [], []>} : vector<8x128xbf16>, vector<128x512xbf16>, vector<8x512xf32> -> vector<8x512xf32>
    %654 = vector.broadcast %478 : vector<1x512xf32> to vector<8x512xf32>
    %655 = arith.addf %653, %654 : vector<8x512xf32>
    %c16_233 = arith.constant 16 : index
    %c0_234 = arith.constant 0 : index
    %656 = vector.load %arg20[%c16_233, %c0_234] : memref<64x512xf32, #tpu.memory_space<vmem>>, vector<8x512xf32>
    tpu.vector_store %arg20[%c16_233, %c0_234], %655 {strides = array<i32>} : memref<64x512xf32, #tpu.memory_space<vmem>>, vector<8x512xf32>,
    %c24_235 = arith.constant 24 : index
    %c0_236 = arith.constant 0 : index
    %657 = vector.load %arg19[%c24_235, %c0_236] : memref<64x512xf32, #tpu.memory_space<vmem>>, vector<8x512xf32>
    %c0_237 = arith.constant 0 : index
    %c0_238 = arith.constant 0 : index
    %658 = vector.load %arg6[%c0_237, %c0_238] : memref<128x512xbf16, #tpu.memory_space<vmem>>, vector<128x512xbf16>
    %cst_239 = arith.constant dense<0.000000e+00> : vector<8x512xf32>
    %659 = tpu.matmul %620, %658, %cst_239 {dimension_numbers = #tpu.dot_dimension_numbers<[1], [0], [0], [1], [0, 0, 1, 1], [], []>} : vector<8x128xbf16>, vector<128x512xbf16>, vector<8x512xf32> -> vector<8x512xf32>
    %660 = arith.addf %657, %659 : vector<8x512xf32>
    %661 = vector.extract_strided_slice %660 {offsets = [0, 0], sizes = [8, 384], strides = [1, 1]} : vector<8x512xf32> to vector<8x384xf32>
    %cst_240 = arith.constant 5.000000e-01 : f32
    %662 = vector.broadcast %cst_240 : f32 to vector<8x384xf32>
    %663 = arith.mulf %662, %661 : vector<8x384xf32>
    %664 = math.tanh %663 : vector<8x384xf32>
    %cst_241 = arith.constant 5.000000e-01 : f32
    %665 = vector.broadcast %cst_241 : f32 to vector<8x384xf32>
    %666 = arith.mulf %665, %664 : vector<8x384xf32>
    %cst_242 = arith.constant 5.000000e-01 : f32
    %667 = vector.broadcast %cst_242 : f32 to vector<8x384xf32>
    %668 = arith.addf %666, %667 : vector<8x384xf32>
    %669 = vector.extract_strided_slice %668 {offsets = [0, 0], sizes = [8, 128], strides = [1, 1]} : vector<8x384xf32> to vector<8x128xf32>
    %670 = vector.extract_strided_slice %668 {offsets = [0, 128], sizes = [8, 128], strides = [1, 1]} : vector<8x384xf32> to vector<8x128xf32>
    %671 = vector.extract_strided_slice %668 {offsets = [0, 256], sizes = [8, 128], strides = [1, 1]} : vector<8x384xf32> to vector<8x128xf32>
    %672 = vector.extract_strided_slice %660 {offsets = [0, 384], sizes = [8, 128], strides = [1, 1]} : vector<8x512xf32> to vector<8x128xf32>
    %673 = math.tanh %672 : vector<8x128xf32>
    %674 = arith.mulf %670, %617 : vector<8x128xf32>
    %675 = arith.mulf %669, %673 : vector<8x128xf32>
    %676 = arith.addf %674, %675 : vector<8x128xf32>
    %677 = math.tanh %676 : vector<8x128xf32>
    %678 = arith.mulf %671, %677 : vector<8x128xf32>
    %679 = arith.truncf %678 : vector<8x128xf32> to vector<8x128xbf16>
    %cst_243 = arith.constant dense<0.000000e+00> : vector<8xf32>
    %680 = vector.multi_reduction <add>, %678, %cst_243 [1] : vector<8x128xf32> to vector<8xf32>
    %681 = vector.shape_cast %680 : vector<8xf32> to vector<8x1xf32>
    %cst_244 = arith.constant 1.280000e+02 : f32
    %682 = vector.broadcast %cst_244 : f32 to vector<8x1xf32>
    %683 = arith.divf %681, %682 : vector<8x1xf32>
    %684 = arith.mulf %678, %678 : vector<8x128xf32>
    %cst_245 = arith.constant dense<0.000000e+00> : vector<8xf32>
    %685 = vector.multi_reduction <add>, %684, %cst_245 [1] : vector<8x128xf32> to vector<8xf32>
    %686 = vector.shape_cast %685 : vector<8xf32> to vector<8x1xf32>
    %cst_246 = arith.constant 1.280000e+02 : f32
    %687 = vector.broadcast %cst_246 : f32 to vector<8x1xf32>
    %688 = arith.divf %686, %687 : vector<8x1xf32>
    %689 = arith.mulf %683, %683 : vector<8x1xf32>
    %690 = arith.subf %688, %689 : vector<8x1xf32>
    %691 = vector.broadcast %683 : vector<8x1xf32> to vector<8x128xf32>
    %692 = arith.subf %678, %691 : vector<8x128xf32>
    %cst_247 = arith.constant 9.99999974E-6 : f32
    %693 = vector.broadcast %cst_247 : f32 to vector<8x1xf32>
    %694 = arith.addf %690, %693 : vector<8x1xf32>
    %695 = math.rsqrt %694 : vector<8x1xf32>
    %696 = vector.broadcast %695 : vector<8x1xf32> to vector<8x128xf32>
    %697 = arith.mulf %692, %696 : vector<8x128xf32>
    %698 = vector.broadcast %476 : vector<1x128xf32> to vector<8x128xf32>
    %699 = arith.mulf %697, %698 : vector<8x128xf32>
    %700 = vector.broadcast %477 : vector<1x128xf32> to vector<8x128xf32>
    %701 = arith.addf %699, %700 : vector<8x128xf32>
    %cst_248 = arith.constant 5.000000e-01 : f32
    %702 = vector.broadcast %cst_248 : f32 to vector<8x128xf32>
    %703 = arith.mulf %702, %701 : vector<8x128xf32>
    %704 = math.tanh %703 : vector<8x128xf32>
    %cst_249 = arith.constant 5.000000e-01 : f32
    %705 = vector.broadcast %cst_249 : f32 to vector<8x128xf32>
    %706 = arith.mulf %705, %704 : vector<8x128xf32>
    %cst_250 = arith.constant 5.000000e-01 : f32
    %707 = vector.broadcast %cst_250 : f32 to vector<8x128xf32>
    %708 = arith.addf %706, %707 : vector<8x128xf32>
    %709 = arith.mulf %701, %708 : vector<8x128xf32>
    %710 = arith.truncf %709 : vector<8x128xf32> to vector<8x128xbf16>
    %c0_251 = arith.constant 0 : index
    %c0_252 = arith.constant 0 : index
    %711 = vector.load %arg9[%c0_251, %c0_252] : memref<128x512xbf16, #tpu.memory_space<vmem>>, vector<128x512xbf16>
    %cst_253 = arith.constant dense<0.000000e+00> : vector<8x512xf32>
    %712 = tpu.matmul %710, %711, %cst_253 {dimension_numbers = #tpu.dot_dimension_numbers<[1], [0], [0], [1], [0, 0, 1, 1], [], []>} : vector<8x128xbf16>, vector<128x512xbf16>, vector<8x512xf32> -> vector<8x512xf32>
    %713 = vector.broadcast %478 : vector<1x512xf32> to vector<8x512xf32>
    %714 = arith.addf %712, %713 : vector<8x512xf32>
    %c24_254 = arith.constant 24 : index
    %c0_255 = arith.constant 0 : index
    %715 = vector.load %arg20[%c24_254, %c0_255] : memref<64x512xf32, #tpu.memory_space<vmem>>, vector<8x512xf32>
    tpu.vector_store %arg20[%c24_254, %c0_255], %714 {strides = array<i32>} : memref<64x512xf32, #tpu.memory_space<vmem>>, vector<8x512xf32>,
    %c32_256 = arith.constant 32 : index
    %c0_257 = arith.constant 0 : index
    %716 = vector.load %arg19[%c32_256, %c0_257] : memref<64x512xf32, #tpu.memory_space<vmem>>, vector<8x512xf32>
    %c0_258 = arith.constant 0 : index
    %c0_259 = arith.constant 0 : index
    %717 = vector.load %arg6[%c0_258, %c0_259] : memref<128x512xbf16, #tpu.memory_space<vmem>>, vector<128x512xbf16>
    %cst_260 = arith.constant dense<0.000000e+00> : vector<8x512xf32>
    %718 = tpu.matmul %679, %717, %cst_260 {dimension_numbers = #tpu.dot_dimension_numbers<[1], [0], [0], [1], [0, 0, 1, 1], [], []>} : vector<8x128xbf16>, vector<128x512xbf16>, vector<8x512xf32> -> vector<8x512xf32>
    %719 = arith.addf %716, %718 : vector<8x512xf32>
    %720 = vector.extract_strided_slice %719 {offsets = [0, 0], sizes = [8, 384], strides = [1, 1]} : vector<8x512xf32> to vector<8x384xf32>
    %cst_261 = arith.constant 5.000000e-01 : f32
    %721 = vector.broadcast %cst_261 : f32 to vector<8x384xf32>
    %722 = arith.mulf %721, %720 : vector<8x384xf32>
    %723 = math.tanh %722 : vector<8x384xf32>
    %cst_262 = arith.constant 5.000000e-01 : f32
    %724 = vector.broadcast %cst_262 : f32 to vector<8x384xf32>
    %725 = arith.mulf %724, %723 : vector<8x384xf32>
    %cst_263 = arith.constant 5.000000e-01 : f32
    %726 = vector.broadcast %cst_263 : f32 to vector<8x384xf32>
    %727 = arith.addf %725, %726 : vector<8x384xf32>
    %728 = vector.extract_strided_slice %727 {offsets = [0, 0], sizes = [8, 128], strides = [1, 1]} : vector<8x384xf32> to vector<8x128xf32>
    %729 = vector.extract_strided_slice %727 {offsets = [0, 128], sizes = [8, 128], strides = [1, 1]} : vector<8x384xf32> to vector<8x128xf32>
    %730 = vector.extract_strided_slice %727 {offsets = [0, 256], sizes = [8, 128], strides = [1, 1]} : vector<8x384xf32> to vector<8x128xf32>
    %731 = vector.extract_strided_slice %719 {offsets = [0, 384], sizes = [8, 128], strides = [1, 1]} : vector<8x512xf32> to vector<8x128xf32>
    %732 = math.tanh %731 : vector<8x128xf32>
    %733 = arith.mulf %729, %676 : vector<8x128xf32>
    %734 = arith.mulf %728, %732 : vector<8x128xf32>
    %735 = arith.addf %733, %734 : vector<8x128xf32>
    %736 = math.tanh %735 : vector<8x128xf32>
    %737 = arith.mulf %730, %736 : vector<8x128xf32>
    %738 = arith.truncf %737 : vector<8x128xf32> to vector<8x128xbf16>
    %cst_264 = arith.constant dense<0.000000e+00> : vector<8xf32>
    %739 = vector.multi_reduction <add>, %737, %cst_264 [1] : vector<8x128xf32> to vector<8xf32>
    %740 = vector.shape_cast %739 : vector<8xf32> to vector<8x1xf32>
    %cst_265 = arith.constant 1.280000e+02 : f32
    %741 = vector.broadcast %cst_265 : f32 to vector<8x1xf32>
    %742 = arith.divf %740, %741 : vector<8x1xf32>
    %743 = arith.mulf %737, %737 : vector<8x128xf32>
    %cst_266 = arith.constant dense<0.000000e+00> : vector<8xf32>
    %744 = vector.multi_reduction <add>, %743, %cst_266 [1] : vector<8x128xf32> to vector<8xf32>
    %745 = vector.shape_cast %744 : vector<8xf32> to vector<8x1xf32>
    %cst_267 = arith.constant 1.280000e+02 : f32
    %746 = vector.broadcast %cst_267 : f32 to vector<8x1xf32>
    %747 = arith.divf %745, %746 : vector<8x1xf32>
    %748 = arith.mulf %742, %742 : vector<8x1xf32>
    %749 = arith.subf %747, %748 : vector<8x1xf32>
    %750 = vector.broadcast %742 : vector<8x1xf32> to vector<8x128xf32>
    %751 = arith.subf %737, %750 : vector<8x128xf32>
    %cst_268 = arith.constant 9.99999974E-6 : f32
    %752 = vector.broadcast %cst_268 : f32 to vector<8x1xf32>
    %753 = arith.addf %749, %752 : vector<8x1xf32>
    %754 = math.rsqrt %753 : vector<8x1xf32>
    %755 = vector.broadcast %754 : vector<8x1xf32> to vector<8x128xf32>
    %756 = arith.mulf %751, %755 : vector<8x128xf32>
    %757 = vector.broadcast %476 : vector<1x128xf32> to vector<8x128xf32>
    %758 = arith.mulf %756, %757 : vector<8x128xf32>
    %759 = vector.broadcast %477 : vector<1x128xf32> to vector<8x128xf32>
    %760 = arith.addf %758, %759 : vector<8x128xf32>
    %cst_269 = arith.constant 5.000000e-01 : f32
    %761 = vector.broadcast %cst_269 : f32 to vector<8x128xf32>
    %762 = arith.mulf %761, %760 : vector<8x128xf32>
    %763 = math.tanh %762 : vector<8x128xf32>
    %cst_270 = arith.constant 5.000000e-01 : f32
    %764 = vector.broadcast %cst_270 : f32 to vector<8x128xf32>
    %765 = arith.mulf %764, %763 : vector<8x128xf32>
    %cst_271 = arith.constant 5.000000e-01 : f32
    %766 = vector.broadcast %cst_271 : f32 to vector<8x128xf32>
    %767 = arith.addf %765, %766 : vector<8x128xf32>
    %768 = arith.mulf %760, %767 : vector<8x128xf32>
    %769 = arith.truncf %768 : vector<8x128xf32> to vector<8x128xbf16>
    %c0_272 = arith.constant 0 : index
    %c0_273 = arith.constant 0 : index
    %770 = vector.load %arg9[%c0_272, %c0_273] : memref<128x512xbf16, #tpu.memory_space<vmem>>, vector<128x512xbf16>
    %cst_274 = arith.constant dense<0.000000e+00> : vector<8x512xf32>
    %771 = tpu.matmul %769, %770, %cst_274 {dimension_numbers = #tpu.dot_dimension_numbers<[1], [0], [0], [1], [0, 0, 1, 1], [], []>} : vector<8x128xbf16>, vector<128x512xbf16>, vector<8x512xf32> -> vector<8x512xf32>
    %772 = vector.broadcast %478 : vector<1x512xf32> to vector<8x512xf32>
    %773 = arith.addf %771, %772 : vector<8x512xf32>
    %c32_275 = arith.constant 32 : index
    %c0_276 = arith.constant 0 : index
    %774 = vector.load %arg20[%c32_275, %c0_276] : memref<64x512xf32, #tpu.memory_space<vmem>>, vector<8x512xf32>
    tpu.vector_store %arg20[%c32_275, %c0_276], %773 {strides = array<i32>} : memref<64x512xf32, #tpu.memory_space<vmem>>, vector<8x512xf32>,
    %c40_277 = arith.constant 40 : index
    %c0_278 = arith.constant 0 : index
    %775 = vector.load %arg19[%c40_277, %c0_278] : memref<64x512xf32, #tpu.memory_space<vmem>>, vector<8x512xf32>
    %c0_279 = arith.constant 0 : index
    %c0_280 = arith.constant 0 : index
    %776 = vector.load %arg6[%c0_279, %c0_280] : memref<128x512xbf16, #tpu.memory_space<vmem>>, vector<128x512xbf16>
    %cst_281 = arith.constant dense<0.000000e+00> : vector<8x512xf32>
    %777 = tpu.matmul %738, %776, %cst_281 {dimension_numbers = #tpu.dot_dimension_numbers<[1], [0], [0], [1], [0, 0, 1, 1], [], []>} : vector<8x128xbf16>, vector<128x512xbf16>, vector<8x512xf32> -> vector<8x512xf32>
    %778 = arith.addf %775, %777 : vector<8x512xf32>
    %779 = vector.extract_strided_slice %778 {offsets = [0, 0], sizes = [8, 384], strides = [1, 1]} : vector<8x512xf32> to vector<8x384xf32>
    %cst_282 = arith.constant 5.000000e-01 : f32
    %780 = vector.broadcast %cst_282 : f32 to vector<8x384xf32>
    %781 = arith.mulf %780, %779 : vector<8x384xf32>
    %782 = math.tanh %781 : vector<8x384xf32>
    %cst_283 = arith.constant 5.000000e-01 : f32
    %783 = vector.broadcast %cst_283 : f32 to vector<8x384xf32>
    %784 = arith.mulf %783, %782 : vector<8x384xf32>
    %cst_284 = arith.constant 5.000000e-01 : f32
    %785 = vector.broadcast %cst_284 : f32 to vector<8x384xf32>
    %786 = arith.addf %784, %785 : vector<8x384xf32>
    %787 = vector.extract_strided_slice %786 {offsets = [0, 0], sizes = [8, 128], strides = [1, 1]} : vector<8x384xf32> to vector<8x128xf32>
    %788 = vector.extract_strided_slice %786 {offsets = [0, 128], sizes = [8, 128], strides = [1, 1]} : vector<8x384xf32> to vector<8x128xf32>
    %789 = vector.extract_strided_slice %786 {offsets = [0, 256], sizes = [8, 128], strides = [1, 1]} : vector<8x384xf32> to vector<8x128xf32>
    %790 = vector.extract_strided_slice %778 {offsets = [0, 384], sizes = [8, 128], strides = [1, 1]} : vector<8x512xf32> to vector<8x128xf32>
    %791 = math.tanh %790 : vector<8x128xf32>
    %792 = arith.mulf %788, %735 : vector<8x128xf32>
    %793 = arith.mulf %787, %791 : vector<8x128xf32>
    %794 = arith.addf %792, %793 : vector<8x128xf32>
    %795 = math.tanh %794 : vector<8x128xf32>
    %796 = arith.mulf %789, %795 : vector<8x128xf32>
    %797 = arith.truncf %796 : vector<8x128xf32> to vector<8x128xbf16>
    %cst_285 = arith.constant dense<0.000000e+00> : vector<8xf32>
    %798 = vector.multi_reduction <add>, %796, %cst_285 [1] : vector<8x128xf32> to vector<8xf32>
    %799 = vector.shape_cast %798 : vector<8xf32> to vector<8x1xf32>
    %cst_286 = arith.constant 1.280000e+02 : f32
    %800 = vector.broadcast %cst_286 : f32 to vector<8x1xf32>
    %801 = arith.divf %799, %800 : vector<8x1xf32>
    %802 = arith.mulf %796, %796 : vector<8x128xf32>
    %cst_287 = arith.constant dense<0.000000e+00> : vector<8xf32>
    %803 = vector.multi_reduction <add>, %802, %cst_287 [1] : vector<8x128xf32> to vector<8xf32>
    %804 = vector.shape_cast %803 : vector<8xf32> to vector<8x1xf32>
    %cst_288 = arith.constant 1.280000e+02 : f32
    %805 = vector.broadcast %cst_288 : f32 to vector<8x1xf32>
    %806 = arith.divf %804, %805 : vector<8x1xf32>
    %807 = arith.mulf %801, %801 : vector<8x1xf32>
    %808 = arith.subf %806, %807 : vector<8x1xf32>
    %809 = vector.broadcast %801 : vector<8x1xf32> to vector<8x128xf32>
    %810 = arith.subf %796, %809 : vector<8x128xf32>
    %cst_289 = arith.constant 9.99999974E-6 : f32
    %811 = vector.broadcast %cst_289 : f32 to vector<8x1xf32>
    %812 = arith.addf %808, %811 : vector<8x1xf32>
    %813 = math.rsqrt %812 : vector<8x1xf32>
    %814 = vector.broadcast %813 : vector<8x1xf32> to vector<8x128xf32>
    %815 = arith.mulf %810, %814 : vector<8x128xf32>
    %816 = vector.broadcast %476 : vector<1x128xf32> to vector<8x128xf32>
    %817 = arith.mulf %815, %816 : vector<8x128xf32>
    %818 = vector.broadcast %477 : vector<1x128xf32> to vector<8x128xf32>
    %819 = arith.addf %817, %818 : vector<8x128xf32>
    %cst_290 = arith.constant 5.000000e-01 : f32
    %820 = vector.broadcast %cst_290 : f32 to vector<8x128xf32>
    %821 = arith.mulf %820, %819 : vector<8x128xf32>
    %822 = math.tanh %821 : vector<8x128xf32>
    %cst_291 = arith.constant 5.000000e-01 : f32
    %823 = vector.broadcast %cst_291 : f32 to vector<8x128xf32>
    %824 = arith.mulf %823, %822 : vector<8x128xf32>
    %cst_292 = arith.constant 5.000000e-01 : f32
    %825 = vector.broadcast %cst_292 : f32 to vector<8x128xf32>
    %826 = arith.addf %824, %825 : vector<8x128xf32>
    %827 = arith.mulf %819, %826 : vector<8x128xf32>
    %828 = arith.truncf %827 : vector<8x128xf32> to vector<8x128xbf16>
    %c0_293 = arith.constant 0 : index
    %c0_294 = arith.constant 0 : index
    %829 = vector.load %arg9[%c0_293, %c0_294] : memref<128x512xbf16, #tpu.memory_space<vmem>>, vector<128x512xbf16>
    %cst_295 = arith.constant dense<0.000000e+00> : vector<8x512xf32>
    %830 = tpu.matmul %828, %829, %cst_295 {dimension_numbers = #tpu.dot_dimension_numbers<[1], [0], [0], [1], [0, 0, 1, 1], [], []>} : vector<8x128xbf16>, vector<128x512xbf16>, vector<8x512xf32> -> vector<8x512xf32>
    %831 = vector.broadcast %478 : vector<1x512xf32> to vector<8x512xf32>
    %832 = arith.addf %830, %831 : vector<8x512xf32>
    %c40_296 = arith.constant 40 : index
    %c0_297 = arith.constant 0 : index
    %833 = vector.load %arg20[%c40_296, %c0_297] : memref<64x512xf32, #tpu.memory_space<vmem>>, vector<8x512xf32>
    tpu.vector_store %arg20[%c40_296, %c0_297], %832 {strides = array<i32>} : memref<64x512xf32, #tpu.memory_space<vmem>>, vector<8x512xf32>,
    %c48_298 = arith.constant 48 : index
    %c0_299 = arith.constant 0 : index
    %834 = vector.load %arg19[%c48_298, %c0_299] : memref<64x512xf32, #tpu.memory_space<vmem>>, vector<8x512xf32>
    %c0_300 = arith.constant 0 : index
    %c0_301 = arith.constant 0 : index
    %835 = vector.load %arg6[%c0_300, %c0_301] : memref<128x512xbf16, #tpu.memory_space<vmem>>, vector<128x512xbf16>
    %cst_302 = arith.constant dense<0.000000e+00> : vector<8x512xf32>
    %836 = tpu.matmul %797, %835, %cst_302 {dimension_numbers = #tpu.dot_dimension_numbers<[1], [0], [0], [1], [0, 0, 1, 1], [], []>} : vector<8x128xbf16>, vector<128x512xbf16>, vector<8x512xf32> -> vector<8x512xf32>
    %837 = arith.addf %834, %836 : vector<8x512xf32>
    %838 = vector.extract_strided_slice %837 {offsets = [0, 0], sizes = [8, 384], strides = [1, 1]} : vector<8x512xf32> to vector<8x384xf32>
    %cst_303 = arith.constant 5.000000e-01 : f32
    %839 = vector.broadcast %cst_303 : f32 to vector<8x384xf32>
    %840 = arith.mulf %839, %838 : vector<8x384xf32>
    %841 = math.tanh %840 : vector<8x384xf32>
    %cst_304 = arith.constant 5.000000e-01 : f32
    %842 = vector.broadcast %cst_304 : f32 to vector<8x384xf32>
    %843 = arith.mulf %842, %841 : vector<8x384xf32>
    %cst_305 = arith.constant 5.000000e-01 : f32
    %844 = vector.broadcast %cst_305 : f32 to vector<8x384xf32>
    %845 = arith.addf %843, %844 : vector<8x384xf32>
    %846 = vector.extract_strided_slice %845 {offsets = [0, 0], sizes = [8, 128], strides = [1, 1]} : vector<8x384xf32> to vector<8x128xf32>
    %847 = vector.extract_strided_slice %845 {offsets = [0, 128], sizes = [8, 128], strides = [1, 1]} : vector<8x384xf32> to vector<8x128xf32>
    %848 = vector.extract_strided_slice %845 {offsets = [0, 256], sizes = [8, 128], strides = [1, 1]} : vector<8x384xf32> to vector<8x128xf32>
    %849 = vector.extract_strided_slice %837 {offsets = [0, 384], sizes = [8, 128], strides = [1, 1]} : vector<8x512xf32> to vector<8x128xf32>
    %850 = math.tanh %849 : vector<8x128xf32>
    %851 = arith.mulf %847, %794 : vector<8x128xf32>
    %852 = arith.mulf %846, %850 : vector<8x128xf32>
    %853 = arith.addf %851, %852 : vector<8x128xf32>
    %854 = math.tanh %853 : vector<8x128xf32>
    %855 = arith.mulf %848, %854 : vector<8x128xf32>
    %856 = arith.truncf %855 : vector<8x128xf32> to vector<8x128xbf16>
    %cst_306 = arith.constant dense<0.000000e+00> : vector<8xf32>
    %857 = vector.multi_reduction <add>, %855, %cst_306 [1] : vector<8x128xf32> to vector<8xf32>
    %858 = vector.shape_cast %857 : vector<8xf32> to vector<8x1xf32>
    %cst_307 = arith.constant 1.280000e+02 : f32
    %859 = vector.broadcast %cst_307 : f32 to vector<8x1xf32>
    %860 = arith.divf %858, %859 : vector<8x1xf32>
    %861 = arith.mulf %855, %855 : vector<8x128xf32>
    %cst_308 = arith.constant dense<0.000000e+00> : vector<8xf32>
    %862 = vector.multi_reduction <add>, %861, %cst_308 [1] : vector<8x128xf32> to vector<8xf32>
    %863 = vector.shape_cast %862 : vector<8xf32> to vector<8x1xf32>
    %cst_309 = arith.constant 1.280000e+02 : f32
    %864 = vector.broadcast %cst_309 : f32 to vector<8x1xf32>
    %865 = arith.divf %863, %864 : vector<8x1xf32>
    %866 = arith.mulf %860, %860 : vector<8x1xf32>
    %867 = arith.subf %865, %866 : vector<8x1xf32>
    %868 = vector.broadcast %860 : vector<8x1xf32> to vector<8x128xf32>
    %869 = arith.subf %855, %868 : vector<8x128xf32>
    %cst_310 = arith.constant 9.99999974E-6 : f32
    %870 = vector.broadcast %cst_310 : f32 to vector<8x1xf32>
    %871 = arith.addf %867, %870 : vector<8x1xf32>
    %872 = math.rsqrt %871 : vector<8x1xf32>
    %873 = vector.broadcast %872 : vector<8x1xf32> to vector<8x128xf32>
    %874 = arith.mulf %869, %873 : vector<8x128xf32>
    %875 = vector.broadcast %476 : vector<1x128xf32> to vector<8x128xf32>
    %876 = arith.mulf %874, %875 : vector<8x128xf32>
    %877 = vector.broadcast %477 : vector<1x128xf32> to vector<8x128xf32>
    %878 = arith.addf %876, %877 : vector<8x128xf32>
    %cst_311 = arith.constant 5.000000e-01 : f32
    %879 = vector.broadcast %cst_311 : f32 to vector<8x128xf32>
    %880 = arith.mulf %879, %878 : vector<8x128xf32>
    %881 = math.tanh %880 : vector<8x128xf32>
    %cst_312 = arith.constant 5.000000e-01 : f32
    %882 = vector.broadcast %cst_312 : f32 to vector<8x128xf32>
    %883 = arith.mulf %882, %881 : vector<8x128xf32>
    %cst_313 = arith.constant 5.000000e-01 : f32
    %884 = vector.broadcast %cst_313 : f32 to vector<8x128xf32>
    %885 = arith.addf %883, %884 : vector<8x128xf32>
    %886 = arith.mulf %878, %885 : vector<8x128xf32>
    %887 = arith.truncf %886 : vector<8x128xf32> to vector<8x128xbf16>
    %c0_314 = arith.constant 0 : index
    %c0_315 = arith.constant 0 : index
    %888 = vector.load %arg9[%c0_314, %c0_315] : memref<128x512xbf16, #tpu.memory_space<vmem>>, vector<128x512xbf16>
    %cst_316 = arith.constant dense<0.000000e+00> : vector<8x512xf32>
    %889 = tpu.matmul %887, %888, %cst_316 {dimension_numbers = #tpu.dot_dimension_numbers<[1], [0], [0], [1], [0, 0, 1, 1], [], []>} : vector<8x128xbf16>, vector<128x512xbf16>, vector<8x512xf32> -> vector<8x512xf32>
    %890 = vector.broadcast %478 : vector<1x512xf32> to vector<8x512xf32>
    %891 = arith.addf %889, %890 : vector<8x512xf32>
    %c48_317 = arith.constant 48 : index
    %c0_318 = arith.constant 0 : index
    %892 = vector.load %arg20[%c48_317, %c0_318] : memref<64x512xf32, #tpu.memory_space<vmem>>, vector<8x512xf32>
    tpu.vector_store %arg20[%c48_317, %c0_318], %891 {strides = array<i32>} : memref<64x512xf32, #tpu.memory_space<vmem>>, vector<8x512xf32>,
    %c56_319 = arith.constant 56 : index
    %c0_320 = arith.constant 0 : index
    %893 = vector.load %arg19[%c56_319, %c0_320] : memref<64x512xf32, #tpu.memory_space<vmem>>, vector<8x512xf32>
    %c0_321 = arith.constant 0 : index
    %c0_322 = arith.constant 0 : index
    %894 = vector.load %arg6[%c0_321, %c0_322] : memref<128x512xbf16, #tpu.memory_space<vmem>>, vector<128x512xbf16>
    %cst_323 = arith.constant dense<0.000000e+00> : vector<8x512xf32>
    %895 = tpu.matmul %856, %894, %cst_323 {dimension_numbers = #tpu.dot_dimension_numbers<[1], [0], [0], [1], [0, 0, 1, 1], [], []>} : vector<8x128xbf16>, vector<128x512xbf16>, vector<8x512xf32> -> vector<8x512xf32>
    %896 = arith.addf %893, %895 : vector<8x512xf32>
    %897 = vector.extract_strided_slice %896 {offsets = [0, 0], sizes = [8, 384], strides = [1, 1]} : vector<8x512xf32> to vector<8x384xf32>
    %cst_324 = arith.constant 5.000000e-01 : f32
    %898 = vector.broadcast %cst_324 : f32 to vector<8x384xf32>
    %899 = arith.mulf %898, %897 : vector<8x384xf32>
    %900 = math.tanh %899 : vector<8x384xf32>
    %cst_325 = arith.constant 5.000000e-01 : f32
    %901 = vector.broadcast %cst_325 : f32 to vector<8x384xf32>
    %902 = arith.mulf %901, %900 : vector<8x384xf32>
    %cst_326 = arith.constant 5.000000e-01 : f32
    %903 = vector.broadcast %cst_326 : f32 to vector<8x384xf32>
    %904 = arith.addf %902, %903 : vector<8x384xf32>
    %905 = vector.extract_strided_slice %904 {offsets = [0, 0], sizes = [8, 128], strides = [1, 1]} : vector<8x384xf32> to vector<8x128xf32>
    %906 = vector.extract_strided_slice %904 {offsets = [0, 128], sizes = [8, 128], strides = [1, 1]} : vector<8x384xf32> to vector<8x128xf32>
    %907 = vector.extract_strided_slice %904 {offsets = [0, 256], sizes = [8, 128], strides = [1, 1]} : vector<8x384xf32> to vector<8x128xf32>
    %908 = vector.extract_strided_slice %896 {offsets = [0, 384], sizes = [8, 128], strides = [1, 1]} : vector<8x512xf32> to vector<8x128xf32>
    %909 = math.tanh %908 : vector<8x128xf32>
    %910 = arith.mulf %906, %853 : vector<8x128xf32>
    %911 = arith.mulf %905, %909 : vector<8x128xf32>
    %912 = arith.addf %910, %911 : vector<8x128xf32>
    %913 = math.tanh %912 : vector<8x128xf32>
    %914 = arith.mulf %907, %913 : vector<8x128xf32>
    %cst_327 = arith.constant dense<0.000000e+00> : vector<8xf32>
    %915 = vector.multi_reduction <add>, %914, %cst_327 [1] : vector<8x128xf32> to vector<8xf32>
    %916 = vector.shape_cast %915 : vector<8xf32> to vector<8x1xf32>
    %cst_328 = arith.constant 1.280000e+02 : f32
    %917 = vector.broadcast %cst_328 : f32 to vector<8x1xf32>
    %918 = arith.divf %916, %917 : vector<8x1xf32>
    %919 = arith.mulf %914, %914 : vector<8x128xf32>
    %cst_329 = arith.constant dense<0.000000e+00> : vector<8xf32>
    %920 = vector.multi_reduction <add>, %919, %cst_329 [1] : vector<8x128xf32> to vector<8xf32>
    %921 = vector.shape_cast %920 : vector<8xf32> to vector<8x1xf32>
    %cst_330 = arith.constant 1.280000e+02 : f32
    %922 = vector.broadcast %cst_330 : f32 to vector<8x1xf32>
    %923 = arith.divf %921, %922 : vector<8x1xf32>
    %924 = arith.mulf %918, %918 : vector<8x1xf32>
    %925 = arith.subf %923, %924 : vector<8x1xf32>
    %926 = vector.broadcast %918 : vector<8x1xf32> to vector<8x128xf32>
    %927 = arith.subf %914, %926 : vector<8x128xf32>
    %cst_331 = arith.constant 9.99999974E-6 : f32
    %928 = vector.broadcast %cst_331 : f32 to vector<8x1xf32>
    %929 = arith.addf %925, %928 : vector<8x1xf32>
    %930 = math.rsqrt %929 : vector<8x1xf32>
    %931 = vector.broadcast %930 : vector<8x1xf32> to vector<8x128xf32>
    %932 = arith.mulf %927, %931 : vector<8x128xf32>
    %933 = vector.broadcast %476 : vector<1x128xf32> to vector<8x128xf32>
    %934 = arith.mulf %932, %933 : vector<8x128xf32>
    %935 = vector.broadcast %477 : vector<1x128xf32> to vector<8x128xf32>
    %936 = arith.addf %934, %935 : vector<8x128xf32>
    %cst_332 = arith.constant 5.000000e-01 : f32
    %937 = vector.broadcast %cst_332 : f32 to vector<8x128xf32>
    %938 = arith.mulf %937, %936 : vector<8x128xf32>
    %939 = math.tanh %938 : vector<8x128xf32>
    %cst_333 = arith.constant 5.000000e-01 : f32
    %940 = vector.broadcast %cst_333 : f32 to vector<8x128xf32>
    %941 = arith.mulf %940, %939 : vector<8x128xf32>
    %cst_334 = arith.constant 5.000000e-01 : f32
    %942 = vector.broadcast %cst_334 : f32 to vector<8x128xf32>
    %943 = arith.addf %941, %942 : vector<8x128xf32>
    %944 = arith.mulf %936, %943 : vector<8x128xf32>
    %945 = arith.truncf %944 : vector<8x128xf32> to vector<8x128xbf16>
    %c0_335 = arith.constant 0 : index
    %c0_336 = arith.constant 0 : index
    %946 = vector.load %arg9[%c0_335, %c0_336] : memref<128x512xbf16, #tpu.memory_space<vmem>>, vector<128x512xbf16>
    %cst_337 = arith.constant dense<0.000000e+00> : vector<8x512xf32>
    %947 = tpu.matmul %945, %946, %cst_337 {dimension_numbers = #tpu.dot_dimension_numbers<[1], [0], [0], [1], [0, 0, 1, 1], [], []>} : vector<8x128xbf16>, vector<128x512xbf16>, vector<8x512xf32> -> vector<8x512xf32>
    %948 = vector.broadcast %478 : vector<1x512xf32> to vector<8x512xf32>
    %949 = arith.addf %947, %948 : vector<8x512xf32>
    %c56_338 = arith.constant 56 : index
    %c0_339 = arith.constant 0 : index
    %950 = vector.load %arg20[%c56_338, %c0_339] : memref<64x512xf32, #tpu.memory_space<vmem>>, vector<8x512xf32>
    tpu.vector_store %arg20[%c56_338, %c0_339], %949 {strides = array<i32>} : memref<64x512xf32, #tpu.memory_space<vmem>>, vector<8x512xf32>,
    %951 = arith.truncf %914 : vector<8x128xf32> to vector<8x128xbf16>
    %c0_340 = arith.constant 0 : index
    %c0_341 = arith.constant 0 : index
    %952 = vector.load %arg20[%c0_340, %c0_341] : memref<64x512xf32, #tpu.memory_space<vmem>>, vector<8x512xf32>
    %c0_342 = arith.constant 0 : index
    %c0_343 = arith.constant 0 : index
    %953 = vector.load %arg11[%c0_342, %c0_343] : memref<128x512xbf16, #tpu.memory_space<vmem>>, vector<128x512xbf16>
    %cst_344 = arith.constant dense<0.000000e+00> : vector<8x512xf32>
    %954 = tpu.matmul %951, %953, %cst_344 {dimension_numbers = #tpu.dot_dimension_numbers<[1], [0], [0], [1], [0, 0, 1, 1], [], []>} : vector<8x128xbf16>, vector<128x512xbf16>, vector<8x512xf32> -> vector<8x512xf32>
    %955 = arith.addf %952, %954 : vector<8x512xf32>
    %956 = vector.extract_strided_slice %955 {offsets = [0, 0], sizes = [8, 384], strides = [1, 1]} : vector<8x512xf32> to vector<8x384xf32>
    %cst_345 = arith.constant 5.000000e-01 : f32
    %957 = vector.broadcast %cst_345 : f32 to vector<8x384xf32>
    %958 = arith.mulf %957, %956 : vector<8x384xf32>
    %959 = math.tanh %958 : vector<8x384xf32>
    %cst_346 = arith.constant 5.000000e-01 : f32
    %960 = vector.broadcast %cst_346 : f32 to vector<8x384xf32>
    %961 = arith.mulf %960, %959 : vector<8x384xf32>
    %cst_347 = arith.constant 5.000000e-01 : f32
    %962 = vector.broadcast %cst_347 : f32 to vector<8x384xf32>
    %963 = arith.addf %961, %962 : vector<8x384xf32>
    %964 = vector.extract_strided_slice %963 {offsets = [0, 0], sizes = [8, 128], strides = [1, 1]} : vector<8x384xf32> to vector<8x128xf32>
    %965 = vector.extract_strided_slice %963 {offsets = [0, 128], sizes = [8, 128], strides = [1, 1]} : vector<8x384xf32> to vector<8x128xf32>
    %966 = vector.extract_strided_slice %963 {offsets = [0, 256], sizes = [8, 128], strides = [1, 1]} : vector<8x384xf32> to vector<8x128xf32>
    %967 = vector.extract_strided_slice %955 {offsets = [0, 384], sizes = [8, 128], strides = [1, 1]} : vector<8x512xf32> to vector<8x128xf32>
    %968 = math.tanh %967 : vector<8x128xf32>
    %969 = arith.mulf %965, %912 : vector<8x128xf32>
    %970 = arith.mulf %964, %968 : vector<8x128xf32>
    %971 = arith.addf %969, %970 : vector<8x128xf32>
    %972 = math.tanh %971 : vector<8x128xf32>
    %973 = arith.mulf %966, %972 : vector<8x128xf32>
    %974 = arith.truncf %973 : vector<8x128xf32> to vector<8x128xbf16>
    %c8_348 = arith.constant 8 : index
    %c0_349 = arith.constant 0 : index
    %975 = vector.load %arg20[%c8_348, %c0_349] : memref<64x512xf32, #tpu.memory_space<vmem>>, vector<8x512xf32>
    %c0_350 = arith.constant 0 : index
    %c0_351 = arith.constant 0 : index
    %976 = vector.load %arg11[%c0_350, %c0_351] : memref<128x512xbf16, #tpu.memory_space<vmem>>, vector<128x512xbf16>
    %cst_352 = arith.constant dense<0.000000e+00> : vector<8x512xf32>
    %977 = tpu.matmul %974, %976, %cst_352 {dimension_numbers = #tpu.dot_dimension_numbers<[1], [0], [0], [1], [0, 0, 1, 1], [], []>} : vector<8x128xbf16>, vector<128x512xbf16>, vector<8x512xf32> -> vector<8x512xf32>
    %978 = arith.addf %975, %977 : vector<8x512xf32>
    %979 = vector.extract_strided_slice %978 {offsets = [0, 0], sizes = [8, 384], strides = [1, 1]} : vector<8x512xf32> to vector<8x384xf32>
    %cst_353 = arith.constant 5.000000e-01 : f32
    %980 = vector.broadcast %cst_353 : f32 to vector<8x384xf32>
    %981 = arith.mulf %980, %979 : vector<8x384xf32>
    %982 = math.tanh %981 : vector<8x384xf32>
    %cst_354 = arith.constant 5.000000e-01 : f32
    %983 = vector.broadcast %cst_354 : f32 to vector<8x384xf32>
    %984 = arith.mulf %983, %982 : vector<8x384xf32>
    %cst_355 = arith.constant 5.000000e-01 : f32
    %985 = vector.broadcast %cst_355 : f32 to vector<8x384xf32>
    %986 = arith.addf %984, %985 : vector<8x384xf32>
    %987 = vector.extract_strided_slice %986 {offsets = [0, 0], sizes = [8, 128], strides = [1, 1]} : vector<8x384xf32> to vector<8x128xf32>
    %988 = vector.extract_strided_slice %986 {offsets = [0, 128], sizes = [8, 128], strides = [1, 1]} : vector<8x384xf32> to vector<8x128xf32>
    %989 = vector.extract_strided_slice %986 {offsets = [0, 256], sizes = [8, 128], strides = [1, 1]} : vector<8x384xf32> to vector<8x128xf32>
    %990 = vector.extract_strided_slice %978 {offsets = [0, 384], sizes = [8, 128], strides = [1, 1]} : vector<8x512xf32> to vector<8x128xf32>
    %991 = math.tanh %990 : vector<8x128xf32>
    %992 = arith.mulf %988, %971 : vector<8x128xf32>
    %993 = arith.mulf %987, %991 : vector<8x128xf32>
    %994 = arith.addf %992, %993 : vector<8x128xf32>
    %995 = math.tanh %994 : vector<8x128xf32>
    %996 = arith.mulf %989, %995 : vector<8x128xf32>
    %997 = arith.truncf %996 : vector<8x128xf32> to vector<8x128xbf16>
    %c16_356 = arith.constant 16 : index
    %c0_357 = arith.constant 0 : index
    %998 = vector.load %arg20[%c16_356, %c0_357] : memref<64x512xf32, #tpu.memory_space<vmem>>, vector<8x512xf32>
    %c0_358 = arith.constant 0 : index
    %c0_359 = arith.constant 0 : index
    %999 = vector.load %arg11[%c0_358, %c0_359] : memref<128x512xbf16, #tpu.memory_space<vmem>>, vector<128x512xbf16>
    %cst_360 = arith.constant dense<0.000000e+00> : vector<8x512xf32>
    %1000 = tpu.matmul %997, %999, %cst_360 {dimension_numbers = #tpu.dot_dimension_numbers<[1], [0], [0], [1], [0, 0, 1, 1], [], []>} : vector<8x128xbf16>, vector<128x512xbf16>, vector<8x512xf32> -> vector<8x512xf32>
    %1001 = arith.addf %998, %1000 : vector<8x512xf32>
    %1002 = vector.extract_strided_slice %1001 {offsets = [0, 0], sizes = [8, 384], strides = [1, 1]} : vector<8x512xf32> to vector<8x384xf32>
    %cst_361 = arith.constant 5.000000e-01 : f32
    %1003 = vector.broadcast %cst_361 : f32 to vector<8x384xf32>
    %1004 = arith.mulf %1003, %1002 : vector<8x384xf32>
    %1005 = math.tanh %1004 : vector<8x384xf32>
    %cst_362 = arith.constant 5.000000e-01 : f32
    %1006 = vector.broadcast %cst_362 : f32 to vector<8x384xf32>
    %1007 = arith.mulf %1006, %1005 : vector<8x384xf32>
    %cst_363 = arith.constant 5.000000e-01 : f32
    %1008 = vector.broadcast %cst_363 : f32 to vector<8x384xf32>
    %1009 = arith.addf %1007, %1008 : vector<8x384xf32>
    %1010 = vector.extract_strided_slice %1009 {offsets = [0, 0], sizes = [8, 128], strides = [1, 1]} : vector<8x384xf32> to vector<8x128xf32>
    %1011 = vector.extract_strided_slice %1009 {offsets = [0, 128], sizes = [8, 128], strides = [1, 1]} : vector<8x384xf32> to vector<8x128xf32>
    %1012 = vector.extract_strided_slice %1009 {offsets = [0, 256], sizes = [8, 128], strides = [1, 1]} : vector<8x384xf32> to vector<8x128xf32>
    %1013 = vector.extract_strided_slice %1001 {offsets = [0, 384], sizes = [8, 128], strides = [1, 1]} : vector<8x512xf32> to vector<8x128xf32>
    %1014 = math.tanh %1013 : vector<8x128xf32>
    %1015 = arith.mulf %1011, %994 : vector<8x128xf32>
    %1016 = arith.mulf %1010, %1014 : vector<8x128xf32>
    %1017 = arith.addf %1015, %1016 : vector<8x128xf32>
    %1018 = math.tanh %1017 : vector<8x128xf32>
    %1019 = arith.mulf %1012, %1018 : vector<8x128xf32>
    %1020 = arith.truncf %1019 : vector<8x128xf32> to vector<8x128xbf16>
    %c24_364 = arith.constant 24 : index
    %c0_365 = arith.constant 0 : index
    %1021 = vector.load %arg20[%c24_364, %c0_365] : memref<64x512xf32, #tpu.memory_space<vmem>>, vector<8x512xf32>
    %c0_366 = arith.constant 0 : index
    %c0_367 = arith.constant 0 : index
    %1022 = vector.load %arg11[%c0_366, %c0_367] : memref<128x512xbf16, #tpu.memory_space<vmem>>, vector<128x512xbf16>
    %cst_368 = arith.constant dense<0.000000e+00> : vector<8x512xf32>
    %1023 = tpu.matmul %1020, %1022, %cst_368 {dimension_numbers = #tpu.dot_dimension_numbers<[1], [0], [0], [1], [0, 0, 1, 1], [], []>} : vector<8x128xbf16>, vector<128x512xbf16>, vector<8x512xf32> -> vector<8x512xf32>
    %1024 = arith.addf %1021, %1023 : vector<8x512xf32>
    %1025 = vector.extract_strided_slice %1024 {offsets = [0, 0], sizes = [8, 384], strides = [1, 1]} : vector<8x512xf32> to vector<8x384xf32>
    %cst_369 = arith.constant 5.000000e-01 : f32
    %1026 = vector.broadcast %cst_369 : f32 to vector<8x384xf32>
    %1027 = arith.mulf %1026, %1025 : vector<8x384xf32>
    %1028 = math.tanh %1027 : vector<8x384xf32>
    %cst_370 = arith.constant 5.000000e-01 : f32
    %1029 = vector.broadcast %cst_370 : f32 to vector<8x384xf32>
    %1030 = arith.mulf %1029, %1028 : vector<8x384xf32>
    %cst_371 = arith.constant 5.000000e-01 : f32
    %1031 = vector.broadcast %cst_371 : f32 to vector<8x384xf32>
    %1032 = arith.addf %1030, %1031 : vector<8x384xf32>
    %1033 = vector.extract_strided_slice %1032 {offsets = [0, 0], sizes = [8, 128], strides = [1, 1]} : vector<8x384xf32> to vector<8x128xf32>
    %1034 = vector.extract_strided_slice %1032 {offsets = [0, 128], sizes = [8, 128], strides = [1, 1]} : vector<8x384xf32> to vector<8x128xf32>
    %1035 = vector.extract_strided_slice %1032 {offsets = [0, 256], sizes = [8, 128], strides = [1, 1]} : vector<8x384xf32> to vector<8x128xf32>
    %1036 = vector.extract_strided_slice %1024 {offsets = [0, 384], sizes = [8, 128], strides = [1, 1]} : vector<8x512xf32> to vector<8x128xf32>
    %1037 = math.tanh %1036 : vector<8x128xf32>
    %1038 = arith.mulf %1034, %1017 : vector<8x128xf32>
    %1039 = arith.mulf %1033, %1037 : vector<8x128xf32>
    %1040 = arith.addf %1038, %1039 : vector<8x128xf32>
    %1041 = math.tanh %1040 : vector<8x128xf32>
    %1042 = arith.mulf %1035, %1041 : vector<8x128xf32>
    %1043 = arith.truncf %1042 : vector<8x128xf32> to vector<8x128xbf16>
    %c32_372 = arith.constant 32 : index
    %c0_373 = arith.constant 0 : index
    %1044 = vector.load %arg20[%c32_372, %c0_373] : memref<64x512xf32, #tpu.memory_space<vmem>>, vector<8x512xf32>
    %c0_374 = arith.constant 0 : index
    %c0_375 = arith.constant 0 : index
    %1045 = vector.load %arg11[%c0_374, %c0_375] : memref<128x512xbf16, #tpu.memory_space<vmem>>, vector<128x512xbf16>
    %cst_376 = arith.constant dense<0.000000e+00> : vector<8x512xf32>
    %1046 = tpu.matmul %1043, %1045, %cst_376 {dimension_numbers = #tpu.dot_dimension_numbers<[1], [0], [0], [1], [0, 0, 1, 1], [], []>} : vector<8x128xbf16>, vector<128x512xbf16>, vector<8x512xf32> -> vector<8x512xf32>
    %1047 = arith.addf %1044, %1046 : vector<8x512xf32>
    %1048 = vector.extract_strided_slice %1047 {offsets = [0, 0], sizes = [8, 384], strides = [1, 1]} : vector<8x512xf32> to vector<8x384xf32>
    %cst_377 = arith.constant 5.000000e-01 : f32
    %1049 = vector.broadcast %cst_377 : f32 to vector<8x384xf32>
    %1050 = arith.mulf %1049, %1048 : vector<8x384xf32>
    %1051 = math.tanh %1050 : vector<8x384xf32>
    %cst_378 = arith.constant 5.000000e-01 : f32
    %1052 = vector.broadcast %cst_378 : f32 to vector<8x384xf32>
    %1053 = arith.mulf %1052, %1051 : vector<8x384xf32>
    %cst_379 = arith.constant 5.000000e-01 : f32
    %1054 = vector.broadcast %cst_379 : f32 to vector<8x384xf32>
    %1055 = arith.addf %1053, %1054 : vector<8x384xf32>
    %1056 = vector.extract_strided_slice %1055 {offsets = [0, 0], sizes = [8, 128], strides = [1, 1]} : vector<8x384xf32> to vector<8x128xf32>
    %1057 = vector.extract_strided_slice %1055 {offsets = [0, 128], sizes = [8, 128], strides = [1, 1]} : vector<8x384xf32> to vector<8x128xf32>
    %1058 = vector.extract_strided_slice %1055 {offsets = [0, 256], sizes = [8, 128], strides = [1, 1]} : vector<8x384xf32> to vector<8x128xf32>
    %1059 = vector.extract_strided_slice %1047 {offsets = [0, 384], sizes = [8, 128], strides = [1, 1]} : vector<8x512xf32> to vector<8x128xf32>
    %1060 = math.tanh %1059 : vector<8x128xf32>
    %1061 = arith.mulf %1057, %1040 : vector<8x128xf32>
    %1062 = arith.mulf %1056, %1060 : vector<8x128xf32>
    %1063 = arith.addf %1061, %1062 : vector<8x128xf32>
    %1064 = math.tanh %1063 : vector<8x128xf32>
    %1065 = arith.mulf %1058, %1064 : vector<8x128xf32>
    %1066 = arith.truncf %1065 : vector<8x128xf32> to vector<8x128xbf16>
    %c40_380 = arith.constant 40 : index
    %c0_381 = arith.constant 0 : index
    %1067 = vector.load %arg20[%c40_380, %c0_381] : memref<64x512xf32, #tpu.memory_space<vmem>>, vector<8x512xf32>
    %c0_382 = arith.constant 0 : index
    %c0_383 = arith.constant 0 : index
    %1068 = vector.load %arg11[%c0_382, %c0_383] : memref<128x512xbf16, #tpu.memory_space<vmem>>, vector<128x512xbf16>
    %cst_384 = arith.constant dense<0.000000e+00> : vector<8x512xf32>
    %1069 = tpu.matmul %1066, %1068, %cst_384 {dimension_numbers = #tpu.dot_dimension_numbers<[1], [0], [0], [1], [0, 0, 1, 1], [], []>} : vector<8x128xbf16>, vector<128x512xbf16>, vector<8x512xf32> -> vector<8x512xf32>
    %1070 = arith.addf %1067, %1069 : vector<8x512xf32>
    %1071 = vector.extract_strided_slice %1070 {offsets = [0, 0], sizes = [8, 384], strides = [1, 1]} : vector<8x512xf32> to vector<8x384xf32>
    %cst_385 = arith.constant 5.000000e-01 : f32
    %1072 = vector.broadcast %cst_385 : f32 to vector<8x384xf32>
    %1073 = arith.mulf %1072, %1071 : vector<8x384xf32>
    %1074 = math.tanh %1073 : vector<8x384xf32>
    %cst_386 = arith.constant 5.000000e-01 : f32
    %1075 = vector.broadcast %cst_386 : f32 to vector<8x384xf32>
    %1076 = arith.mulf %1075, %1074 : vector<8x384xf32>
    %cst_387 = arith.constant 5.000000e-01 : f32
    %1077 = vector.broadcast %cst_387 : f32 to vector<8x384xf32>
    %1078 = arith.addf %1076, %1077 : vector<8x384xf32>
    %1079 = vector.extract_strided_slice %1078 {offsets = [0, 0], sizes = [8, 128], strides = [1, 1]} : vector<8x384xf32> to vector<8x128xf32>
    %1080 = vector.extract_strided_slice %1078 {offsets = [0, 128], sizes = [8, 128], strides = [1, 1]} : vector<8x384xf32> to vector<8x128xf32>
    %1081 = vector.extract_strided_slice %1078 {offsets = [0, 256], sizes = [8, 128], strides = [1, 1]} : vector<8x384xf32> to vector<8x128xf32>
    %1082 = vector.extract_strided_slice %1070 {offsets = [0, 384], sizes = [8, 128], strides = [1, 1]} : vector<8x512xf32> to vector<8x128xf32>
    %1083 = math.tanh %1082 : vector<8x128xf32>
    %1084 = arith.mulf %1080, %1063 : vector<8x128xf32>
    %1085 = arith.mulf %1079, %1083 : vector<8x128xf32>
    %1086 = arith.addf %1084, %1085 : vector<8x128xf32>
    %1087 = math.tanh %1086 : vector<8x128xf32>
    %1088 = arith.mulf %1081, %1087 : vector<8x128xf32>
    %1089 = arith.truncf %1088 : vector<8x128xf32> to vector<8x128xbf16>
    %c48_388 = arith.constant 48 : index
    %c0_389 = arith.constant 0 : index
    %1090 = vector.load %arg20[%c48_388, %c0_389] : memref<64x512xf32, #tpu.memory_space<vmem>>, vector<8x512xf32>
    %c0_390 = arith.constant 0 : index
    %c0_391 = arith.constant 0 : index
    %1091 = vector.load %arg11[%c0_390, %c0_391] : memref<128x512xbf16, #tpu.memory_space<vmem>>, vector<128x512xbf16>
    %cst_392 = arith.constant dense<0.000000e+00> : vector<8x512xf32>
    %1092 = tpu.matmul %1089, %1091, %cst_392 {dimension_numbers = #tpu.dot_dimension_numbers<[1], [0], [0], [1], [0, 0, 1, 1], [], []>} : vector<8x128xbf16>, vector<128x512xbf16>, vector<8x512xf32> -> vector<8x512xf32>
    %1093 = arith.addf %1090, %1092 : vector<8x512xf32>
    %1094 = vector.extract_strided_slice %1093 {offsets = [0, 0], sizes = [8, 384], strides = [1, 1]} : vector<8x512xf32> to vector<8x384xf32>
    %cst_393 = arith.constant 5.000000e-01 : f32
    %1095 = vector.broadcast %cst_393 : f32 to vector<8x384xf32>
    %1096 = arith.mulf %1095, %1094 : vector<8x384xf32>
    %1097 = math.tanh %1096 : vector<8x384xf32>
    %cst_394 = arith.constant 5.000000e-01 : f32
    %1098 = vector.broadcast %cst_394 : f32 to vector<8x384xf32>
    %1099 = arith.mulf %1098, %1097 : vector<8x384xf32>
    %cst_395 = arith.constant 5.000000e-01 : f32
    %1100 = vector.broadcast %cst_395 : f32 to vector<8x384xf32>
    %1101 = arith.addf %1099, %1100 : vector<8x384xf32>
    %1102 = vector.extract_strided_slice %1101 {offsets = [0, 0], sizes = [8, 128], strides = [1, 1]} : vector<8x384xf32> to vector<8x128xf32>
    %1103 = vector.extract_strided_slice %1101 {offsets = [0, 128], sizes = [8, 128], strides = [1, 1]} : vector<8x384xf32> to vector<8x128xf32>
    %1104 = vector.extract_strided_slice %1101 {offsets = [0, 256], sizes = [8, 128], strides = [1, 1]} : vector<8x384xf32> to vector<8x128xf32>
    %1105 = vector.extract_strided_slice %1093 {offsets = [0, 384], sizes = [8, 128], strides = [1, 1]} : vector<8x512xf32> to vector<8x128xf32>
    %1106 = math.tanh %1105 : vector<8x128xf32>
    %1107 = arith.mulf %1103, %1086 : vector<8x128xf32>
    %1108 = arith.mulf %1102, %1106 : vector<8x128xf32>
    %1109 = arith.addf %1107, %1108 : vector<8x128xf32>
    %1110 = math.tanh %1109 : vector<8x128xf32>
    %1111 = arith.mulf %1104, %1110 : vector<8x128xf32>
    %1112 = arith.truncf %1111 : vector<8x128xf32> to vector<8x128xbf16>
    %c56_396 = arith.constant 56 : index
    %c0_397 = arith.constant 0 : index
    %1113 = vector.load %arg20[%c56_396, %c0_397] : memref<64x512xf32, #tpu.memory_space<vmem>>, vector<8x512xf32>
    %c0_398 = arith.constant 0 : index
    %c0_399 = arith.constant 0 : index
    %1114 = vector.load %arg11[%c0_398, %c0_399] : memref<128x512xbf16, #tpu.memory_space<vmem>>, vector<128x512xbf16>
    %cst_400 = arith.constant dense<0.000000e+00> : vector<8x512xf32>
    %1115 = tpu.matmul %1112, %1114, %cst_400 {dimension_numbers = #tpu.dot_dimension_numbers<[1], [0], [0], [1], [0, 0, 1, 1], [], []>} : vector<8x128xbf16>, vector<128x512xbf16>, vector<8x512xf32> -> vector<8x512xf32>
    %1116 = arith.addf %1113, %1115 : vector<8x512xf32>
    %1117 = vector.extract_strided_slice %1116 {offsets = [0, 0], sizes = [8, 384], strides = [1, 1]} : vector<8x512xf32> to vector<8x384xf32>
    %cst_401 = arith.constant 5.000000e-01 : f32
    %1118 = vector.broadcast %cst_401 : f32 to vector<8x384xf32>
    %1119 = arith.mulf %1118, %1117 : vector<8x384xf32>
    %1120 = math.tanh %1119 : vector<8x384xf32>
    %cst_402 = arith.constant 5.000000e-01 : f32
    %1121 = vector.broadcast %cst_402 : f32 to vector<8x384xf32>
    %1122 = arith.mulf %1121, %1120 : vector<8x384xf32>
    %cst_403 = arith.constant 5.000000e-01 : f32
    %1123 = vector.broadcast %cst_403 : f32 to vector<8x384xf32>
    %1124 = arith.addf %1122, %1123 : vector<8x384xf32>
    %1125 = vector.extract_strided_slice %1124 {offsets = [0, 0], sizes = [8, 128], strides = [1, 1]} : vector<8x384xf32> to vector<8x128xf32>
    %1126 = vector.extract_strided_slice %1124 {offsets = [0, 128], sizes = [8, 128], strides = [1, 1]} : vector<8x384xf32> to vector<8x128xf32>
    %1127 = vector.extract_strided_slice %1124 {offsets = [0, 256], sizes = [8, 128], strides = [1, 1]} : vector<8x384xf32> to vector<8x128xf32>
    %1128 = vector.extract_strided_slice %1116 {offsets = [0, 384], sizes = [8, 128], strides = [1, 1]} : vector<8x512xf32> to vector<8x128xf32>
    %1129 = math.tanh %1128 : vector<8x128xf32>
    %1130 = arith.mulf %1126, %1109 : vector<8x128xf32>
    %1131 = arith.mulf %1125, %1129 : vector<8x128xf32>
    %1132 = arith.addf %1130, %1131 : vector<8x128xf32>
    %1133 = math.tanh %1132 : vector<8x128xf32>
    %1134 = arith.mulf %1127, %1133 : vector<8x128xf32>
    %c0_404 = arith.constant 0 : index
    %c0_405 = arith.constant 0 : index
    %1135 = vector.load %arg12[%c0_404, %c0_405] : memref<1x128xf32, #tpu.memory_space<vmem>>, vector<1x128xf32>
    %c0_406 = arith.constant 0 : index
    %c0_407 = arith.constant 0 : index
    %1136 = vector.load %arg13[%c0_406, %c0_407] : memref<1x128xf32, #tpu.memory_space<vmem>>, vector<1x128xf32>
    %cst_408 = arith.constant dense<0.000000e+00> : vector<8xf32>
    %1137 = vector.multi_reduction <add>, %1134, %cst_408 [1] : vector<8x128xf32> to vector<8xf32>
    %1138 = vector.shape_cast %1137 : vector<8xf32> to vector<8x1xf32>
    %cst_409 = arith.constant 1.280000e+02 : f32
    %1139 = vector.broadcast %cst_409 : f32 to vector<8x1xf32>
    %1140 = arith.divf %1138, %1139 : vector<8x1xf32>
    %1141 = arith.mulf %1134, %1134 : vector<8x128xf32>
    %cst_410 = arith.constant dense<0.000000e+00> : vector<8xf32>
    %1142 = vector.multi_reduction <add>, %1141, %cst_410 [1] : vector<8x128xf32> to vector<8xf32>
    %1143 = vector.shape_cast %1142 : vector<8xf32> to vector<8x1xf32>
    %cst_411 = arith.constant 1.280000e+02 : f32
    %1144 = vector.broadcast %cst_411 : f32 to vector<8x1xf32>
    %1145 = arith.divf %1143, %1144 : vector<8x1xf32>
    %1146 = arith.mulf %1140, %1140 : vector<8x1xf32>
    %1147 = arith.subf %1145, %1146 : vector<8x1xf32>
    %1148 = vector.broadcast %1140 : vector<8x1xf32> to vector<8x128xf32>
    %1149 = arith.subf %1134, %1148 : vector<8x128xf32>
    %cst_412 = arith.constant 9.99999974E-6 : f32
    %1150 = vector.broadcast %cst_412 : f32 to vector<8x1xf32>
    %1151 = arith.addf %1147, %1150 : vector<8x1xf32>
    %1152 = math.rsqrt %1151 : vector<8x1xf32>
    %1153 = vector.broadcast %1152 : vector<8x1xf32> to vector<8x128xf32>
    %1154 = arith.mulf %1149, %1153 : vector<8x128xf32>
    %1155 = vector.broadcast %1135 : vector<1x128xf32> to vector<8x128xf32>
    %1156 = arith.mulf %1154, %1155 : vector<8x128xf32>
    %1157 = vector.broadcast %1136 : vector<1x128xf32> to vector<8x128xf32>
    %1158 = arith.addf %1156, %1157 : vector<8x128xf32>
    %cst_413 = arith.constant 5.000000e-01 : f32
    %1159 = vector.broadcast %cst_413 : f32 to vector<8x128xf32>
    %1160 = arith.mulf %1159, %1158 : vector<8x128xf32>
    %1161 = math.tanh %1160 : vector<8x128xf32>
    %cst_414 = arith.constant 5.000000e-01 : f32
    %1162 = vector.broadcast %cst_414 : f32 to vector<8x128xf32>
    %1163 = arith.mulf %1162, %1161 : vector<8x128xf32>
    %cst_415 = arith.constant 5.000000e-01 : f32
    %1164 = vector.broadcast %cst_415 : f32 to vector<8x128xf32>
    %1165 = arith.addf %1163, %1164 : vector<8x128xf32>
    %1166 = arith.mulf %1158, %1165 : vector<8x128xf32>
    %c0_416 = arith.constant 0 : index
    %c0_417 = arith.constant 0 : index
    %1167 = vector.load %arg14[%c0_416, %c0_417] : memref<1x128xf32, #tpu.memory_space<vmem>>, vector<1x128xf32>
    %c0_418 = arith.constant 0 : index
    %c0_419 = arith.constant 0 : index
    %1168 = vector.load %arg15[%c0_418, %c0_419] : memref<1x128xf32, #tpu.memory_space<vmem>>, vector<1x128xf32>
    %cst_420 = arith.constant dense<0.000000e+00> : vector<8xf32>
    %1169 = vector.multi_reduction <add>, %1166, %cst_420 [1] : vector<8x128xf32> to vector<8xf32>
    %1170 = vector.shape_cast %1169 : vector<8xf32> to vector<8x1xf32>
    %cst_421 = arith.constant 1.280000e+02 : f32
    %1171 = vector.broadcast %cst_421 : f32 to vector<8x1xf32>
    %1172 = arith.divf %1170, %1171 : vector<8x1xf32>
    %1173 = arith.mulf %1166, %1166 : vector<8x128xf32>
    %cst_422 = arith.constant dense<0.000000e+00> : vector<8xf32>
    %1174 = vector.multi_reduction <add>, %1173, %cst_422 [1] : vector<8x128xf32> to vector<8xf32>
    %1175 = vector.shape_cast %1174 : vector<8xf32> to vector<8x1xf32>
    %cst_423 = arith.constant 1.280000e+02 : f32
    %1176 = vector.broadcast %cst_423 : f32 to vector<8x1xf32>
    %1177 = arith.divf %1175, %1176 : vector<8x1xf32>
    %1178 = arith.mulf %1172, %1172 : vector<8x1xf32>
    %1179 = arith.subf %1177, %1178 : vector<8x1xf32>
    %1180 = vector.broadcast %1172 : vector<8x1xf32> to vector<8x128xf32>
    %1181 = arith.subf %1166, %1180 : vector<8x128xf32>
    %cst_424 = arith.constant 9.99999974E-6 : f32
    %1182 = vector.broadcast %cst_424 : f32 to vector<8x1xf32>
    %1183 = arith.addf %1179, %1182 : vector<8x1xf32>
    %1184 = math.rsqrt %1183 : vector<8x1xf32>
    %1185 = vector.broadcast %1184 : vector<8x1xf32> to vector<8x128xf32>
    %1186 = arith.mulf %1181, %1185 : vector<8x128xf32>
    %1187 = vector.broadcast %1167 : vector<1x128xf32> to vector<8x128xf32>
    %1188 = arith.mulf %1186, %1187 : vector<8x128xf32>
    %1189 = vector.broadcast %1168 : vector<1x128xf32> to vector<8x128xf32>
    %1190 = arith.addf %1188, %1189 : vector<8x128xf32>
    %cst_425 = arith.constant 5.000000e-01 : f32
    %1191 = vector.broadcast %cst_425 : f32 to vector<8x128xf32>
    %1192 = arith.mulf %1191, %1190 : vector<8x128xf32>
    %1193 = math.tanh %1192 : vector<8x128xf32>
    %cst_426 = arith.constant 5.000000e-01 : f32
    %1194 = vector.broadcast %cst_426 : f32 to vector<8x128xf32>
    %1195 = arith.mulf %1194, %1193 : vector<8x128xf32>
    %cst_427 = arith.constant 5.000000e-01 : f32
    %1196 = vector.broadcast %cst_427 : f32 to vector<8x128xf32>
    %1197 = arith.addf %1195, %1196 : vector<8x128xf32>
    %1198 = arith.mulf %1190, %1197 : vector<8x128xf32>
    %c0_428 = arith.constant 0 : index
    %c0_429 = arith.constant 0 : index
    %1199 = vector.load %arg16[%c0_428, %c0_429] : memref<1x128xf32, #tpu.memory_space<vmem>>, vector<1x128xf32>
    %1200 = vector.broadcast %1199 : vector<1x128xf32> to vector<8x128xf32>
    %1201 = arith.mulf %1198, %1200 : vector<8x128xf32>
    %cst_430 = arith.constant dense<0.000000e+00> : vector<8xf32>
    %1202 = vector.multi_reduction <add>, %1201, %cst_430 [1] : vector<8x128xf32> to vector<8xf32>
    %1203 = vector.shape_cast %1202 : vector<8xf32> to vector<8x1xf32>
    %c0_431 = arith.constant 0 : index
    %c0_432 = arith.constant 0 : index
    %1204 = vector.load %arg17[%c0_431, %c0_432] : memref<1x1xf32, #tpu.memory_space<vmem>>, vector<1x1xf32>
    %1205 = vector.broadcast %1204 : vector<1x1xf32> to vector<8x1xf32>
    %1206 = arith.addf %1203, %1205 : vector<8x1xf32>
    %c0_433 = arith.constant 0 : index
    %c0_434 = arith.constant 0 : index
    %1207 = vector.load %arg18[%c0_433, %c0_434] : memref<8x1xf32, #tpu.memory_space<vmem>>, vector<8x1xf32>
    tpu.vector_store %arg18[%c0_433, %c0_434], %1206 {strides = array<i32>} : memref<8x1xf32, #tpu.memory_space<vmem>>, vector<8x1xf32>,
    return
  }
}

</mosaic_0001>

<llo_original>
// kernel: tpu_custom_call.1
$region0: #{tpu_custom_call.1}
  #allocation0 [shape = 'u32[]', space=smem, size = 0x4, offset = 0x4, fixed_abs, tag = 'smem constant byte address 0x4 - core index']
  #allocation1 [shape = 'u32[144,128]{1,0:T(1,128)}', space=vmem, size = 0x12000, scoped, tag = 'internal scratch']
  #allocation2 [shape = 'f32[64,512]{1,0:T(8,128)}', space=vmem, size = 0x20000, scoped, tag = 'scratch operand']
  #allocation3 [shape = 'f32[64,512]{1,0:T(8,128)}', space=vmem, size = 0x20000, scoped, tag = 'scratch operand']
  #allocation4 [shape = 'f32[1,1]{1,0:T(1,128)S(1)}', space=vmem, size = 0x200, scoped, tag = 'scoped memory for tpu_custom_call.1']
  %s0 = inlined_call_operand.hbm [shape: f32[64,512], index: 0, kind: input, shape index: {}]
  %s1 = inlined_call_operand.hbm [shape: bf16[128,512], index: 1, kind: input, shape index: {}]
  %s2 = inlined_call_operand.vmem [shape: f32[1,128], index: 2, kind: input, shape index: {}]
  %s3 = inlined_call_operand.hbm [shape: f32[1,128], index: 3, kind: input, shape index: {}]
  %s4 = inlined_call_operand.hbm [shape: bf16[128,512], index: 4, kind: input, shape index: {}]
  %s5 = inlined_call_operand.vmem [shape: f32[1,512], index: 5, kind: input, shape index: {}]
  %s6 = inlined_call_operand.hbm [shape: bf16[128,512], index: 6, kind: input, shape index: {}]
  %s7 = inlined_call_operand.vmem [shape: f32[1,128], index: 7, kind: input, shape index: {}]
  %s8 = inlined_call_operand.vmem [shape: f32[1,128], index: 8, kind: input, shape index: {}]
  %s9 = inlined_call_operand.hbm [shape: bf16[128,512], index: 9, kind: input, shape index: {}]
  %s10 = inlined_call_operand.vmem [shape: f32[1,512], index: 10, kind: input, shape index: {}]
  %s11 = inlined_call_operand.hbm [shape: bf16[128,512], index: 11, kind: input, shape index: {}]
  %s12 = inlined_call_operand.vmem [shape: f32[1,128], index: 12, kind: input, shape index: {}]
  %s13 = inlined_call_operand.vmem [shape: f32[1,128], index: 13, kind: input, shape index: {}]
  %s14 = inlined_call_operand.vmem [shape: f32[1,128], index: 14, kind: input, shape index: {}]
  %s15 = inlined_call_operand.vmem [shape: f32[1,128], index: 15, kind: input, shape index: {}]
  %s16 = inlined_call_operand.vmem [shape: f32[1,128], index: 16, kind: input, shape index: {}]
  %s17 = inlined_call_operand.<no memory space> [shape: f32[1,1], index: 17, kind: input, shape index: {}]
  %s18 = inlined_call_operand.vmem [shape: f32[8,1], index: 18, kind: output, shape index: {}]
  %s19 = sld [smem:[#allocation0]]
  $region110: #{tpu_custom_call.1} parent=0
    _
  %s21 = ssub.s32 1, %s19
  %s22 = scalar_select 0, %s21, %s19
  %v23 = vstv %s17
  %24 = vst [vmem:[#allocation4] sm:$0x1] %v23
  $region1: #{tpu_custom_call.1} parent=0
    #allocation5 [shape = 'u8[131072]{0}', space=vmem, size = 0x20000, scoped, tag = 'input window, operand 0, single buffered']
    #allocation6 [shape = 's32[1]{0}', space=sflag, size = 0x4, scoped, tag = 'scoped memory for tpu_custom_call.1']
    #allocation7 [shape = 'u8[131072]{0}', space=vmem, size = 0x20000, scoped, tag = 'input window, operand 1, single buffered']
    #allocation8 [shape = 's32[1]{0}', space=sflag, size = 0x4, scoped, tag = 'scoped memory for tpu_custom_call.1']
    #allocation9 [shape = 'u8[512]{0}', space=vmem, size = 0x400, scoped, tag = 'input window, operand 3, single buffered']
    #allocation10 [shape = 'u8[131072]{0}', space=vmem, size = 0x20000, scoped, tag = 'input window, operand 4, single buffered']
    #allocation11 [shape = 's32[1]{0}', space=sflag, size = 0x4, scoped, tag = 'scoped memory for tpu_custom_call.1']
    #allocation12 [shape = 'u8[131072]{0}', space=vmem, size = 0x20000, scoped, tag = 'input window, operand 6, single buffered']
    #allocation13 [shape = 'u8[131072]{0}', space=vmem, size = 0x20000, scoped, tag = 'input window, operand 9, single buffered']
    #allocation14 [shape = 's32[1]{0}', space=sflag, size = 0x4, scoped, tag = 'scoped memory for tpu_custom_call.1']
    #allocation15 [shape = 'u8[131072]{0}', space=vmem, size = 0x20000, scoped, tag = 'input window, operand 11, single buffered']
    %25 = vsyncpa [#allocation6], 0
    %26 = vsyncpa [#allocation8], 0
    %27 = vsyncpa [#allocation11], 0
    %28 = vsyncpa [#allocation14], 0
    // Predicated region
    $region2: #{tpu_custom_call.1} parent=1 // pred_check
      _
    $region3: #{tpu_custom_call.1} parent=1 // pred_check_branch
      %30 = sbr.rel (0) target = $region5
    $region4: #{tpu_custom_call.1} parent=1 // pred_region
      %s32 = ssub.s32 4096, 4096
      %33 = vsyncadd [#allocation6], %s32
      %s34 = sshll.u32 [#allocation5], 4
      %s35 = int_to_ptr.vmem [resolvable:$true] %s34
      %40 = dma.hbm_to_vmem [thread:$0]  %s0, 4096, %s35, [#allocation6], 512, 512, 32
    $region5: #{tpu_custom_call.1} parent=1 // pred_fallthru
      _
    // Predicated region
    $region6: #{tpu_custom_call.1} parent=1 // pred_check
      _
    $region7: #{tpu_custom_call.1} parent=1 // pred_check_branch
      %42 = sbr.rel (0) target = $region9
    $region8: #{tpu_custom_call.1} parent=1 // pred_region
      %s44 = ssub.s32 4096, 4096
      %45 = vsyncadd [#allocation8], %s44
      %s46 = sshll.u32 [#allocation7], 4
      %s47 = int_to_ptr.vmem [resolvable:$true] %s46
      %52 = dma.hbm_to_vmem [thread:$0]  %s1, 4096, %s47, [#allocation8], 256, 256, 16
    $region9: #{tpu_custom_call.1} parent=1 // pred_fallthru
      _
    // Predicated region
    $region10: #{tpu_custom_call.1} parent=1 // pred_check
      _
    $region11: #{tpu_custom_call.1} parent=1 // pred_check_branch
      %54 = sbr.rel (0) target = $region13
    $region12: #{tpu_custom_call.1} parent=1 // pred_region
      _
    $region13: #{tpu_custom_call.1} parent=1 // pred_fallthru
      _
    // Predicated region
    $region14: #{tpu_custom_call.1} parent=1 // pred_check
      _
    $region15: #{tpu_custom_call.1} parent=1 // pred_check_branch
      %56 = sbr.rel (0) target = $region17
    $region16: #{tpu_custom_call.1} parent=1 // pred_region
      %s58 = ssub.s32 16, 16
      %59 = vsyncadd [#allocation8], %s58
      %s61 = sshll.u32 [#allocation9], 4
      %s62 = int_to_ptr.vmem [resolvable:$true] %s61
      %64 = dma.hbm_to_vmem [thread:$0]  %s3, 16, %s62, [#allocation8]
    $region17: #{tpu_custom_call.1} parent=1 // pred_fallthru
      _
    // Predicated region
    $region18: #{tpu_custom_call.1} parent=1 // pred_check
      _
    $region19: #{tpu_custom_call.1} parent=1 // pred_check_branch
      %66 = sbr.rel (0) target = $region21
    $region20: #{tpu_custom_call.1} parent=1 // pred_region
      %s68 = ssub.s32 4096, 4096
      %69 = vsyncadd [#allocation11], %s68
      %s70 = sshll.u32 [#allocation10], 4
      %s71 = int_to_ptr.vmem [resolvable:$true] %s70
      %76 = dma.hbm_to_vmem [thread:$0]  %s4, 4096, %s71, [#allocation11], 256, 256, 16
    $region21: #{tpu_custom_call.1} parent=1 // pred_fallthru
      _
    // Predicated region
    $region22: #{tpu_custom_call.1} parent=1 // pred_check
      _
    $region23: #{tpu_custom_call.1} parent=1 // pred_check_branch
      %78 = sbr.rel (0) target = $region25
    $region24: #{tpu_custom_call.1} parent=1 // pred_region
      _
    $region25: #{tpu_custom_call.1} parent=1 // pred_fallthru
      _
    // Predicated region
    $region26: #{tpu_custom_call.1} parent=1 // pred_check
      _
    $region27: #{tpu_custom_call.1} parent=1 // pred_check_branch
      %80 = sbr.rel (0) target = $region29
    $region28: #{tpu_custom_call.1} parent=1 // pred_region
      %s82 = ssub.s32 4096, 4096
      %83 = vsyncadd [#allocation11], %s82
      %s84 = sshll.u32 [#allocation12], 4
      %s85 = int_to_ptr.vmem [resolvable:$true] %s84
      %90 = dma.hbm_to_vmem [thread:$0]  %s6, 4096, %s85, [#allocation11], 256, 256, 16
    $region29: #{tpu_custom_call.1} parent=1 // pred_fallthru
      _
    // Predicated region
    $region30: #{tpu_custom_call.1} parent=1 // pred_check
      _
    $region31: #{tpu_custom_call.1} parent=1 // pred_check_branch
      %92 = sbr.rel (0) target = $region33
    $region32: #{tpu_custom_call.1} parent=1 // pred_region
      _
    $region33: #{tpu_custom_call.1} parent=1 // pred_fallthru
      _
    // Predicated region
    $region34: #{tpu_custom_call.1} parent=1 // pred_check
      _
    $region35: #{tpu_custom_call.1} parent=1 // pred_check_branch
      %94 = sbr.rel (0) target = $region37
    $region36: #{tpu_custom_call.1} parent=1 // pred_region
      _
    $region37: #{tpu_custom_call.1} parent=1 // pred_fallthru
      _
    // Predicated region
    $region38: #{tpu_custom_call.1} parent=1 // pred_check
      _
    $region39: #{tpu_custom_call.1} parent=1 // pred_check_branch
      %96 = sbr.rel (0) target = $region41
    $region40: #{tpu_custom_call.1} parent=1 // pred_region
      %s98 = ssub.s32 4096, 4096
      %99 = vsyncadd [#allocation14], %s98
      %s100 = sshll.u32 [#allocation13], 4
      %s101 = int_to_ptr.vmem [resolvable:$true] %s100
      %106 = dma.hbm_to_vmem [thread:$0]  %s9, 4096, %s101, [#allocation14], 256, 256, 16
    $region41: #{tpu_custom_call.1} parent=1 // pred_fallthru
      _
    // Predicated region
    $region42: #{tpu_custom_call.1} parent=1 // pred_check
      _
    $region43: #{tpu_custom_call.1} parent=1 // pred_check_branch
      %108 = sbr.rel (0) target = $region45
    $region44: #{tpu_custom_call.1} parent=1 // pred_region
      _
    $region45: #{tpu_custom_call.1} parent=1 // pred_fallthru
      _
    // Predicated region
    $region46: #{tpu_custom_call.1} parent=1 // pred_check
      _
    $region47: #{tpu_custom_call.1} parent=1 // pred_check_branch
      %110 = sbr.rel (0) target = $region49
    $region48: #{tpu_custom_call.1} parent=1 // pred_region
      %s112 = ssub.s32 4096, 4096
      %113 = vsyncadd [#allocation14], %s112
      %s114 = sshll.u32 [#allocation15], 4
      %s115 = int_to_ptr.vmem [resolvable:$true] %s114
      %120 = dma.hbm_to_vmem [thread:$0]  %s11, 4096, %s115, [#allocation14], 256, 256, 16
    $region49: #{tpu_custom_call.1} parent=1 // pred_fallthru
      _
    // Predicated region
    $region50: #{tpu_custom_call.1} parent=1 // pred_check
      _
    $region51: #{tpu_custom_call.1} parent=1 // pred_check_branch
      %122 = sbr.rel (0) target = $region53
    $region52: #{tpu_custom_call.1} parent=1 // pred_region
      _
    $region53: #{tpu_custom_call.1} parent=1 // pred_fallthru
      _
    // Predicated region
    $region54: #{tpu_custom_call.1} parent=1 // pred_check
      _
    $region55: #{tpu_custom_call.1} parent=1 // pred_check_branch
      %124 = sbr.rel (0) target = $region57
    $region56: #{tpu_custom_call.1} parent=1 // pred_region
      _
    $region57: #{tpu_custom_call.1} parent=1 // pred_fallthru
      _
    // Predicated region
    $region58: #{tpu_custom_call.1} parent=1 // pred_check
      _
    $region59: #{tpu_custom_call.1} parent=1 // pred_check_branch
      %126 = sbr.rel (0) target = $region61
    $region60: #{tpu_custom_call.1} parent=1 // pred_region
      _
    $region61: #{tpu_custom_call.1} parent=1 // pred_fallthru
      _
    // Predicated region
    $region62: #{tpu_custom_call.1} parent=1 // pred_check
      _
    $region63: #{tpu_custom_call.1} parent=1 // pred_check_branch
      %128 = sbr.rel (0) target = $region65
    $region64: #{tpu_custom_call.1} parent=1 // pred_region
      _
    $region65: #{tpu_custom_call.1} parent=1 // pred_fallthru
      _
    // Predicated region
    $region66: #{tpu_custom_call.1} parent=1 // pred_check
      _
    $region67: #{tpu_custom_call.1} parent=1 // pred_check_branch
      %130 = sbr.rel (0) target = $region69
    $region68: #{tpu_custom_call.1} parent=1 // pred_region
      _
    $region69: #{tpu_custom_call.1} parent=1 // pred_fallthru
      _
    // Predicated region
    $region70: #{tpu_custom_call.1} parent=1 // pred_check
      _
    $region71: #{tpu_custom_call.1} parent=1 // pred_check_branch
      %132 = sbr.rel (0) target = $region73
    $region72: #{tpu_custom_call.1} parent=1 // pred_region
      _
    $region73: #{tpu_custom_call.1} parent=1 // pred_fallthru
      _
    // Predicated region
    $region74: #{tpu_custom_call.1} parent=1 // pred_check
      _
    $region75: #{tpu_custom_call.1} parent=1 // pred_check_branch
      %134 = sbr.rel (0) target = $region77
    $region76: #{tpu_custom_call.1} parent=1 // pred_region
      %135 = dma.done [#allocation6], 4096
    $region77: #{tpu_custom_call.1} parent=1 // pred_fallthru
      _
    // Predicated region
    $region78: #{tpu_custom_call.1} parent=1 // pred_check
      _
    $region79: #{tpu_custom_call.1} parent=1 // pred_check_branch
      %137 = sbr.rel (0) target = $region81
    $region80: #{tpu_custom_call.1} parent=1 // pred_region
      %138 = dma.done [#allocation8], 4096
    $region81: #{tpu_custom_call.1} parent=1 // pred_fallthru
      _
    // Predicated region
    $region82: #{tpu_custom_call.1} parent=1 // pred_check
      _
    $region83: #{tpu_custom_call.1} parent=1 // pred_check_branch
      %140 = sbr.rel (0) target = $region85
    $region84: #{tpu_custom_call.1} parent=1 // pred_region
      %141 = dma.done [#allocation8], 16
    $region85: #{tpu_custom_call.1} parent=1 // pred_fallthru
      _
    // Predicated region
    $region86: #{tpu_custom_call.1} parent=1 // pred_check
      _
    $region87: #{tpu_custom_call.1} parent=1 // pred_check_branch
      %143 = sbr.rel (0) target = $region89
    $region88: #{tpu_custom_call.1} parent=1 // pred_region
      %144 = dma.done [#allocation11], 4096
    $region89: #{tpu_custom_call.1} parent=1 // pred_fallthru
      _
    // Predicated region
    $region90: #{tpu_custom_call.1} parent=1 // pred_check
      _
    $region91: #{tpu_custom_call.1} parent=1 // pred_check_branch
      %146 = sbr.rel (0) target = $region93
    $region92: #{tpu_custom_call.1} parent=1 // pred_region
      %147 = dma.done [#allocation11], 4096
    $region93: #{tpu_custom_call.1} parent=1 // pred_fallthru
      _
    // Predicated region
    $region94: #{tpu_custom_call.1} parent=1 // pred_check
      _
    $region95: #{tpu_custom_call.1} parent=1 // pred_check_branch
      %149 = sbr.rel (0) target = $region97
    $region96: #{tpu_custom_call.1} parent=1 // pred_region
      %150 = dma.done [#allocation14], 4096
    $region97: #{tpu_custom_call.1} parent=1 // pred_fallthru
      _
    // Predicated region
    $region98: #{tpu_custom_call.1} parent=1 // pred_check
      _
    $region99: #{tpu_custom_call.1} parent=1 // pred_check_branch
      %152 = sbr.rel (0) target = $region101
    $region100: #{tpu_custom_call.1} parent=1 // pred_region
      %153 = dma.done [#allocation14], 4096
    $region101: #{tpu_custom_call.1} parent=1 // pred_fallthru
      _
    %v155 = vld [vmem:[%s2] sm:$0x1]
    %v156 = vld [vmem:[#allocation9] sm:$0x1]
    %v157 = vld [vmem:[%s5] sm:$0xf]
    %v158 = vld [vmem:[#allocation5] sm:$0xff]
    %v159 = vld [vmem:[#allocation5 + $0x8] sm:$0xff]
    %v160 = vld [vmem:[#allocation5 + $0x10] sm:$0xff]
    %v161 = vld [vmem:[#allocation5 + $0x18] sm:$0xff]
    %v162 = vld [vmem:[#allocation7] sm:$0xff]
    %v163 = vld [vmem:[#allocation7 + $0x8] sm:$0xff]
    %v164 = vld [vmem:[#allocation7 + $0x10] sm:$0xff]
    %v165 = vld [vmem:[#allocation7 + $0x18] sm:$0xff]
    %v166 = vld [vmem:[#allocation7 + $0x20] sm:$0xff]
    %v167 = vld [vmem:[#allocation7 + $0x28] sm:$0xff]
    %v168 = vld [vmem:[#allocation7 + $0x30] sm:$0xff]
    %v169 = vld [vmem:[#allocation7 + $0x38] sm:$0xff]
    %v170 = vld [vmem:[#allocation7 + $0x40] sm:$0xff]
    %v171 = vld [vmem:[#allocation7 + $0x48] sm:$0xff]
    %v172 = vld [vmem:[#allocation7 + $0x50] sm:$0xff]
    %v173 = vld [vmem:[#allocation7 + $0x58] sm:$0xff]
    %v174 = vld [vmem:[#allocation7 + $0x60] sm:$0xff]
    %v175 = vld [vmem:[#allocation7 + $0x68] sm:$0xff]
    %v176 = vld [vmem:[#allocation7 + $0x70] sm:$0xff]
    %v177 = vld [vmem:[#allocation7 + $0x78] sm:$0xff]
    %v178 = vld [vmem:[#allocation7 + $0x80] sm:$0xff]
    %v179 = vld [vmem:[#allocation7 + $0x88] sm:$0xff]
    %v180 = vld [vmem:[#allocation7 + $0x90] sm:$0xff]
    %v181 = vld [vmem:[#allocation7 + $0x98] sm:$0xff]
    %v182 = vld [vmem:[#allocation7 + $0xa0] sm:$0xff]
    %v183 = vld [vmem:[#allocation7 + $0xa8] sm:$0xff]
    %v184 = vld [vmem:[#allocation7 + $0xb0] sm:$0xff]
    %v185 = vld [vmem:[#allocation7 + $0xb8] sm:$0xff]
    %v186 = vld [vmem:[#allocation7 + $0xc0] sm:$0xff]
    %v187 = vld [vmem:[#allocation7 + $0xc8] sm:$0xff]
    %v188 = vld [vmem:[#allocation7 + $0xd0] sm:$0xff]
    %v189 = vld [vmem:[#allocation7 + $0xd8] sm:$0xff]
    %v190 = vld [vmem:[#allocation7 + $0xe0] sm:$0xff]
    %v191 = vld [vmem:[#allocation7 + $0xe8] sm:$0xff]
    %v192 = vld [vmem:[#allocation7 + $0xf0] sm:$0xff]
    %v193 = vld [vmem:[#allocation7 + $0xf8] sm:$0xff]
    %v226 = vunpack.c.l.b16 %v162
    %v227 = vunpack.c.h.b16 %v162
    %v228 = vunpack.c.l.b16 %v163
    %v229 = vunpack.c.h.b16 %v163
    %v230 = vunpack.c.l.b16 %v164
    %v231 = vunpack.c.h.b16 %v164
    %v232 = vunpack.c.l.b16 %v165
    %v233 = vunpack.c.h.b16 %v165
    %v234 = vunpack.c.l.b16 %v166
    %v235 = vunpack.c.h.b16 %v166
    %v236 = vunpack.c.l.b16 %v167
    %v237 = vunpack.c.h.b16 %v167
    %v238 = vunpack.c.l.b16 %v168
    %v239 = vunpack.c.h.b16 %v168
    %v240 = vunpack.c.l.b16 %v169
    %v241 = vunpack.c.h.b16 %v169
    %v242 = vunpack.c.l.b16 %v170
    %v243 = vunpack.c.h.b16 %v170
    %v244 = vunpack.c.l.b16 %v171
    %v245 = vunpack.c.h.b16 %v171
    %v246 = vunpack.c.l.b16 %v172
    %v247 = vunpack.c.h.b16 %v172
    %v248 = vunpack.c.l.b16 %v173
    %v249 = vunpack.c.h.b16 %v173
    %v250 = vunpack.c.l.b16 %v174
    %v251 = vunpack.c.h.b16 %v174
    %v252 = vunpack.c.l.b16 %v175
    %v253 = vunpack.c.h.b16 %v175
    %v254 = vunpack.c.l.b16 %v176
    %v255 = vunpack.c.h.b16 %v176
    %v256 = vunpack.c.l.b16 %v177
    %v257 = vunpack.c.h.b16 %v177
    %v258 = vunpack.c.l.b16 %v178
    %v259 = vunpack.c.h.b16 %v178
    %v260 = vunpack.c.l.b16 %v179
    %v261 = vunpack.c.h.b16 %v179
    %v262 = vunpack.c.l.b16 %v180
    %v263 = vunpack.c.h.b16 %v180
    %v264 = vunpack.c.l.b16 %v181
    %v265 = vunpack.c.h.b16 %v181
    %v266 = vunpack.c.l.b16 %v182
    %v267 = vunpack.c.h.b16 %v182
    %v268 = vunpack.c.l.b16 %v183
    %v269 = vunpack.c.h.b16 %v183
    %v270 = vunpack.c.l.b16 %v184
    %v271 = vunpack.c.h.b16 %v184
    %v272 = vunpack.c.l.b16 %v185
    %v273 = vunpack.c.h.b16 %v185
    %v274 = vunpack.c.l.b16 %v186
    %v275 = vunpack.c.h.b16 %v186
    %v276 = vunpack.c.l.b16 %v187
    %v277 = vunpack.c.h.b16 %v187
    %v278 = vunpack.c.l.b16 %v188
    %v279 = vunpack.c.h.b16 %v188
    %v280 = vunpack.c.l.b16 %v189
    %v281 = vunpack.c.h.b16 %v189
    %v282 = vunpack.c.l.b16 %v190
    %v283 = vunpack.c.h.b16 %v190
    %v284 = vunpack.c.l.b16 %v191
    %v285 = vunpack.c.h.b16 %v191
    %v286 = vunpack.c.l.b16 %v192
    %v287 = vunpack.c.h.b16 %v192
    %v288 = vunpack.c.l.b16 %v193
    %v289 = vunpack.c.h.b16 %v193
    %v290 = vpack.c.b16 %v230, %v226
    %v291 = vpack.c.b16 %v231, %v227
    %v292 = vpack.c.b16 %v232, %v228
    %v293 = vpack.c.b16 %v233, %v229
    %v294 = vpack.c.b16 %v238, %v234
    %v295 = vpack.c.b16 %v239, %v235
    %v296 = vpack.c.b16 %v240, %v236
    %v297 = vpack.c.b16 %v241, %v237
    %v298 = vpack.c.b16 %v246, %v242
    %v299 = vpack.c.b16 %v247, %v243
    %v300 = vpack.c.b16 %v248, %v244
    %v301 = vpack.c.b16 %v249, %v245
    %v302 = vpack.c.b16 %v254, %v250
    %v303 = vpack.c.b16 %v255, %v251
    %v304 = vpack.c.b16 %v256, %v252
    %v305 = vpack.c.b16 %v257, %v253
    %v306 = vpack.c.b16 %v262, %v258
    %v307 = vpack.c.b16 %v263, %v259
    %v308 = vpack.c.b16 %v264, %v260
    %v309 = vpack.c.b16 %v265, %v261
    %v310 = vpack.c.b16 %v270, %v266
    %v311 = vpack.c.b16 %v271, %v267
    %v312 = vpack.c.b16 %v272, %v268
    %v313 = vpack.c.b16 %v273, %v269
    %v314 = vpack.c.b16 %v278, %v274
    %v315 = vpack.c.b16 %v279, %v275
    %v316 = vpack.c.b16 %v280, %v276
    %v317 = vpack.c.b16 %v281, %v277
    %v318 = vpack.c.b16 %v286, %v282
    %v319 = vpack.c.b16 %v287, %v283
    %v320 = vpack.c.b16 %v288, %v284
    %v321 = vpack.c.b16 %v289, %v285
    %354 = vmatprep.subr.bf16.mxu0 %v319
    %355 = vmatpush1.bf16.msra.mxu0 %v318
    %356 = vmatprep.subr.bf16.mxu0 %v315
    %357 = vmatpush1.bf16.msra.mxu0 %v314
    %358 = vmatprep.subr.bf16.mxu0 %v311
    %359 = vmatpush1.bf16.msra.mxu0 %v310
    %360 = vmatprep.subr.bf16.mxu0 %v307
    %361 = vmatpush1.bf16.msra.mxu0 %v306
    %362 = vmatprep.subr.bf16.mxu0 %v303
    %363 = vmatpush1.bf16.msra.mxu0 %v302
    %364 = vmatprep.subr.bf16.mxu0 %v299
    %365 = vmatpush1.bf16.msra.mxu0 %v298
    %366 = vmatprep.subr.bf16.mxu0 %v295
    %367 = vmatpush1.bf16.msra.mxu0 %v294
    %368 = vmatprep.subr.bf16.mxu0 %v291
    %369 = vmatpush1.bf16.msra.mxu0 %v290
    %370 = vmatprep.subr.bf16.mxu0 0
    %371 = vmatpush2.bf16.msra.mxu0 0
    %372 = vmatprep.subr.bf16.mxu0 0
    %373 = vmatpush2.bf16.msra.mxu0 0
    %374 = vmatprep.subr.bf16.mxu0 0
    %375 = vmatpush2.bf16.msra.mxu0 0
    %376 = vmatprep.subr.bf16.mxu0 0
    %377 = vmatpush2.bf16.msra.mxu0 0
    %378 = vmatprep.subr.bf16.mxu0 0
    %379 = vmatpush2.bf16.msra.mxu0 0
    %380 = vmatprep.subr.bf16.mxu0 0
    %381 = vmatpush2.bf16.msra.mxu0 0
    %382 = vmatprep.subr.bf16.mxu0 0
    %383 = vmatpush2.bf16.msra.mxu0 0
    %384 = vmatprep.subr.bf16.mxu0 0
    %385 = vmatpush2.bf16.msra.mxu0 0
    %386 = vmatprep.mubr.bf16.mxu0 0
    %387 = vmatmul.mubr.bf16.gmra.mxu0 0
    %v388 = vpop.f32.mrf.mxu0
    %v389 = vadd.f32 0.0, %v388
    %v390 = vpop.f32.mrf.mxu0
    %v391 = vadd.f32 0.0, %v390
    %v392 = vpop.f32.mrf.mxu0
    %v393 = vpop.f32.mrf.mxu0
    %394 = vdwg.mxu0
    %395 = vmatprep.subr.bf16.mxu0 %v321
    %396 = vmatpush1.bf16.msra.mxu0 %v320
    %397 = vmatprep.subr.bf16.mxu0 %v317
    %398 = vmatpush1.bf16.msra.mxu0 %v316
    %399 = vmatprep.subr.bf16.mxu0 %v313
    %400 = vmatpush1.bf16.msra.mxu0 %v312
    %401 = vmatprep.subr.bf16.mxu0 %v309
    %402 = vmatpush1.bf16.msra.mxu0 %v308
    %403 = vmatprep.subr.bf16.mxu0 %v305
    %404 = vmatpush1.bf16.msra.mxu0 %v304
    %405 = vmatprep.subr.bf16.mxu0 %v301
    %406 = vmatpush1.bf16.msra.mxu0 %v300
    %407 = vmatprep.subr.bf16.mxu0 %v297
    %408 = vmatpush1.bf16.msra.mxu0 %v296
    %409 = vmatprep.subr.bf16.mxu0 %v293
    %410 = vmatpush1.bf16.msra.mxu0 %v292
    %411 = vmatprep.subr.bf16.mxu0 0
    %412 = vmatpush2.bf16.msra.mxu0 0
    %413 = vmatprep.subr.bf16.mxu0 0
    %414 = vmatpush2.bf16.msra.mxu0 0
    %415 = vmatprep.subr.bf16.mxu0 0
    %416 = vmatpush2.bf16.msra.mxu0 0
    %417 = vmatprep.subr.bf16.mxu0 0
    %418 = vmatpush2.bf16.msra.mxu0 0
    %419 = vmatprep.subr.bf16.mxu0 0
    %420 = vmatpush2.bf16.msra.mxu0 0
    %421 = vmatprep.subr.bf16.mxu0 0
    %422 = vmatpush2.bf16.msra.mxu0 0
    %423 = vmatprep.subr.bf16.mxu0 0
    %424 = vmatpush2.bf16.msra.mxu0 0
    %425 = vmatprep.subr.bf16.mxu0 0
    %426 = vmatpush2.bf16.msra.mxu0 0
    %427 = vmatprep.mubr.bf16.mxu0 0
    %428 = vmatmul.mubr.bf16.gmra.mxu0 0
    %v429 = vpop.f32.mrf.mxu0
    %v430 = vadd.f32 0.0, %v429
    %v431 = vpop.f32.mrf.mxu0
    %v432 = vadd.f32 0.0, %v431
    %v433 = vpop.f32.mrf.mxu0
    %v434 = vpop.f32.mrf.mxu0
    %435 = vdwg.mxu0
    %v436 = vadd.f32 %v158, %v389
    %v437 = vadd.f32 %v159, %v391
    %v438 = vadd.f32 %v160, %v430
    %v439 = vadd.f32 %v161, %v432
    %v440 = vmul.f32 %v436, 0.5
    %v441 = vmul.f32 %v437, 0.5
    %v442 = vmul.f32 %v438, 0.5
    %v443 = vtanh.pop %v440
    %v444 = vtanh.pop %v441
    %v445 = vtanh.pop %v442
    %v446 = vmul.f32 %v443, 0.5
    %v447 = vmul.f32 %v444, 0.5
    %v448 = vmul.f32 %v445, 0.5
    %v449 = vadd.f32 %v446, 0.5
    %v450 = vadd.f32 %v447, 0.5
    %v451 = vadd.f32 %v448, 0.5
    %v452 = vtanh.pop %v439
    %v453 = vmul.f32 %v450, 0.0
    %v454 = vmul.f32 %v449, %v452
    %v455 = vadd.f32 %v453, %v454
    %v456 = vtanh.pop %v455
    %v457 = vmul.f32 %v451, %v456
    %v458 = vpack.c.bf16 %v457, %v457
    %459 = vadd.xlane.f32.xlu0 %v457
    %v460 = vpop.xlane.xlu0 %459
    %v461 = vrcp.pop 128.0
    %v462 = vmul.f32 %v460, %v461
    %v463 = vmul.f32 %v457, %v457
    %464 = vadd.xlane.f32.xlu0 %v463
    %v465 = vpop.xlane.xlu0 %464
    %v466 = vmul.f32 %v465, %v461
    %v467 = vmul.f32 %v462, %v462
    %v468 = vsub.f32 %v466, %v467
    %v469 = vsub.f32 %v457, %v462
    %v470 = vadd.f32 %v468, 1e-05
    %v471 = vrsqrt.pop %v470
    %v472 = vmul.f32 %v469, %v471
    %v474 = vlaneseq
    %v475 = vshrl.u32 %v474, 7
    %v476 = vsub.s32 0, %v475
    %v477 = vrot.slane %v155, %v476
    %v479 = vmul.f32 %v472, %v477
    %v481 = vlaneseq
    %v482 = vshrl.u32 %v481, 7
    %v483 = vsub.s32 0, %v482
    %v484 = vrot.slane %v156, %v483
    %v486 = vadd.f32 %v479, %v484
    %v487 = vmul.f32 %v486, 0.5
    %v488 = vtanh.pop %v487
    %v489 = vmul.f32 %v488, 0.5
    %v490 = vadd.f32 %v489, 0.5
    %v491 = vmul.f32 %v486, %v490
    %v492 = vpack.c.bf16 %v491, %v491
    %v493 = vld [vmem:[#allocation10] sm:$0xff]
    %v494 = vld [vmem:[#allocation10 + $0x8] sm:$0xff]
    %v495 = vld [vmem:[#allocation10 + $0x10] sm:$0xff]
    %v496 = vld [vmem:[#allocation10 + $0x18] sm:$0xff]
    %v497 = vld [vmem:[#allocation10 + $0x20] sm:$0xff]
    %v498 = vld [vmem:[#allocation10 + $0x28] sm:$0xff]
    %v499 = vld [vmem:[#allocation10 + $0x30] sm:$0xff]
    %v500 = vld [vmem:[#allocation10 + $0x38] sm:$0xff]
    %v501 = vld [vmem:[#allocation10 + $0x40] sm:$0xff]
    %v502 = vld [vmem:[#allocation10 + $0x48] sm:$0xff]
    %v503 = vld [vmem:[#allocation10 + $0x50] sm:$0xff]
    %v504 = vld [vmem:[#allocation10 + $0x58] sm:$0xff]
    %v505 = vld [vmem:[#allocation10 + $0x60] sm:$0xff]
    %v506 = vld [vmem:[#allocation10 + $0x68] sm:$0xff]
    %v507 = vld [vmem:[#allocation10 + $0x70] sm:$0xff]
    %v508 = vld [vmem:[#allocation10 + $0x78] sm:$0xff]
    %v509 = vld [vmem:[#allocation10 + $0x80] sm:$0xff]
    %v510 = vld [vmem:[#allocation10 + $0x88] sm:$0xff]
    %v511 = vld [vmem:[#allocation10 + $0x90] sm:$0xff]
    %v512 = vld [vmem:[#allocation10 + $0x98] sm:$0xff]
    %v513 = vld [vmem:[#allocation10 + $0xa0] sm:$0xff]
    %v514 = vld [vmem:[#allocation10 + $0xa8] sm:$0xff]
    %v515 = vld [vmem:[#allocation10 + $0xb0] sm:$0xff]
    %v516 = vld [vmem:[#allocation10 + $0xb8] sm:$0xff]
    %v517 = vld [vmem:[#allocation10 + $0xc0] sm:$0xff]
    %v518 = vld [vmem:[#allocation10 + $0xc8] sm:$0xff]
    %v519 = vld [vmem:[#allocation10 + $0xd0] sm:$0xff]
    %v520 = vld [vmem:[#allocation10 + $0xd8] sm:$0xff]
    %v521 = vld [vmem:[#allocation10 + $0xe0] sm:$0xff]
    %v522 = vld [vmem:[#allocation10 + $0xe8] sm:$0xff]
    %v523 = vld [vmem:[#allocation10 + $0xf0] sm:$0xff]
    %v524 = vld [vmem:[#allocation10 + $0xf8] sm:$0xff]
    %v526 = vlaneseq
    %v527 = vshrl.u32 %v526, 7
    %v528 = vsub.s32 0, %v527
    %v529 = vrot.slane %v157, %v528
    %v530 = vlaneseq
    %v531 = vshrl.u32 %v530, 7
    %v532 = vsub.s32 1, %v531
    %v533 = vrot.slane %v157, %v532
    %v534 = vlaneseq
    %v535 = vshrl.u32 %v534, 7
    %v536 = vsub.s32 2, %v535
    %v537 = vrot.slane %v157, %v536
    %v538 = vlaneseq
    %v539 = vshrl.u32 %v538, 7
    %v540 = vsub.s32 3, %v539
    %v541 = vrot.slane %v157, %v540
    %v578 = vunpack.c.l.b16 %v493
    %v579 = vunpack.c.h.b16 %v493
    %v580 = vunpack.c.l.b16 %v494
    %v581 = vunpack.c.h.b16 %v494
    %v582 = vunpack.c.l.b16 %v495
    %v583 = vunpack.c.h.b16 %v495
    %v584 = vunpack.c.l.b16 %v496
    %v585 = vunpack.c.h.b16 %v496
    %v586 = vunpack.c.l.b16 %v497
    %v587 = vunpack.c.h.b16 %v497
    %v588 = vunpack.c.l.b16 %v498
    %v589 = vunpack.c.h.b16 %v498
    %v590 = vunpack.c.l.b16 %v499
    %v591 = vunpack.c.h.b16 %v499
    %v592 = vunpack.c.l.b16 %v500
    %v593 = vunpack.c.h.b16 %v500
    %v594 = vunpack.c.l.b16 %v501
    %v595 = vunpack.c.h.b16 %v501
    %v596 = vunpack.c.l.b16 %v502
    %v597 = vunpack.c.h.b16 %v502
    %v598 = vunpack.c.l.b16 %v503
    %v599 = vunpack.c.h.b16 %v503
    %v600 = vunpack.c.l.b16 %v504
    %v601 = vunpack.c.h.b16 %v504
    %v602 = vunpack.c.l.b16 %v505
    %v603 = vunpack.c.h.b16 %v505
    %v604 = vunpack.c.l.b16 %v506
    %v605 = vunpack.c.h.b16 %v506
    %v606 = vunpack.c.l.b16 %v507
    %v607 = vunpack.c.h.b16 %v507
    %v608 = vunpack.c.l.b16 %v508
    %v609 = vunpack.c.h.b16 %v508
    %v610 = vunpack.c.l.b16 %v509
    %v611 = vunpack.c.h.b16 %v509
    %v612 = vunpack.c.l.b16 %v510
    %v613 = vunpack.c.h.b16 %v510
    %v614 = vunpack.c.l.b16 %v511
    %v615 = vunpack.c.h.b16 %v511
    %v616 = vunpack.c.l.b16 %v512
    %v617 = vunpack.c.h.b16 %v512
    %v618 = vunpack.c.l.b16 %v513
    %v619 = vunpack.c.h.b16 %v513
    %v620 = vunpack.c.l.b16 %v514
    %v621 = vunpack.c.h.b16 %v514
    %v622 = vunpack.c.l.b16 %v515
    %v623 = vunpack.c.h.b16 %v515
    %v624 = vunpack.c.l.b16 %v516
    %v625 = vunpack.c.h.b16 %v516
    %v626 = vunpack.c.l.b16 %v517
    %v627 = vunpack.c.h.b16 %v517
    %v628 = vunpack.c.l.b16 %v518
    %v629 = vunpack.c.h.b16 %v518
    %v630 = vunpack.c.l.b16 %v519
    %v631 = vunpack.c.h.b16 %v519
    %v632 = vunpack.c.l.b16 %v520
    %v633 = vunpack.c.h.b16 %v520
    %v634 = vunpack.c.l.b16 %v521
    %v635 = vunpack.c.h.b16 %v521
    %v636 = vunpack.c.l.b16 %v522
    %v637 = vunpack.c.h.b16 %v522
    %v638 = vunpack.c.l.b16 %v523
    %v639 = vunpack.c.h.b16 %v523
    %v640 = vunpack.c.l.b16 %v524
    %v641 = vunpack.c.h.b16 %v524
    %v642 = vpack.c.b16 %v582, %v578
    %v643 = vpack.c.b16 %v583, %v579
    %v644 = vpack.c.b16 %v584, %v580
    %v645 = vpack.c.b16 %v585, %v581
    %v646 = vpack.c.b16 %v590, %v586
    %v647 = vpack.c.b16 %v591, %v587
    %v648 = vpack.c.b16 %v592, %v588
    %v649 = vpack.c.b16 %v593, %v589
    %v650 = vpack.c.b16 %v598, %v594
    %v651 = vpack.c.b16 %v599, %v595
    %v652 = vpack.c.b16 %v600, %v596
    %v653 = vpack.c.b16 %v601, %v597
    %v654 = vpack.c.b16 %v606, %v602
    %v655 = vpack.c.b16 %v607, %v603
    %v656 = vpack.c.b16 %v608, %v604
    %v657 = vpack.c.b16 %v609, %v605
    %v658 = vpack.c.b16 %v614, %v610
    %v659 = vpack.c.b16 %v615, %v611
    %v660 = vpack.c.b16 %v616, %v612
    %v661 = vpack.c.b16 %v617, %v613
    %v662 = vpack.c.b16 %v622, %v618
    %v663 = vpack.c.b16 %v623, %v619
    %v664 = vpack.c.b16 %v624, %v620
    %v665 = vpack.c.b16 %v625, %v621
    %v666 = vpack.c.b16 %v630, %v626
    %v667 = vpack.c.b16 %v631, %v627
    %v668 = vpack.c.b16 %v632, %v628
    %v669 = vpack.c.b16 %v633, %v629
    %v670 = vpack.c.b16 %v638, %v634
    %v671 = vpack.c.b16 %v639, %v635
    %v672 = vpack.c.b16 %v640, %v636
    %v673 = vpack.c.b16 %v641, %v637
    %706 = vmatprep.subr.bf16.mxu0 %v671
    %707 = vmatpush1.bf16.msra.mxu0 %v670
    %708 = vmatprep.subr.bf16.mxu0 %v667
    %709 = vmatpush1.bf16.msra.mxu0 %v666
    %710 = vmatprep.subr.bf16.mxu0 %v663
    %711 = vmatpush1.bf16.msra.mxu0 %v662
    %712 = vmatprep.subr.bf16.mxu0 %v659
    %713 = vmatpush1.bf16.msra.mxu0 %v658
    %714 = vmatprep.subr.bf16.mxu0 %v655
    %715 = vmatpush1.bf16.msra.mxu0 %v654
    %716 = vmatprep.subr.bf16.mxu0 %v651
    %717 = vmatpush1.bf16.msra.mxu0 %v650
    %718 = vmatprep.subr.bf16.mxu0 %v647
    %719 = vmatpush1.bf16.msra.mxu0 %v646
    %720 = vmatprep.subr.bf16.mxu0 %v643
    %721 = vmatpush1.bf16.msra.mxu0 %v642
    %722 = vmatprep.subr.bf16.mxu0 0
    %723 = vmatpush2.bf16.msra.mxu0 0
    %724 = vmatprep.subr.bf16.mxu0 0
    %725 = vmatpush2.bf16.msra.mxu0 0
    %726 = vmatprep.subr.bf16.mxu0 0
    %727 = vmatpush2.bf16.msra.mxu0 0
    %728 = vmatprep.subr.bf16.mxu0 0
    %729 = vmatpush2.bf16.msra.mxu0 0
    %730 = vmatprep.subr.bf16.mxu0 0
    %731 = vmatpush2.bf16.msra.mxu0 0
    %732 = vmatprep.subr.bf16.mxu0 0
    %733 = vmatpush2.bf16.msra.mxu0 0
    %734 = vmatprep.subr.bf16.mxu0 0
    %735 = vmatpush2.bf16.msra.mxu0 0
    %736 = vmatprep.subr.bf16.mxu0 0
    %737 = vmatpush2.bf16.msra.mxu0 0
    %738 = vmatprep.mubr.bf16.mxu0 0
    %739 = vmatmul.mubr.bf16.gmra.mxu0 %v492
    %v740 = vpop.f32.mrf.mxu0
    %v741 = vadd.f32 %v529, %v740
    %v742 = vpop.f32.mrf.mxu0
    %v743 = vadd.f32 %v533, %v742
    %v744 = vpop.f32.mrf.mxu0
    %v745 = vpop.f32.mrf.mxu0
    %746 = vdwg.mxu0
    %747 = vmatprep.subr.bf16.mxu0 %v673
    %748 = vmatpush1.bf16.msra.mxu0 %v672
    %749 = vmatprep.subr.bf16.mxu0 %v669
    %750 = vmatpush1.bf16.msra.mxu0 %v668
    %751 = vmatprep.subr.bf16.mxu0 %v665
    %752 = vmatpush1.bf16.msra.mxu0 %v664
    %753 = vmatprep.subr.bf16.mxu0 %v661
    %754 = vmatpush1.bf16.msra.mxu0 %v660
    %755 = vmatprep.subr.bf16.mxu0 %v657
    %756 = vmatpush1.bf16.msra.mxu0 %v656
    %757 = vmatprep.subr.bf16.mxu0 %v653
    %758 = vmatpush1.bf16.msra.mxu0 %v652
    %759 = vmatprep.subr.bf16.mxu0 %v649
    %760 = vmatpush1.bf16.msra.mxu0 %v648
    %761 = vmatprep.subr.bf16.mxu0 %v645
    %762 = vmatpush1.bf16.msra.mxu0 %v644
    %763 = vmatprep.subr.bf16.mxu0 0
    %764 = vmatpush2.bf16.msra.mxu0 0
    %765 = vmatprep.subr.bf16.mxu0 0
    %766 = vmatpush2.bf16.msra.mxu0 0
    %767 = vmatprep.subr.bf16.mxu0 0
    %768 = vmatpush2.bf16.msra.mxu0 0
    %769 = vmatprep.subr.bf16.mxu0 0
    %770 = vmatpush2.bf16.msra.mxu0 0
    %771 = vmatprep.subr.bf16.mxu0 0
    %772 = vmatpush2.bf16.msra.mxu0 0
    %773 = vmatprep.subr.bf16.mxu0 0
    %774 = vmatpush2.bf16.msra.mxu0 0
    %775 = vmatprep.subr.bf16.mxu0 0
    %776 = vmatpush2.bf16.msra.mxu0 0
    %777 = vmatprep.subr.bf16.mxu0 0
    %778 = vmatpush2.bf16.msra.mxu0 0
    %779 = vmatprep.mubr.bf16.mxu0 0
    %780 = vmatmul.mubr.bf16.gmra.mxu0 %v492
    %v781 = vpop.f32.mrf.mxu0
    %v782 = vadd.f32 %v537, %v781
    %v783 = vpop.f32.mrf.mxu0
    %v784 = vadd.f32 %v541, %v783
    %v785 = vpop.f32.mrf.mxu0
    %v786 = vpop.f32.mrf.mxu0
    %787 = vdwg.mxu0
    %788 = vst [vmem:[#allocation2] sm:$0xff] %v741
    %789 = vst [vmem:[#allocation2 + $0x8] sm:$0xff] %v743
    %790 = vst [vmem:[#allocation2 + $0x10] sm:$0xff] %v782
    %791 = vst [vmem:[#allocation2 + $0x18] sm:$0xff] %v784
    %v792 = vld [vmem:[#allocation5 + $0x20] sm:$0xff]
    %v793 = vld [vmem:[#allocation5 + $0x28] sm:$0xff]
    %v794 = vld [vmem:[#allocation5 + $0x30] sm:$0xff]
    %v795 = vld [vmem:[#allocation5 + $0x38] sm:$0xff]
    %v796 = vld [vmem:[#allocation7] sm:$0xff]
    %v797 = vld [vmem:[#allocation7 + $0x8] sm:$0xff]
    %v798 = vld [vmem:[#allocation7 + $0x10] sm:$0xff]
    %v799 = vld [vmem:[#allocation7 + $0x18] sm:$0xff]
    %v800 = vld [vmem:[#allocation7 + $0x20] sm:$0xff]
    %v801 = vld [vmem:[#allocation7 + $0x28] sm:$0xff]
    %v802 = vld [vmem:[#allocation7 + $0x30] sm:$0xff]
    %v803 = vld [vmem:[#allocation7 + $0x38] sm:$0xff]
    %v804 = vld [vmem:[#allocation7 + $0x40] sm:$0xff]
    %v805 = vld [vmem:[#allocation7 + $0x48] sm:$0xff]
    %v806 = vld [vmem:[#allocation7 + $0x50] sm:$0xff]
    %v807 = vld [vmem:[#allocation7 + $0x58] sm:$0xff]
    %v808 = vld [vmem:[#allocation7 + $0x60] sm:$0xff]
    %v809 = vld [vmem:[#allocation7 + $0x68] sm:$0xff]
    %v810 = vld [vmem:[#allocation7 + $0x70] sm:$0xff]
    %v811 = vld [vmem:[#allocation7 + $0x78] sm:$0xff]
    %v812 = vld [vmem:[#allocation7 + $0x80] sm:$0xff]
    %v813 = vld [vmem:[#allocation7 + $0x88] sm:$0xff]
    %v814 = vld [vmem:[#allocation7 + $0x90] sm:$0xff]
    %v815 = vld [vmem:[#allocation7 + $0x98] sm:$0xff]
    %v816 = vld [vmem:[#allocation7 + $0xa0] sm:$0xff]
    %v817 = vld [vmem:[#allocation7 + $0xa8] sm:$0xff]
    %v818 = vld [vmem:[#allocation7 + $0xb0] sm:$0xff]
    %v819 = vld [vmem:[#allocation7 + $0xb8] sm:$0xff]
    %v820 = vld [vmem:[#allocation7 + $0xc0] sm:$0xff]
    %v821 = vld [vmem:[#allocation7 + $0xc8] sm:$0xff]
    %v822 = vld [vmem:[#allocation7 + $0xd0] sm:$0xff]
    %v823 = vld [vmem:[#allocation7 + $0xd8] sm:$0xff]
    %v824 = vld [vmem:[#allocation7 + $0xe0] sm:$0xff]
    %v825 = vld [vmem:[#allocation7 + $0xe8] sm:$0xff]
    %v826 = vld [vmem:[#allocation7 + $0xf0] sm:$0xff]
    %v827 = vld [vmem:[#allocation7 + $0xf8] sm:$0xff]
    %v860 = vunpack.c.l.b16 %v796
    %v861 = vunpack.c.h.b16 %v796
    %v862 = vunpack.c.l.b16 %v797
    %v863 = vunpack.c.h.b16 %v797
    %v864 = vunpack.c.l.b16 %v798
    %v865 = vunpack.c.h.b16 %v798
    %v866 = vunpack.c.l.b16 %v799
    %v867 = vunpack.c.h.b16 %v799
    %v868 = vunpack.c.l.b16 %v800
    %v869 = vunpack.c.h.b16 %v800
    %v870 = vunpack.c.l.b16 %v801
    %v871 = vunpack.c.h.b16 %v801
    %v872 = vunpack.c.l.b16 %v802
    %v873 = vunpack.c.h.b16 %v802
    %v874 = vunpack.c.l.b16 %v803
    %v875 = vunpack.c.h.b16 %v803
    %v876 = vunpack.c.l.b16 %v804
    %v877 = vunpack.c.h.b16 %v804
    %v878 = vunpack.c.l.b16 %v805
    %v879 = vunpack.c.h.b16 %v805
    %v880 = vunpack.c.l.b16 %v806
    %v881 = vunpack.c.h.b16 %v806
    %v882 = vunpack.c.l.b16 %v807
    %v883 = vunpack.c.h.b16 %v807
    %v884 = vunpack.c.l.b16 %v808
    %v885 = vunpack.c.h.b16 %v808
    %v886 = vunpack.c.l.b16 %v809
    %v887 = vunpack.c.h.b16 %v809
    %v888 = vunpack.c.l.b16 %v810
    %v889 = vunpack.c.h.b16 %v810
    %v890 = vunpack.c.l.b16 %v811
    %v891 = vunpack.c.h.b16 %v811
    %v892 = vunpack.c.l.b16 %v812
    %v893 = vunpack.c.h.b16 %v812
    %v894 = vunpack.c.l.b16 %v813
    %v895 = vunpack.c.h.b16 %v813
    %v896 = vunpack.c.l.b16 %v814
    %v897 = vunpack.c.h.b16 %v814
    %v898 = vunpack.c.l.b16 %v815
    %v899 = vunpack.c.h.b16 %v815
    %v900 = vunpack.c.l.b16 %v816
    %v901 = vunpack.c.h.b16 %v816
    %v902 = vunpack.c.l.b16 %v817
    %v903 = vunpack.c.h.b16 %v817
    %v904 = vunpack.c.l.b16 %v818
    %v905 = vunpack.c.h.b16 %v818
    %v906 = vunpack.c.l.b16 %v819
    %v907 = vunpack.c.h.b16 %v819
    %v908 = vunpack.c.l.b16 %v820
    %v909 = vunpack.c.h.b16 %v820
    %v910 = vunpack.c.l.b16 %v821
    %v911 = vunpack.c.h.b16 %v821
    %v912 = vunpack.c.l.b16 %v822
    %v913 = vunpack.c.h.b16 %v822
    %v914 = vunpack.c.l.b16 %v823
    %v915 = vunpack.c.h.b16 %v823
    %v916 = vunpack.c.l.b16 %v824
    %v917 = vunpack.c.h.b16 %v824
    %v918 = vunpack.c.l.b16 %v825
    %v919 = vunpack.c.h.b16 %v825
    %v920 = vunpack.c.l.b16 %v826
    %v921 = vunpack.c.h.b16 %v826
    %v922 = vunpack.c.l.b16 %v827
    %v923 = vunpack.c.h.b16 %v827
    %v924 = vpack.c.b16 %v864, %v860
    %v925 = vpack.c.b16 %v865, %v861
    %v926 = vpack.c.b16 %v866, %v862
    %v927 = vpack.c.b16 %v867, %v863
    %v928 = vpack.c.b16 %v872, %v868
    %v929 = vpack.c.b16 %v873, %v869
    %v930 = vpack.c.b16 %v874, %v870
    %v931 = vpack.c.b16 %v875, %v871
    %v932 = vpack.c.b16 %v880, %v876
    %v933 = vpack.c.b16 %v881, %v877
    %v934 = vpack.c.b16 %v882, %v878
    %v935 = vpack.c.b16 %v883, %v879
    %v936 = vpack.c.b16 %v888, %v884
    %v937 = vpack.c.b16 %v889, %v885
    %v938 = vpack.c.b16 %v890, %v886
    %v939 = vpack.c.b16 %v891, %v887
    %v940 = vpack.c.b16 %v896, %v892
    %v941 = vpack.c.b16 %v897, %v893
    %v942 = vpack.c.b16 %v898, %v894
    %v943 = vpack.c.b16 %v899, %v895
    %v944 = vpack.c.b16 %v904, %v900
    %v945 = vpack.c.b16 %v905, %v901
    %v946 = vpack.c.b16 %v906, %v902
    %v947 = vpack.c.b16 %v907, %v903
    %v948 = vpack.c.b16 %v912, %v908
    %v949 = vpack.c.b16 %v913, %v909
    %v950 = vpack.c.b16 %v914, %v910
    %v951 = vpack.c.b16 %v915, %v911
    %v952 = vpack.c.b16 %v920, %v916
    %v953 = vpack.c.b16 %v921, %v917
    %v954 = vpack.c.b16 %v922, %v918
    %v955 = vpack.c.b16 %v923, %v919
    %988 = vmatprep.subr.bf16.mxu0 %v953
    %989 = vmatpush1.bf16.msra.mxu0 %v952
    %990 = vmatprep.subr.bf16.mxu0 %v949
    %991 = vmatpush1.bf16.msra.mxu0 %v948
    %992 = vmatprep.subr.bf16.mxu0 %v945
    %993 = vmatpush1.bf16.msra.mxu0 %v944
    %994 = vmatprep.subr.bf16.mxu0 %v941
    %995 = vmatpush1.bf16.msra.mxu0 %v940
    %996 = vmatprep.subr.bf16.mxu0 %v937
    %997 = vmatpush1.bf16.msra.mxu0 %v936
    %998 = vmatprep.subr.bf16.mxu0 %v933
    %999 = vmatpush1.bf16.msra.mxu0 %v932
    %1000 = vmatprep.subr.bf16.mxu0 %v929
    %1001 = vmatpush1.bf16.msra.mxu0 %v928
    %1002 = vmatprep.subr.bf16.mxu0 %v925
    %1003 = vmatpush1.bf16.msra.mxu0 %v924
    %1004 = vmatprep.subr.bf16.mxu0 0
    %1005 = vmatpush2.bf16.msra.mxu0 0
    %1006 = vmatprep.subr.bf16.mxu0 0
    %1007 = vmatpush2.bf16.msra.mxu0 0
    %1008 = vmatprep.subr.bf16.mxu0 0
    %1009 = vmatpush2.bf16.msra.mxu0 0
    %1010 = vmatprep.subr.bf16.mxu0 0
    %1011 = vmatpush2.bf16.msra.mxu0 0
    %1012 = vmatprep.subr.bf16.mxu0 0
    %1013 = vmatpush2.bf16.msra.mxu0 0
    %1014 = vmatprep.subr.bf16.mxu0 0
    %1015 = vmatpush2.bf16.msra.mxu0 0
    %1016 = vmatprep.subr.bf16.mxu0 0
    %1017 = vmatpush2.bf16.msra.mxu0 0
    %1018 = vmatprep.subr.bf16.mxu0 0
    %1019 = vmatpush2.bf16.msra.mxu0 0
    %1020 = vmatprep.mubr.bf16.mxu0 0
    %1021 = vmatmul.mubr.bf16.gmra.mxu0 %v458
    %v1022 = vpop.f32.mrf.mxu0
    %v1023 = vadd.f32 0.0, %v1022
    %v1024 = vpop.f32.mrf.mxu0
    %v1025 = vadd.f32 0.0, %v1024
    %v1026 = vpop.f32.mrf.mxu0
    %v1027 = vpop.f32.mrf.mxu0
    %1028 = vdwg.mxu0
    %1029 = vmatprep.subr.bf16.mxu0 %v955
    %1030 = vmatpush1.bf16.msra.mxu0 %v954
    %1031 = vmatprep.subr.bf16.mxu0 %v951
    %1032 = vmatpush1.bf16.msra.mxu0 %v950
    %1033 = vmatprep.subr.bf16.mxu0 %v947
    %1034 = vmatpush1.bf16.msra.mxu0 %v946
    %1035 = vmatprep.subr.bf16.mxu0 %v943
    %1036 = vmatpush1.bf16.msra.mxu0 %v942
    %1037 = vmatprep.subr.bf16.mxu0 %v939
    %1038 = vmatpush1.bf16.msra.mxu0 %v938
    %1039 = vmatprep.subr.bf16.mxu0 %v935
    %1040 = vmatpush1.bf16.msra.mxu0 %v934
    %1041 = vmatprep.subr.bf16.mxu0 %v931
    %1042 = vmatpush1.bf16.msra.mxu0 %v930
    %1043 = vmatprep.subr.bf16.mxu0 %v927
    %1044 = vmatpush1.bf16.msra.mxu0 %v926
    %1045 = vmatprep.subr.bf16.mxu0 0
    %1046 = vmatpush2.bf16.msra.mxu0 0
    %1047 = vmatprep.subr.bf16.mxu0 0
    %1048 = vmatpush2.bf16.msra.mxu0 0
    %1049 = vmatprep.subr.bf16.mxu0 0
    %1050 = vmatpush2.bf16.msra.mxu0 0
    %1051 = vmatprep.subr.bf16.mxu0 0
    %1052 = vmatpush2.bf16.msra.mxu0 0
    %1053 = vmatprep.subr.bf16.mxu0 0
    %1054 = vmatpush2.bf16.msra.mxu0 0
    %1055 = vmatprep.subr.bf16.mxu0 0
    %1056 = vmatpush2.bf16.msra.mxu0 0
    %1057 = vmatprep.subr.bf16.mxu0 0
    %1058 = vmatpush2.bf16.msra.mxu0 0
    %1059 = vmatprep.subr.bf16.mxu0 0
    %1060 = vmatpush2.bf16.msra.mxu0 0
    %1061 = vmatprep.mubr.bf16.mxu0 0
    %1062 = vmatmul.mubr.bf16.gmra.mxu0 %v458
    %v1063 = vpop.f32.mrf.mxu0
    %v1064 = vadd.f32 0.0, %v1063
    %v1065 = vpop.f32.mrf.mxu0
    %v1066 = vadd.f32 0.0, %v1065
    %v1067 = vpop.f32.mrf.mxu0
    %v1068 = vpop.f32.mrf.mxu0
    %1069 = vdwg.mxu0
    %v1070 = vadd.f32 %v792, %v1023
    %v1071 = vadd.f32 %v793, %v1025
    %v1072 = vadd.f32 %v794, %v1064
    %v1073 = vadd.f32 %v795, %v1066
    %v1074 = vmul.f32 %v1070, 0.5
    %v1075 = vmul.f32 %v1071, 0.5
    %v1076 = vmul.f32 %v1072, 0.5
    %v1077 = vtanh.pop %v1074
    %v1078 = vtanh.pop %v1075
    %v1079 = vtanh.pop %v1076
    %v1080 = vmul.f32 %v1077, 0.5
    %v1081 = vmul.f32 %v1078, 0.5
    %v1082 = vmul.f32 %v1079, 0.5
    %v1083 = vadd.f32 %v1080, 0.5
    %v1084 = vadd.f32 %v1081, 0.5
    %v1085 = vadd.f32 %v1082, 0.5
    %v1086 = vtanh.pop %v1073
    %v1087 = vmul.f32 %v1084, %v455
    %v1088 = vmul.f32 %v1083, %v1086
    %v1089 = vadd.f32 %v1087, %v1088
    %v1090 = vtanh.pop %v1089
    %v1091 = vmul.f32 %v1085, %v1090
    %v1092 = vpack.c.bf16 %v1091, %v1091
    %1093 = vadd.xlane.f32.xlu0 %v1091
    %v1094 = vpop.xlane.xlu0 %1093
    %v1095 = vmul.f32 %v1094, %v461
    %v1096 = vmul.f32 %v1091, %v1091
    %1097 = vadd.xlane.f32.xlu0 %v1096
    %v1098 = vpop.xlane.xlu0 %1097
    %v1099 = vmul.f32 %v1098, %v461
    %v1100 = vmul.f32 %v1095, %v1095
    %v1101 = vsub.f32 %v1099, %v1100
    %v1102 = vsub.f32 %v1091, %v1095
    %v1103 = vadd.f32 %v1101, 1e-05
    %v1104 = vrsqrt.pop %v1103
    %v1105 = vmul.f32 %v1102, %v1104
    %v1106 = vmul.f32 %v1105, %v477
    %v1107 = vadd.f32 %v1106, %v484
    %v1108 = vmul.f32 %v1107, 0.5
    %v1109 = vtanh.pop %v1108
    %v1110 = vmul.f32 %v1109, 0.5
    %v1111 = vadd.f32 %v1110, 0.5
    %v1112 = vmul.f32 %v1107, %v1111
    %v1113 = vpack.c.bf16 %v1112, %v1112
    %v1114 = vld [vmem:[#allocation10] sm:$0xff]
    %v1115 = vld [vmem:[#allocation10 + $0x8] sm:$0xff]
    %v1116 = vld [vmem:[#allocation10 + $0x10] sm:$0xff]
    %v1117 = vld [vmem:[#allocation10 + $0x18] sm:$0xff]
    %v1118 = vld [vmem:[#allocation10 + $0x20] sm:$0xff]
    %v1119 = vld [vmem:[#allocation10 + $0x28] sm:$0xff]
    %v1120 = vld [vmem:[#allocation10 + $0x30] sm:$0xff]
    %v1121 = vld [vmem:[#allocation10 + $0x38] sm:$0xff]
    %v1122 = vld [vmem:[#allocation10 + $0x40] sm:$0xff]
    %v1123 = vld [vmem:[#allocation10 + $0x48] sm:$0xff]
    %v1124 = vld [vmem:[#allocation10 + $0x50] sm:$0xff]
    %v1125 = vld [vmem:[#allocation10 + $0x58] sm:$0xff]
    %v1126 = vld [vmem:[#allocation10 + $0x60] sm:$0xff]
    %v1127 = vld [vmem:[#allocation10 + $0x68] sm:$0xff]
    %v1128 = vld [vmem:[#allocation10 + $0x70] sm:$0xff]
    %v1129 = vld [vmem:[#allocation10 + $0x78] sm:$0xff]
    %v1130 = vld [vmem:[#allocation10 + $0x80] sm:$0xff]
    %v1131 = vld [vmem:[#allocation10 + $0x88] sm:$0xff]
    %v1132 = vld [vmem:[#allocation10 + $0x90] sm:$0xff]
    %v1133 = vld [vmem:[#allocation10 + $0x98] sm:$0xff]
    %v1134 = vld [vmem:[#allocation10 + $0xa0] sm:$0xff]
    %v1135 = vld [vmem:[#allocation10 + $0xa8] sm:$0xff]
    %v1136 = vld [vmem:[#allocation10 + $0xb0] sm:$0xff]
    %v1137 = vld [vmem:[#allocation10 + $0xb8] sm:$0xff]
    %v1138 = vld [vmem:[#allocation10 + $0xc0] sm:$0xff]
    %v1139 = vld [vmem:[#allocation10 + $0xc8] sm:$0xff]
    %v1140 = vld [vmem:[#allocation10 + $0xd0] sm:$0xff]
    %v1141 = vld [vmem:[#allocation10 + $0xd8] sm:$0xff]
    %v1142 = vld [vmem:[#allocation10 + $0xe0] sm:$0xff]
    %v1143 = vld [vmem:[#allocation10 + $0xe8] sm:$0xff]
    %v1144 = vld [vmem:[#allocation10 + $0xf0] sm:$0xff]
    %v1145 = vld [vmem:[#allocation10 + $0xf8] sm:$0xff]
    %v1178 = vunpack.c.l.b16 %v1114
    %v1179 = vunpack.c.h.b16 %v1114
    %v1180 = vunpack.c.l.b16 %v1115
    %v1181 = vunpack.c.h.b16 %v1115
    %v1182 = vunpack.c.l.b16 %v1116
    %v1183 = vunpack.c.h.b16 %v1116
    %v1184 = vunpack.c.l.b16 %v1117
    %v1185 = vunpack.c.h.b16 %v1117
    %v1186 = vunpack.c.l.b16 %v1118
    %v1187 = vunpack.c.h.b16 %v1118
    %v1188 = vunpack.c.l.b16 %v1119
    %v1189 = vunpack.c.h.b16 %v1119
    %v1190 = vunpack.c.l.b16 %v1120
    %v1191 = vunpack.c.h.b16 %v1120
    %v1192 = vunpack.c.l.b16 %v1121
    %v1193 = vunpack.c.h.b16 %v1121
    %v1194 = vunpack.c.l.b16 %v1122
    %v1195 = vunpack.c.h.b16 %v1122
    %v1196 = vunpack.c.l.b16 %v1123
    %v1197 = vunpack.c.h.b16 %v1123
    %v1198 = vunpack.c.l.b16 %v1124
    %v1199 = vunpack.c.h.b16 %v1124
    %v1200 = vunpack.c.l.b16 %v1125
    %v1201 = vunpack.c.h.b16 %v1125
    %v1202 = vunpack.c.l.b16 %v1126
    %v1203 = vunpack.c.h.b16 %v1126
    %v1204 = vunpack.c.l.b16 %v1127
    %v1205 = vunpack.c.h.b16 %v1127
    %v1206 = vunpack.c.l.b16 %v1128
    %v1207 = vunpack.c.h.b16 %v1128
    %v1208 = vunpack.c.l.b16 %v1129
    %v1209 = vunpack.c.h.b16 %v1129
    %v1210 = vunpack.c.l.b16 %v1130
    %v1211 = vunpack.c.h.b16 %v1130
    %v1212 = vunpack.c.l.b16 %v1131
    %v1213 = vunpack.c.h.b16 %v1131
    %v1214 = vunpack.c.l.b16 %v1132
    %v1215 = vunpack.c.h.b16 %v1132
    %v1216 = vunpack.c.l.b16 %v1133
    %v1217 = vunpack.c.h.b16 %v1133
    %v1218 = vunpack.c.l.b16 %v1134
    %v1219 = vunpack.c.h.b16 %v1134
    %v1220 = vunpack.c.l.b16 %v1135
    %v1221 = vunpack.c.h.b16 %v1135
    %v1222 = vunpack.c.l.b16 %v1136
    %v1223 = vunpack.c.h.b16 %v1136
    %v1224 = vunpack.c.l.b16 %v1137
    %v1225 = vunpack.c.h.b16 %v1137
    %v1226 = vunpack.c.l.b16 %v1138
    %v1227 = vunpack.c.h.b16 %v1138
    %v1228 = vunpack.c.l.b16 %v1139
    %v1229 = vunpack.c.h.b16 %v1139
    %v1230 = vunpack.c.l.b16 %v1140
    %v1231 = vunpack.c.h.b16 %v1140
    %v1232 = vunpack.c.l.b16 %v1141
    %v1233 = vunpack.c.h.b16 %v1141
    %v1234 = vunpack.c.l.b16 %v1142
    %v1235 = vunpack.c.h.b16 %v1142
    %v1236 = vunpack.c.l.b16 %v1143
    %v1237 = vunpack.c.h.b16 %v1143
    %v1238 = vunpack.c.l.b16 %v1144
    %v1239 = vunpack.c.h.b16 %v1144
    %v1240 = vunpack.c.l.b16 %v1145
    %v1241 = vunpack.c.h.b16 %v1145
    %v1242 = vpack.c.b16 %v1182, %v1178
    %v1243 = vpack.c.b16 %v1183, %v1179
    %v1244 = vpack.c.b16 %v1184, %v1180
    %v1245 = vpack.c.b16 %v1185, %v1181
    %v1246 = vpack.c.b16 %v1190, %v1186
    %v1247 = vpack.c.b16 %v1191, %v1187
    %v1248 = vpack.c.b16 %v1192, %v1188
    %v1249 = vpack.c.b16 %v1193, %v1189
    %v1250 = vpack.c.b16 %v1198, %v1194
    %v1251 = vpack.c.b16 %v1199, %v1195
    %v1252 = vpack.c.b16 %v1200, %v1196
    %v1253 = vpack.c.b16 %v1201, %v1197
    %v1254 = vpack.c.b16 %v1206, %v1202
    %v1255 = vpack.c.b16 %v1207, %v1203
    %v1256 = vpack.c.b16 %v1208, %v1204
    %v1257 = vpack.c.b16 %v1209, %v1205
    %v1258 = vpack.c.b16 %v1214, %v1210
    %v1259 = vpack.c.b16 %v1215, %v1211
    %v1260 = vpack.c.b16 %v1216, %v1212
    %v1261 = vpack.c.b16 %v1217, %v1213
    %v1262 = vpack.c.b16 %v1222, %v1218
    %v1263 = vpack.c.b16 %v1223, %v1219
    %v1264 = vpack.c.b16 %v1224, %v1220
    %v1265 = vpack.c.b16 %v1225, %v1221
    %v1266 = vpack.c.b16 %v1230, %v1226
    %v1267 = vpack.c.b16 %v1231, %v1227
    %v1268 = vpack.c.b16 %v1232, %v1228
    %v1269 = vpack.c.b16 %v1233, %v1229
    %v1270 = vpack.c.b16 %v1238, %v1234
    %v1271 = vpack.c.b16 %v1239, %v1235
    %v1272 = vpack.c.b16 %v1240, %v1236
    %v1273 = vpack.c.b16 %v1241, %v1237
    %1306 = vmatprep.subr.bf16.mxu0 %v1271
    %1307 = vmatpush1.bf16.msra.mxu0 %v1270
    %1308 = vmatprep.subr.bf16.mxu0 %v1267
    %1309 = vmatpush1.bf16.msra.mxu0 %v1266
    %1310 = vmatprep.subr.bf16.mxu0 %v1263
    %1311 = vmatpush1.bf16.msra.mxu0 %v1262
    %1312 = vmatprep.subr.bf16.mxu0 %v1259
    %1313 = vmatpush1.bf16.msra.mxu0 %v1258
    %1314 = vmatprep.subr.bf16.mxu0 %v1255
    %1315 = vmatpush1.bf16.msra.mxu0 %v1254
    %1316 = vmatprep.subr.bf16.mxu0 %v1251
    %1317 = vmatpush1.bf16.msra.mxu0 %v1250
    %1318 = vmatprep.subr.bf16.mxu0 %v1247
    %1319 = vmatpush1.bf16.msra.mxu0 %v1246
    %1320 = vmatprep.subr.bf16.mxu0 %v1243
    %1321 = vmatpush1.bf16.msra.mxu0 %v1242
    %1322 = vmatprep.subr.bf16.mxu0 0
    %1323 = vmatpush2.bf16.msra.mxu0 0
    %1324 = vmatprep.subr.bf16.mxu0 0
    %1325 = vmatpush2.bf16.msra.mxu0 0
    %1326 = vmatprep.subr.bf16.mxu0 0
    %1327 = vmatpush2.bf16.msra.mxu0 0
    %1328 = vmatprep.subr.bf16.mxu0 0
    %1329 = vmatpush2.bf16.msra.mxu0 0
    %1330 = vmatprep.subr.bf16.mxu0 0
    %1331 = vmatpush2.bf16.msra.mxu0 0
    %1332 = vmatprep.subr.bf16.mxu0 0
    %1333 = vmatpush2.bf16.msra.mxu0 0
    %1334 = vmatprep.subr.bf16.mxu0 0
    %1335 = vmatpush2.bf16.msra.mxu0 0
    %1336 = vmatprep.subr.bf16.mxu0 0
    %1337 = vmatpush2.bf16.msra.mxu0 0
    %1338 = vmatprep.mubr.bf16.mxu0 0
    %1339 = vmatmul.mubr.bf16.gmra.mxu0 %v1113
    %v1340 = vpop.f32.mrf.mxu0
    %v1341 = vadd.f32 %v529, %v1340
    %v1342 = vpop.f32.mrf.mxu0
    %v1343 = vadd.f32 %v533, %v1342
    %v1344 = vpop.f32.mrf.mxu0
    %v1345 = vpop.f32.mrf.mxu0
    %1346 = vdwg.mxu0
    %1347 = vmatprep.subr.bf16.mxu0 %v1273
    %1348 = vmatpush1.bf16.msra.mxu0 %v1272
    %1349 = vmatprep.subr.bf16.mxu0 %v1269
    %1350 = vmatpush1.bf16.msra.mxu0 %v1268
    %1351 = vmatprep.subr.bf16.mxu0 %v1265
    %1352 = vmatpush1.bf16.msra.mxu0 %v1264
    %1353 = vmatprep.subr.bf16.mxu0 %v1261
    %1354 = vmatpush1.bf16.msra.mxu0 %v1260
    %1355 = vmatprep.subr.bf16.mxu0 %v1257
    %1356 = vmatpush1.bf16.msra.mxu0 %v1256
    %1357 = vmatprep.subr.bf16.mxu0 %v1253
    %1358 = vmatpush1.bf16.msra.mxu0 %v1252
    %1359 = vmatprep.subr.bf16.mxu0 %v1249
    %1360 = vmatpush1.bf16.msra.mxu0 %v1248
    %1361 = vmatprep.subr.bf16.mxu0 %v1245
    %1362 = vmatpush1.bf16.msra.mxu0 %v1244
    %1363 = vmatprep.subr.bf16.mxu0 0
    %1364 = vmatpush2.bf16.msra.mxu0 0
    %1365 = vmatprep.subr.bf16.mxu0 0
    %1366 = vmatpush2.bf16.msra.mxu0 0
    %1367 = vmatprep.subr.bf16.mxu0 0
    %1368 = vmatpush2.bf16.msra.mxu0 0
    %1369 = vmatprep.subr.bf16.mxu0 0
    %1370 = vmatpush2.bf16.msra.mxu0 0
    %1371 = vmatprep.subr.bf16.mxu0 0
    %1372 = vmatpush2.bf16.msra.mxu0 0
    %1373 = vmatprep.subr.bf16.mxu0 0
    %1374 = vmatpush2.bf16.msra.mxu0 0
    %1375 = vmatprep.subr.bf16.mxu0 0
    %1376 = vmatpush2.bf16.msra.mxu0 0
    %1377 = vmatprep.subr.bf16.mxu0 0
    %1378 = vmatpush2.bf16.msra.mxu0 0
    %1379 = vmatprep.mubr.bf16.mxu0 0
    %1380 = vmatmul.mubr.bf16.gmra.mxu0 %v1113
    %v1381 = vpop.f32.mrf.mxu0
    %v1382 = vadd.f32 %v537, %v1381
    %v1383 = vpop.f32.mrf.mxu0
    %v1384 = vadd.f32 %v541, %v1383
    %v1385 = vpop.f32.mrf.mxu0
    %v1386 = vpop.f32.mrf.mxu0
    %1387 = vdwg.mxu0
    %1388 = vst [vmem:[#allocation2 + $0x20] sm:$0xff] %v1341
    %1389 = vst [vmem:[#allocation2 + $0x28] sm:$0xff] %v1343
    %1390 = vst [vmem:[#allocation2 + $0x30] sm:$0xff] %v1382
    %1391 = vst [vmem:[#allocation2 + $0x38] sm:$0xff] %v1384
    %v1392 = vld [vmem:[#allocation5 + $0x40] sm:$0xff]
    %v1393 = vld [vmem:[#allocation5 + $0x48] sm:$0xff]
    %v1394 = vld [vmem:[#allocation5 + $0x50] sm:$0xff]
    %v1395 = vld [vmem:[#allocation5 + $0x58] sm:$0xff]
    %v1396 = vld [vmem:[#allocation7] sm:$0xff]
    %v1397 = vld [vmem:[#allocation7 + $0x8] sm:$0xff]
    %v1398 = vld [vmem:[#allocation7 + $0x10] sm:$0xff]
    %v1399 = vld [vmem:[#allocation7 + $0x18] sm:$0xff]
    %v1400 = vld [vmem:[#allocation7 + $0x20] sm:$0xff]
    %v1401 = vld [vmem:[#allocation7 + $0x28] sm:$0xff]
    %v1402 = vld [vmem:[#allocation7 + $0x30] sm:$0xff]
    %v1403 = vld [vmem:[#allocation7 + $0x38] sm:$0xff]
    %v1404 = vld [vmem:[#allocation7 + $0x40] sm:$0xff]
    %v1405 = vld [vmem:[#allocation7 + $0x48] sm:$0xff]
    %v1406 = vld [vmem:[#allocation7 + $0x50] sm:$0xff]
    %v1407 = vld [vmem:[#allocation7 + $0x58] sm:$0xff]
    %v1408 = vld [vmem:[#allocation7 + $0x60] sm:$0xff]
    %v1409 = vld [vmem:[#allocation7 + $0x68] sm:$0xff]
    %v1410 = vld [vmem:[#allocation7 + $0x70] sm:$0xff]
    %v1411 = vld [vmem:[#allocation7 + $0x78] sm:$0xff]
    %v1412 = vld [vmem:[#allocation7 + $0x80] sm:$0xff]
    %v1413 = vld [vmem:[#allocation7 + $0x88] sm:$0xff]
    %v1414 = vld [vmem:[#allocation7 + $0x90] sm:$0xff]
    %v1415 = vld [vmem:[#allocation7 + $0x98] sm:$0xff]
    %v1416 = vld [vmem:[#allocation7 + $0xa0] sm:$0xff]
    %v1417 = vld [vmem:[#allocation7 + $0xa8] sm:$0xff]
    %v1418 = vld [vmem:[#allocation7 + $0xb0] sm:$0xff]
    %v1419 = vld [vmem:[#allocation7 + $0xb8] sm:$0xff]
    %v1420 = vld [vmem:[#allocation7 + $0xc0] sm:$0xff]
    %v1421 = vld [vmem:[#allocation7 + $0xc8] sm:$0xff]
    %v1422 = vld [vmem:[#allocation7 + $0xd0] sm:$0xff]
    %v1423 = vld [vmem:[#allocation7 + $0xd8] sm:$0xff]
    %v1424 = vld [vmem:[#allocation7 + $0xe0] sm:$0xff]
    %v1425 = vld [vmem:[#allocation7 + $0xe8] sm:$0xff]
    %v1426 = vld [vmem:[#allocation7 + $0xf0] sm:$0xff]
    %v1427 = vld [vmem:[#allocation7 + $0xf8] sm:$0xff]
    %v1460 = vunpack.c.l.b16 %v1396
    %v1461 = vunpack.c.h.b16 %v1396
    %v1462 = vunpack.c.l.b16 %v1397
    %v1463 = vunpack.c.h.b16 %v1397
    %v1464 = vunpack.c.l.b16 %v1398
    %v1465 = vunpack.c.h.b16 %v1398
    %v1466 = vunpack.c.l.b16 %v1399
    %v1467 = vunpack.c.h.b16 %v1399
    %v1468 = vunpack.c.l.b16 %v1400
    %v1469 = vunpack.c.h.b16 %v1400
    %v1470 = vunpack.c.l.b16 %v1401
    %v1471 = vunpack.c.h.b16 %v1401
    %v1472 = vunpack.c.l.b16 %v1402
    %v1473 = vunpack.c.h.b16 %v1402
    %v1474 = vunpack.c.l.b16 %v1403
    %v1475 = vunpack.c.h.b16 %v1403
    %v1476 = vunpack.c.l.b16 %v1404
    %v1477 = vunpack.c.h.b16 %v1404
    %v1478 = vunpack.c.l.b16 %v1405
    %v1479 = vunpack.c.h.b16 %v1405
    %v1480 = vunpack.c.l.b16 %v1406
    %v1481 = vunpack.c.h.b16 %v1406
    %v1482 = vunpack.c.l.b16 %v1407
    %v1483 = vunpack.c.h.b16 %v1407
    %v1484 = vunpack.c.l.b16 %v1408
    %v1485 = vunpack.c.h.b16 %v1408
    %v1486 = vunpack.c.l.b16 %v1409
    %v1487 = vunpack.c.h.b16 %v1409
    %v1488 = vunpack.c.l.b16 %v1410
    %v1489 = vunpack.c.h.b16 %v1410
    %v1490 = vunpack.c.l.b16 %v1411
    %v1491 = vunpack.c.h.b16 %v1411
    %v1492 = vunpack.c.l.b16 %v1412
    %v1493 = vunpack.c.h.b16 %v1412
    %v1494 = vunpack.c.l.b16 %v1413
    %v1495 = vunpack.c.h.b16 %v1413
    %v1496 = vunpack.c.l.b16 %v1414
    %v1497 = vunpack.c.h.b16 %v1414
    %v1498 = vunpack.c.l.b16 %v1415
    %v1499 = vunpack.c.h.b16 %v1415
    %v1500 = vunpack.c.l.b16 %v1416
    %v1501 = vunpack.c.h.b16 %v1416
    %v1502 = vunpack.c.l.b16 %v1417
    %v1503 = vunpack.c.h.b16 %v1417
    %v1504 = vunpack.c.l.b16 %v1418
    %v1505 = vunpack.c.h.b16 %v1418
    %v1506 = vunpack.c.l.b16 %v1419
    %v1507 = vunpack.c.h.b16 %v1419
    %v1508 = vunpack.c.l.b16 %v1420
    %v1509 = vunpack.c.h.b16 %v1420
    %v1510 = vunpack.c.l.b16 %v1421
    %v1511 = vunpack.c.h.b16 %v1421
    %v1512 = vunpack.c.l.b16 %v1422
    %v1513 = vunpack.c.h.b16 %v1422
    %v1514 = vunpack.c.l.b16 %v1423
    %v1515 = vunpack.c.h.b16 %v1423
    %v1516 = vunpack.c.l.b16 %v1424
    %v1517 = vunpack.c.h.b16 %v1424
    %v1518 = vunpack.c.l.b16 %v1425
    %v1519 = vunpack.c.h.b16 %v1425
    %v1520 = vunpack.c.l.b16 %v1426
    %v1521 = vunpack.c.h.b16 %v1426
    %v1522 = vunpack.c.l.b16 %v1427
    %v1523 = vunpack.c.h.b16 %v1427
    %v1524 = vpack.c.b16 %v1464, %v1460
    %v1525 = vpack.c.b16 %v1465, %v1461
    %v1526 = vpack.c.b16 %v1466, %v1462
    %v1527 = vpack.c.b16 %v1467, %v1463
    %v1528 = vpack.c.b16 %v1472, %v1468
    %v1529 = vpack.c.b16 %v1473, %v1469
    %v1530 = vpack.c.b16 %v1474, %v1470
    %v1531 = vpack.c.b16 %v1475, %v1471
    %v1532 = vpack.c.b16 %v1480, %v1476
    %v1533 = vpack.c.b16 %v1481, %v1477
    %v1534 = vpack.c.b16 %v1482, %v1478
    %v1535 = vpack.c.b16 %v1483, %v1479
    %v1536 = vpack.c.b16 %v1488, %v1484
    %v1537 = vpack.c.b16 %v1489, %v1485
    %v1538 = vpack.c.b16 %v1490, %v1486
    %v1539 = vpack.c.b16 %v1491, %v1487
    %v1540 = vpack.c.b16 %v1496, %v1492
    %v1541 = vpack.c.b16 %v1497, %v1493
    %v1542 = vpack.c.b16 %v1498, %v1494
    %v1543 = vpack.c.b16 %v1499, %v1495
    %v1544 = vpack.c.b16 %v1504, %v1500
    %v1545 = vpack.c.b16 %v1505, %v1501
    %v1546 = vpack.c.b16 %v1506, %v1502
    %v1547 = vpack.c.b16 %v1507, %v1503
    %v1548 = vpack.c.b16 %v1512, %v1508
    %v1549 = vpack.c.b16 %v1513, %v1509
    %v1550 = vpack.c.b16 %v1514, %v1510
    %v1551 = vpack.c.b16 %v1515, %v1511
    %v1552 = vpack.c.b16 %v1520, %v1516
    %v1553 = vpack.c.b16 %v1521, %v1517
    %v1554 = vpack.c.b16 %v1522, %v1518
    %v1555 = vpack.c.b16 %v1523, %v1519
    %1588 = vmatprep.subr.bf16.mxu0 %v1553
    %1589 = vmatpush1.bf16.msra.mxu0 %v1552
    %1590 = vmatprep.subr.bf16.mxu0 %v1549
    %1591 = vmatpush1.bf16.msra.mxu0 %v1548
    %1592 = vmatprep.subr.bf16.mxu0 %v1545
    %1593 = vmatpush1.bf16.msra.mxu0 %v1544
    %1594 = vmatprep.subr.bf16.mxu0 %v1541
    %1595 = vmatpush1.bf16.msra.mxu0 %v1540
    %1596 = vmatprep.subr.bf16.mxu0 %v1537
    %1597 = vmatpush1.bf16.msra.mxu0 %v1536
    %1598 = vmatprep.subr.bf16.mxu0 %v1533
    %1599 = vmatpush1.bf16.msra.mxu0 %v1532
    %1600 = vmatprep.subr.bf16.mxu0 %v1529
    %1601 = vmatpush1.bf16.msra.mxu0 %v1528
    %1602 = vmatprep.subr.bf16.mxu0 %v1525
    %1603 = vmatpush1.bf16.msra.mxu0 %v1524
    %1604 = vmatprep.subr.bf16.mxu0 0
    %1605 = vmatpush2.bf16.msra.mxu0 0
    %1606 = vmatprep.subr.bf16.mxu0 0
    %1607 = vmatpush2.bf16.msra.mxu0 0
    %1608 = vmatprep.subr.bf16.mxu0 0
    %1609 = vmatpush2.bf16.msra.mxu0 0
    %1610 = vmatprep.subr.bf16.mxu0 0
    %1611 = vmatpush2.bf16.msra.mxu0 0
    %1612 = vmatprep.subr.bf16.mxu0 0
    %1613 = vmatpush2.bf16.msra.mxu0 0
    %1614 = vmatprep.subr.bf16.mxu0 0
    %1615 = vmatpush2.bf16.msra.mxu0 0
    %1616 = vmatprep.subr.bf16.mxu0 0
    %1617 = vmatpush2.bf16.msra.mxu0 0
    %1618 = vmatprep.subr.bf16.mxu0 0
    %1619 = vmatpush2.bf16.msra.mxu0 0
    %1620 = vmatprep.mubr.bf16.mxu0 0
    %1621 = vmatmul.mubr.bf16.gmra.mxu0 %v1092
    %v1622 = vpop.f32.mrf.mxu0
    %v1623 = vadd.f32 0.0, %v1622
    %v1624 = vpop.f32.mrf.mxu0
    %v1625 = vadd.f32 0.0, %v1624
    %v1626 = vpop.f32.mrf.mxu0
    %v1627 = vpop.f32.mrf.mxu0
    %1628 = vdwg.mxu0
    %1629 = vmatprep.subr.bf16.mxu0 %v1555
    %1630 = vmatpush1.bf16.msra.mxu0 %v1554
    %1631 = vmatprep.subr.bf16.mxu0 %v1551
    %1632 = vmatpush1.bf16.msra.mxu0 %v1550
    %1633 = vmatprep.subr.bf16.mxu0 %v1547
    %1634 = vmatpush1.bf16.msra.mxu0 %v1546
    %1635 = vmatprep.subr.bf16.mxu0 %v1543
    %1636 = vmatpush1.bf16.msra.mxu0 %v1542
    %1637 = vmatprep.subr.bf16.mxu0 %v1539
    %1638 = vmatpush1.bf16.msra.mxu0 %v1538
    %1639 = vmatprep.subr.bf16.mxu0 %v1535
    %1640 = vmatpush1.bf16.msra.mxu0 %v1534
    %1641 = vmatprep.subr.bf16.mxu0 %v1531
    %1642 = vmatpush1.bf16.msra.mxu0 %v1530
    %1643 = vmatprep.subr.bf16.mxu0 %v1527
    %1644 = vmatpush1.bf16.msra.mxu0 %v1526
    %1645 = vmatprep.subr.bf16.mxu0 0
    %1646 = vmatpush2.bf16.msra.mxu0 0
    %1647 = vmatprep.subr.bf16.mxu0 0
    %1648 = vmatpush2.bf16.msra.mxu0 0
    %1649 = vmatprep.subr.bf16.mxu0 0
    %1650 = vmatpush2.bf16.msra.mxu0 0
    %1651 = vmatprep.subr.bf16.mxu0 0
    %1652 = vmatpush2.bf16.msra.mxu0 0
    %1653 = vmatprep.subr.bf16.mxu0 0
    %1654 = vmatpush2.bf16.msra.mxu0 0
    %1655 = vmatprep.subr.bf16.mxu0 0
    %1656 = vmatpush2.bf16.msra.mxu0 0
    %1657 = vmatprep.subr.bf16.mxu0 0
    %1658 = vmatpush2.bf16.msra.mxu0 0
    %1659 = vmatprep.subr.bf16.mxu0 0
    %1660 = vmatpush2.bf16.msra.mxu0 0
    %1661 = vmatprep.mubr.bf16.mxu0 0
    %1662 = vmatmul.mubr.bf16.gmra.mxu0 %v1092
    %v1663 = vpop.f32.mrf.mxu0
    %v1664 = vadd.f32 0.0, %v1663
    %v1665 = vpop.f32.mrf.mxu0
    %v1666 = vadd.f32 0.0, %v1665
    %v1667 = vpop.f32.mrf.mxu0
    %v1668 = vpop.f32.mrf.mxu0
    %1669 = vdwg.mxu0
    %v1670 = vadd.f32 %v1392, %v1623
    %v1671 = vadd.f32 %v1393, %v1625
    %v1672 = vadd.f32 %v1394, %v1664
    %v1673 = vadd.f32 %v1395, %v1666
    %v1674 = vmul.f32 %v1670, 0.5
    %v1675 = vmul.f32 %v1671, 0.5
    %v1676 = vmul.f32 %v1672, 0.5
    %v1677 = vtanh.pop %v1674
    %v1678 = vtanh.pop %v1675
    %v1679 = vtanh.pop %v1676
    %v1680 = vmul.f32 %v1677, 0.5
    %v1681 = vmul.f32 %v1678, 0.5
    %v1682 = vmul.f32 %v1679, 0.5
    %v1683 = vadd.f32 %v1680, 0.5
    %v1684 = vadd.f32 %v1681, 0.5
    %v1685 = vadd.f32 %v1682, 0.5
    %v1686 = vtanh.pop %v1673
    %v1687 = vmul.f32 %v1684, %v1089
    %v1688 = vmul.f32 %v1683, %v1686
    %v1689 = vadd.f32 %v1687, %v1688
    %v1690 = vtanh.pop %v1689
    %v1691 = vmul.f32 %v1685, %v1690
    %v1692 = vpack.c.bf16 %v1691, %v1691
    %1693 = vadd.xlane.f32.xlu0 %v1691
    %v1694 = vpop.xlane.xlu0 %1693
    %v1695 = vmul.f32 %v1694, %v461
    %v1696 = vmul.f32 %v1691, %v1691
    %1697 = vadd.xlane.f32.xlu0 %v1696
    %v1698 = vpop.xlane.xlu0 %1697
    %v1699 = vmul.f32 %v1698, %v461
    %v1700 = vmul.f32 %v1695, %v1695
    %v1701 = vsub.f32 %v1699, %v1700
    %v1702 = vsub.f32 %v1691, %v1695
    %v1703 = vadd.f32 %v1701, 1e-05
    %v1704 = vrsqrt.pop %v1703
    %v1705 = vmul.f32 %v1702, %v1704
    %v1706 = vmul.f32 %v1705, %v477
    %v1707 = vadd.f32 %v1706, %v484
    %v1708 = vmul.f32 %v1707, 0.5
    %v1709 = vtanh.pop %v1708
    %v1710 = vmul.f32 %v1709, 0.5
    %v1711 = vadd.f32 %v1710, 0.5
    %v1712 = vmul.f32 %v1707, %v1711
    %v1713 = vpack.c.bf16 %v1712, %v1712
    %v1714 = vld [vmem:[#allocation10] sm:$0xff]
    %v1715 = vld [vmem:[#allocation10 + $0x8] sm:$0xff]
    %v1716 = vld [vmem:[#allocation10 + $0x10] sm:$0xff]
    %v1717 = vld [vmem:[#allocation10 + $0x18] sm:$0xff]
    %v1718 = vld [vmem:[#allocation10 + $0x20] sm:$0xff]
    %v1719 = vld [vmem:[#allocation10 + $0x28] sm:$0xff]
    %v1720 = vld [vmem:[#allocation10 + $0x30] sm:$0xff]
    %v1721 = vld [vmem:[#allocation10 + $0x38] sm:$0xff]
    %v1722 = vld [vmem:[#allocation10 + $0x40] sm:$0xff]
    %v1723 = vld [vmem:[#allocation10 + $0x48] sm:$0xff]
    %v1724 = vld [vmem:[#allocation10 + $0x50] sm:$0xff]
    %v1725 = vld [vmem:[#allocation10 + $0x58] sm:$0xff]
    %v1726 = vld [vmem:[#allocation10 + $0x60] sm:$0xff]
    %v1727 = vld [vmem:[#allocation10 + $0x68] sm:$0xff]
    %v1728 = vld [vmem:[#allocation10 + $0x70] sm:$0xff]
    %v1729 = vld [vmem:[#allocation10 + $0x78] sm:$0xff]
    %v1730 = vld [vmem:[#allocation10 + $0x80] sm:$0xff]
    %v1731 = vld [vmem:[#allocation10 + $0x88] sm:$0xff]
    %v1732 = vld [vmem:[#allocation10 + $0x90] sm:$0xff]
    %v1733 = vld [vmem:[#allocation10 + $0x98] sm:$0xff]
    %v1734 = vld [vmem:[#allocation10 + $0xa0] sm:$0xff]
    %v1735 = vld [vmem:[#allocation10 + $0xa8] sm:$0xff]
    %v1736 = vld [vmem:[#allocation10 + $0xb0] sm:$0xff]
    %v1737 = vld [vmem:[#allocation10 + $0xb8] sm:$0xff]
    %v1738 = vld [vmem:[#allocation10 + $0xc0] sm:$0xff]
    %v1739 = vld [vmem:[#allocation10 + $0xc8] sm:$0xff]
    %v1740 = vld [vmem:[#allocation10 + $0xd0] sm:$0xff]
    %v1741 = vld [vmem:[#allocation10 + $0xd8] sm:$0xff]
    %v1742 = vld [vmem:[#allocation10 + $0xe0] sm:$0xff]
    %v1743 = vld [vmem:[#allocation10 + $0xe8] sm:$0xff]
    %v1744 = vld [vmem:[#allocation10 + $0xf0] sm:$0xff]
    %v1745 = vld [vmem:[#allocation10 + $0xf8] sm:$0xff]
    %v1778 = vunpack.c.l.b16 %v1714
    %v1779 = vunpack.c.h.b16 %v1714
    %v1780 = vunpack.c.l.b16 %v1715
    %v1781 = vunpack.c.h.b16 %v1715
    %v1782 = vunpack.c.l.b16 %v1716
    %v1783 = vunpack.c.h.b16 %v1716
    %v1784 = vunpack.c.l.b16 %v1717
    %v1785 = vunpack.c.h.b16 %v1717
    %v1786 = vunpack.c.l.b16 %v1718
    %v1787 = vunpack.c.h.b16 %v1718
    %v1788 = vunpack.c.l.b16 %v1719
    %v1789 = vunpack.c.h.b16 %v1719
    %v1790 = vunpack.c.l.b16 %v1720
    %v1791 = vunpack.c.h.b16 %v1720
    %v1792 = vunpack.c.l.b16 %v1721
    %v1793 = vunpack.c.h.b16 %v1721
    %v1794 = vunpack.c.l.b16 %v1722
    %v1795 = vunpack.c.h.b16 %v1722
    %v1796 = vunpack.c.l.b16 %v1723
    %v1797 = vunpack.c.h.b16 %v1723
    %v1798 = vunpack.c.l.b16 %v1724
    %v1799 = vunpack.c.h.b16 %v1724
    %v1800 = vunpack.c.l.b16 %v1725
    %v1801 = vunpack.c.h.b16 %v1725
    %v1802 = vunpack.c.l.b16 %v1726
    %v1803 = vunpack.c.h.b16 %v1726
    %v1804 = vunpack.c.l.b16 %v1727
    %v1805 = vunpack.c.h.b16 %v1727
    %v1806 = vunpack.c.l.b16 %v1728
    %v1807 = vunpack.c.h.b16 %v1728
    %v1808 = vunpack.c.l.b16 %v1729
    %v1809 = vunpack.c.h.b16 %v1729
    %v1810 = vunpack.c.l.b16 %v1730
    %v1811 = vunpack.c.h.b16 %v1730
    %v1812 = vunpack.c.l.b16 %v1731
    %v1813 = vunpack.c.h.b16 %v1731
    %v1814 = vunpack.c.l.b16 %v1732
    %v1815 = vunpack.c.h.b16 %v1732
    %v1816 = vunpack.c.l.b16 %v1733
    %v1817 = vunpack.c.h.b16 %v1733
    %v1818 = vunpack.c.l.b16 %v1734
    %v1819 = vunpack.c.h.b16 %v1734
    %v1820 = vunpack.c.l.b16 %v1735
    %v1821 = vunpack.c.h.b16 %v1735
    %v1822 = vunpack.c.l.b16 %v1736
    %v1823 = vunpack.c.h.b16 %v1736
    %v1824 = vunpack.c.l.b16 %v1737
    %v1825 = vunpack.c.h.b16 %v1737
    %v1826 = vunpack.c.l.b16 %v1738
    %v1827 = vunpack.c.h.b16 %v1738
    %v1828 = vunpack.c.l.b16 %v1739
    %v1829 = vunpack.c.h.b16 %v1739
    %v1830 = vunpack.c.l.b16 %v1740
    %v1831 = vunpack.c.h.b16 %v1740
    %v1832 = vunpack.c.l.b16 %v1741
    %v1833 = vunpack.c.h.b16 %v1741
    %v1834 = vunpack.c.l.b16 %v1742
    %v1835 = vunpack.c.h.b16 %v1742
    %v1836 = vunpack.c.l.b16 %v1743
    %v1837 = vunpack.c.h.b16 %v1743
    %v1838 = vunpack.c.l.b16 %v1744
    %v1839 = vunpack.c.h.b16 %v1744
    %v1840 = vunpack.c.l.b16 %v1745
    %v1841 = vunpack.c.h.b16 %v1745
    %v1842 = vpack.c.b16 %v1782, %v1778
    %v1843 = vpack.c.b16 %v1783, %v1779
    %v1844 = vpack.c.b16 %v1784, %v1780
    %v1845 = vpack.c.b16 %v1785, %v1781
    %v1846 = vpack.c.b16 %v1790, %v1786
    %v1847 = vpack.c.b16 %v1791, %v1787
    %v1848 = vpack.c.b16 %v1792, %v1788
    %v1849 = vpack.c.b16 %v1793, %v1789
    %v1850 = vpack.c.b16 %v1798, %v1794
    %v1851 = vpack.c.b16 %v1799, %v1795
    %v1852 = vpack.c.b16 %v1800, %v1796
    %v1853 = vpack.c.b16 %v1801, %v1797
    %v1854 = vpack.c.b16 %v1806, %v1802
    %v1855 = vpack.c.b16 %v1807, %v1803
    %v1856 = vpack.c.b16 %v1808, %v1804
    %v1857 = vpack.c.b16 %v1809, %v1805
    %v1858 = vpack.c.b16 %v1814, %v1810
    %v1859 = vpack.c.b16 %v1815, %v1811
    %v1860 = vpack.c.b16 %v1816, %v1812
    %v1861 = vpack.c.b16 %v1817, %v1813
    %v1862 = vpack.c.b16 %v1822, %v1818
    %v1863 = vpack.c.b16 %v1823, %v1819
    %v1864 = vpack.c.b16 %v1824, %v1820
    %v1865 = vpack.c.b16 %v1825, %v1821
    %v1866 = vpack.c.b16 %v1830, %v1826
    %v1867 = vpack.c.b16 %v1831, %v1827
    %v1868 = vpack.c.b16 %v1832, %v1828
    %v1869 = vpack.c.b16 %v1833, %v1829
    %v1870 = vpack.c.b16 %v1838, %v1834
    %v1871 = vpack.c.b16 %v1839, %v1835
    %v1872 = vpack.c.b16 %v1840, %v1836
    %v1873 = vpack.c.b16 %v1841, %v1837
    %1906 = vmatprep.subr.bf16.mxu0 %v1871
    %1907 = vmatpush1.bf16.msra.mxu0 %v1870
    %1908 = vmatprep.subr.bf16.mxu0 %v1867
    %1909 = vmatpush1.bf16.msra.mxu0 %v1866
    %1910 = vmatprep.subr.bf16.mxu0 %v1863
    %1911 = vmatpush1.bf16.msra.mxu0 %v1862
    %1912 = vmatprep.subr.bf16.mxu0 %v1859
    %1913 = vmatpush1.bf16.msra.mxu0 %v1858
    %1914 = vmatprep.subr.bf16.mxu0 %v1855
    %1915 = vmatpush1.bf16.msra.mxu0 %v1854
    %1916 = vmatprep.subr.bf16.mxu0 %v1851
    %1917 = vmatpush1.bf16.msra.mxu0 %v1850
    %1918 = vmatprep.subr.bf16.mxu0 %v1847
    %1919 = vmatpush1.bf16.msra.mxu0 %v1846
    %1920 = vmatprep.subr.bf16.mxu0 %v1843
    %1921 = vmatpush1.bf16.msra.mxu0 %v1842
    %1922 = vmatprep.subr.bf16.mxu0 0
    %1923 = vmatpush2.bf16.msra.mxu0 0
    %1924 = vmatprep.subr.bf16.mxu0 0
    %1925 = vmatpush2.bf16.msra.mxu0 0
    %1926 = vmatprep.subr.bf16.mxu0 0
    %1927 = vmatpush2.bf16.msra.mxu0 0
    %1928 = vmatprep.subr.bf16.mxu0 0
    %1929 = vmatpush2.bf16.msra.mxu0 0
    %1930 = vmatprep.subr.bf16.mxu0 0
    %1931 = vmatpush2.bf16.msra.mxu0 0
    %1932 = vmatprep.subr.bf16.mxu0 0
    %1933 = vmatpush2.bf16.msra.mxu0 0
    %1934 = vmatprep.subr.bf16.mxu0 0
    %1935 = vmatpush2.bf16.msra.mxu0 0
    %1936 = vmatprep.subr.bf16.mxu0 0
    %1937 = vmatpush2.bf16.msra.mxu0 0
    %1938 = vmatprep.mubr.bf16.mxu0 0
    %1939 = vmatmul.mubr.bf16.gmra.mxu0 %v1713
    %v1940 = vpop.f32.mrf.mxu0
    %v1941 = vadd.f32 %v529, %v1940
    %v1942 = vpop.f32.mrf.mxu0
    %v1943 = vadd.f32 %v533, %v1942
    %v1944 = vpop.f32.mrf.mxu0
    %v1945 = vpop.f32.mrf.mxu0
    %1946 = vdwg.mxu0
    %1947 = vmatprep.subr.bf16.mxu0 %v1873
    %1948 = vmatpush1.bf16.msra.mxu0 %v1872
    %1949 = vmatprep.subr.bf16.mxu0 %v1869
    %1950 = vmatpush1.bf16.msra.mxu0 %v1868
    %1951 = vmatprep.subr.bf16.mxu0 %v1865
    %1952 = vmatpush1.bf16.msra.mxu0 %v1864
    %1953 = vmatprep.subr.bf16.mxu0 %v1861
    %1954 = vmatpush1.bf16.msra.mxu0 %v1860
    %1955 = vmatprep.subr.bf16.mxu0 %v1857
    %1956 = vmatpush1.bf16.msra.mxu0 %v1856
    %1957 = vmatprep.subr.bf16.mxu0 %v1853
    %1958 = vmatpush1.bf16.msra.mxu0 %v1852
    %1959 = vmatprep.subr.bf16.mxu0 %v1849
    %1960 = vmatpush1.bf16.msra.mxu0 %v1848
    %1961 = vmatprep.subr.bf16.mxu0 %v1845
    %1962 = vmatpush1.bf16.msra.mxu0 %v1844
    %1963 = vmatprep.subr.bf16.mxu0 0
    %1964 = vmatpush2.bf16.msra.mxu0 0
    %1965 = vmatprep.subr.bf16.mxu0 0
    %1966 = vmatpush2.bf16.msra.mxu0 0
    %1967 = vmatprep.subr.bf16.mxu0 0
    %1968 = vmatpush2.bf16.msra.mxu0 0
    %1969 = vmatprep.subr.bf16.mxu0 0
    %1970 = vmatpush2.bf16.msra.mxu0 0
    %1971 = vmatprep.subr.bf16.mxu0 0
    %1972 = vmatpush2.bf16.msra.mxu0 0
    %1973 = vmatprep.subr.bf16.mxu0 0
    %1974 = vmatpush2.bf16.msra.mxu0 0
    %1975 = vmatprep.subr.bf16.mxu0 0
    %1976 = vmatpush2.bf16.msra.mxu0 0
    %1977 = vmatprep.subr.bf16.mxu0 0
    %1978 = vmatpush2.bf16.msra.mxu0 0
    %1979 = vmatprep.mubr.bf16.mxu0 0
    %1980 = vmatmul.mubr.bf16.gmra.mxu0 %v1713
    %v1981 = vpop.f32.mrf.mxu0
    %v1982 = vadd.f32 %v537, %v1981
    %v1983 = vpop.f32.mrf.mxu0
    %v1984 = vadd.f32 %v541, %v1983
    %v1985 = vpop.f32.mrf.mxu0
    %v1986 = vpop.f32.mrf.mxu0
    %1987 = vdwg.mxu0
    %1988 = vst [vmem:[#allocation2 + $0x40] sm:$0xff] %v1941
    %1989 = vst [vmem:[#allocation2 + $0x48] sm:$0xff] %v1943
    %1990 = vst [vmem:[#allocation2 + $0x50] sm:$0xff] %v1982
    %1991 = vst [vmem:[#allocation2 + $0x58] sm:$0xff] %v1984
    %v1992 = vld [vmem:[#allocation5 + $0x60] sm:$0xff]
    %v1993 = vld [vmem:[#allocation5 + $0x68] sm:$0xff]
    %v1994 = vld [vmem:[#allocation5 + $0x70] sm:$0xff]
    %v1995 = vld [vmem:[#allocation5 + $0x78] sm:$0xff]
    %v1996 = vld [vmem:[#allocation7] sm:$0xff]
    %v1997 = vld [vmem:[#allocation7 + $0x8] sm:$0xff]
    %v1998 = vld [vmem:[#allocation7 + $0x10] sm:$0xff]
    %v1999 = vld [vmem:[#allocation7 + $0x18] sm:$0xff]
    %v2000 = vld [vmem:[#allocation7 + $0x20] sm:$0xff]
    %v2001 = vld [vmem:[#allocation7 + $0x28] sm:$0xff]
    %v2002 = vld [vmem:[#allocation7 + $0x30] sm:$0xff]
    %v2003 = vld [vmem:[#allocation7 + $0x38] sm:$0xff]
    %v2004 = vld [vmem:[#allocation7 + $0x40] sm:$0xff]
    %v2005 = vld [vmem:[#allocation7 + $0x48] sm:$0xff]
    %v2006 = vld [vmem:[#allocation7 + $0x50] sm:$0xff]
    %v2007 = vld [vmem:[#allocation7 + $0x58] sm:$0xff]
    %v2008 = vld [vmem:[#allocation7 + $0x60] sm:$0xff]
    %v2009 = vld [vmem:[#allocation7 + $0x68] sm:$0xff]
    %v2010 = vld [vmem:[#allocation7 + $0x70] sm:$0xff]
    %v2011 = vld [vmem:[#allocation7 + $0x78] sm:$0xff]
    %v2012 = vld [vmem:[#allocation7 + $0x80] sm:$0xff]
    %v2013 = vld [vmem:[#allocation7 + $0x88] sm:$0xff]
    %v2014 = vld [vmem:[#allocation7 + $0x90] sm:$0xff]
    %v2015 = vld [vmem:[#allocation7 + $0x98] sm:$0xff]
    %v2016 = vld [vmem:[#allocation7 + $0xa0] sm:$0xff]
    %v2017 = vld [vmem:[#allocation7 + $0xa8] sm:$0xff]
    %v2018 = vld [vmem:[#allocation7 + $0xb0] sm:$0xff]
    %v2019 = vld [vmem:[#allocation7 + $0xb8] sm:$0xff]
    %v2020 = vld [vmem:[#allocation7 + $0xc0] sm:$0xff]
    %v2021 = vld [vmem:[#allocation7 + $0xc8] sm:$0xff]
    %v2022 = vld [vmem:[#allocation7 + $0xd0] sm:$0xff]
    %v2023 = vld [vmem:[#allocation7 + $0xd8] sm:$0xff]
    %v2024 = vld [vmem:[#allocation7 + $0xe0] sm:$0xff]
    %v2025 = vld [vmem:[#allocation7 + $0xe8] sm:$0xff]
    %v2026 = vld [vmem:[#allocation7 + $0xf0] sm:$0xff]
    %v2027 = vld [vmem:[#allocation7 + $0xf8] sm:$0xff]
    %v2060 = vunpack.c.l.b16 %v1996
    %v2061 = vunpack.c.h.b16 %v1996
    %v2062 = vunpack.c.l.b16 %v1997
    %v2063 = vunpack.c.h.b16 %v1997
    %v2064 = vunpack.c.l.b16 %v1998
    %v2065 = vunpack.c.h.b16 %v1998
    %v2066 = vunpack.c.l.b16 %v1999
    %v2067 = vunpack.c.h.b16 %v1999
    %v2068 = vunpack.c.l.b16 %v2000
    %v2069 = vunpack.c.h.b16 %v2000
    %v2070 = vunpack.c.l.b16 %v2001
    %v2071 = vunpack.c.h.b16 %v2001
    %v2072 = vunpack.c.l.b16 %v2002
    %v2073 = vunpack.c.h.b16 %v2002
    %v2074 = vunpack.c.l.b16 %v2003
    %v2075 = vunpack.c.h.b16 %v2003
    %v2076 = vunpack.c.l.b16 %v2004
    %v2077 = vunpack.c.h.b16 %v2004
    %v2078 = vunpack.c.l.b16 %v2005
    %v2079 = vunpack.c.h.b16 %v2005
    %v2080 = vunpack.c.l.b16 %v2006
    %v2081 = vunpack.c.h.b16 %v2006
    %v2082 = vunpack.c.l.b16 %v2007
    %v2083 = vunpack.c.h.b16 %v2007
    %v2084 = vunpack.c.l.b16 %v2008
    %v2085 = vunpack.c.h.b16 %v2008
    %v2086 = vunpack.c.l.b16 %v2009
    %v2087 = vunpack.c.h.b16 %v2009
    %v2088 = vunpack.c.l.b16 %v2010
    %v2089 = vunpack.c.h.b16 %v2010
    %v2090 = vunpack.c.l.b16 %v2011
    %v2091 = vunpack.c.h.b16 %v2011
    %v2092 = vunpack.c.l.b16 %v2012
    %v2093 = vunpack.c.h.b16 %v2012
    %v2094 = vunpack.c.l.b16 %v2013
    %v2095 = vunpack.c.h.b16 %v2013
    %v2096 = vunpack.c.l.b16 %v2014
    %v2097 = vunpack.c.h.b16 %v2014
    %v2098 = vunpack.c.l.b16 %v2015
    %v2099 = vunpack.c.h.b16 %v2015
    %v2100 = vunpack.c.l.b16 %v2016
    %v2101 = vunpack.c.h.b16 %v2016
    %v2102 = vunpack.c.l.b16 %v2017
    %v2103 = vunpack.c.h.b16 %v2017
    %v2104 = vunpack.c.l.b16 %v2018
    %v2105 = vunpack.c.h.b16 %v2018
    %v2106 = vunpack.c.l.b16 %v2019
    %v2107 = vunpack.c.h.b16 %v2019
    %v2108 = vunpack.c.l.b16 %v2020
    %v2109 = vunpack.c.h.b16 %v2020
    %v2110 = vunpack.c.l.b16 %v2021
    %v2111 = vunpack.c.h.b16 %v2021
    %v2112 = vunpack.c.l.b16 %v2022
    %v2113 = vunpack.c.h.b16 %v2022
    %v2114 = vunpack.c.l.b16 %v2023
    %v2115 = vunpack.c.h.b16 %v2023
    %v2116 = vunpack.c.l.b16 %v2024
    %v2117 = vunpack.c.h.b16 %v2024
    %v2118 = vunpack.c.l.b16 %v2025
    %v2119 = vunpack.c.h.b16 %v2025
    %v2120 = vunpack.c.l.b16 %v2026
    %v2121 = vunpack.c.h.b16 %v2026
    %v2122 = vunpack.c.l.b16 %v2027
    %v2123 = vunpack.c.h.b16 %v2027
    %v2124 = vpack.c.b16 %v2064, %v2060
    %v2125 = vpack.c.b16 %v2065, %v2061
    %v2126 = vpack.c.b16 %v2066, %v2062
    %v2127 = vpack.c.b16 %v2067, %v2063
    %v2128 = vpack.c.b16 %v2072, %v2068
    %v2129 = vpack.c.b16 %v2073, %v2069
    %v2130 = vpack.c.b16 %v2074, %v2070
    %v2131 = vpack.c.b16 %v2075, %v2071
    %v2132 = vpack.c.b16 %v2080, %v2076
    %v2133 = vpack.c.b16 %v2081, %v2077
    %v2134 = vpack.c.b16 %v2082, %v2078
    %v2135 = vpack.c.b16 %v2083, %v2079
    %v2136 = vpack.c.b16 %v2088, %v2084
    %v2137 = vpack.c.b16 %v2089, %v2085
    %v2138 = vpack.c.b16 %v2090, %v2086
    %v2139 = vpack.c.b16 %v2091, %v2087
    %v2140 = vpack.c.b16 %v2096, %v2092
    %v2141 = vpack.c.b16 %v2097, %v2093
    %v2142 = vpack.c.b16 %v2098, %v2094
    %v2143 = vpack.c.b16 %v2099, %v2095
    %v2144 = vpack.c.b16 %v2104, %v2100
    %v2145 = vpack.c.b16 %v2105, %v2101
    %v2146 = vpack.c.b16 %v2106, %v2102
    %v2147 = vpack.c.b16 %v2107, %v2103
    %v2148 = vpack.c.b16 %v2112, %v2108
    %v2149 = vpack.c.b16 %v2113, %v2109
    %v2150 = vpack.c.b16 %v2114, %v2110
    %v2151 = vpack.c.b16 %v2115, %v2111
    %v2152 = vpack.c.b16 %v2120, %v2116
    %v2153 = vpack.c.b16 %v2121, %v2117
    %v2154 = vpack.c.b16 %v2122, %v2118
    %v2155 = vpack.c.b16 %v2123, %v2119
    %2188 = vmatprep.subr.bf16.mxu0 %v2153
    %2189 = vmatpush1.bf16.msra.mxu0 %v2152
    %2190 = vmatprep.subr.bf16.mxu0 %v2149
    %2191 = vmatpush1.bf16.msra.mxu0 %v2148
    %2192 = vmatprep.subr.bf16.mxu0 %v2145
    %2193 = vmatpush1.bf16.msra.mxu0 %v2144
    %2194 = vmatprep.subr.bf16.mxu0 %v2141
    %2195 = vmatpush1.bf16.msra.mxu0 %v2140
    %2196 = vmatprep.subr.bf16.mxu0 %v2137
    %2197 = vmatpush1.bf16.msra.mxu0 %v2136
    %2198 = vmatprep.subr.bf16.mxu0 %v2133
    %2199 = vmatpush1.bf16.msra.mxu0 %v2132
    %2200 = vmatprep.subr.bf16.mxu0 %v2129
    %2201 = vmatpush1.bf16.msra.mxu0 %v2128
    %2202 = vmatprep.subr.bf16.mxu0 %v2125
    %2203 = vmatpush1.bf16.msra.mxu0 %v2124
    %2204 = vmatprep.subr.bf16.mxu0 0
    %2205 = vmatpush2.bf16.msra.mxu0 0
    %2206 = vmatprep.subr.bf16.mxu0 0
    %2207 = vmatpush2.bf16.msra.mxu0 0
    %2208 = vmatprep.subr.bf16.mxu0 0
    %2209 = vmatpush2.bf16.msra.mxu0 0
    %2210 = vmatprep.subr.bf16.mxu0 0
    %2211 = vmatpush2.bf16.msra.mxu0 0
    %2212 = vmatprep.subr.bf16.mxu0 0
    %2213 = vmatpush2.bf16.msra.mxu0 0
    %2214 = vmatprep.subr.bf16.mxu0 0
    %2215 = vmatpush2.bf16.msra.mxu0 0
    %2216 = vmatprep.subr.bf16.mxu0 0
    %2217 = vmatpush2.bf16.msra.mxu0 0
    %2218 = vmatprep.subr.bf16.mxu0 0
    %2219 = vmatpush2.bf16.msra.mxu0 0
    %2220 = vmatprep.mubr.bf16.mxu0 0
    %2221 = vmatmul.mubr.bf16.gmra.mxu0 %v1692
    %v2222 = vpop.f32.mrf.mxu0
    %v2223 = vadd.f32 0.0, %v2222
    %v2224 = vpop.f32.mrf.mxu0
    %v2225 = vadd.f32 0.0, %v2224
    %v2226 = vpop.f32.mrf.mxu0
    %v2227 = vpop.f32.mrf.mxu0
    %2228 = vdwg.mxu0
    %2229 = vmatprep.subr.bf16.mxu0 %v2155
    %2230 = vmatpush1.bf16.msra.mxu0 %v2154
    %2231 = vmatprep.subr.bf16.mxu0 %v2151
    %2232 = vmatpush1.bf16.msra.mxu0 %v2150
    %2233 = vmatprep.subr.bf16.mxu0 %v2147
    %2234 = vmatpush1.bf16.msra.mxu0 %v2146
    %2235 = vmatprep.subr.bf16.mxu0 %v2143
    %2236 = vmatpush1.bf16.msra.mxu0 %v2142
    %2237 = vmatprep.subr.bf16.mxu0 %v2139
    %2238 = vmatpush1.bf16.msra.mxu0 %v2138
    %2239 = vmatprep.subr.bf16.mxu0 %v2135
    %2240 = vmatpush1.bf16.msra.mxu0 %v2134
    %2241 = vmatprep.subr.bf16.mxu0 %v2131
    %2242 = vmatpush1.bf16.msra.mxu0 %v2130
    %2243 = vmatprep.subr.bf16.mxu0 %v2127
    %2244 = vmatpush1.bf16.msra.mxu0 %v2126
    %2245 = vmatprep.subr.bf16.mxu0 0
    %2246 = vmatpush2.bf16.msra.mxu0 0
    %2247 = vmatprep.subr.bf16.mxu0 0
    %2248 = vmatpush2.bf16.msra.mxu0 0
    %2249 = vmatprep.subr.bf16.mxu0 0
    %2250 = vmatpush2.bf16.msra.mxu0 0
    %2251 = vmatprep.subr.bf16.mxu0 0
    %2252 = vmatpush2.bf16.msra.mxu0 0
    %2253 = vmatprep.subr.bf16.mxu0 0
    %2254 = vmatpush2.bf16.msra.mxu0 0
    %2255 = vmatprep.subr.bf16.mxu0 0
    %2256 = vmatpush2.bf16.msra.mxu0 0
    %2257 = vmatprep.subr.bf16.mxu0 0
    %2258 = vmatpush2.bf16.msra.mxu0 0
    %2259 = vmatprep.subr.bf16.mxu0 0
    %2260 = vmatpush2.bf16.msra.mxu0 0
    %2261 = vmatprep.mubr.bf16.mxu0 0
    %2262 = vmatmul.mubr.bf16.gmra.mxu0 %v1692
    %v2263 = vpop.f32.mrf.mxu0
    %v2264 = vadd.f32 0.0, %v2263
    %v2265 = vpop.f32.mrf.mxu0
    %v2266 = vadd.f32 0.0, %v2265
    %v2267 = vpop.f32.mrf.mxu0
    %v2268 = vpop.f32.mrf.mxu0
    %2269 = vdwg.mxu0
    %v2270 = vadd.f32 %v1992, %v2223
    %v2271 = vadd.f32 %v1993, %v2225
    %v2272 = vadd.f32 %v1994, %v2264
    %v2273 = vadd.f32 %v1995, %v2266
    %v2274 = vmul.f32 %v2270, 0.5
    %v2275 = vmul.f32 %v2271, 0.5
    %v2276 = vmul.f32 %v2272, 0.5
    %v2277 = vtanh.pop %v2274
    %v2278 = vtanh.pop %v2275
    %v2279 = vtanh.pop %v2276
    %v2280 = vmul.f32 %v2277, 0.5
    %v2281 = vmul.f32 %v2278, 0.5
    %v2282 = vmul.f32 %v2279, 0.5
    %v2283 = vadd.f32 %v2280, 0.5
    %v2284 = vadd.f32 %v2281, 0.5
    %v2285 = vadd.f32 %v2282, 0.5
    %v2286 = vtanh.pop %v2273
    %v2287 = vmul.f32 %v2284, %v1689
    %v2288 = vmul.f32 %v2283, %v2286
    %v2289 = vadd.f32 %v2287, %v2288
    %v2290 = vtanh.pop %v2289
    %v2291 = vmul.f32 %v2285, %v2290
    %v2292 = vpack.c.bf16 %v2291, %v2291
    %2293 = vadd.xlane.f32.xlu0 %v2291
    %v2294 = vpop.xlane.xlu0 %2293
    %v2295 = vmul.f32 %v2294, %v461
    %v2296 = vmul.f32 %v2291, %v2291
    %2297 = vadd.xlane.f32.xlu0 %v2296
    %v2298 = vpop.xlane.xlu0 %2297
    %v2299 = vmul.f32 %v2298, %v461
    %v2300 = vmul.f32 %v2295, %v2295
    %v2301 = vsub.f32 %v2299, %v2300
    %v2302 = vsub.f32 %v2291, %v2295
    %v2303 = vadd.f32 %v2301, 1e-05
    %v2304 = vrsqrt.pop %v2303
    %v2305 = vmul.f32 %v2302, %v2304
    %v2306 = vmul.f32 %v2305, %v477
    %v2307 = vadd.f32 %v2306, %v484
    %v2308 = vmul.f32 %v2307, 0.5
    %v2309 = vtanh.pop %v2308
    %v2310 = vmul.f32 %v2309, 0.5
    %v2311 = vadd.f32 %v2310, 0.5
    %v2312 = vmul.f32 %v2307, %v2311
    %v2313 = vpack.c.bf16 %v2312, %v2312
    %v2314 = vld [vmem:[#allocation10] sm:$0xff]
    %v2315 = vld [vmem:[#allocation10 + $0x8] sm:$0xff]
    %v2316 = vld [vmem:[#allocation10 + $0x10] sm:$0xff]
    %v2317 = vld [vmem:[#allocation10 + $0x18] sm:$0xff]
    %v2318 = vld [vmem:[#allocation10 + $0x20] sm:$0xff]
    %v2319 = vld [vmem:[#allocation10 + $0x28] sm:$0xff]
    %v2320 = vld [vmem:[#allocation10 + $0x30] sm:$0xff]
    %v2321 = vld [vmem:[#allocation10 + $0x38] sm:$0xff]
    %v2322 = vld [vmem:[#allocation10 + $0x40] sm:$0xff]
    %v2323 = vld [vmem:[#allocation10 + $0x48] sm:$0xff]
    %v2324 = vld [vmem:[#allocation10 + $0x50] sm:$0xff]
    %v2325 = vld [vmem:[#allocation10 + $0x58] sm:$0xff]
    %v2326 = vld [vmem:[#allocation10 + $0x60] sm:$0xff]
    %v2327 = vld [vmem:[#allocation10 + $0x68] sm:$0xff]
    %v2328 = vld [vmem:[#allocation10 + $0x70] sm:$0xff]
    %v2329 = vld [vmem:[#allocation10 + $0x78] sm:$0xff]
    %v2330 = vld [vmem:[#allocation10 + $0x80] sm:$0xff]
    %v2331 = vld [vmem:[#allocation10 + $0x88] sm:$0xff]
    %v2332 = vld [vmem:[#allocation10 + $0x90] sm:$0xff]
    %v2333 = vld [vmem:[#allocation10 + $0x98] sm:$0xff]
    %v2334 = vld [vmem:[#allocation10 + $0xa0] sm:$0xff]
    %v2335 = vld [vmem:[#allocation10 + $0xa8] sm:$0xff]
    %v2336 = vld [vmem:[#allocation10 + $0xb0] sm:$0xff]
    %v2337 = vld [vmem:[#allocation10 + $0xb8] sm:$0xff]
    %v2338 = vld [vmem:[#allocation10 + $0xc0] sm:$0xff]
    %v2339 = vld [vmem:[#allocation10 + $0xc8] sm:$0xff]
    %v2340 = vld [vmem:[#allocation10 + $0xd0] sm:$0xff]
    %v2341 = vld [vmem:[#allocation10 + $0xd8] sm:$0xff]
    %v2342 = vld [vmem:[#allocation10 + $0xe0] sm:$0xff]
    %v2343 = vld [vmem:[#allocation10 + $0xe8] sm:$0xff]
    %v2344 = vld [vmem:[#allocation10 + $0xf0] sm:$0xff]
    %v2345 = vld [vmem:[#allocation10 + $0xf8] sm:$0xff]
    %v2378 = vunpack.c.l.b16 %v2314
    %v2379 = vunpack.c.h.b16 %v2314
    %v2380 = vunpack.c.l.b16 %v2315
    %v2381 = vunpack.c.h.b16 %v2315
    %v2382 = vunpack.c.l.b16 %v2316
    %v2383 = vunpack.c.h.b16 %v2316
    %v2384 = vunpack.c.l.b16 %v2317
    %v2385 = vunpack.c.h.b16 %v2317
    %v2386 = vunpack.c.l.b16 %v2318
    %v2387 = vunpack.c.h.b16 %v2318
    %v2388 = vunpack.c.l.b16 %v2319
    %v2389 = vunpack.c.h.b16 %v2319
    %v2390 = vunpack.c.l.b16 %v2320
    %v2391 = vunpack.c.h.b16 %v2320
    %v2392 = vunpack.c.l.b16 %v2321
    %v2393 = vunpack.c.h.b16 %v2321
    %v2394 = vunpack.c.l.b16 %v2322
    %v2395 = vunpack.c.h.b16 %v2322
    %v2396 = vunpack.c.l.b16 %v2323
    %v2397 = vunpack.c.h.b16 %v2323
    %v2398 = vunpack.c.l.b16 %v2324
    %v2399 = vunpack.c.h.b16 %v2324
    %v2400 = vunpack.c.l.b16 %v2325
    %v2401 = vunpack.c.h.b16 %v2325
    %v2402 = vunpack.c.l.b16 %v2326
    %v2403 = vunpack.c.h.b16 %v2326
    %v2404 = vunpack.c.l.b16 %v2327
    %v2405 = vunpack.c.h.b16 %v2327
    %v2406 = vunpack.c.l.b16 %v2328
    %v2407 = vunpack.c.h.b16 %v2328
    %v2408 = vunpack.c.l.b16 %v2329
    %v2409 = vunpack.c.h.b16 %v2329
    %v2410 = vunpack.c.l.b16 %v2330
    %v2411 = vunpack.c.h.b16 %v2330
    %v2412 = vunpack.c.l.b16 %v2331
    %v2413 = vunpack.c.h.b16 %v2331
    %v2414 = vunpack.c.l.b16 %v2332
    %v2415 = vunpack.c.h.b16 %v2332
    %v2416 = vunpack.c.l.b16 %v2333
    %v2417 = vunpack.c.h.b16 %v2333
    %v2418 = vunpack.c.l.b16 %v2334
    %v2419 = vunpack.c.h.b16 %v2334
    %v2420 = vunpack.c.l.b16 %v2335
    %v2421 = vunpack.c.h.b16 %v2335
    %v2422 = vunpack.c.l.b16 %v2336
    %v2423 = vunpack.c.h.b16 %v2336
    %v2424 = vunpack.c.l.b16 %v2337
    %v2425 = vunpack.c.h.b16 %v2337
    %v2426 = vunpack.c.l.b16 %v2338
    %v2427 = vunpack.c.h.b16 %v2338
    %v2428 = vunpack.c.l.b16 %v2339
    %v2429 = vunpack.c.h.b16 %v2339
    %v2430 = vunpack.c.l.b16 %v2340
    %v2431 = vunpack.c.h.b16 %v2340
    %v2432 = vunpack.c.l.b16 %v2341
    %v2433 = vunpack.c.h.b16 %v2341
    %v2434 = vunpack.c.l.b16 %v2342
    %v2435 = vunpack.c.h.b16 %v2342
    %v2436 = vunpack.c.l.b16 %v2343
    %v2437 = vunpack.c.h.b16 %v2343
    %v2438 = vunpack.c.l.b16 %v2344
    %v2439 = vunpack.c.h.b16 %v2344
    %v2440 = vunpack.c.l.b16 %v2345
    %v2441 = vunpack.c.h.b16 %v2345
    %v2442 = vpack.c.b16 %v2382, %v2378
    %v2443 = vpack.c.b16 %v2383, %v2379
    %v2444 = vpack.c.b16 %v2384, %v2380
    %v2445 = vpack.c.b16 %v2385, %v2381
    %v2446 = vpack.c.b16 %v2390, %v2386
    %v2447 = vpack.c.b16 %v2391, %v2387
    %v2448 = vpack.c.b16 %v2392, %v2388
    %v2449 = vpack.c.b16 %v2393, %v2389
    %v2450 = vpack.c.b16 %v2398, %v2394
    %v2451 = vpack.c.b16 %v2399, %v2395
    %v2452 = vpack.c.b16 %v2400, %v2396
    %v2453 = vpack.c.b16 %v2401, %v2397
    %v2454 = vpack.c.b16 %v2406, %v2402
    %v2455 = vpack.c.b16 %v2407, %v2403
    %v2456 = vpack.c.b16 %v2408, %v2404
    %v2457 = vpack.c.b16 %v2409, %v2405
    %v2458 = vpack.c.b16 %v2414, %v2410
    %v2459 = vpack.c.b16 %v2415, %v2411
    %v2460 = vpack.c.b16 %v2416, %v2412
    %v2461 = vpack.c.b16 %v2417, %v2413
    %v2462 = vpack.c.b16 %v2422, %v2418
    %v2463 = vpack.c.b16 %v2423, %v2419
    %v2464 = vpack.c.b16 %v2424, %v2420
    %v2465 = vpack.c.b16 %v2425, %v2421
    %v2466 = vpack.c.b16 %v2430, %v2426
    %v2467 = vpack.c.b16 %v2431, %v2427
    %v2468 = vpack.c.b16 %v2432, %v2428
    %v2469 = vpack.c.b16 %v2433, %v2429
    %v2470 = vpack.c.b16 %v2438, %v2434
    %v2471 = vpack.c.b16 %v2439, %v2435
    %v2472 = vpack.c.b16 %v2440, %v2436
    %v2473 = vpack.c.b16 %v2441, %v2437
    %2506 = vmatprep.subr.bf16.mxu0 %v2471
    %2507 = vmatpush1.bf16.msra.mxu0 %v2470
    %2508 = vmatprep.subr.bf16.mxu0 %v2467
    %2509 = vmatpush1.bf16.msra.mxu0 %v2466
    %2510 = vmatprep.subr.bf16.mxu0 %v2463
    %2511 = vmatpush1.bf16.msra.mxu0 %v2462
    %2512 = vmatprep.subr.bf16.mxu0 %v2459
    %2513 = vmatpush1.bf16.msra.mxu0 %v2458
    %2514 = vmatprep.subr.bf16.mxu0 %v2455
    %2515 = vmatpush1.bf16.msra.mxu0 %v2454
    %2516 = vmatprep.subr.bf16.mxu0 %v2451
    %2517 = vmatpush1.bf16.msra.mxu0 %v2450
    %2518 = vmatprep.subr.bf16.mxu0 %v2447
    %2519 = vmatpush1.bf16.msra.mxu0 %v2446
    %2520 = vmatprep.subr.bf16.mxu0 %v2443
    %2521 = vmatpush1.bf16.msra.mxu0 %v2442
    %2522 = vmatprep.subr.bf16.mxu0 0
    %2523 = vmatpush2.bf16.msra.mxu0 0
    %2524 = vmatprep.subr.bf16.mxu0 0
    %2525 = vmatpush2.bf16.msra.mxu0 0
    %2526 = vmatprep.subr.bf16.mxu0 0
    %2527 = vmatpush2.bf16.msra.mxu0 0
    %2528 = vmatprep.subr.bf16.mxu0 0
    %2529 = vmatpush2.bf16.msra.mxu0 0
    %2530 = vmatprep.subr.bf16.mxu0 0
    %2531 = vmatpush2.bf16.msra.mxu0 0
    %2532 = vmatprep.subr.bf16.mxu0 0
    %2533 = vmatpush2.bf16.msra.mxu0 0
    %2534 = vmatprep.subr.bf16.mxu0 0
    %2535 = vmatpush2.bf16.msra.mxu0 0
    %2536 = vmatprep.subr.bf16.mxu0 0
    %2537 = vmatpush2.bf16.msra.mxu0 0
    %2538 = vmatprep.mubr.bf16.mxu0 0
    %2539 = vmatmul.mubr.bf16.gmra.mxu0 %v2313
    %v2540 = vpop.f32.mrf.mxu0
    %v2541 = vadd.f32 %v529, %v2540
    %v2542 = vpop.f32.mrf.mxu0
    %v2543 = vadd.f32 %v533, %v2542
    %v2544 = vpop.f32.mrf.mxu0
    %v2545 = vpop.f32.mrf.mxu0
    %2546 = vdwg.mxu0
    %2547 = vmatprep.subr.bf16.mxu0 %v2473
    %2548 = vmatpush1.bf16.msra.mxu0 %v2472
    %2549 = vmatprep.subr.bf16.mxu0 %v2469
    %2550 = vmatpush1.bf16.msra.mxu0 %v2468
    %2551 = vmatprep.subr.bf16.mxu0 %v2465
    %2552 = vmatpush1.bf16.msra.mxu0 %v2464
    %2553 = vmatprep.subr.bf16.mxu0 %v2461
    %2554 = vmatpush1.bf16.msra.mxu0 %v2460
    %2555 = vmatprep.subr.bf16.mxu0 %v2457
    %2556 = vmatpush1.bf16.msra.mxu0 %v2456
    %2557 = vmatprep.subr.bf16.mxu0 %v2453
    %2558 = vmatpush1.bf16.msra.mxu0 %v2452
    %2559 = vmatprep.subr.bf16.mxu0 %v2449
    %2560 = vmatpush1.bf16.msra.mxu0 %v2448
    %2561 = vmatprep.subr.bf16.mxu0 %v2445
    %2562 = vmatpush1.bf16.msra.mxu0 %v2444
    %2563 = vmatprep.subr.bf16.mxu0 0
    %2564 = vmatpush2.bf16.msra.mxu0 0
    %2565 = vmatprep.subr.bf16.mxu0 0
    %2566 = vmatpush2.bf16.msra.mxu0 0
    %2567 = vmatprep.subr.bf16.mxu0 0
    %2568 = vmatpush2.bf16.msra.mxu0 0
    %2569 = vmatprep.subr.bf16.mxu0 0
    %2570 = vmatpush2.bf16.msra.mxu0 0
    %2571 = vmatprep.subr.bf16.mxu0 0
    %2572 = vmatpush2.bf16.msra.mxu0 0
    %2573 = vmatprep.subr.bf16.mxu0 0
    %2574 = vmatpush2.bf16.msra.mxu0 0
    %2575 = vmatprep.subr.bf16.mxu0 0
    %2576 = vmatpush2.bf16.msra.mxu0 0
    %2577 = vmatprep.subr.bf16.mxu0 0
    %2578 = vmatpush2.bf16.msra.mxu0 0
    %2579 = vmatprep.mubr.bf16.mxu0 0
    %2580 = vmatmul.mubr.bf16.gmra.mxu0 %v2313
    %v2581 = vpop.f32.mrf.mxu0
    %v2582 = vadd.f32 %v537, %v2581
    %v2583 = vpop.f32.mrf.mxu0
    %v2584 = vadd.f32 %v541, %v2583
    %v2585 = vpop.f32.mrf.mxu0
    %v2586 = vpop.f32.mrf.mxu0
    %2587 = vdwg.mxu0
    %2588 = vst [vmem:[#allocation2 + $0x60] sm:$0xff] %v2541
    %2589 = vst [vmem:[#allocation2 + $0x68] sm:$0xff] %v2543
    %2590 = vst [vmem:[#allocation2 + $0x70] sm:$0xff] %v2582
    %2591 = vst [vmem:[#allocation2 + $0x78] sm:$0xff] %v2584
    %v2592 = vld [vmem:[#allocation5 + $0x80] sm:$0xff]
    %v2593 = vld [vmem:[#allocation5 + $0x88] sm:$0xff]
    %v2594 = vld [vmem:[#allocation5 + $0x90] sm:$0xff]
    %v2595 = vld [vmem:[#allocation5 + $0x98] sm:$0xff]
    %v2596 = vld [vmem:[#allocation7] sm:$0xff]
    %v2597 = vld [vmem:[#allocation7 + $0x8] sm:$0xff]
    %v2598 = vld [vmem:[#allocation7 + $0x10] sm:$0xff]
    %v2599 = vld [vmem:[#allocation7 + $0x18] sm:$0xff]
    %v2600 = vld [vmem:[#allocation7 + $0x20] sm:$0xff]
    %v2601 = vld [vmem:[#allocation7 + $0x28] sm:$0xff]
    %v2602 = vld [vmem:[#allocation7 + $0x30] sm:$0xff]
    %v2603 = vld [vmem:[#allocation7 + $0x38] sm:$0xff]
    %v2604 = vld [vmem:[#allocation7 + $0x40] sm:$0xff]
    %v2605 = vld [vmem:[#allocation7 + $0x48] sm:$0xff]
    %v2606 = vld [vmem:[#allocation7 + $0x50] sm:$0xff]
    %v2607 = vld [vmem:[#allocation7 + $0x58] sm:$0xff]
    %v2608 = vld [vmem:[#allocation7 + $0x60] sm:$0xff]
    %v2609 = vld [vmem:[#allocation7 + $0x68] sm:$0xff]
    %v2610 = vld [vmem:[#allocation7 + $0x70] sm:$0xff]
    %v2611 = vld [vmem:[#allocation7 + $0x78] sm:$0xff]
    %v2612 = vld [vmem:[#allocation7 + $0x80] sm:$0xff]
    %v2613 = vld [vmem:[#allocation7 + $0x88] sm:$0xff]
    %v2614 = vld [vmem:[#allocation7 + $0x90] sm:$0xff]
    %v2615 = vld [vmem:[#allocation7 + $0x98] sm:$0xff]
    %v2616 = vld [vmem:[#allocation7 + $0xa0] sm:$0xff]
    %v2617 = vld [vmem:[#allocation7 + $0xa8] sm:$0xff]
    %v2618 = vld [vmem:[#allocation7 + $0xb0] sm:$0xff]
    %v2619 = vld [vmem:[#allocation7 + $0xb8] sm:$0xff]
    %v2620 = vld [vmem:[#allocation7 + $0xc0] sm:$0xff]
    %v2621 = vld [vmem:[#allocation7 + $0xc8] sm:$0xff]
    %v2622 = vld [vmem:[#allocation7 + $0xd0] sm:$0xff]
    %v2623 = vld [vmem:[#allocation7 + $0xd8] sm:$0xff]
    %v2624 = vld [vmem:[#allocation7 + $0xe0] sm:$0xff]
    %v2625 = vld [vmem:[#allocation7 + $0xe8] sm:$0xff]
    %v2626 = vld [vmem:[#allocation7 + $0xf0] sm:$0xff]
    %v2627 = vld [vmem:[#allocation7 + $0xf8] sm:$0xff]
    %v2660 = vunpack.c.l.b16 %v2596
    %v2661 = vunpack.c.h.b16 %v2596
    %v2662 = vunpack.c.l.b16 %v2597
    %v2663 = vunpack.c.h.b16 %v2597
    %v2664 = vunpack.c.l.b16 %v2598
    %v2665 = vunpack.c.h.b16 %v2598
    %v2666 = vunpack.c.l.b16 %v2599
    %v2667 = vunpack.c.h.b16 %v2599
    %v2668 = vunpack.c.l.b16 %v2600
    %v2669 = vunpack.c.h.b16 %v2600
    %v2670 = vunpack.c.l.b16 %v2601
    %v2671 = vunpack.c.h.b16 %v2601
    %v2672 = vunpack.c.l.b16 %v2602
    %v2673 = vunpack.c.h.b16 %v2602
    %v2674 = vunpack.c.l.b16 %v2603
    %v2675 = vunpack.c.h.b16 %v2603
    %v2676 = vunpack.c.l.b16 %v2604
    %v2677 = vunpack.c.h.b16 %v2604
    %v2678 = vunpack.c.l.b16 %v2605
    %v2679 = vunpack.c.h.b16 %v2605
    %v2680 = vunpack.c.l.b16 %v2606
    %v2681 = vunpack.c.h.b16 %v2606
    %v2682 = vunpack.c.l.b16 %v2607
    %v2683 = vunpack.c.h.b16 %v2607
    %v2684 = vunpack.c.l.b16 %v2608
    %v2685 = vunpack.c.h.b16 %v2608
    %v2686 = vunpack.c.l.b16 %v2609
    %v2687 = vunpack.c.h.b16 %v2609
    %v2688 = vunpack.c.l.b16 %v2610
    %v2689 = vunpack.c.h.b16 %v2610
    %v2690 = vunpack.c.l.b16 %v2611
    %v2691 = vunpack.c.h.b16 %v2611
    %v2692 = vunpack.c.l.b16 %v2612
    %v2693 = vunpack.c.h.b16 %v2612
    %v2694 = vunpack.c.l.b16 %v2613
    %v2695 = vunpack.c.h.b16 %v2613
    %v2696 = vunpack.c.l.b16 %v2614
    %v2697 = vunpack.c.h.b16 %v2614
    %v2698 = vunpack.c.l.b16 %v2615
    %v2699 = vunpack.c.h.b16 %v2615
    %v2700 = vunpack.c.l.b16 %v2616
    %v2701 = vunpack.c.h.b16 %v2616
    %v2702 = vunpack.c.l.b16 %v2617
    %v2703 = vunpack.c.h.b16 %v2617
    %v2704 = vunpack.c.l.b16 %v2618
    %v2705 = vunpack.c.h.b16 %v2618
    %v2706 = vunpack.c.l.b16 %v2619
    %v2707 = vunpack.c.h.b16 %v2619
    %v2708 = vunpack.c.l.b16 %v2620
    %v2709 = vunpack.c.h.b16 %v2620
    %v2710 = vunpack.c.l.b16 %v2621
    %v2711 = vunpack.c.h.b16 %v2621
    %v2712 = vunpack.c.l.b16 %v2622
    %v2713 = vunpack.c.h.b16 %v2622
    %v2714 = vunpack.c.l.b16 %v2623
    %v2715 = vunpack.c.h.b16 %v2623
    %v2716 = vunpack.c.l.b16 %v2624
    %v2717 = vunpack.c.h.b16 %v2624
    %v2718 = vunpack.c.l.b16 %v2625
    %v2719 = vunpack.c.h.b16 %v2625
    %v2720 = vunpack.c.l.b16 %v2626
    %v2721 = vunpack.c.h.b16 %v2626
    %v2722 = vunpack.c.l.b16 %v2627
    %v2723 = vunpack.c.h.b16 %v2627
    %v2724 = vpack.c.b16 %v2664, %v2660
    %v2725 = vpack.c.b16 %v2665, %v2661
    %v2726 = vpack.c.b16 %v2666, %v2662
    %v2727 = vpack.c.b16 %v2667, %v2663
    %v2728 = vpack.c.b16 %v2672, %v2668
    %v2729 = vpack.c.b16 %v2673, %v2669
    %v2730 = vpack.c.b16 %v2674, %v2670
    %v2731 = vpack.c.b16 %v2675, %v2671
    %v2732 = vpack.c.b16 %v2680, %v2676
    %v2733 = vpack.c.b16 %v2681, %v2677
    %v2734 = vpack.c.b16 %v2682, %v2678
    %v2735 = vpack.c.b16 %v2683, %v2679
    %v2736 = vpack.c.b16 %v2688, %v2684
    %v2737 = vpack.c.b16 %v2689, %v2685
    %v2738 = vpack.c.b16 %v2690, %v2686
    %v2739 = vpack.c.b16 %v2691, %v2687
    %v2740 = vpack.c.b16 %v2696, %v2692
    %v2741 = vpack.c.b16 %v2697, %v2693
    %v2742 = vpack.c.b16 %v2698, %v2694
    %v2743 = vpack.c.b16 %v2699, %v2695
    %v2744 = vpack.c.b16 %v2704, %v2700
    %v2745 = vpack.c.b16 %v2705, %v2701
    %v2746 = vpack.c.b16 %v2706, %v2702
    %v2747 = vpack.c.b16 %v2707, %v2703
    %v2748 = vpack.c.b16 %v2712, %v2708
    %v2749 = vpack.c.b16 %v2713, %v2709
    %v2750 = vpack.c.b16 %v2714, %v2710
    %v2751 = vpack.c.b16 %v2715, %v2711
    %v2752 = vpack.c.b16 %v2720, %v2716
    %v2753 = vpack.c.b16 %v2721, %v2717
    %v2754 = vpack.c.b16 %v2722, %v2718
    %v2755 = vpack.c.b16 %v2723, %v2719
    %2788 = vmatprep.subr.bf16.mxu0 %v2753
    %2789 = vmatpush1.bf16.msra.mxu0 %v2752
    %2790 = vmatprep.subr.bf16.mxu0 %v2749
    %2791 = vmatpush1.bf16.msra.mxu0 %v2748
    %2792 = vmatprep.subr.bf16.mxu0 %v2745
    %2793 = vmatpush1.bf16.msra.mxu0 %v2744
    %2794 = vmatprep.subr.bf16.mxu0 %v2741
    %2795 = vmatpush1.bf16.msra.mxu0 %v2740
    %2796 = vmatprep.subr.bf16.mxu0 %v2737
    %2797 = vmatpush1.bf16.msra.mxu0 %v2736
    %2798 = vmatprep.subr.bf16.mxu0 %v2733
    %2799 = vmatpush1.bf16.msra.mxu0 %v2732
    %2800 = vmatprep.subr.bf16.mxu0 %v2729
    %2801 = vmatpush1.bf16.msra.mxu0 %v2728
    %2802 = vmatprep.subr.bf16.mxu0 %v2725
    %2803 = vmatpush1.bf16.msra.mxu0 %v2724
    %2804 = vmatprep.subr.bf16.mxu0 0
    %2805 = vmatpush2.bf16.msra.mxu0 0
    %2806 = vmatprep.subr.bf16.mxu0 0
    %2807 = vmatpush2.bf16.msra.mxu0 0
    %2808 = vmatprep.subr.bf16.mxu0 0
    %2809 = vmatpush2.bf16.msra.mxu0 0
    %2810 = vmatprep.subr.bf16.mxu0 0
    %2811 = vmatpush2.bf16.msra.mxu0 0
    %2812 = vmatprep.subr.bf16.mxu0 0
    %2813 = vmatpush2.bf16.msra.mxu0 0
    %2814 = vmatprep.subr.bf16.mxu0 0
    %2815 = vmatpush2.bf16.msra.mxu0 0
    %2816 = vmatprep.subr.bf16.mxu0 0
    %2817 = vmatpush2.bf16.msra.mxu0 0
    %2818 = vmatprep.subr.bf16.mxu0 0
    %2819 = vmatpush2.bf16.msra.mxu0 0
    %2820 = vmatprep.mubr.bf16.mxu0 0
    %2821 = vmatmul.mubr.bf16.gmra.mxu0 %v2292
    %v2822 = vpop.f32.mrf.mxu0
    %v2823 = vadd.f32 0.0, %v2822
    %v2824 = vpop.f32.mrf.mxu0
    %v2825 = vadd.f32 0.0, %v2824
    %v2826 = vpop.f32.mrf.mxu0
    %v2827 = vpop.f32.mrf.mxu0
    %2828 = vdwg.mxu0
    %2829 = vmatprep.subr.bf16.mxu0 %v2755
    %2830 = vmatpush1.bf16.msra.mxu0 %v2754
    %2831 = vmatprep.subr.bf16.mxu0 %v2751
    %2832 = vmatpush1.bf16.msra.mxu0 %v2750
    %2833 = vmatprep.subr.bf16.mxu0 %v2747
    %2834 = vmatpush1.bf16.msra.mxu0 %v2746
    %2835 = vmatprep.subr.bf16.mxu0 %v2743
    %2836 = vmatpush1.bf16.msra.mxu0 %v2742
    %2837 = vmatprep.subr.bf16.mxu0 %v2739
    %2838 = vmatpush1.bf16.msra.mxu0 %v2738
    %2839 = vmatprep.subr.bf16.mxu0 %v2735
    %2840 = vmatpush1.bf16.msra.mxu0 %v2734
    %2841 = vmatprep.subr.bf16.mxu0 %v2731
    %2842 = vmatpush1.bf16.msra.mxu0 %v2730
    %2843 = vmatprep.subr.bf16.mxu0 %v2727
    %2844 = vmatpush1.bf16.msra.mxu0 %v2726
    %2845 = vmatprep.subr.bf16.mxu0 0
    %2846 = vmatpush2.bf16.msra.mxu0 0
    %2847 = vmatprep.subr.bf16.mxu0 0
    %2848 = vmatpush2.bf16.msra.mxu0 0
    %2849 = vmatprep.subr.bf16.mxu0 0
    %2850 = vmatpush2.bf16.msra.mxu0 0
    %2851 = vmatprep.subr.bf16.mxu0 0
    %2852 = vmatpush2.bf16.msra.mxu0 0
    %2853 = vmatprep.subr.bf16.mxu0 0
    %2854 = vmatpush2.bf16.msra.mxu0 0
    %2855 = vmatprep.subr.bf16.mxu0 0
    %2856 = vmatpush2.bf16.msra.mxu0 0
    %2857 = vmatprep.subr.bf16.mxu0 0
    %2858 = vmatpush2.bf16.msra.mxu0 0
    %2859 = vmatprep.subr.bf16.mxu0 0
    %2860 = vmatpush2.bf16.msra.mxu0 0
    %2861 = vmatprep.mubr.bf16.mxu0 0
    %2862 = vmatmul.mubr.bf16.gmra.mxu0 %v2292
    %v2863 = vpop.f32.mrf.mxu0
    %v2864 = vadd.f32 0.0, %v2863
    %v2865 = vpop.f32.mrf.mxu0
    %v2866 = vadd.f32 0.0, %v2865
    %v2867 = vpop.f32.mrf.mxu0
    %v2868 = vpop.f32.mrf.mxu0
    %2869 = vdwg.mxu0
    %v2870 = vadd.f32 %v2592, %v2823
    %v2871 = vadd.f32 %v2593, %v2825
    %v2872 = vadd.f32 %v2594, %v2864
    %v2873 = vadd.f32 %v2595, %v2866
    %v2874 = vmul.f32 %v2870, 0.5
    %v2875 = vmul.f32 %v2871, 0.5
    %v2876 = vmul.f32 %v2872, 0.5
    %v2877 = vtanh.pop %v2874
    %v2878 = vtanh.pop %v2875
    %v2879 = vtanh.pop %v2876
    %v2880 = vmul.f32 %v2877, 0.5
    %v2881 = vmul.f32 %v2878, 0.5
    %v2882 = vmul.f32 %v2879, 0.5
    %v2883 = vadd.f32 %v2880, 0.5
    %v2884 = vadd.f32 %v2881, 0.5
    %v2885 = vadd.f32 %v2882, 0.5
    %v2886 = vtanh.pop %v2873
    %v2887 = vmul.f32 %v2884, %v2289
    %v2888 = vmul.f32 %v2883, %v2886
    %v2889 = vadd.f32 %v2887, %v2888
    %v2890 = vtanh.pop %v2889
    %v2891 = vmul.f32 %v2885, %v2890
    %v2892 = vpack.c.bf16 %v2891, %v2891
    %2893 = vadd.xlane.f32.xlu0 %v2891
    %v2894 = vpop.xlane.xlu0 %2893
    %v2895 = vmul.f32 %v2894, %v461
    %v2896 = vmul.f32 %v2891, %v2891
    %2897 = vadd.xlane.f32.xlu0 %v2896
    %v2898 = vpop.xlane.xlu0 %2897
    %v2899 = vmul.f32 %v2898, %v461
    %v2900 = vmul.f32 %v2895, %v2895
    %v2901 = vsub.f32 %v2899, %v2900
    %v2902 = vsub.f32 %v2891, %v2895
    %v2903 = vadd.f32 %v2901, 1e-05
    %v2904 = vrsqrt.pop %v2903
    %v2905 = vmul.f32 %v2902, %v2904
    %v2906 = vmul.f32 %v2905, %v477
    %v2907 = vadd.f32 %v2906, %v484
    %v2908 = vmul.f32 %v2907, 0.5
    %v2909 = vtanh.pop %v2908
    %v2910 = vmul.f32 %v2909, 0.5
    %v2911 = vadd.f32 %v2910, 0.5
    %v2912 = vmul.f32 %v2907, %v2911
    %v2913 = vpack.c.bf16 %v2912, %v2912
    %v2914 = vld [vmem:[#allocation10] sm:$0xff]
    %v2915 = vld [vmem:[#allocation10 + $0x8] sm:$0xff]
    %v2916 = vld [vmem:[#allocation10 + $0x10] sm:$0xff]
    %v2917 = vld [vmem:[#allocation10 + $0x18] sm:$0xff]
    %v2918 = vld [vmem:[#allocation10 + $0x20] sm:$0xff]
    %v2919 = vld [vmem:[#allocation10 + $0x28] sm:$0xff]
    %v2920 = vld [vmem:[#allocation10 + $0x30] sm:$0xff]
    %v2921 = vld [vmem:[#allocation10 + $0x38] sm:$0xff]
    %v2922 = vld [vmem:[#allocation10 + $0x40] sm:$0xff]
    %v2923 = vld [vmem:[#allocation10 + $0x48] sm:$0xff]
    %v2924 = vld [vmem:[#allocation10 + $0x50] sm:$0xff]
    %v2925 = vld [vmem:[#allocation10 + $0x58] sm:$0xff]
    %v2926 = vld [vmem:[#allocation10 + $0x60] sm:$0xff]
    %v2927 = vld [vmem:[#allocation10 + $0x68] sm:$0xff]
    %v2928 = vld [vmem:[#allocation10 + $0x70] sm:$0xff]
    %v2929 = vld [vmem:[#allocation10 + $0x78] sm:$0xff]
    %v2930 = vld [vmem:[#allocation10 + $0x80] sm:$0xff]
    %v2931 = vld [vmem:[#allocation10 + $0x88] sm:$0xff]
    %v2932 = vld [vmem:[#allocation10 + $0x90] sm:$0xff]
    %v2933 = vld [vmem:[#allocation10 + $0x98] sm:$0xff]
    %v2934 = vld [vmem:[#allocation10 + $0xa0] sm:$0xff]
    %v2935 = vld [vmem:[#allocation10 + $0xa8] sm:$0xff]
    %v2936 = vld [vmem:[#allocation10 + $0xb0] sm:$0xff]
    %v2937 = vld [vmem:[#allocation10 + $0xb8] sm:$0xff]
    %v2938 = vld [vmem:[#allocation10 + $0xc0] sm:$0xff]
    %v2939 = vld [vmem:[#allocation10 + $0xc8] sm:$0xff]
    %v2940 = vld [vmem:[#allocation10 + $0xd0] sm:$0xff]
    %v2941 = vld [vmem:[#allocation10 + $0xd8] sm:$0xff]
    %v2942 = vld [vmem:[#allocation10 + $0xe0] sm:$0xff]
    %v2943 = vld [vmem:[#allocation10 + $0xe8] sm:$0xff]
    %v2944 = vld [vmem:[#allocation10 + $0xf0] sm:$0xff]
    %v2945 = vld [vmem:[#allocation10 + $0xf8] sm:$0xff]
    %v2978 = vunpack.c.l.b16 %v2914
    %v2979 = vunpack.c.h.b16 %v2914
    %v2980 = vunpack.c.l.b16 %v2915
    %v2981 = vunpack.c.h.b16 %v2915
    %v2982 = vunpack.c.l.b16 %v2916
    %v2983 = vunpack.c.h.b16 %v2916
    %v2984 = vunpack.c.l.b16 %v2917
    %v2985 = vunpack.c.h.b16 %v2917
    %v2986 = vunpack.c.l.b16 %v2918
    %v2987 = vunpack.c.h.b16 %v2918
    %v2988 = vunpack.c.l.b16 %v2919
    %v2989 = vunpack.c.h.b16 %v2919
    %v2990 = vunpack.c.l.b16 %v2920
    %v2991 = vunpack.c.h.b16 %v2920
    %v2992 = vunpack.c.l.b16 %v2921
    %v2993 = vunpack.c.h.b16 %v2921
    %v2994 = vunpack.c.l.b16 %v2922
    %v2995 = vunpack.c.h.b16 %v2922
    %v2996 = vunpack.c.l.b16 %v2923
    %v2997 = vunpack.c.h.b16 %v2923
    %v2998 = vunpack.c.l.b16 %v2924
    %v2999 = vunpack.c.h.b16 %v2924
    %v3000 = vunpack.c.l.b16 %v2925
    %v3001 = vunpack.c.h.b16 %v2925
    %v3002 = vunpack.c.l.b16 %v2926
    %v3003 = vunpack.c.h.b16 %v2926
    %v3004 = vunpack.c.l.b16 %v2927
    %v3005 = vunpack.c.h.b16 %v2927
    %v3006 = vunpack.c.l.b16 %v2928
    %v3007 = vunpack.c.h.b16 %v2928
    %v3008 = vunpack.c.l.b16 %v2929
    %v3009 = vunpack.c.h.b16 %v2929
    %v3010 = vunpack.c.l.b16 %v2930
    %v3011 = vunpack.c.h.b16 %v2930
    %v3012 = vunpack.c.l.b16 %v2931
    %v3013 = vunpack.c.h.b16 %v2931
    %v3014 = vunpack.c.l.b16 %v2932
    %v3015 = vunpack.c.h.b16 %v2932
    %v3016 = vunpack.c.l.b16 %v2933
    %v3017 = vunpack.c.h.b16 %v2933
    %v3018 = vunpack.c.l.b16 %v2934
    %v3019 = vunpack.c.h.b16 %v2934
    %v3020 = vunpack.c.l.b16 %v2935
    %v3021 = vunpack.c.h.b16 %v2935
    %v3022 = vunpack.c.l.b16 %v2936
    %v3023 = vunpack.c.h.b16 %v2936
    %v3024 = vunpack.c.l.b16 %v2937
    %v3025 = vunpack.c.h.b16 %v2937
    %v3026 = vunpack.c.l.b16 %v2938
    %v3027 = vunpack.c.h.b16 %v2938
    %v3028 = vunpack.c.l.b16 %v2939
    %v3029 = vunpack.c.h.b16 %v2939
    %v3030 = vunpack.c.l.b16 %v2940
    %v3031 = vunpack.c.h.b16 %v2940
    %v3032 = vunpack.c.l.b16 %v2941
    %v3033 = vunpack.c.h.b16 %v2941
    %v3034 = vunpack.c.l.b16 %v2942
    %v3035 = vunpack.c.h.b16 %v2942
    %v3036 = vunpack.c.l.b16 %v2943
    %v3037 = vunpack.c.h.b16 %v2943
    %v3038 = vunpack.c.l.b16 %v2944
    %v3039 = vunpack.c.h.b16 %v2944
    %v3040 = vunpack.c.l.b16 %v2945
    %v3041 = vunpack.c.h.b16 %v2945
    %v3042 = vpack.c.b16 %v2982, %v2978
    %v3043 = vpack.c.b16 %v2983, %v2979
    %v3044 = vpack.c.b16 %v2984, %v2980
    %v3045 = vpack.c.b16 %v2985, %v2981
    %v3046 = vpack.c.b16 %v2990, %v2986
    %v3047 = vpack.c.b16 %v2991, %v2987
    %v3048 = vpack.c.b16 %v2992, %v2988
    %v3049 = vpack.c.b16 %v2993, %v2989
    %v3050 = vpack.c.b16 %v2998, %v2994
    %v3051 = vpack.c.b16 %v2999, %v2995
    %v3052 = vpack.c.b16 %v3000, %v2996
    %v3053 = vpack.c.b16 %v3001, %v2997
    %v3054 = vpack.c.b16 %v3006, %v3002
    %v3055 = vpack.c.b16 %v3007, %v3003
    %v3056 = vpack.c.b16 %v3008, %v3004
    %v3057 = vpack.c.b16 %v3009, %v3005
    %v3058 = vpack.c.b16 %v3014, %v3010
    %v3059 = vpack.c.b16 %v3015, %v3011
    %v3060 = vpack.c.b16 %v3016, %v3012
    %v3061 = vpack.c.b16 %v3017, %v3013
    %v3062 = vpack.c.b16 %v3022, %v3018
    %v3063 = vpack.c.b16 %v3023, %v3019
    %v3064 = vpack.c.b16 %v3024, %v3020
    %v3065 = vpack.c.b16 %v3025, %v3021
    %v3066 = vpack.c.b16 %v3030, %v3026
    %v3067 = vpack.c.b16 %v3031, %v3027
    %v3068 = vpack.c.b16 %v3032, %v3028
    %v3069 = vpack.c.b16 %v3033, %v3029
    %v3070 = vpack.c.b16 %v3038, %v3034
    %v3071 = vpack.c.b16 %v3039, %v3035
    %v3072 = vpack.c.b16 %v3040, %v3036
    %v3073 = vpack.c.b16 %v3041, %v3037
    %3106 = vmatprep.subr.bf16.mxu0 %v3071
    %3107 = vmatpush1.bf16.msra.mxu0 %v3070
    %3108 = vmatprep.subr.bf16.mxu0 %v3067
    %3109 = vmatpush1.bf16.msra.mxu0 %v3066
    %3110 = vmatprep.subr.bf16.mxu0 %v3063
    %3111 = vmatpush1.bf16.msra.mxu0 %v3062
    %3112 = vmatprep.subr.bf16.mxu0 %v3059
    %3113 = vmatpush1.bf16.msra.mxu0 %v3058
    %3114 = vmatprep.subr.bf16.mxu0 %v3055
    %3115 = vmatpush1.bf16.msra.mxu0 %v3054
    %3116 = vmatprep.subr.bf16.mxu0 %v3051
    %3117 = vmatpush1.bf16.msra.mxu0 %v3050
    %3118 = vmatprep.subr.bf16.mxu0 %v3047
    %3119 = vmatpush1.bf16.msra.mxu0 %v3046
    %3120 = vmatprep.subr.bf16.mxu0 %v3043
    %3121 = vmatpush1.bf16.msra.mxu0 %v3042
    %3122 = vmatprep.subr.bf16.mxu0 0
    %3123 = vmatpush2.bf16.msra.mxu0 0
    %3124 = vmatprep.subr.bf16.mxu0 0
    %3125 = vmatpush2.bf16.msra.mxu0 0
    %3126 = vmatprep.subr.bf16.mxu0 0
    %3127 = vmatpush2.bf16.msra.mxu0 0
    %3128 = vmatprep.subr.bf16.mxu0 0
    %3129 = vmatpush2.bf16.msra.mxu0 0
    %3130 = vmatprep.subr.bf16.mxu0 0
    %3131 = vmatpush2.bf16.msra.mxu0 0
    %3132 = vmatprep.subr.bf16.mxu0 0
    %3133 = vmatpush2.bf16.msra.mxu0 0
    %3134 = vmatprep.subr.bf16.mxu0 0
    %3135 = vmatpush2.bf16.msra.mxu0 0
    %3136 = vmatprep.subr.bf16.mxu0 0
    %3137 = vmatpush2.bf16.msra.mxu0 0
    %3138 = vmatprep.mubr.bf16.mxu0 0
    %3139 = vmatmul.mubr.bf16.gmra.mxu0 %v2913
    %v3140 = vpop.f32.mrf.mxu0
    %v3141 = vadd.f32 %v529, %v3140
    %v3142 = vpop.f32.mrf.mxu0
    %v3143 = vadd.f32 %v533, %v3142
    %v3144 = vpop.f32.mrf.mxu0
    %v3145 = vpop.f32.mrf.mxu0
    %3146 = vdwg.mxu0
    %3147 = vmatprep.subr.bf16.mxu0 %v3073
    %3148 = vmatpush1.bf16.msra.mxu0 %v3072
    %3149 = vmatprep.subr.bf16.mxu0 %v3069
    %3150 = vmatpush1.bf16.msra.mxu0 %v3068
    %3151 = vmatprep.subr.bf16.mxu0 %v3065
    %3152 = vmatpush1.bf16.msra.mxu0 %v3064
    %3153 = vmatprep.subr.bf16.mxu0 %v3061
    %3154 = vmatpush1.bf16.msra.mxu0 %v3060
    %3155 = vmatprep.subr.bf16.mxu0 %v3057
    %3156 = vmatpush1.bf16.msra.mxu0 %v3056
    %3157 = vmatprep.subr.bf16.mxu0 %v3053
    %3158 = vmatpush1.bf16.msra.mxu0 %v3052
    %3159 = vmatprep.subr.bf16.mxu0 %v3049
    %3160 = vmatpush1.bf16.msra.mxu0 %v3048
    %3161 = vmatprep.subr.bf16.mxu0 %v3045
    %3162 = vmatpush1.bf16.msra.mxu0 %v3044
    %3163 = vmatprep.subr.bf16.mxu0 0
    %3164 = vmatpush2.bf16.msra.mxu0 0
    %3165 = vmatprep.subr.bf16.mxu0 0
    %3166 = vmatpush2.bf16.msra.mxu0 0
    %3167 = vmatprep.subr.bf16.mxu0 0
    %3168 = vmatpush2.bf16.msra.mxu0 0
    %3169 = vmatprep.subr.bf16.mxu0 0
    %3170 = vmatpush2.bf16.msra.mxu0 0
    %3171 = vmatprep.subr.bf16.mxu0 0
    %3172 = vmatpush2.bf16.msra.mxu0 0
    %3173 = vmatprep.subr.bf16.mxu0 0
    %3174 = vmatpush2.bf16.msra.mxu0 0
    %3175 = vmatprep.subr.bf16.mxu0 0
    %3176 = vmatpush2.bf16.msra.mxu0 0
    %3177 = vmatprep.subr.bf16.mxu0 0
    %3178 = vmatpush2.bf16.msra.mxu0 0
    %3179 = vmatprep.mubr.bf16.mxu0 0
    %3180 = vmatmul.mubr.bf16.gmra.mxu0 %v2913
    %v3181 = vpop.f32.mrf.mxu0
    %v3182 = vadd.f32 %v537, %v3181
    %v3183 = vpop.f32.mrf.mxu0
    %v3184 = vadd.f32 %v541, %v3183
    %v3185 = vpop.f32.mrf.mxu0
    %v3186 = vpop.f32.mrf.mxu0
    %3187 = vdwg.mxu0
    %3188 = vst [vmem:[#allocation2 + $0x80] sm:$0xff] %v3141
    %3189 = vst [vmem:[#allocation2 + $0x88] sm:$0xff] %v3143
    %3190 = vst [vmem:[#allocation2 + $0x90] sm:$0xff] %v3182
    %3191 = vst [vmem:[#allocation2 + $0x98] sm:$0xff] %v3184
    %v3192 = vld [vmem:[#allocation5 + $0xa0] sm:$0xff]
    %v3193 = vld [vmem:[#allocation5 + $0xa8] sm:$0xff]
    %v3194 = vld [vmem:[#allocation5 + $0xb0] sm:$0xff]
    %v3195 = vld [vmem:[#allocation5 + $0xb8] sm:$0xff]
    %v3196 = vld [vmem:[#allocation7] sm:$0xff]
    %v3197 = vld [vmem:[#allocation7 + $0x8] sm:$0xff]
    %v3198 = vld [vmem:[#allocation7 + $0x10] sm:$0xff]
    %v3199 = vld [vmem:[#allocation7 + $0x18] sm:$0xff]
    %v3200 = vld [vmem:[#allocation7 + $0x20] sm:$0xff]
    %v3201 = vld [vmem:[#allocation7 + $0x28] sm:$0xff]
    %v3202 = vld [vmem:[#allocation7 + $0x30] sm:$0xff]
    %v3203 = vld [vmem:[#allocation7 + $0x38] sm:$0xff]
    %v3204 = vld [vmem:[#allocation7 + $0x40] sm:$0xff]
    %v3205 = vld [vmem:[#allocation7 + $0x48] sm:$0xff]
    %v3206 = vld [vmem:[#allocation7 + $0x50] sm:$0xff]
    %v3207 = vld [vmem:[#allocation7 + $0x58] sm:$0xff]
    %v3208 = vld [vmem:[#allocation7 + $0x60] sm:$0xff]
    %v3209 = vld [vmem:[#allocation7 + $0x68] sm:$0xff]
    %v3210 = vld [vmem:[#allocation7 + $0x70] sm:$0xff]
    %v3211 = vld [vmem:[#allocation7 + $0x78] sm:$0xff]
    %v3212 = vld [vmem:[#allocation7 + $0x80] sm:$0xff]
    %v3213 = vld [vmem:[#allocation7 + $0x88] sm:$0xff]
    %v3214 = vld [vmem:[#allocation7 + $0x90] sm:$0xff]
    %v3215 = vld [vmem:[#allocation7 + $0x98] sm:$0xff]
    %v3216 = vld [vmem:[#allocation7 + $0xa0] sm:$0xff]
    %v3217 = vld [vmem:[#allocation7 + $0xa8] sm:$0xff]
    %v3218 = vld [vmem:[#allocation7 + $0xb0] sm:$0xff]
    %v3219 = vld [vmem:[#allocation7 + $0xb8] sm:$0xff]
    %v3220 = vld [vmem:[#allocation7 + $0xc0] sm:$0xff]
    %v3221 = vld [vmem:[#allocation7 + $0xc8] sm:$0xff]
    %v3222 = vld [vmem:[#allocation7 + $0xd0] sm:$0xff]
    %v3223 = vld [vmem:[#allocation7 + $0xd8] sm:$0xff]
    %v3224 = vld [vmem:[#allocation7 + $0xe0] sm:$0xff]
    %v3225 = vld [vmem:[#allocation7 + $0xe8] sm:$0xff]
    %v3226 = vld [vmem:[#allocation7 + $0xf0] sm:$0xff]
    %v3227 = vld [vmem:[#allocation7 + $0xf8] sm:$0xff]
    %v3260 = vunpack.c.l.b16 %v3196
    %v3261 = vunpack.c.h.b16 %v3196
    %v3262 = vunpack.c.l.b16 %v3197
    %v3263 = vunpack.c.h.b16 %v3197
    %v3264 = vunpack.c.l.b16 %v3198
    %v3265 = vunpack.c.h.b16 %v3198
    %v3266 = vunpack.c.l.b16 %v3199
    %v3267 = vunpack.c.h.b16 %v3199
    %v3268 = vunpack.c.l.b16 %v3200
    %v3269 = vunpack.c.h.b16 %v3200
    %v3270 = vunpack.c.l.b16 %v3201
    %v3271 = vunpack.c.h.b16 %v3201
    %v3272 = vunpack.c.l.b16 %v3202
    %v3273 = vunpack.c.h.b16 %v3202
    %v3274 = vunpack.c.l.b16 %v3203
    %v3275 = vunpack.c.h.b16 %v3203
    %v3276 = vunpack.c.l.b16 %v3204
    %v3277 = vunpack.c.h.b16 %v3204
    %v3278 = vunpack.c.l.b16 %v3205
    %v3279 = vunpack.c.h.b16 %v3205
    %v3280 = vunpack.c.l.b16 %v3206
    %v3281 = vunpack.c.h.b16 %v3206
    %v3282 = vunpack.c.l.b16 %v3207
    %v3283 = vunpack.c.h.b16 %v3207
    %v3284 = vunpack.c.l.b16 %v3208
    %v3285 = vunpack.c.h.b16 %v3208
    %v3286 = vunpack.c.l.b16 %v3209
    %v3287 = vunpack.c.h.b16 %v3209
    %v3288 = vunpack.c.l.b16 %v3210
    %v3289 = vunpack.c.h.b16 %v3210
    %v3290 = vunpack.c.l.b16 %v3211
    %v3291 = vunpack.c.h.b16 %v3211
    %v3292 = vunpack.c.l.b16 %v3212
    %v3293 = vunpack.c.h.b16 %v3212
    %v3294 = vunpack.c.l.b16 %v3213
    %v3295 = vunpack.c.h.b16 %v3213
    %v3296 = vunpack.c.l.b16 %v3214
    %v3297 = vunpack.c.h.b16 %v3214
    %v3298 = vunpack.c.l.b16 %v3215
    %v3299 = vunpack.c.h.b16 %v3215
    %v3300 = vunpack.c.l.b16 %v3216
    %v3301 = vunpack.c.h.b16 %v3216
    %v3302 = vunpack.c.l.b16 %v3217
    %v3303 = vunpack.c.h.b16 %v3217
    %v3304 = vunpack.c.l.b16 %v3218
    %v3305 = vunpack.c.h.b16 %v3218
    %v3306 = vunpack.c.l.b16 %v3219
    %v3307 = vunpack.c.h.b16 %v3219
    %v3308 = vunpack.c.l.b16 %v3220
    %v3309 = vunpack.c.h.b16 %v3220
    %v3310 = vunpack.c.l.b16 %v3221
    %v3311 = vunpack.c.h.b16 %v3221
    %v3312 = vunpack.c.l.b16 %v3222
    %v3313 = vunpack.c.h.b16 %v3222
    %v3314 = vunpack.c.l.b16 %v3223
    %v3315 = vunpack.c.h.b16 %v3223
    %v3316 = vunpack.c.l.b16 %v3224
    %v3317 = vunpack.c.h.b16 %v3224
    %v3318 = vunpack.c.l.b16 %v3225
    %v3319 = vunpack.c.h.b16 %v3225
    %v3320 = vunpack.c.l.b16 %v3226
    %v3321 = vunpack.c.h.b16 %v3226
    %v3322 = vunpack.c.l.b16 %v3227
    %v3323 = vunpack.c.h.b16 %v3227
    %v3324 = vpack.c.b16 %v3264, %v3260
    %v3325 = vpack.c.b16 %v3265, %v3261
    %v3326 = vpack.c.b16 %v3266, %v3262
    %v3327 = vpack.c.b16 %v3267, %v3263
    %v3328 = vpack.c.b16 %v3272, %v3268
    %v3329 = vpack.c.b16 %v3273, %v3269
    %v3330 = vpack.c.b16 %v3274, %v3270
    %v3331 = vpack.c.b16 %v3275, %v3271
    %v3332 = vpack.c.b16 %v3280, %v3276
    %v3333 = vpack.c.b16 %v3281, %v3277
    %v3334 = vpack.c.b16 %v3282, %v3278
    %v3335 = vpack.c.b16 %v3283, %v3279
    %v3336 = vpack.c.b16 %v3288, %v3284
    %v3337 = vpack.c.b16 %v3289, %v3285
    %v3338 = vpack.c.b16 %v3290, %v3286
    %v3339 = vpack.c.b16 %v3291, %v3287
    %v3340 = vpack.c.b16 %v3296, %v3292
    %v3341 = vpack.c.b16 %v3297, %v3293
    %v3342 = vpack.c.b16 %v3298, %v3294
    %v3343 = vpack.c.b16 %v3299, %v3295
    %v3344 = vpack.c.b16 %v3304, %v3300
    %v3345 = vpack.c.b16 %v3305, %v3301
    %v3346 = vpack.c.b16 %v3306, %v3302
    %v3347 = vpack.c.b16 %v3307, %v3303
    %v3348 = vpack.c.b16 %v3312, %v3308
    %v3349 = vpack.c.b16 %v3313, %v3309
    %v3350 = vpack.c.b16 %v3314, %v3310
    %v3351 = vpack.c.b16 %v3315, %v3311
    %v3352 = vpack.c.b16 %v3320, %v3316
    %v3353 = vpack.c.b16 %v3321, %v3317
    %v3354 = vpack.c.b16 %v3322, %v3318
    %v3355 = vpack.c.b16 %v3323, %v3319
    %3388 = vmatprep.subr.bf16.mxu0 %v3353
    %3389 = vmatpush1.bf16.msra.mxu0 %v3352
    %3390 = vmatprep.subr.bf16.mxu0 %v3349
    %3391 = vmatpush1.bf16.msra.mxu0 %v3348
    %3392 = vmatprep.subr.bf16.mxu0 %v3345
    %3393 = vmatpush1.bf16.msra.mxu0 %v3344
    %3394 = vmatprep.subr.bf16.mxu0 %v3341
    %3395 = vmatpush1.bf16.msra.mxu0 %v3340
    %3396 = vmatprep.subr.bf16.mxu0 %v3337
    %3397 = vmatpush1.bf16.msra.mxu0 %v3336
    %3398 = vmatprep.subr.bf16.mxu0 %v3333
    %3399 = vmatpush1.bf16.msra.mxu0 %v3332
    %3400 = vmatprep.subr.bf16.mxu0 %v3329
    %3401 = vmatpush1.bf16.msra.mxu0 %v3328
    %3402 = vmatprep.subr.bf16.mxu0 %v3325
    %3403 = vmatpush1.bf16.msra.mxu0 %v3324
    %3404 = vmatprep.subr.bf16.mxu0 0
    %3405 = vmatpush2.bf16.msra.mxu0 0
    %3406 = vmatprep.subr.bf16.mxu0 0
    %3407 = vmatpush2.bf16.msra.mxu0 0
    %3408 = vmatprep.subr.bf16.mxu0 0
    %3409 = vmatpush2.bf16.msra.mxu0 0
    %3410 = vmatprep.subr.bf16.mxu0 0
    %3411 = vmatpush2.bf16.msra.mxu0 0
    %3412 = vmatprep.subr.bf16.mxu0 0
    %3413 = vmatpush2.bf16.msra.mxu0 0
    %3414 = vmatprep.subr.bf16.mxu0 0
    %3415 = vmatpush2.bf16.msra.mxu0 0
    %3416 = vmatprep.subr.bf16.mxu0 0
    %3417 = vmatpush2.bf16.msra.mxu0 0
    %3418 = vmatprep.subr.bf16.mxu0 0
    %3419 = vmatpush2.bf16.msra.mxu0 0
    %3420 = vmatprep.mubr.bf16.mxu0 0
    %3421 = vmatmul.mubr.bf16.gmra.mxu0 %v2892
    %v3422 = vpop.f32.mrf.mxu0
    %v3423 = vadd.f32 0.0, %v3422
    %v3424 = vpop.f32.mrf.mxu0
    %v3425 = vadd.f32 0.0, %v3424
    %v3426 = vpop.f32.mrf.mxu0
    %v3427 = vpop.f32.mrf.mxu0
    %3428 = vdwg.mxu0
    %3429 = vmatprep.subr.bf16.mxu0 %v3355
    %3430 = vmatpush1.bf16.msra.mxu0 %v3354
    %3431 = vmatprep.subr.bf16.mxu0 %v3351
    %3432 = vmatpush1.bf16.msra.mxu0 %v3350
    %3433 = vmatprep.subr.bf16.mxu0 %v3347
    %3434 = vmatpush1.bf16.msra.mxu0 %v3346
    %3435 = vmatprep.subr.bf16.mxu0 %v3343
    %3436 = vmatpush1.bf16.msra.mxu0 %v3342
    %3437 = vmatprep.subr.bf16.mxu0 %v3339
    %3438 = vmatpush1.bf16.msra.mxu0 %v3338
    %3439 = vmatprep.subr.bf16.mxu0 %v3335
    %3440 = vmatpush1.bf16.msra.mxu0 %v3334
    %3441 = vmatprep.subr.bf16.mxu0 %v3331
    %3442 = vmatpush1.bf16.msra.mxu0 %v3330
    %3443 = vmatprep.subr.bf16.mxu0 %v3327
    %3444 = vmatpush1.bf16.msra.mxu0 %v3326
    %3445 = vmatprep.subr.bf16.mxu0 0
    %3446 = vmatpush2.bf16.msra.mxu0 0
    %3447 = vmatprep.subr.bf16.mxu0 0
    %3448 = vmatpush2.bf16.msra.mxu0 0
    %3449 = vmatprep.subr.bf16.mxu0 0
    %3450 = vmatpush2.bf16.msra.mxu0 0
    %3451 = vmatprep.subr.bf16.mxu0 0
    %3452 = vmatpush2.bf16.msra.mxu0 0
    %3453 = vmatprep.subr.bf16.mxu0 0
    %3454 = vmatpush2.bf16.msra.mxu0 0
    %3455 = vmatprep.subr.bf16.mxu0 0
    %3456 = vmatpush2.bf16.msra.mxu0 0
    %3457 = vmatprep.subr.bf16.mxu0 0
    %3458 = vmatpush2.bf16.msra.mxu0 0
    %3459 = vmatprep.subr.bf16.mxu0 0
    %3460 = vmatpush2.bf16.msra.mxu0 0
    %3461 = vmatprep.mubr.bf16.mxu0 0
    %3462 = vmatmul.mubr.bf16.gmra.mxu0 %v2892
    %v3463 = vpop.f32.mrf.mxu0
    %v3464 = vadd.f32 0.0, %v3463
    %v3465 = vpop.f32.mrf.mxu0
    %v3466 = vadd.f32 0.0, %v3465
    %v3467 = vpop.f32.mrf.mxu0
    %v3468 = vpop.f32.mrf.mxu0
    %3469 = vdwg.mxu0
    %v3470 = vadd.f32 %v3192, %v3423
    %v3471 = vadd.f32 %v3193, %v3425
    %v3472 = vadd.f32 %v3194, %v3464
    %v3473 = vadd.f32 %v3195, %v3466
    %v3474 = vmul.f32 %v3470, 0.5
    %v3475 = vmul.f32 %v3471, 0.5
    %v3476 = vmul.f32 %v3472, 0.5
    %v3477 = vtanh.pop %v3474
    %v3478 = vtanh.pop %v3475
    %v3479 = vtanh.pop %v3476
    %v3480 = vmul.f32 %v3477, 0.5
    %v3481 = vmul.f32 %v3478, 0.5
    %v3482 = vmul.f32 %v3479, 0.5
    %v3483 = vadd.f32 %v3480, 0.5
    %v3484 = vadd.f32 %v3481, 0.5
    %v3485 = vadd.f32 %v3482, 0.5
    %v3486 = vtanh.pop %v3473
    %v3487 = vmul.f32 %v3484, %v2889
    %v3488 = vmul.f32 %v3483, %v3486
    %v3489 = vadd.f32 %v3487, %v3488
    %v3490 = vtanh.pop %v3489
    %v3491 = vmul.f32 %v3485, %v3490
    %v3492 = vpack.c.bf16 %v3491, %v3491
    %3493 = vadd.xlane.f32.xlu0 %v3491
    %v3494 = vpop.xlane.xlu0 %3493
    %v3495 = vmul.f32 %v3494, %v461
    %v3496 = vmul.f32 %v3491, %v3491
    %3497 = vadd.xlane.f32.xlu0 %v3496
    %v3498 = vpop.xlane.xlu0 %3497
    %v3499 = vmul.f32 %v3498, %v461
    %v3500 = vmul.f32 %v3495, %v3495
    %v3501 = vsub.f32 %v3499, %v3500
    %v3502 = vsub.f32 %v3491, %v3495
    %v3503 = vadd.f32 %v3501, 1e-05
    %v3504 = vrsqrt.pop %v3503
    %v3505 = vmul.f32 %v3502, %v3504
    %v3506 = vmul.f32 %v3505, %v477
    %v3507 = vadd.f32 %v3506, %v484
    %v3508 = vmul.f32 %v3507, 0.5
    %v3509 = vtanh.pop %v3508
    %v3510 = vmul.f32 %v3509, 0.5
    %v3511 = vadd.f32 %v3510, 0.5
    %v3512 = vmul.f32 %v3507, %v3511
    %v3513 = vpack.c.bf16 %v3512, %v3512
    %v3514 = vld [vmem:[#allocation10] sm:$0xff]
    %v3515 = vld [vmem:[#allocation10 + $0x8] sm:$0xff]
    %v3516 = vld [vmem:[#allocation10 + $0x10] sm:$0xff]
    %v3517 = vld [vmem:[#allocation10 + $0x18] sm:$0xff]
    %v3518 = vld [vmem:[#allocation10 + $0x20] sm:$0xff]
    %v3519 = vld [vmem:[#allocation10 + $0x28] sm:$0xff]
    %v3520 = vld [vmem:[#allocation10 + $0x30] sm:$0xff]
    %v3521 = vld [vmem:[#allocation10 + $0x38] sm:$0xff]
    %v3522 = vld [vmem:[#allocation10 + $0x40] sm:$0xff]
    %v3523 = vld [vmem:[#allocation10 + $0x48] sm:$0xff]
    %v3524 = vld [vmem:[#allocation10 + $0x50] sm:$0xff]
    %v3525 = vld [vmem:[#allocation10 + $0x58] sm:$0xff]
    %v3526 = vld [vmem:[#allocation10 + $0x60] sm:$0xff]
    %v3527 = vld [vmem:[#allocation10 + $0x68] sm:$0xff]
    %v3528 = vld [vmem:[#allocation10 + $0x70] sm:$0xff]
    %v3529 = vld [vmem:[#allocation10 + $0x78] sm:$0xff]
    %v3530 = vld [vmem:[#allocation10 + $0x80] sm:$0xff]
    %v3531 = vld [vmem:[#allocation10 + $0x88] sm:$0xff]
    %v3532 = vld [vmem:[#allocation10 + $0x90] sm:$0xff]
    %v3533 = vld [vmem:[#allocation10 + $0x98] sm:$0xff]
    %v3534 = vld [vmem:[#allocation10 + $0xa0] sm:$0xff]
    %v3535 = vld [vmem:[#allocation10 + $0xa8] sm:$0xff]
    %v3536 = vld [vmem:[#allocation10 + $0xb0] sm:$0xff]
    %v3537 = vld [vmem:[#allocation10 + $0xb8] sm:$0xff]
    %v3538 = vld [vmem:[#allocation10 + $0xc0] sm:$0xff]
    %v3539 = vld [vmem:[#allocation10 + $0xc8] sm:$0xff]
    %v3540 = vld [vmem:[#allocation10 + $0xd0] sm:$0xff]
    %v3541 = vld [vmem:[#allocation10 + $0xd8] sm:$0xff]
    %v3542 = vld [vmem:[#allocation10 + $0xe0] sm:$0xff]
    %v3543 = vld [vmem:[#allocation10 + $0xe8] sm:$0xff]
    %v3544 = vld [vmem:[#allocation10 + $0xf0] sm:$0xff]
    %v3545 = vld [vmem:[#allocation10 + $0xf8] sm:$0xff]
    %v3578 = vunpack.c.l.b16 %v3514
    %v3579 = vunpack.c.h.b16 %v3514
    %v3580 = vunpack.c.l.b16 %v3515
    %v3581 = vunpack.c.h.b16 %v3515
    %v3582 = vunpack.c.l.b16 %v3516
    %v3583 = vunpack.c.h.b16 %v3516
    %v3584 = vunpack.c.l.b16 %v3517
    %v3585 = vunpack.c.h.b16 %v3517
    %v3586 = vunpack.c.l.b16 %v3518
    %v3587 = vunpack.c.h.b16 %v3518
    %v3588 = vunpack.c.l.b16 %v3519
    %v3589 = vunpack.c.h.b16 %v3519
    %v3590 = vunpack.c.l.b16 %v3520
    %v3591 = vunpack.c.h.b16 %v3520
    %v3592 = vunpack.c.l.b16 %v3521
    %v3593 = vunpack.c.h.b16 %v3521
    %v3594 = vunpack.c.l.b16 %v3522
    %v3595 = vunpack.c.h.b16 %v3522
    %v3596 = vunpack.c.l.b16 %v3523
    %v3597 = vunpack.c.h.b16 %v3523
    %v3598 = vunpack.c.l.b16 %v3524
    %v3599 = vunpack.c.h.b16 %v3524
    %v3600 = vunpack.c.l.b16 %v3525
    %v3601 = vunpack.c.h.b16 %v3525
    %v3602 = vunpack.c.l.b16 %v3526
    %v3603 = vunpack.c.h.b16 %v3526
    %v3604 = vunpack.c.l.b16 %v3527
    %v3605 = vunpack.c.h.b16 %v3527
    %v3606 = vunpack.c.l.b16 %v3528
    %v3607 = vunpack.c.h.b16 %v3528
    %v3608 = vunpack.c.l.b16 %v3529
    %v3609 = vunpack.c.h.b16 %v3529
    %v3610 = vunpack.c.l.b16 %v3530
    %v3611 = vunpack.c.h.b16 %v3530
    %v3612 = vunpack.c.l.b16 %v3531
    %v3613 = vunpack.c.h.b16 %v3531
    %v3614 = vunpack.c.l.b16 %v3532
    %v3615 = vunpack.c.h.b16 %v3532
    %v3616 = vunpack.c.l.b16 %v3533
    %v3617 = vunpack.c.h.b16 %v3533
    %v3618 = vunpack.c.l.b16 %v3534
    %v3619 = vunpack.c.h.b16 %v3534
    %v3620 = vunpack.c.l.b16 %v3535
    %v3621 = vunpack.c.h.b16 %v3535
    %v3622 = vunpack.c.l.b16 %v3536
    %v3623 = vunpack.c.h.b16 %v3536
    %v3624 = vunpack.c.l.b16 %v3537
    %v3625 = vunpack.c.h.b16 %v3537
    %v3626 = vunpack.c.l.b16 %v3538
    %v3627 = vunpack.c.h.b16 %v3538
    %v3628 = vunpack.c.l.b16 %v3539
    %v3629 = vunpack.c.h.b16 %v3539
    %v3630 = vunpack.c.l.b16 %v3540
    %v3631 = vunpack.c.h.b16 %v3540
    %v3632 = vunpack.c.l.b16 %v3541
    %v3633 = vunpack.c.h.b16 %v3541
    %v3634 = vunpack.c.l.b16 %v3542
    %v3635 = vunpack.c.h.b16 %v3542
    %v3636 = vunpack.c.l.b16 %v3543
    %v3637 = vunpack.c.h.b16 %v3543
    %v3638 = vunpack.c.l.b16 %v3544
    %v3639 = vunpack.c.h.b16 %v3544
    %v3640 = vunpack.c.l.b16 %v3545
    %v3641 = vunpack.c.h.b16 %v3545
    %v3642 = vpack.c.b16 %v3582, %v3578
    %v3643 = vpack.c.b16 %v3583, %v3579
    %v3644 = vpack.c.b16 %v3584, %v3580
    %v3645 = vpack.c.b16 %v3585, %v3581
    %v3646 = vpack.c.b16 %v3590, %v3586
    %v3647 = vpack.c.b16 %v3591, %v3587
    %v3648 = vpack.c.b16 %v3592, %v3588
    %v3649 = vpack.c.b16 %v3593, %v3589
    %v3650 = vpack.c.b16 %v3598, %v3594
    %v3651 = vpack.c.b16 %v3599, %v3595
    %v3652 = vpack.c.b16 %v3600, %v3596
    %v3653 = vpack.c.b16 %v3601, %v3597
    %v3654 = vpack.c.b16 %v3606, %v3602
    %v3655 = vpack.c.b16 %v3607, %v3603
    %v3656 = vpack.c.b16 %v3608, %v3604
    %v3657 = vpack.c.b16 %v3609, %v3605
    %v3658 = vpack.c.b16 %v3614, %v3610
    %v3659 = vpack.c.b16 %v3615, %v3611
    %v3660 = vpack.c.b16 %v3616, %v3612
    %v3661 = vpack.c.b16 %v3617, %v3613
    %v3662 = vpack.c.b16 %v3622, %v3618
    %v3663 = vpack.c.b16 %v3623, %v3619
    %v3664 = vpack.c.b16 %v3624, %v3620
    %v3665 = vpack.c.b16 %v3625, %v3621
    %v3666 = vpack.c.b16 %v3630, %v3626
    %v3667 = vpack.c.b16 %v3631, %v3627
    %v3668 = vpack.c.b16 %v3632, %v3628
    %v3669 = vpack.c.b16 %v3633, %v3629
    %v3670 = vpack.c.b16 %v3638, %v3634
    %v3671 = vpack.c.b16 %v3639, %v3635
    %v3672 = vpack.c.b16 %v3640, %v3636
    %v3673 = vpack.c.b16 %v3641, %v3637
    %3706 = vmatprep.subr.bf16.mxu0 %v3671
    %3707 = vmatpush1.bf16.msra.mxu0 %v3670
    %3708 = vmatprep.subr.bf16.mxu0 %v3667
    %3709 = vmatpush1.bf16.msra.mxu0 %v3666
    %3710 = vmatprep.subr.bf16.mxu0 %v3663
    %3711 = vmatpush1.bf16.msra.mxu0 %v3662
    %3712 = vmatprep.subr.bf16.mxu0 %v3659
    %3713 = vmatpush1.bf16.msra.mxu0 %v3658
    %3714 = vmatprep.subr.bf16.mxu0 %v3655
    %3715 = vmatpush1.bf16.msra.mxu0 %v3654
    %3716 = vmatprep.subr.bf16.mxu0 %v3651
    %3717 = vmatpush1.bf16.msra.mxu0 %v3650
    %3718 = vmatprep.subr.bf16.mxu0 %v3647
    %3719 = vmatpush1.bf16.msra.mxu0 %v3646
    %3720 = vmatprep.subr.bf16.mxu0 %v3643
    %3721 = vmatpush1.bf16.msra.mxu0 %v3642
    %3722 = vmatprep.subr.bf16.mxu0 0
    %3723 = vmatpush2.bf16.msra.mxu0 0
    %3724 = vmatprep.subr.bf16.mxu0 0
    %3725 = vmatpush2.bf16.msra.mxu0 0
    %3726 = vmatprep.subr.bf16.mxu0 0
    %3727 = vmatpush2.bf16.msra.mxu0 0
    %3728 = vmatprep.subr.bf16.mxu0 0
    %3729 = vmatpush2.bf16.msra.mxu0 0
    %3730 = vmatprep.subr.bf16.mxu0 0
    %3731 = vmatpush2.bf16.msra.mxu0 0
    %3732 = vmatprep.subr.bf16.mxu0 0
    %3733 = vmatpush2.bf16.msra.mxu0 0
    %3734 = vmatprep.subr.bf16.mxu0 0
    %3735 = vmatpush2.bf16.msra.mxu0 0
    %3736 = vmatprep.subr.bf16.mxu0 0
    %3737 = vmatpush2.bf16.msra.mxu0 0
    %3738 = vmatprep.mubr.bf16.mxu0 0
    %3739 = vmatmul.mubr.bf16.gmra.mxu0 %v3513
    %v3740 = vpop.f32.mrf.mxu0
    %v3741 = vadd.f32 %v529, %v3740
    %v3742 = vpop.f32.mrf.mxu0
    %v3743 = vadd.f32 %v533, %v3742
    %v3744 = vpop.f32.mrf.mxu0
    %v3745 = vpop.f32.mrf.mxu0
    %3746 = vdwg.mxu0
    %3747 = vmatprep.subr.bf16.mxu0 %v3673
    %3748 = vmatpush1.bf16.msra.mxu0 %v3672
    %3749 = vmatprep.subr.bf16.mxu0 %v3669
    %3750 = vmatpush1.bf16.msra.mxu0 %v3668
    %3751 = vmatprep.subr.bf16.mxu0 %v3665
    %3752 = vmatpush1.bf16.msra.mxu0 %v3664
    %3753 = vmatprep.subr.bf16.mxu0 %v3661
    %3754 = vmatpush1.bf16.msra.mxu0 %v3660
    %3755 = vmatprep.subr.bf16.mxu0 %v3657
    %3756 = vmatpush1.bf16.msra.mxu0 %v3656
    %3757 = vmatprep.subr.bf16.mxu0 %v3653
    %3758 = vmatpush1.bf16.msra.mxu0 %v3652
    %3759 = vmatprep.subr.bf16.mxu0 %v3649
    %3760 = vmatpush1.bf16.msra.mxu0 %v3648
    %3761 = vmatprep.subr.bf16.mxu0 %v3645
    %3762 = vmatpush1.bf16.msra.mxu0 %v3644
    %3763 = vmatprep.subr.bf16.mxu0 0
    %3764 = vmatpush2.bf16.msra.mxu0 0
    %3765 = vmatprep.subr.bf16.mxu0 0
    %3766 = vmatpush2.bf16.msra.mxu0 0
    %3767 = vmatprep.subr.bf16.mxu0 0
    %3768 = vmatpush2.bf16.msra.mxu0 0
    %3769 = vmatprep.subr.bf16.mxu0 0
    %3770 = vmatpush2.bf16.msra.mxu0 0
    %3771 = vmatprep.subr.bf16.mxu0 0
    %3772 = vmatpush2.bf16.msra.mxu0 0
    %3773 = vmatprep.subr.bf16.mxu0 0
    %3774 = vmatpush2.bf16.msra.mxu0 0
    %3775 = vmatprep.subr.bf16.mxu0 0
    %3776 = vmatpush2.bf16.msra.mxu0 0
    %3777 = vmatprep.subr.bf16.mxu0 0
    %3778 = vmatpush2.bf16.msra.mxu0 0
    %3779 = vmatprep.mubr.bf16.mxu0 0
    %3780 = vmatmul.mubr.bf16.gmra.mxu0 %v3513
    %v3781 = vpop.f32.mrf.mxu0
    %v3782 = vadd.f32 %v537, %v3781
    %v3783 = vpop.f32.mrf.mxu0
    %v3784 = vadd.f32 %v541, %v3783
    %v3785 = vpop.f32.mrf.mxu0
    %v3786 = vpop.f32.mrf.mxu0
    %3787 = vdwg.mxu0
    %3788 = vst [vmem:[#allocation2 + $0xa0] sm:$0xff] %v3741
    %3789 = vst [vmem:[#allocation2 + $0xa8] sm:$0xff] %v3743
    %3790 = vst [vmem:[#allocation2 + $0xb0] sm:$0xff] %v3782
    %3791 = vst [vmem:[#allocation2 + $0xb8] sm:$0xff] %v3784
    %v3792 = vld [vmem:[#allocation5 + $0xc0] sm:$0xff]
    %v3793 = vld [vmem:[#allocation5 + $0xc8] sm:$0xff]
    %v3794 = vld [vmem:[#allocation5 + $0xd0] sm:$0xff]
    %v3795 = vld [vmem:[#allocation5 + $0xd8] sm:$0xff]
    %v3796 = vld [vmem:[#allocation7] sm:$0xff]
    %v3797 = vld [vmem:[#allocation7 + $0x8] sm:$0xff]
    %v3798 = vld [vmem:[#allocation7 + $0x10] sm:$0xff]
    %v3799 = vld [vmem:[#allocation7 + $0x18] sm:$0xff]
    %v3800 = vld [vmem:[#allocation7 + $0x20] sm:$0xff]
    %v3801 = vld [vmem:[#allocation7 + $0x28] sm:$0xff]
    %v3802 = vld [vmem:[#allocation7 + $0x30] sm:$0xff]
    %v3803 = vld [vmem:[#allocation7 + $0x38] sm:$0xff]
    %v3804 = vld [vmem:[#allocation7 + $0x40] sm:$0xff]
    %v3805 = vld [vmem:[#allocation7 + $0x48] sm:$0xff]
    %v3806 = vld [vmem:[#allocation7 + $0x50] sm:$0xff]
    %v3807 = vld [vmem:[#allocation7 + $0x58] sm:$0xff]
    %v3808 = vld [vmem:[#allocation7 + $0x60] sm:$0xff]
    %v3809 = vld [vmem:[#allocation7 + $0x68] sm:$0xff]
    %v3810 = vld [vmem:[#allocation7 + $0x70] sm:$0xff]
    %v3811 = vld [vmem:[#allocation7 + $0x78] sm:$0xff]
    %v3812 = vld [vmem:[#allocation7 + $0x80] sm:$0xff]
    %v3813 = vld [vmem:[#allocation7 + $0x88] sm:$0xff]
    %v3814 = vld [vmem:[#allocation7 + $0x90] sm:$0xff]
    %v3815 = vld [vmem:[#allocation7 + $0x98] sm:$0xff]
    %v3816 = vld [vmem:[#allocation7 + $0xa0] sm:$0xff]
    %v3817 = vld [vmem:[#allocation7 + $0xa8] sm:$0xff]
    %v3818 = vld [vmem:[#allocation7 + $0xb0] sm:$0xff]
    %v3819 = vld [vmem:[#allocation7 + $0xb8] sm:$0xff]
    %v3820 = vld [vmem:[#allocation7 + $0xc0] sm:$0xff]
    %v3821 = vld [vmem:[#allocation7 + $0xc8] sm:$0xff]
    %v3822 = vld [vmem:[#allocation7 + $0xd0] sm:$0xff]
    %v3823 = vld [vmem:[#allocation7 + $0xd8] sm:$0xff]
    %v3824 = vld [vmem:[#allocation7 + $0xe0] sm:$0xff]
    %v3825 = vld [vmem:[#allocation7 + $0xe8] sm:$0xff]
    %v3826 = vld [vmem:[#allocation7 + $0xf0] sm:$0xff]
    %v3827 = vld [vmem:[#allocation7 + $0xf8] sm:$0xff]
    %v3860 = vunpack.c.l.b16 %v3796
    %v3861 = vunpack.c.h.b16 %v3796
    %v3862 = vunpack.c.l.b16 %v3797
    %v3863 = vunpack.c.h.b16 %v3797
    %v3864 = vunpack.c.l.b16 %v3798
    %v3865 = vunpack.c.h.b16 %v3798
    %v3866 = vunpack.c.l.b16 %v3799
    %v3867 = vunpack.c.h.b16 %v3799
    %v3868 = vunpack.c.l.b16 %v3800
    %v3869 = vunpack.c.h.b16 %v3800
    %v3870 = vunpack.c.l.b16 %v3801
    %v3871 = vunpack.c.h.b16 %v3801
    %v3872 = vunpack.c.l.b16 %v3802
    %v3873 = vunpack.c.h.b16 %v3802
    %v3874 = vunpack.c.l.b16 %v3803
    %v3875 = vunpack.c.h.b16 %v3803
    %v3876 = vunpack.c.l.b16 %v3804
    %v3877 = vunpack.c.h.b16 %v3804
    %v3878 = vunpack.c.l.b16 %v3805
    %v3879 = vunpack.c.h.b16 %v3805
    %v3880 = vunpack.c.l.b16 %v3806
    %v3881 = vunpack.c.h.b16 %v3806
    %v3882 = vunpack.c.l.b16 %v3807
    %v3883 = vunpack.c.h.b16 %v3807
    %v3884 = vunpack.c.l.b16 %v3808
    %v3885 = vunpack.c.h.b16 %v3808
    %v3886 = vunpack.c.l.b16 %v3809
    %v3887 = vunpack.c.h.b16 %v3809
    %v3888 = vunpack.c.l.b16 %v3810
    %v3889 = vunpack.c.h.b16 %v3810
    %v3890 = vunpack.c.l.b16 %v3811
    %v3891 = vunpack.c.h.b16 %v3811
    %v3892 = vunpack.c.l.b16 %v3812
    %v3893 = vunpack.c.h.b16 %v3812
    %v3894 = vunpack.c.l.b16 %v3813
    %v3895 = vunpack.c.h.b16 %v3813
    %v3896 = vunpack.c.l.b16 %v3814
    %v3897 = vunpack.c.h.b16 %v3814
    %v3898 = vunpack.c.l.b16 %v3815
    %v3899 = vunpack.c.h.b16 %v3815
    %v3900 = vunpack.c.l.b16 %v3816
    %v3901 = vunpack.c.h.b16 %v3816
    %v3902 = vunpack.c.l.b16 %v3817
    %v3903 = vunpack.c.h.b16 %v3817
    %v3904 = vunpack.c.l.b16 %v3818
    %v3905 = vunpack.c.h.b16 %v3818
    %v3906 = vunpack.c.l.b16 %v3819
    %v3907 = vunpack.c.h.b16 %v3819
    %v3908 = vunpack.c.l.b16 %v3820
    %v3909 = vunpack.c.h.b16 %v3820
    %v3910 = vunpack.c.l.b16 %v3821
    %v3911 = vunpack.c.h.b16 %v3821
    %v3912 = vunpack.c.l.b16 %v3822
    %v3913 = vunpack.c.h.b16 %v3822
    %v3914 = vunpack.c.l.b16 %v3823
    %v3915 = vunpack.c.h.b16 %v3823
    %v3916 = vunpack.c.l.b16 %v3824
    %v3917 = vunpack.c.h.b16 %v3824
    %v3918 = vunpack.c.l.b16 %v3825
    %v3919 = vunpack.c.h.b16 %v3825
    %v3920 = vunpack.c.l.b16 %v3826
    %v3921 = vunpack.c.h.b16 %v3826
    %v3922 = vunpack.c.l.b16 %v3827
    %v3923 = vunpack.c.h.b16 %v3827
    %v3924 = vpack.c.b16 %v3864, %v3860
    %v3925 = vpack.c.b16 %v3865, %v3861
    %v3926 = vpack.c.b16 %v3866, %v3862
    %v3927 = vpack.c.b16 %v3867, %v3863
    %v3928 = vpack.c.b16 %v3872, %v3868
    %v3929 = vpack.c.b16 %v3873, %v3869
    %v3930 = vpack.c.b16 %v3874, %v3870
    %v3931 = vpack.c.b16 %v3875, %v3871
    %v3932 = vpack.c.b16 %v3880, %v3876
    %v3933 = vpack.c.b16 %v3881, %v3877
    %v3934 = vpack.c.b16 %v3882, %v3878
    %v3935 = vpack.c.b16 %v3883, %v3879
    %v3936 = vpack.c.b16 %v3888, %v3884
    %v3937 = vpack.c.b16 %v3889, %v3885
    %v3938 = vpack.c.b16 %v3890, %v3886
    %v3939 = vpack.c.b16 %v3891, %v3887
    %v3940 = vpack.c.b16 %v3896, %v3892
    %v3941 = vpack.c.b16 %v3897, %v3893
    %v3942 = vpack.c.b16 %v3898, %v3894
    %v3943 = vpack.c.b16 %v3899, %v3895
    %v3944 = vpack.c.b16 %v3904, %v3900
    %v3945 = vpack.c.b16 %v3905, %v3901
    %v3946 = vpack.c.b16 %v3906, %v3902
    %v3947 = vpack.c.b16 %v3907, %v3903
    %v3948 = vpack.c.b16 %v3912, %v3908
    %v3949 = vpack.c.b16 %v3913, %v3909
    %v3950 = vpack.c.b16 %v3914, %v3910
    %v3951 = vpack.c.b16 %v3915, %v3911
    %v3952 = vpack.c.b16 %v3920, %v3916
    %v3953 = vpack.c.b16 %v3921, %v3917
    %v3954 = vpack.c.b16 %v3922, %v3918
    %v3955 = vpack.c.b16 %v3923, %v3919
    %3988 = vmatprep.subr.bf16.mxu0 %v3953
    %3989 = vmatpush1.bf16.msra.mxu0 %v3952
    %3990 = vmatprep.subr.bf16.mxu0 %v3949
    %3991 = vmatpush1.bf16.msra.mxu0 %v3948
    %3992 = vmatprep.subr.bf16.mxu0 %v3945
    %3993 = vmatpush1.bf16.msra.mxu0 %v3944
    %3994 = vmatprep.subr.bf16.mxu0 %v3941
    %3995 = vmatpush1.bf16.msra.mxu0 %v3940
    %3996 = vmatprep.subr.bf16.mxu0 %v3937
    %3997 = vmatpush1.bf16.msra.mxu0 %v3936
    %3998 = vmatprep.subr.bf16.mxu0 %v3933
    %3999 = vmatpush1.bf16.msra.mxu0 %v3932
    %4000 = vmatprep.subr.bf16.mxu0 %v3929
    %4001 = vmatpush1.bf16.msra.mxu0 %v3928
    %4002 = vmatprep.subr.bf16.mxu0 %v3925
    %4003 = vmatpush1.bf16.msra.mxu0 %v3924
    %4004 = vmatprep.subr.bf16.mxu0 0
    %4005 = vmatpush2.bf16.msra.mxu0 0
    %4006 = vmatprep.subr.bf16.mxu0 0
    %4007 = vmatpush2.bf16.msra.mxu0 0
    %4008 = vmatprep.subr.bf16.mxu0 0
    %4009 = vmatpush2.bf16.msra.mxu0 0
    %4010 = vmatprep.subr.bf16.mxu0 0
    %4011 = vmatpush2.bf16.msra.mxu0 0
    %4012 = vmatprep.subr.bf16.mxu0 0
    %4013 = vmatpush2.bf16.msra.mxu0 0
    %4014 = vmatprep.subr.bf16.mxu0 0
    %4015 = vmatpush2.bf16.msra.mxu0 0
    %4016 = vmatprep.subr.bf16.mxu0 0
    %4017 = vmatpush2.bf16.msra.mxu0 0
    %4018 = vmatprep.subr.bf16.mxu0 0
    %4019 = vmatpush2.bf16.msra.mxu0 0
    %4020 = vmatprep.mubr.bf16.mxu0 0
    %4021 = vmatmul.mubr.bf16.gmra.mxu0 %v3492
    %v4022 = vpop.f32.mrf.mxu0
    %v4023 = vadd.f32 0.0, %v4022
    %v4024 = vpop.f32.mrf.mxu0
    %v4025 = vadd.f32 0.0, %v4024
    %v4026 = vpop.f32.mrf.mxu0
    %v4027 = vpop.f32.mrf.mxu0
    %4028 = vdwg.mxu0
    %4029 = vmatprep.subr.bf16.mxu0 %v3955
    %4030 = vmatpush1.bf16.msra.mxu0 %v3954
    %4031 = vmatprep.subr.bf16.mxu0 %v3951
    %4032 = vmatpush1.bf16.msra.mxu0 %v3950
    %4033 = vmatprep.subr.bf16.mxu0 %v3947
    %4034 = vmatpush1.bf16.msra.mxu0 %v3946
    %4035 = vmatprep.subr.bf16.mxu0 %v3943
    %4036 = vmatpush1.bf16.msra.mxu0 %v3942
    %4037 = vmatprep.subr.bf16.mxu0 %v3939
    %4038 = vmatpush1.bf16.msra.mxu0 %v3938
    %4039 = vmatprep.subr.bf16.mxu0 %v3935
    %4040 = vmatpush1.bf16.msra.mxu0 %v3934
    %4041 = vmatprep.subr.bf16.mxu0 %v3931
    %4042 = vmatpush1.bf16.msra.mxu0 %v3930
    %4043 = vmatprep.subr.bf16.mxu0 %v3927
    %4044 = vmatpush1.bf16.msra.mxu0 %v3926
    %4045 = vmatprep.subr.bf16.mxu0 0
    %4046 = vmatpush2.bf16.msra.mxu0 0
    %4047 = vmatprep.subr.bf16.mxu0 0
    %4048 = vmatpush2.bf16.msra.mxu0 0
    %4049 = vmatprep.subr.bf16.mxu0 0
    %4050 = vmatpush2.bf16.msra.mxu0 0
    %4051 = vmatprep.subr.bf16.mxu0 0
    %4052 = vmatpush2.bf16.msra.mxu0 0
    %4053 = vmatprep.subr.bf16.mxu0 0
    %4054 = vmatpush2.bf16.msra.mxu0 0
    %4055 = vmatprep.subr.bf16.mxu0 0
    %4056 = vmatpush2.bf16.msra.mxu0 0
    %4057 = vmatprep.subr.bf16.mxu0 0
    %4058 = vmatpush2.bf16.msra.mxu0 0
    %4059 = vmatprep.subr.bf16.mxu0 0
    %4060 = vmatpush2.bf16.msra.mxu0 0
    %4061 = vmatprep.mubr.bf16.mxu0 0
    %4062 = vmatmul.mubr.bf16.gmra.mxu0 %v3492
    %v4063 = vpop.f32.mrf.mxu0
    %v4064 = vadd.f32 0.0, %v4063
    %v4065 = vpop.f32.mrf.mxu0
    %v4066 = vadd.f32 0.0, %v4065
    %v4067 = vpop.f32.mrf.mxu0
    %v4068 = vpop.f32.mrf.mxu0
    %4069 = vdwg.mxu0
    %v4070 = vadd.f32 %v3792, %v4023
    %v4071 = vadd.f32 %v3793, %v4025
    %v4072 = vadd.f32 %v3794, %v4064
    %v4073 = vadd.f32 %v3795, %v4066
    %v4074 = vmul.f32 %v4070, 0.5
    %v4075 = vmul.f32 %v4071, 0.5
    %v4076 = vmul.f32 %v4072, 0.5
    %v4077 = vtanh.pop %v4074
    %v4078 = vtanh.pop %v4075
    %v4079 = vtanh.pop %v4076
    %v4080 = vmul.f32 %v4077, 0.5
    %v4081 = vmul.f32 %v4078, 0.5
    %v4082 = vmul.f32 %v4079, 0.5
    %v4083 = vadd.f32 %v4080, 0.5
    %v4084 = vadd.f32 %v4081, 0.5
    %v4085 = vadd.f32 %v4082, 0.5
    %v4086 = vtanh.pop %v4073
    %v4087 = vmul.f32 %v4084, %v3489
    %v4088 = vmul.f32 %v4083, %v4086
    %v4089 = vadd.f32 %v4087, %v4088
    %v4090 = vtanh.pop %v4089
    %v4091 = vmul.f32 %v4085, %v4090
    %v4092 = vpack.c.bf16 %v4091, %v4091
    %4093 = vadd.xlane.f32.xlu0 %v4091
    %v4094 = vpop.xlane.xlu0 %4093
    %v4095 = vmul.f32 %v4094, %v461
    %v4096 = vmul.f32 %v4091, %v4091
    %4097 = vadd.xlane.f32.xlu0 %v4096
    %v4098 = vpop.xlane.xlu0 %4097
    %v4099 = vmul.f32 %v4098, %v461
    %v4100 = vmul.f32 %v4095, %v4095
    %v4101 = vsub.f32 %v4099, %v4100
    %v4102 = vsub.f32 %v4091, %v4095
    %v4103 = vadd.f32 %v4101, 1e-05
    %v4104 = vrsqrt.pop %v4103
    %v4105 = vmul.f32 %v4102, %v4104
    %v4106 = vmul.f32 %v4105, %v477
    %v4107 = vadd.f32 %v4106, %v484
    %v4108 = vmul.f32 %v4107, 0.5
    %v4109 = vtanh.pop %v4108
    %v4110 = vmul.f32 %v4109, 0.5
    %v4111 = vadd.f32 %v4110, 0.5
    %v4112 = vmul.f32 %v4107, %v4111
    %v4113 = vpack.c.bf16 %v4112, %v4112
    %v4114 = vld [vmem:[#allocation10] sm:$0xff]
    %v4115 = vld [vmem:[#allocation10 + $0x8] sm:$0xff]
    %v4116 = vld [vmem:[#allocation10 + $0x10] sm:$0xff]
    %v4117 = vld [vmem:[#allocation10 + $0x18] sm:$0xff]
    %v4118 = vld [vmem:[#allocation10 + $0x20] sm:$0xff]
    %v4119 = vld [vmem:[#allocation10 + $0x28] sm:$0xff]
    %v4120 = vld [vmem:[#allocation10 + $0x30] sm:$0xff]
    %v4121 = vld [vmem:[#allocation10 + $0x38] sm:$0xff]
    %v4122 = vld [vmem:[#allocation10 + $0x40] sm:$0xff]
    %v4123 = vld [vmem:[#allocation10 + $0x48] sm:$0xff]
    %v4124 = vld [vmem:[#allocation10 + $0x50] sm:$0xff]
    %v4125 = vld [vmem:[#allocation10 + $0x58] sm:$0xff]
    %v4126 = vld [vmem:[#allocation10 + $0x60] sm:$0xff]
    %v4127 = vld [vmem:[#allocation10 + $0x68] sm:$0xff]
    %v4128 = vld [vmem:[#allocation10 + $0x70] sm:$0xff]
    %v4129 = vld [vmem:[#allocation10 + $0x78] sm:$0xff]
    %v4130 = vld [vmem:[#allocation10 + $0x80] sm:$0xff]
    %v4131 = vld [vmem:[#allocation10 + $0x88] sm:$0xff]
    %v4132 = vld [vmem:[#allocation10 + $0x90] sm:$0xff]
    %v4133 = vld [vmem:[#allocation10 + $0x98] sm:$0xff]
    %v4134 = vld [vmem:[#allocation10 + $0xa0] sm:$0xff]
    %v4135 = vld [vmem:[#allocation10 + $0xa8] sm:$0xff]
    %v4136 = vld [vmem:[#allocation10 + $0xb0] sm:$0xff]
    %v4137 = vld [vmem:[#allocation10 + $0xb8] sm:$0xff]
    %v4138 = vld [vmem:[#allocation10 + $0xc0] sm:$0xff]
    %v4139 = vld [vmem:[#allocation10 + $0xc8] sm:$0xff]
    %v4140 = vld [vmem:[#allocation10 + $0xd0] sm:$0xff]
    %v4141 = vld [vmem:[#allocation10 + $0xd8] sm:$0xff]
    %v4142 = vld [vmem:[#allocation10 + $0xe0] sm:$0xff]
    %v4143 = vld [vmem:[#allocation10 + $0xe8] sm:$0xff]
    %v4144 = vld [vmem:[#allocation10 + $0xf0] sm:$0xff]
    %v4145 = vld [vmem:[#allocation10 + $0xf8] sm:$0xff]
    %v4178 = vunpack.c.l.b16 %v4114
    %v4179 = vunpack.c.h.b16 %v4114
    %v4180 = vunpack.c.l.b16 %v4115
    %v4181 = vunpack.c.h.b16 %v4115
    %v4182 = vunpack.c.l.b16 %v4116
    %v4183 = vunpack.c.h.b16 %v4116
    %v4184 = vunpack.c.l.b16 %v4117
    %v4185 = vunpack.c.h.b16 %v4117
    %v4186 = vunpack.c.l.b16 %v4118
    %v4187 = vunpack.c.h.b16 %v4118
    %v4188 = vunpack.c.l.b16 %v4119
    %v4189 = vunpack.c.h.b16 %v4119
    %v4190 = vunpack.c.l.b16 %v4120
    %v4191 = vunpack.c.h.b16 %v4120
    %v4192 = vunpack.c.l.b16 %v4121
    %v4193 = vunpack.c.h.b16 %v4121
    %v4194 = vunpack.c.l.b16 %v4122
    %v4195 = vunpack.c.h.b16 %v4122
    %v4196 = vunpack.c.l.b16 %v4123
    %v4197 = vunpack.c.h.b16 %v4123
    %v4198 = vunpack.c.l.b16 %v4124
    %v4199 = vunpack.c.h.b16 %v4124
    %v4200 = vunpack.c.l.b16 %v4125
    %v4201 = vunpack.c.h.b16 %v4125
    %v4202 = vunpack.c.l.b16 %v4126
    %v4203 = vunpack.c.h.b16 %v4126
    %v4204 = vunpack.c.l.b16 %v4127
    %v4205 = vunpack.c.h.b16 %v4127
    %v4206 = vunpack.c.l.b16 %v4128
    %v4207 = vunpack.c.h.b16 %v4128
    %v4208 = vunpack.c.l.b16 %v4129
    %v4209 = vunpack.c.h.b16 %v4129
    %v4210 = vunpack.c.l.b16 %v4130
    %v4211 = vunpack.c.h.b16 %v4130
    %v4212 = vunpack.c.l.b16 %v4131
    %v4213 = vunpack.c.h.b16 %v4131
    %v4214 = vunpack.c.l.b16 %v4132
    %v4215 = vunpack.c.h.b16 %v4132
    %v4216 = vunpack.c.l.b16 %v4133
    %v4217 = vunpack.c.h.b16 %v4133
    %v4218 = vunpack.c.l.b16 %v4134
    %v4219 = vunpack.c.h.b16 %v4134
    %v4220 = vunpack.c.l.b16 %v4135
    %v4221 = vunpack.c.h.b16 %v4135
    %v4222 = vunpack.c.l.b16 %v4136
    %v4223 = vunpack.c.h.b16 %v4136
    %v4224 = vunpack.c.l.b16 %v4137
    %v4225 = vunpack.c.h.b16 %v4137
    %v4226 = vunpack.c.l.b16 %v4138
    %v4227 = vunpack.c.h.b16 %v4138
    %v4228 = vunpack.c.l.b16 %v4139
    %v4229 = vunpack.c.h.b16 %v4139
    %v4230 = vunpack.c.l.b16 %v4140
    %v4231 = vunpack.c.h.b16 %v4140
    %v4232 = vunpack.c.l.b16 %v4141
    %v4233 = vunpack.c.h.b16 %v4141
    %v4234 = vunpack.c.l.b16 %v4142
    %v4235 = vunpack.c.h.b16 %v4142
    %v4236 = vunpack.c.l.b16 %v4143
    %v4237 = vunpack.c.h.b16 %v4143
    %v4238 = vunpack.c.l.b16 %v4144
    %v4239 = vunpack.c.h.b16 %v4144
    %v4240 = vunpack.c.l.b16 %v4145
    %v4241 = vunpack.c.h.b16 %v4145
    %v4242 = vpack.c.b16 %v4182, %v4178
    %v4243 = vpack.c.b16 %v4183, %v4179
    %v4244 = vpack.c.b16 %v4184, %v4180
    %v4245 = vpack.c.b16 %v4185, %v4181
    %v4246 = vpack.c.b16 %v4190, %v4186
    %v4247 = vpack.c.b16 %v4191, %v4187
    %v4248 = vpack.c.b16 %v4192, %v4188
    %v4249 = vpack.c.b16 %v4193, %v4189
    %v4250 = vpack.c.b16 %v4198, %v4194
    %v4251 = vpack.c.b16 %v4199, %v4195
    %v4252 = vpack.c.b16 %v4200, %v4196
    %v4253 = vpack.c.b16 %v4201, %v4197
    %v4254 = vpack.c.b16 %v4206, %v4202
    %v4255 = vpack.c.b16 %v4207, %v4203
    %v4256 = vpack.c.b16 %v4208, %v4204
    %v4257 = vpack.c.b16 %v4209, %v4205
    %v4258 = vpack.c.b16 %v4214, %v4210
    %v4259 = vpack.c.b16 %v4215, %v4211
    %v4260 = vpack.c.b16 %v4216, %v4212
    %v4261 = vpack.c.b16 %v4217, %v4213
    %v4262 = vpack.c.b16 %v4222, %v4218
    %v4263 = vpack.c.b16 %v4223, %v4219
    %v4264 = vpack.c.b16 %v4224, %v4220
    %v4265 = vpack.c.b16 %v4225, %v4221
    %v4266 = vpack.c.b16 %v4230, %v4226
    %v4267 = vpack.c.b16 %v4231, %v4227
    %v4268 = vpack.c.b16 %v4232, %v4228
    %v4269 = vpack.c.b16 %v4233, %v4229
    %v4270 = vpack.c.b16 %v4238, %v4234
    %v4271 = vpack.c.b16 %v4239, %v4235
    %v4272 = vpack.c.b16 %v4240, %v4236
    %v4273 = vpack.c.b16 %v4241, %v4237
    %4306 = vmatprep.subr.bf16.mxu0 %v4271
    %4307 = vmatpush1.bf16.msra.mxu0 %v4270
    %4308 = vmatprep.subr.bf16.mxu0 %v4267
    %4309 = vmatpush1.bf16.msra.mxu0 %v4266
    %4310 = vmatprep.subr.bf16.mxu0 %v4263
    %4311 = vmatpush1.bf16.msra.mxu0 %v4262
    %4312 = vmatprep.subr.bf16.mxu0 %v4259
    %4313 = vmatpush1.bf16.msra.mxu0 %v4258
    %4314 = vmatprep.subr.bf16.mxu0 %v4255
    %4315 = vmatpush1.bf16.msra.mxu0 %v4254
    %4316 = vmatprep.subr.bf16.mxu0 %v4251
    %4317 = vmatpush1.bf16.msra.mxu0 %v4250
    %4318 = vmatprep.subr.bf16.mxu0 %v4247
    %4319 = vmatpush1.bf16.msra.mxu0 %v4246
    %4320 = vmatprep.subr.bf16.mxu0 %v4243
    %4321 = vmatpush1.bf16.msra.mxu0 %v4242
    %4322 = vmatprep.subr.bf16.mxu0 0
    %4323 = vmatpush2.bf16.msra.mxu0 0
    %4324 = vmatprep.subr.bf16.mxu0 0
    %4325 = vmatpush2.bf16.msra.mxu0 0
    %4326 = vmatprep.subr.bf16.mxu0 0
    %4327 = vmatpush2.bf16.msra.mxu0 0
    %4328 = vmatprep.subr.bf16.mxu0 0
    %4329 = vmatpush2.bf16.msra.mxu0 0
    %4330 = vmatprep.subr.bf16.mxu0 0
    %4331 = vmatpush2.bf16.msra.mxu0 0
    %4332 = vmatprep.subr.bf16.mxu0 0
    %4333 = vmatpush2.bf16.msra.mxu0 0
    %4334 = vmatprep.subr.bf16.mxu0 0
    %4335 = vmatpush2.bf16.msra.mxu0 0
    %4336 = vmatprep.subr.bf16.mxu0 0
    %4337 = vmatpush2.bf16.msra.mxu0 0
    %4338 = vmatprep.mubr.bf16.mxu0 0
    %4339 = vmatmul.mubr.bf16.gmra.mxu0 %v4113
    %v4340 = vpop.f32.mrf.mxu0
    %v4341 = vadd.f32 %v529, %v4340
    %v4342 = vpop.f32.mrf.mxu0
    %v4343 = vadd.f32 %v533, %v4342
    %v4344 = vpop.f32.mrf.mxu0
    %v4345 = vpop.f32.mrf.mxu0
    %4346 = vdwg.mxu0
    %4347 = vmatprep.subr.bf16.mxu0 %v4273
    %4348 = vmatpush1.bf16.msra.mxu0 %v4272
    %4349 = vmatprep.subr.bf16.mxu0 %v4269
    %4350 = vmatpush1.bf16.msra.mxu0 %v4268
    %4351 = vmatprep.subr.bf16.mxu0 %v4265
    %4352 = vmatpush1.bf16.msra.mxu0 %v4264
    %4353 = vmatprep.subr.bf16.mxu0 %v4261
    %4354 = vmatpush1.bf16.msra.mxu0 %v4260
    %4355 = vmatprep.subr.bf16.mxu0 %v4257
    %4356 = vmatpush1.bf16.msra.mxu0 %v4256
    %4357 = vmatprep.subr.bf16.mxu0 %v4253
    %4358 = vmatpush1.bf16.msra.mxu0 %v4252
    %4359 = vmatprep.subr.bf16.mxu0 %v4249
    %4360 = vmatpush1.bf16.msra.mxu0 %v4248
    %4361 = vmatprep.subr.bf16.mxu0 %v4245
    %4362 = vmatpush1.bf16.msra.mxu0 %v4244
    %4363 = vmatprep.subr.bf16.mxu0 0
    %4364 = vmatpush2.bf16.msra.mxu0 0
    %4365 = vmatprep.subr.bf16.mxu0 0
    %4366 = vmatpush2.bf16.msra.mxu0 0
    %4367 = vmatprep.subr.bf16.mxu0 0
    %4368 = vmatpush2.bf16.msra.mxu0 0
    %4369 = vmatprep.subr.bf16.mxu0 0
    %4370 = vmatpush2.bf16.msra.mxu0 0
    %4371 = vmatprep.subr.bf16.mxu0 0
    %4372 = vmatpush2.bf16.msra.mxu0 0
    %4373 = vmatprep.subr.bf16.mxu0 0
    %4374 = vmatpush2.bf16.msra.mxu0 0
    %4375 = vmatprep.subr.bf16.mxu0 0
    %4376 = vmatpush2.bf16.msra.mxu0 0
    %4377 = vmatprep.subr.bf16.mxu0 0
    %4378 = vmatpush2.bf16.msra.mxu0 0
    %4379 = vmatprep.mubr.bf16.mxu0 0
    %4380 = vmatmul.mubr.bf16.gmra.mxu0 %v4113
    %v4381 = vpop.f32.mrf.mxu0
    %v4382 = vadd.f32 %v537, %v4381
    %v4383 = vpop.f32.mrf.mxu0
    %v4384 = vadd.f32 %v541, %v4383
    %v4385 = vpop.f32.mrf.mxu0
    %v4386 = vpop.f32.mrf.mxu0
    %4387 = vdwg.mxu0
    %4388 = vst [vmem:[#allocation2 + $0xc0] sm:$0xff] %v4341
    %4389 = vst [vmem:[#allocation2 + $0xc8] sm:$0xff] %v4343
    %4390 = vst [vmem:[#allocation2 + $0xd0] sm:$0xff] %v4382
    %4391 = vst [vmem:[#allocation2 + $0xd8] sm:$0xff] %v4384
    %v4392 = vld [vmem:[#allocation5 + $0xe0] sm:$0xff]
    %v4393 = vld [vmem:[#allocation5 + $0xe8] sm:$0xff]
    %v4394 = vld [vmem:[#allocation5 + $0xf0] sm:$0xff]
    %v4395 = vld [vmem:[#allocation5 + $0xf8] sm:$0xff]
    %v4396 = vld [vmem:[#allocation7] sm:$0xff]
    %v4397 = vld [vmem:[#allocation7 + $0x8] sm:$0xff]
    %v4398 = vld [vmem:[#allocation7 + $0x10] sm:$0xff]
    %v4399 = vld [vmem:[#allocation7 + $0x18] sm:$0xff]
    %v4400 = vld [vmem:[#allocation7 + $0x20] sm:$0xff]
    %v4401 = vld [vmem:[#allocation7 + $0x28] sm:$0xff]
    %v4402 = vld [vmem:[#allocation7 + $0x30] sm:$0xff]
    %v4403 = vld [vmem:[#allocation7 + $0x38] sm:$0xff]
    %v4404 = vld [vmem:[#allocation7 + $0x40] sm:$0xff]
    %v4405 = vld [vmem:[#allocation7 + $0x48] sm:$0xff]
    %v4406 = vld [vmem:[#allocation7 + $0x50] sm:$0xff]
    %v4407 = vld [vmem:[#allocation7 + $0x58] sm:$0xff]
    %v4408 = vld [vmem:[#allocation7 + $0x60] sm:$0xff]
    %v4409 = vld [vmem:[#allocation7 + $0x68] sm:$0xff]
    %v4410 = vld [vmem:[#allocation7 + $0x70] sm:$0xff]
    %v4411 = vld [vmem:[#allocation7 + $0x78] sm:$0xff]
    %v4412 = vld [vmem:[#allocation7 + $0x80] sm:$0xff]
    %v4413 = vld [vmem:[#allocation7 + $0x88] sm:$0xff]
    %v4414 = vld [vmem:[#allocation7 + $0x90] sm:$0xff]
    %v4415 = vld [vmem:[#allocation7 + $0x98] sm:$0xff]
    %v4416 = vld [vmem:[#allocation7 + $0xa0] sm:$0xff]
    %v4417 = vld [vmem:[#allocation7 + $0xa8] sm:$0xff]
    %v4418 = vld [vmem:[#allocation7 + $0xb0] sm:$0xff]
    %v4419 = vld [vmem:[#allocation7 + $0xb8] sm:$0xff]
    %v4420 = vld [vmem:[#allocation7 + $0xc0] sm:$0xff]
    %v4421 = vld [vmem:[#allocation7 + $0xc8] sm:$0xff]
    %v4422 = vld [vmem:[#allocation7 + $0xd0] sm:$0xff]
    %v4423 = vld [vmem:[#allocation7 + $0xd8] sm:$0xff]
    %v4424 = vld [vmem:[#allocation7 + $0xe0] sm:$0xff]
    %v4425 = vld [vmem:[#allocation7 + $0xe8] sm:$0xff]
    %v4426 = vld [vmem:[#allocation7 + $0xf0] sm:$0xff]
    %v4427 = vld [vmem:[#allocation7 + $0xf8] sm:$0xff]
    %v4460 = vunpack.c.l.b16 %v4396
    %v4461 = vunpack.c.h.b16 %v4396
    %v4462 = vunpack.c.l.b16 %v4397
    %v4463 = vunpack.c.h.b16 %v4397
    %v4464 = vunpack.c.l.b16 %v4398
    %v4465 = vunpack.c.h.b16 %v4398
    %v4466 = vunpack.c.l.b16 %v4399
    %v4467 = vunpack.c.h.b16 %v4399
    %v4468 = vunpack.c.l.b16 %v4400
    %v4469 = vunpack.c.h.b16 %v4400
    %v4470 = vunpack.c.l.b16 %v4401
    %v4471 = vunpack.c.h.b16 %v4401
    %v4472 = vunpack.c.l.b16 %v4402
    %v4473 = vunpack.c.h.b16 %v4402
    %v4474 = vunpack.c.l.b16 %v4403
    %v4475 = vunpack.c.h.b16 %v4403
    %v4476 = vunpack.c.l.b16 %v4404
    %v4477 = vunpack.c.h.b16 %v4404
    %v4478 = vunpack.c.l.b16 %v4405
    %v4479 = vunpack.c.h.b16 %v4405
    %v4480 = vunpack.c.l.b16 %v4406
    %v4481 = vunpack.c.h.b16 %v4406
    %v4482 = vunpack.c.l.b16 %v4407
    %v4483 = vunpack.c.h.b16 %v4407
    %v4484 = vunpack.c.l.b16 %v4408
    %v4485 = vunpack.c.h.b16 %v4408
    %v4486 = vunpack.c.l.b16 %v4409
    %v4487 = vunpack.c.h.b16 %v4409
    %v4488 = vunpack.c.l.b16 %v4410
    %v4489 = vunpack.c.h.b16 %v4410
    %v4490 = vunpack.c.l.b16 %v4411
    %v4491 = vunpack.c.h.b16 %v4411
    %v4492 = vunpack.c.l.b16 %v4412
    %v4493 = vunpack.c.h.b16 %v4412
    %v4494 = vunpack.c.l.b16 %v4413
    %v4495 = vunpack.c.h.b16 %v4413
    %v4496 = vunpack.c.l.b16 %v4414
    %v4497 = vunpack.c.h.b16 %v4414
    %v4498 = vunpack.c.l.b16 %v4415
    %v4499 = vunpack.c.h.b16 %v4415
    %v4500 = vunpack.c.l.b16 %v4416
    %v4501 = vunpack.c.h.b16 %v4416
    %v4502 = vunpack.c.l.b16 %v4417
    %v4503 = vunpack.c.h.b16 %v4417
    %v4504 = vunpack.c.l.b16 %v4418
    %v4505 = vunpack.c.h.b16 %v4418
    %v4506 = vunpack.c.l.b16 %v4419
    %v4507 = vunpack.c.h.b16 %v4419
    %v4508 = vunpack.c.l.b16 %v4420
    %v4509 = vunpack.c.h.b16 %v4420
    %v4510 = vunpack.c.l.b16 %v4421
    %v4511 = vunpack.c.h.b16 %v4421
    %v4512 = vunpack.c.l.b16 %v4422
    %v4513 = vunpack.c.h.b16 %v4422
    %v4514 = vunpack.c.l.b16 %v4423
    %v4515 = vunpack.c.h.b16 %v4423
    %v4516 = vunpack.c.l.b16 %v4424
    %v4517 = vunpack.c.h.b16 %v4424
    %v4518 = vunpack.c.l.b16 %v4425
    %v4519 = vunpack.c.h.b16 %v4425
    %v4520 = vunpack.c.l.b16 %v4426
    %v4521 = vunpack.c.h.b16 %v4426
    %v4522 = vunpack.c.l.b16 %v4427
    %v4523 = vunpack.c.h.b16 %v4427
    %v4524 = vpack.c.b16 %v4464, %v4460
    %v4525 = vpack.c.b16 %v4465, %v4461
    %v4526 = vpack.c.b16 %v4466, %v4462
    %v4527 = vpack.c.b16 %v4467, %v4463
    %v4528 = vpack.c.b16 %v4472, %v4468
    %v4529 = vpack.c.b16 %v4473, %v4469
    %v4530 = vpack.c.b16 %v4474, %v4470
    %v4531 = vpack.c.b16 %v4475, %v4471
    %v4532 = vpack.c.b16 %v4480, %v4476
    %v4533 = vpack.c.b16 %v4481, %v4477
    %v4534 = vpack.c.b16 %v4482, %v4478
    %v4535 = vpack.c.b16 %v4483, %v4479
    %v4536 = vpack.c.b16 %v4488, %v4484
    %v4537 = vpack.c.b16 %v4489, %v4485
    %v4538 = vpack.c.b16 %v4490, %v4486
    %v4539 = vpack.c.b16 %v4491, %v4487
    %v4540 = vpack.c.b16 %v4496, %v4492
    %v4541 = vpack.c.b16 %v4497, %v4493
    %v4542 = vpack.c.b16 %v4498, %v4494
    %v4543 = vpack.c.b16 %v4499, %v4495
    %v4544 = vpack.c.b16 %v4504, %v4500
    %v4545 = vpack.c.b16 %v4505, %v4501
    %v4546 = vpack.c.b16 %v4506, %v4502
    %v4547 = vpack.c.b16 %v4507, %v4503
    %v4548 = vpack.c.b16 %v4512, %v4508
    %v4549 = vpack.c.b16 %v4513, %v4509
    %v4550 = vpack.c.b16 %v4514, %v4510
    %v4551 = vpack.c.b16 %v4515, %v4511
    %v4552 = vpack.c.b16 %v4520, %v4516
    %v4553 = vpack.c.b16 %v4521, %v4517
    %v4554 = vpack.c.b16 %v4522, %v4518
    %v4555 = vpack.c.b16 %v4523, %v4519
    %4588 = vmatprep.subr.bf16.mxu0 %v4553
    %4589 = vmatpush1.bf16.msra.mxu0 %v4552
    %4590 = vmatprep.subr.bf16.mxu0 %v4549
    %4591 = vmatpush1.bf16.msra.mxu0 %v4548
    %4592 = vmatprep.subr.bf16.mxu0 %v4545
    %4593 = vmatpush1.bf16.msra.mxu0 %v4544
    %4594 = vmatprep.subr.bf16.mxu0 %v4541
    %4595 = vmatpush1.bf16.msra.mxu0 %v4540
    %4596 = vmatprep.subr.bf16.mxu0 %v4537
    %4597 = vmatpush1.bf16.msra.mxu0 %v4536
    %4598 = vmatprep.subr.bf16.mxu0 %v4533
    %4599 = vmatpush1.bf16.msra.mxu0 %v4532
    %4600 = vmatprep.subr.bf16.mxu0 %v4529
    %4601 = vmatpush1.bf16.msra.mxu0 %v4528
    %4602 = vmatprep.subr.bf16.mxu0 %v4525
    %4603 = vmatpush1.bf16.msra.mxu0 %v4524
    %4604 = vmatprep.subr.bf16.mxu0 0
    %4605 = vmatpush2.bf16.msra.mxu0 0
    %4606 = vmatprep.subr.bf16.mxu0 0
    %4607 = vmatpush2.bf16.msra.mxu0 0
    %4608 = vmatprep.subr.bf16.mxu0 0
    %4609 = vmatpush2.bf16.msra.mxu0 0
    %4610 = vmatprep.subr.bf16.mxu0 0
    %4611 = vmatpush2.bf16.msra.mxu0 0
    %4612 = vmatprep.subr.bf16.mxu0 0
    %4613 = vmatpush2.bf16.msra.mxu0 0
    %4614 = vmatprep.subr.bf16.mxu0 0
    %4615 = vmatpush2.bf16.msra.mxu0 0
    %4616 = vmatprep.subr.bf16.mxu0 0
    %4617 = vmatpush2.bf16.msra.mxu0 0
    %4618 = vmatprep.subr.bf16.mxu0 0
    %4619 = vmatpush2.bf16.msra.mxu0 0
    %4620 = vmatprep.mubr.bf16.mxu0 0
    %4621 = vmatmul.mubr.bf16.gmra.mxu0 %v4092
    %v4622 = vpop.f32.mrf.mxu0
    %v4623 = vadd.f32 0.0, %v4622
    %v4624 = vpop.f32.mrf.mxu0
    %v4625 = vadd.f32 0.0, %v4624
    %v4626 = vpop.f32.mrf.mxu0
    %v4627 = vpop.f32.mrf.mxu0
    %4628 = vdwg.mxu0
    %4629 = vmatprep.subr.bf16.mxu0 %v4555
    %4630 = vmatpush1.bf16.msra.mxu0 %v4554
    %4631 = vmatprep.subr.bf16.mxu0 %v4551
    %4632 = vmatpush1.bf16.msra.mxu0 %v4550
    %4633 = vmatprep.subr.bf16.mxu0 %v4547
    %4634 = vmatpush1.bf16.msra.mxu0 %v4546
    %4635 = vmatprep.subr.bf16.mxu0 %v4543
    %4636 = vmatpush1.bf16.msra.mxu0 %v4542
    %4637 = vmatprep.subr.bf16.mxu0 %v4539
    %4638 = vmatpush1.bf16.msra.mxu0 %v4538
    %4639 = vmatprep.subr.bf16.mxu0 %v4535
    %4640 = vmatpush1.bf16.msra.mxu0 %v4534
    %4641 = vmatprep.subr.bf16.mxu0 %v4531
    %4642 = vmatpush1.bf16.msra.mxu0 %v4530
    %4643 = vmatprep.subr.bf16.mxu0 %v4527
    %4644 = vmatpush1.bf16.msra.mxu0 %v4526
    %4645 = vmatprep.subr.bf16.mxu0 0
    %4646 = vmatpush2.bf16.msra.mxu0 0
    %4647 = vmatprep.subr.bf16.mxu0 0
    %4648 = vmatpush2.bf16.msra.mxu0 0
    %4649 = vmatprep.subr.bf16.mxu0 0
    %4650 = vmatpush2.bf16.msra.mxu0 0
    %4651 = vmatprep.subr.bf16.mxu0 0
    %4652 = vmatpush2.bf16.msra.mxu0 0
    %4653 = vmatprep.subr.bf16.mxu0 0
    %4654 = vmatpush2.bf16.msra.mxu0 0
    %4655 = vmatprep.subr.bf16.mxu0 0
    %4656 = vmatpush2.bf16.msra.mxu0 0
    %4657 = vmatprep.subr.bf16.mxu0 0
    %4658 = vmatpush2.bf16.msra.mxu0 0
    %4659 = vmatprep.subr.bf16.mxu0 0
    %4660 = vmatpush2.bf16.msra.mxu0 0
    %4661 = vmatprep.mubr.bf16.mxu0 0
    %4662 = vmatmul.mubr.bf16.gmra.mxu0 %v4092
    %v4663 = vpop.f32.mrf.mxu0
    %v4664 = vadd.f32 0.0, %v4663
    %v4665 = vpop.f32.mrf.mxu0
    %v4666 = vadd.f32 0.0, %v4665
    %v4667 = vpop.f32.mrf.mxu0
    %v4668 = vpop.f32.mrf.mxu0
    %4669 = vdwg.mxu0
    %v4670 = vadd.f32 %v4392, %v4623
    %v4671 = vadd.f32 %v4393, %v4625
    %v4672 = vadd.f32 %v4394, %v4664
    %v4673 = vadd.f32 %v4395, %v4666
    %v4674 = vmul.f32 %v4670, 0.5
    %v4675 = vmul.f32 %v4671, 0.5
    %v4676 = vmul.f32 %v4672, 0.5
    %v4677 = vtanh.pop %v4674
    %v4678 = vtanh.pop %v4675
    %v4679 = vtanh.pop %v4676
    %v4680 = vmul.f32 %v4677, 0.5
    %v4681 = vmul.f32 %v4678, 0.5
    %v4682 = vmul.f32 %v4679, 0.5
    %v4683 = vadd.f32 %v4680, 0.5
    %v4684 = vadd.f32 %v4681, 0.5
    %v4685 = vadd.f32 %v4682, 0.5
    %v4686 = vtanh.pop %v4673
    %v4687 = vmul.f32 %v4684, %v4089
    %v4688 = vmul.f32 %v4683, %v4686
    %v4689 = vadd.f32 %v4687, %v4688
    %v4690 = vtanh.pop %v4689
    %v4691 = vmul.f32 %v4685, %v4690
    %4692 = vadd.xlane.f32.xlu0 %v4691
    %v4693 = vpop.xlane.xlu0 %4692
    %v4694 = vmul.f32 %v4693, %v461
    %v4695 = vmul.f32 %v4691, %v4691
    %4696 = vadd.xlane.f32.xlu0 %v4695
    %v4697 = vpop.xlane.xlu0 %4696
    %v4698 = vmul.f32 %v4697, %v461
    %v4699 = vmul.f32 %v4694, %v4694
    %v4700 = vsub.f32 %v4698, %v4699
    %v4701 = vsub.f32 %v4691, %v4694
    %v4702 = vadd.f32 %v4700, 1e-05
    %v4703 = vrsqrt.pop %v4702
    %v4704 = vmul.f32 %v4701, %v4703
    %v4705 = vmul.f32 %v4704, %v477
    %v4706 = vadd.f32 %v4705, %v484
    %v4707 = vmul.f32 %v4706, 0.5
    %v4708 = vtanh.pop %v4707
    %v4709 = vmul.f32 %v4708, 0.5
    %v4710 = vadd.f32 %v4709, 0.5
    %v4711 = vmul.f32 %v4706, %v4710
    %v4712 = vpack.c.bf16 %v4711, %v4711
    %v4713 = vld [vmem:[#allocation10] sm:$0xff]
    %v4714 = vld [vmem:[#allocation10 + $0x8] sm:$0xff]
    %v4715 = vld [vmem:[#allocation10 + $0x10] sm:$0xff]
    %v4716 = vld [vmem:[#allocation10 + $0x18] sm:$0xff]
    %v4717 = vld [vmem:[#allocation10 + $0x20] sm:$0xff]
    %v4718 = vld [vmem:[#allocation10 + $0x28] sm:$0xff]
    %v4719 = vld [vmem:[#allocation10 + $0x30] sm:$0xff]
    %v4720 = vld [vmem:[#allocation10 + $0x38] sm:$0xff]
    %v4721 = vld [vmem:[#allocation10 + $0x40] sm:$0xff]
    %v4722 = vld [vmem:[#allocation10 + $0x48] sm:$0xff]
    %v4723 = vld [vmem:[#allocation10 + $0x50] sm:$0xff]
    %v4724 = vld [vmem:[#allocation10 + $0x58] sm:$0xff]
    %v4725 = vld [vmem:[#allocation10 + $0x60] sm:$0xff]
    %v4726 = vld [vmem:[#allocation10 + $0x68] sm:$0xff]
    %v4727 = vld [vmem:[#allocation10 + $0x70] sm:$0xff]
    %v4728 = vld [vmem:[#allocation10 + $0x78] sm:$0xff]
    %v4729 = vld [vmem:[#allocation10 + $0x80] sm:$0xff]
    %v4730 = vld [vmem:[#allocation10 + $0x88] sm:$0xff]
    %v4731 = vld [vmem:[#allocation10 + $0x90] sm:$0xff]
    %v4732 = vld [vmem:[#allocation10 + $0x98] sm:$0xff]
    %v4733 = vld [vmem:[#allocation10 + $0xa0] sm:$0xff]
    %v4734 = vld [vmem:[#allocation10 + $0xa8] sm:$0xff]
    %v4735 = vld [vmem:[#allocation10 + $0xb0] sm:$0xff]
    %v4736 = vld [vmem:[#allocation10 + $0xb8] sm:$0xff]
    %v4737 = vld [vmem:[#allocation10 + $0xc0] sm:$0xff]
    %v4738 = vld [vmem:[#allocation10 + $0xc8] sm:$0xff]
    %v4739 = vld [vmem:[#allocation10 + $0xd0] sm:$0xff]
    %v4740 = vld [vmem:[#allocation10 + $0xd8] sm:$0xff]
    %v4741 = vld [vmem:[#allocation10 + $0xe0] sm:$0xff]
    %v4742 = vld [vmem:[#allocation10 + $0xe8] sm:$0xff]
    %v4743 = vld [vmem:[#allocation10 + $0xf0] sm:$0xff]
    %v4744 = vld [vmem:[#allocation10 + $0xf8] sm:$0xff]
    %v4777 = vunpack.c.l.b16 %v4713
    %v4778 = vunpack.c.h.b16 %v4713
    %v4779 = vunpack.c.l.b16 %v4714
    %v4780 = vunpack.c.h.b16 %v4714
    %v4781 = vunpack.c.l.b16 %v4715
    %v4782 = vunpack.c.h.b16 %v4715
    %v4783 = vunpack.c.l.b16 %v4716
    %v4784 = vunpack.c.h.b16 %v4716
    %v4785 = vunpack.c.l.b16 %v4717
    %v4786 = vunpack.c.h.b16 %v4717
    %v4787 = vunpack.c.l.b16 %v4718
    %v4788 = vunpack.c.h.b16 %v4718
    %v4789 = vunpack.c.l.b16 %v4719
    %v4790 = vunpack.c.h.b16 %v4719
    %v4791 = vunpack.c.l.b16 %v4720
    %v4792 = vunpack.c.h.b16 %v4720
    %v4793 = vunpack.c.l.b16 %v4721
    %v4794 = vunpack.c.h.b16 %v4721
    %v4795 = vunpack.c.l.b16 %v4722
    %v4796 = vunpack.c.h.b16 %v4722
    %v4797 = vunpack.c.l.b16 %v4723
    %v4798 = vunpack.c.h.b16 %v4723
    %v4799 = vunpack.c.l.b16 %v4724
    %v4800 = vunpack.c.h.b16 %v4724
    %v4801 = vunpack.c.l.b16 %v4725
    %v4802 = vunpack.c.h.b16 %v4725
    %v4803 = vunpack.c.l.b16 %v4726
    %v4804 = vunpack.c.h.b16 %v4726
    %v4805 = vunpack.c.l.b16 %v4727
    %v4806 = vunpack.c.h.b16 %v4727
    %v4807 = vunpack.c.l.b16 %v4728
    %v4808 = vunpack.c.h.b16 %v4728
    %v4809 = vunpack.c.l.b16 %v4729
    %v4810 = vunpack.c.h.b16 %v4729
    %v4811 = vunpack.c.l.b16 %v4730
    %v4812 = vunpack.c.h.b16 %v4730
    %v4813 = vunpack.c.l.b16 %v4731
    %v4814 = vunpack.c.h.b16 %v4731
    %v4815 = vunpack.c.l.b16 %v4732
    %v4816 = vunpack.c.h.b16 %v4732
    %v4817 = vunpack.c.l.b16 %v4733
    %v4818 = vunpack.c.h.b16 %v4733
    %v4819 = vunpack.c.l.b16 %v4734
    %v4820 = vunpack.c.h.b16 %v4734
    %v4821 = vunpack.c.l.b16 %v4735
    %v4822 = vunpack.c.h.b16 %v4735
    %v4823 = vunpack.c.l.b16 %v4736
    %v4824 = vunpack.c.h.b16 %v4736
    %v4825 = vunpack.c.l.b16 %v4737
    %v4826 = vunpack.c.h.b16 %v4737
    %v4827 = vunpack.c.l.b16 %v4738
    %v4828 = vunpack.c.h.b16 %v4738
    %v4829 = vunpack.c.l.b16 %v4739
    %v4830 = vunpack.c.h.b16 %v4739
    %v4831 = vunpack.c.l.b16 %v4740
    %v4832 = vunpack.c.h.b16 %v4740
    %v4833 = vunpack.c.l.b16 %v4741
    %v4834 = vunpack.c.h.b16 %v4741
    %v4835 = vunpack.c.l.b16 %v4742
    %v4836 = vunpack.c.h.b16 %v4742
    %v4837 = vunpack.c.l.b16 %v4743
    %v4838 = vunpack.c.h.b16 %v4743
    %v4839 = vunpack.c.l.b16 %v4744
    %v4840 = vunpack.c.h.b16 %v4744
    %v4841 = vpack.c.b16 %v4781, %v4777
    %v4842 = vpack.c.b16 %v4782, %v4778
    %v4843 = vpack.c.b16 %v4783, %v4779
    %v4844 = vpack.c.b16 %v4784, %v4780
    %v4845 = vpack.c.b16 %v4789, %v4785
    %v4846 = vpack.c.b16 %v4790, %v4786
    %v4847 = vpack.c.b16 %v4791, %v4787
    %v4848 = vpack.c.b16 %v4792, %v4788
    %v4849 = vpack.c.b16 %v4797, %v4793
    %v4850 = vpack.c.b16 %v4798, %v4794
    %v4851 = vpack.c.b16 %v4799, %v4795
    %v4852 = vpack.c.b16 %v4800, %v4796
    %v4853 = vpack.c.b16 %v4805, %v4801
    %v4854 = vpack.c.b16 %v4806, %v4802
    %v4855 = vpack.c.b16 %v4807, %v4803
    %v4856 = vpack.c.b16 %v4808, %v4804
    %v4857 = vpack.c.b16 %v4813, %v4809
    %v4858 = vpack.c.b16 %v4814, %v4810
    %v4859 = vpack.c.b16 %v4815, %v4811
    %v4860 = vpack.c.b16 %v4816, %v4812
    %v4861 = vpack.c.b16 %v4821, %v4817
    %v4862 = vpack.c.b16 %v4822, %v4818
    %v4863 = vpack.c.b16 %v4823, %v4819
    %v4864 = vpack.c.b16 %v4824, %v4820
    %v4865 = vpack.c.b16 %v4829, %v4825
    %v4866 = vpack.c.b16 %v4830, %v4826
    %v4867 = vpack.c.b16 %v4831, %v4827
    %v4868 = vpack.c.b16 %v4832, %v4828
    %v4869 = vpack.c.b16 %v4837, %v4833
    %v4870 = vpack.c.b16 %v4838, %v4834
    %v4871 = vpack.c.b16 %v4839, %v4835
    %v4872 = vpack.c.b16 %v4840, %v4836
    %4905 = vmatprep.subr.bf16.mxu0 %v4870
    %4906 = vmatpush1.bf16.msra.mxu0 %v4869
    %4907 = vmatprep.subr.bf16.mxu0 %v4866
    %4908 = vmatpush1.bf16.msra.mxu0 %v4865
    %4909 = vmatprep.subr.bf16.mxu0 %v4862
    %4910 = vmatpush1.bf16.msra.mxu0 %v4861
    %4911 = vmatprep.subr.bf16.mxu0 %v4858
    %4912 = vmatpush1.bf16.msra.mxu0 %v4857
    %4913 = vmatprep.subr.bf16.mxu0 %v4854
    %4914 = vmatpush1.bf16.msra.mxu0 %v4853
    %4915 = vmatprep.subr.bf16.mxu0 %v4850
    %4916 = vmatpush1.bf16.msra.mxu0 %v4849
    %4917 = vmatprep.subr.bf16.mxu0 %v4846
    %4918 = vmatpush1.bf16.msra.mxu0 %v4845
    %4919 = vmatprep.subr.bf16.mxu0 %v4842
    %4920 = vmatpush1.bf16.msra.mxu0 %v4841
    %4921 = vmatprep.subr.bf16.mxu0 0
    %4922 = vmatpush2.bf16.msra.mxu0 0
    %4923 = vmatprep.subr.bf16.mxu0 0
    %4924 = vmatpush2.bf16.msra.mxu0 0
    %4925 = vmatprep.subr.bf16.mxu0 0
    %4926 = vmatpush2.bf16.msra.mxu0 0
    %4927 = vmatprep.subr.bf16.mxu0 0
    %4928 = vmatpush2.bf16.msra.mxu0 0
    %4929 = vmatprep.subr.bf16.mxu0 0
    %4930 = vmatpush2.bf16.msra.mxu0 0
    %4931 = vmatprep.subr.bf16.mxu0 0
    %4932 = vmatpush2.bf16.msra.mxu0 0
    %4933 = vmatprep.subr.bf16.mxu0 0
    %4934 = vmatpush2.bf16.msra.mxu0 0
    %4935 = vmatprep.subr.bf16.mxu0 0
    %4936 = vmatpush2.bf16.msra.mxu0 0
    %4937 = vmatprep.mubr.bf16.mxu0 0
    %4938 = vmatmul.mubr.bf16.gmra.mxu0 %v4712
    %v4939 = vpop.f32.mrf.mxu0
    %v4940 = vadd.f32 %v529, %v4939
    %v4941 = vpop.f32.mrf.mxu0
    %v4942 = vadd.f32 %v533, %v4941
    %v4943 = vpop.f32.mrf.mxu0
    %v4944 = vpop.f32.mrf.mxu0
    %4945 = vdwg.mxu0
    %4946 = vmatprep.subr.bf16.mxu0 %v4872
    %4947 = vmatpush1.bf16.msra.mxu0 %v4871
    %4948 = vmatprep.subr.bf16.mxu0 %v4868
    %4949 = vmatpush1.bf16.msra.mxu0 %v4867
    %4950 = vmatprep.subr.bf16.mxu0 %v4864
    %4951 = vmatpush1.bf16.msra.mxu0 %v4863
    %4952 = vmatprep.subr.bf16.mxu0 %v4860
    %4953 = vmatpush1.bf16.msra.mxu0 %v4859
    %4954 = vmatprep.subr.bf16.mxu0 %v4856
    %4955 = vmatpush1.bf16.msra.mxu0 %v4855
    %4956 = vmatprep.subr.bf16.mxu0 %v4852
    %4957 = vmatpush1.bf16.msra.mxu0 %v4851
    %4958 = vmatprep.subr.bf16.mxu0 %v4848
    %4959 = vmatpush1.bf16.msra.mxu0 %v4847
    %4960 = vmatprep.subr.bf16.mxu0 %v4844
    %4961 = vmatpush1.bf16.msra.mxu0 %v4843
    %4962 = vmatprep.subr.bf16.mxu0 0
    %4963 = vmatpush2.bf16.msra.mxu0 0
    %4964 = vmatprep.subr.bf16.mxu0 0
    %4965 = vmatpush2.bf16.msra.mxu0 0
    %4966 = vmatprep.subr.bf16.mxu0 0
    %4967 = vmatpush2.bf16.msra.mxu0 0
    %4968 = vmatprep.subr.bf16.mxu0 0
    %4969 = vmatpush2.bf16.msra.mxu0 0
    %4970 = vmatprep.subr.bf16.mxu0 0
    %4971 = vmatpush2.bf16.msra.mxu0 0
    %4972 = vmatprep.subr.bf16.mxu0 0
    %4973 = vmatpush2.bf16.msra.mxu0 0
    %4974 = vmatprep.subr.bf16.mxu0 0
    %4975 = vmatpush2.bf16.msra.mxu0 0
    %4976 = vmatprep.subr.bf16.mxu0 0
    %4977 = vmatpush2.bf16.msra.mxu0 0
    %4978 = vmatprep.mubr.bf16.mxu0 0
    %4979 = vmatmul.mubr.bf16.gmra.mxu0 %v4712
    %v4980 = vpop.f32.mrf.mxu0
    %v4981 = vadd.f32 %v537, %v4980
    %v4982 = vpop.f32.mrf.mxu0
    %v4983 = vadd.f32 %v541, %v4982
    %v4984 = vpop.f32.mrf.mxu0
    %v4985 = vpop.f32.mrf.mxu0
    %4986 = vdwg.mxu0
    %4987 = vst [vmem:[#allocation2 + $0xe0] sm:$0xff] %v4940
    %4988 = vst [vmem:[#allocation2 + $0xe8] sm:$0xff] %v4942
    %4989 = vst [vmem:[#allocation2 + $0xf0] sm:$0xff] %v4981
    %4990 = vst [vmem:[#allocation2 + $0xf8] sm:$0xff] %v4983
    %v4991 = vld [vmem:[%s7] sm:$0x1]
    %v4992 = vld [vmem:[%s8] sm:$0x1]
    %v4993 = vld [vmem:[%s10] sm:$0xf]
    %v4994 = vpack.c.bf16 %v4691, %v4691
    %v4995 = vld [vmem:[#allocation2] sm:$0xff]
    %v4996 = vld [vmem:[#allocation2 + $0x8] sm:$0xff]
    %v4997 = vld [vmem:[#allocation2 + $0x10] sm:$0xff]
    %v4998 = vld [vmem:[#allocation2 + $0x18] sm:$0xff]
    %v4999 = vld [vmem:[#allocation12] sm:$0xff]
    %v5000 = vld [vmem:[#allocation12 + $0x8] sm:$0xff]
    %v5001 = vld [vmem:[#allocation12 + $0x10] sm:$0xff]
    %v5002 = vld [vmem:[#allocation12 + $0x18] sm:$0xff]
    %v5003 = vld [vmem:[#allocation12 + $0x20] sm:$0xff]
    %v5004 = vld [vmem:[#allocation12 + $0x28] sm:$0xff]
    %v5005 = vld [vmem:[#allocation12 + $0x30] sm:$0xff]
    %v5006 = vld [vmem:[#allocation12 + $0x38] sm:$0xff]
    %v5007 = vld [vmem:[#allocation12 + $0x40] sm:$0xff]
    %v5008 = vld [vmem:[#allocation12 + $0x48] sm:$0xff]
    %v5009 = vld [vmem:[#allocation12 + $0x50] sm:$0xff]
    %v5010 = vld [vmem:[#allocation12 + $0x58] sm:$0xff]
    %v5011 = vld [vmem:[#allocation12 + $0x60] sm:$0xff]
    %v5012 = vld [vmem:[#allocation12 + $0x68] sm:$0xff]
    %v5013 = vld [vmem:[#allocation12 + $0x70] sm:$0xff]
    %v5014 = vld [vmem:[#allocation12 + $0x78] sm:$0xff]
    %v5015 = vld [vmem:[#allocation12 + $0x80] sm:$0xff]
    %v5016 = vld [vmem:[#allocation12 + $0x88] sm:$0xff]
    %v5017 = vld [vmem:[#allocation12 + $0x90] sm:$0xff]
    %v5018 = vld [vmem:[#allocation12 + $0x98] sm:$0xff]
    %v5019 = vld [vmem:[#allocation12 + $0xa0] sm:$0xff]
    %v5020 = vld [vmem:[#allocation12 + $0xa8] sm:$0xff]
    %v5021 = vld [vmem:[#allocation12 + $0xb0] sm:$0xff]
    %v5022 = vld [vmem:[#allocation12 + $0xb8] sm:$0xff]
    %v5023 = vld [vmem:[#allocation12 + $0xc0] sm:$0xff]
    %v5024 = vld [vmem:[#allocation12 + $0xc8] sm:$0xff]
    %v5025 = vld [vmem:[#allocation12 + $0xd0] sm:$0xff]
    %v5026 = vld [vmem:[#allocation12 + $0xd8] sm:$0xff]
    %v5027 = vld [vmem:[#allocation12 + $0xe0] sm:$0xff]
    %v5028 = vld [vmem:[#allocation12 + $0xe8] sm:$0xff]
    %v5029 = vld [vmem:[#allocation12 + $0xf0] sm:$0xff]
    %v5030 = vld [vmem:[#allocation12 + $0xf8] sm:$0xff]
    %v5063 = vunpack.c.l.b16 %v4999
    %v5064 = vunpack.c.h.b16 %v4999
    %v5065 = vunpack.c.l.b16 %v5000
    %v5066 = vunpack.c.h.b16 %v5000
    %v5067 = vunpack.c.l.b16 %v5001
    %v5068 = vunpack.c.h.b16 %v5001
    %v5069 = vunpack.c.l.b16 %v5002
    %v5070 = vunpack.c.h.b16 %v5002
    %v5071 = vunpack.c.l.b16 %v5003
    %v5072 = vunpack.c.h.b16 %v5003
    %v5073 = vunpack.c.l.b16 %v5004
    %v5074 = vunpack.c.h.b16 %v5004
    %v5075 = vunpack.c.l.b16 %v5005
    %v5076 = vunpack.c.h.b16 %v5005
    %v5077 = vunpack.c.l.b16 %v5006
    %v5078 = vunpack.c.h.b16 %v5006
    %v5079 = vunpack.c.l.b16 %v5007
    %v5080 = vunpack.c.h.b16 %v5007
    %v5081 = vunpack.c.l.b16 %v5008
    %v5082 = vunpack.c.h.b16 %v5008
    %v5083 = vunpack.c.l.b16 %v5009
    %v5084 = vunpack.c.h.b16 %v5009
    %v5085 = vunpack.c.l.b16 %v5010
    %v5086 = vunpack.c.h.b16 %v5010
    %v5087 = vunpack.c.l.b16 %v5011
    %v5088 = vunpack.c.h.b16 %v5011
    %v5089 = vunpack.c.l.b16 %v5012
    %v5090 = vunpack.c.h.b16 %v5012
    %v5091 = vunpack.c.l.b16 %v5013
    %v5092 = vunpack.c.h.b16 %v5013
    %v5093 = vunpack.c.l.b16 %v5014
    %v5094 = vunpack.c.h.b16 %v5014
    %v5095 = vunpack.c.l.b16 %v5015
    %v5096 = vunpack.c.h.b16 %v5015
    %v5097 = vunpack.c.l.b16 %v5016
    %v5098 = vunpack.c.h.b16 %v5016
    %v5099 = vunpack.c.l.b16 %v5017
    %v5100 = vunpack.c.h.b16 %v5017
    %v5101 = vunpack.c.l.b16 %v5018
    %v5102 = vunpack.c.h.b16 %v5018
    %v5103 = vunpack.c.l.b16 %v5019
    %v5104 = vunpack.c.h.b16 %v5019
    %v5105 = vunpack.c.l.b16 %v5020
    %v5106 = vunpack.c.h.b16 %v5020
    %v5107 = vunpack.c.l.b16 %v5021
    %v5108 = vunpack.c.h.b16 %v5021
    %v5109 = vunpack.c.l.b16 %v5022
    %v5110 = vunpack.c.h.b16 %v5022
    %v5111 = vunpack.c.l.b16 %v5023
    %v5112 = vunpack.c.h.b16 %v5023
    %v5113 = vunpack.c.l.b16 %v5024
    %v5114 = vunpack.c.h.b16 %v5024
    %v5115 = vunpack.c.l.b16 %v5025
    %v5116 = vunpack.c.h.b16 %v5025
    %v5117 = vunpack.c.l.b16 %v5026
    %v5118 = vunpack.c.h.b16 %v5026
    %v5119 = vunpack.c.l.b16 %v5027
    %v5120 = vunpack.c.h.b16 %v5027
    %v5121 = vunpack.c.l.b16 %v5028
    %v5122 = vunpack.c.h.b16 %v5028
    %v5123 = vunpack.c.l.b16 %v5029
    %v5124 = vunpack.c.h.b16 %v5029
    %v5125 = vunpack.c.l.b16 %v5030
    %v5126 = vunpack.c.h.b16 %v5030
    %v5127 = vpack.c.b16 %v5067, %v5063
    %v5128 = vpack.c.b16 %v5068, %v5064
    %v5129 = vpack.c.b16 %v5069, %v5065
    %v5130 = vpack.c.b16 %v5070, %v5066
    %v5131 = vpack.c.b16 %v5075, %v5071
    %v5132 = vpack.c.b16 %v5076, %v5072
    %v5133 = vpack.c.b16 %v5077, %v5073
    %v5134 = vpack.c.b16 %v5078, %v5074
    %v5135 = vpack.c.b16 %v5083, %v5079
    %v5136 = vpack.c.b16 %v5084, %v5080
    %v5137 = vpack.c.b16 %v5085, %v5081
    %v5138 = vpack.c.b16 %v5086, %v5082
    %v5139 = vpack.c.b16 %v5091, %v5087
    %v5140 = vpack.c.b16 %v5092, %v5088
    %v5141 = vpack.c.b16 %v5093, %v5089
    %v5142 = vpack.c.b16 %v5094, %v5090
    %v5143 = vpack.c.b16 %v5099, %v5095
    %v5144 = vpack.c.b16 %v5100, %v5096
    %v5145 = vpack.c.b16 %v5101, %v5097
    %v5146 = vpack.c.b16 %v5102, %v5098
    %v5147 = vpack.c.b16 %v5107, %v5103
    %v5148 = vpack.c.b16 %v5108, %v5104
    %v5149 = vpack.c.b16 %v5109, %v5105
    %v5150 = vpack.c.b16 %v5110, %v5106
    %v5151 = vpack.c.b16 %v5115, %v5111
    %v5152 = vpack.c.b16 %v5116, %v5112
    %v5153 = vpack.c.b16 %v5117, %v5113
    %v5154 = vpack.c.b16 %v5118, %v5114
    %v5155 = vpack.c.b16 %v5123, %v5119
    %v5156 = vpack.c.b16 %v5124, %v5120
    %v5157 = vpack.c.b16 %v5125, %v5121
    %v5158 = vpack.c.b16 %v5126, %v5122
    %5191 = vmatprep.subr.bf16.mxu0 %v5156
    %5192 = vmatpush1.bf16.msra.mxu0 %v5155
    %5193 = vmatprep.subr.bf16.mxu0 %v5152
    %5194 = vmatpush1.bf16.msra.mxu0 %v5151
    %5195 = vmatprep.subr.bf16.mxu0 %v5148
    %5196 = vmatpush1.bf16.msra.mxu0 %v5147
    %5197 = vmatprep.subr.bf16.mxu0 %v5144
    %5198 = vmatpush1.bf16.msra.mxu0 %v5143
    %5199 = vmatprep.subr.bf16.mxu0 %v5140
    %5200 = vmatpush1.bf16.msra.mxu0 %v5139
    %5201 = vmatprep.subr.bf16.mxu0 %v5136
    %5202 = vmatpush1.bf16.msra.mxu0 %v5135
    %5203 = vmatprep.subr.bf16.mxu0 %v5132
    %5204 = vmatpush1.bf16.msra.mxu0 %v5131
    %5205 = vmatprep.subr.bf16.mxu0 %v5128
    %5206 = vmatpush1.bf16.msra.mxu0 %v5127
    %5207 = vmatprep.subr.bf16.mxu0 0
    %5208 = vmatpush2.bf16.msra.mxu0 0
    %5209 = vmatprep.subr.bf16.mxu0 0
    %5210 = vmatpush2.bf16.msra.mxu0 0
    %5211 = vmatprep.subr.bf16.mxu0 0
    %5212 = vmatpush2.bf16.msra.mxu0 0
    %5213 = vmatprep.subr.bf16.mxu0 0
    %5214 = vmatpush2.bf16.msra.mxu0 0
    %5215 = vmatprep.subr.bf16.mxu0 0
    %5216 = vmatpush2.bf16.msra.mxu0 0
    %5217 = vmatprep.subr.bf16.mxu0 0
    %5218 = vmatpush2.bf16.msra.mxu0 0
    %5219 = vmatprep.subr.bf16.mxu0 0
    %5220 = vmatpush2.bf16.msra.mxu0 0
    %5221 = vmatprep.subr.bf16.mxu0 0
    %5222 = vmatpush2.bf16.msra.mxu0 0
    %5223 = vmatprep.mubr.bf16.mxu0 0
    %5224 = vmatmul.mubr.bf16.gmra.mxu0 %v4994
    %v5225 = vpop.f32.mrf.mxu0
    %v5226 = vadd.f32 0.0, %v5225
    %v5227 = vpop.f32.mrf.mxu0
    %v5228 = vadd.f32 0.0, %v5227
    %v5229 = vpop.f32.mrf.mxu0
    %v5230 = vpop.f32.mrf.mxu0
    %5231 = vdwg.mxu0
    %5232 = vmatprep.subr.bf16.mxu0 %v5158
    %5233 = vmatpush1.bf16.msra.mxu0 %v5157
    %5234 = vmatprep.subr.bf16.mxu0 %v5154
    %5235 = vmatpush1.bf16.msra.mxu0 %v5153
    %5236 = vmatprep.subr.bf16.mxu0 %v5150
    %5237 = vmatpush1.bf16.msra.mxu0 %v5149
    %5238 = vmatprep.subr.bf16.mxu0 %v5146
    %5239 = vmatpush1.bf16.msra.mxu0 %v5145
    %5240 = vmatprep.subr.bf16.mxu0 %v5142
    %5241 = vmatpush1.bf16.msra.mxu0 %v5141
    %5242 = vmatprep.subr.bf16.mxu0 %v5138
    %5243 = vmatpush1.bf16.msra.mxu0 %v5137
    %5244 = vmatprep.subr.bf16.mxu0 %v5134
    %5245 = vmatpush1.bf16.msra.mxu0 %v5133
    %5246 = vmatprep.subr.bf16.mxu0 %v5130
    %5247 = vmatpush1.bf16.msra.mxu0 %v5129
    %5248 = vmatprep.subr.bf16.mxu0 0
    %5249 = vmatpush2.bf16.msra.mxu0 0
    %5250 = vmatprep.subr.bf16.mxu0 0
    %5251 = vmatpush2.bf16.msra.mxu0 0
    %5252 = vmatprep.subr.bf16.mxu0 0
    %5253 = vmatpush2.bf16.msra.mxu0 0
    %5254 = vmatprep.subr.bf16.mxu0 0
    %5255 = vmatpush2.bf16.msra.mxu0 0
    %5256 = vmatprep.subr.bf16.mxu0 0
    %5257 = vmatpush2.bf16.msra.mxu0 0
    %5258 = vmatprep.subr.bf16.mxu0 0
    %5259 = vmatpush2.bf16.msra.mxu0 0
    %5260 = vmatprep.subr.bf16.mxu0 0
    %5261 = vmatpush2.bf16.msra.mxu0 0
    %5262 = vmatprep.subr.bf16.mxu0 0
    %5263 = vmatpush2.bf16.msra.mxu0 0
    %5264 = vmatprep.mubr.bf16.mxu0 0
    %5265 = vmatmul.mubr.bf16.gmra.mxu0 %v4994
    %v5266 = vpop.f32.mrf.mxu0
    %v5267 = vadd.f32 0.0, %v5266
    %v5268 = vpop.f32.mrf.mxu0
    %v5269 = vadd.f32 0.0, %v5268
    %v5270 = vpop.f32.mrf.mxu0
    %v5271 = vpop.f32.mrf.mxu0
    %5272 = vdwg.mxu0
    %v5273 = vadd.f32 %v4995, %v5226
    %v5274 = vadd.f32 %v4996, %v5228
    %v5275 = vadd.f32 %v4997, %v5267
    %v5276 = vadd.f32 %v4998, %v5269
    %v5277 = vmul.f32 %v5273, 0.5
    %v5278 = vmul.f32 %v5274, 0.5
    %v5279 = vmul.f32 %v5275, 0.5
    %v5280 = vtanh.pop %v5277
    %v5281 = vtanh.pop %v5278
    %v5282 = vtanh.pop %v5279
    %v5283 = vmul.f32 %v5280, 0.5
    %v5284 = vmul.f32 %v5281, 0.5
    %v5285 = vmul.f32 %v5282, 0.5
    %v5286 = vadd.f32 %v5283, 0.5
    %v5287 = vadd.f32 %v5284, 0.5
    %v5288 = vadd.f32 %v5285, 0.5
    %v5289 = vtanh.pop %v5276
    %v5290 = vmul.f32 %v5287, %v4689
    %v5291 = vmul.f32 %v5286, %v5289
    %v5292 = vadd.f32 %v5290, %v5291
    %v5293 = vtanh.pop %v5292
    %v5294 = vmul.f32 %v5288, %v5293
    %v5295 = vpack.c.bf16 %v5294, %v5294
    %5296 = vadd.xlane.f32.xlu0 %v5294
    %v5297 = vpop.xlane.xlu0 %5296
    %v5298 = vmul.f32 %v5297, %v461
    %v5299 = vmul.f32 %v5294, %v5294
    %5300 = vadd.xlane.f32.xlu0 %v5299
    %v5301 = vpop.xlane.xlu0 %5300
    %v5302 = vmul.f32 %v5301, %v461
    %v5303 = vmul.f32 %v5298, %v5298
    %v5304 = vsub.f32 %v5302, %v5303
    %v5305 = vsub.f32 %v5294, %v5298
    %v5306 = vadd.f32 %v5304, 1e-05
    %v5307 = vrsqrt.pop %v5306
    %v5308 = vmul.f32 %v5305, %v5307
    %v5310 = vlaneseq
    %v5311 = vshrl.u32 %v5310, 7
    %v5312 = vsub.s32 0, %v5311
    %v5313 = vrot.slane %v4991, %v5312
    %v5315 = vmul.f32 %v5308, %v5313
    %v5317 = vlaneseq
    %v5318 = vshrl.u32 %v5317, 7
    %v5319 = vsub.s32 0, %v5318
    %v5320 = vrot.slane %v4992, %v5319
    %v5322 = vadd.f32 %v5315, %v5320
    %v5323 = vmul.f32 %v5322, 0.5
    %v5324 = vtanh.pop %v5323
    %v5325 = vmul.f32 %v5324, 0.5
    %v5326 = vadd.f32 %v5325, 0.5
    %v5327 = vmul.f32 %v5322, %v5326
    %v5328 = vpack.c.bf16 %v5327, %v5327
    %v5329 = vld [vmem:[#allocation13] sm:$0xff]
    %v5330 = vld [vmem:[#allocation13 + $0x8] sm:$0xff]
    %v5331 = vld [vmem:[#allocation13 + $0x10] sm:$0xff]
    %v5332 = vld [vmem:[#allocation13 + $0x18] sm:$0xff]
    %v5333 = vld [vmem:[#allocation13 + $0x20] sm:$0xff]
    %v5334 = vld [vmem:[#allocation13 + $0x28] sm:$0xff]
    %v5335 = vld [vmem:[#allocation13 + $0x30] sm:$0xff]
    %v5336 = vld [vmem:[#allocation13 + $0x38] sm:$0xff]
    %v5337 = vld [vmem:[#allocation13 + $0x40] sm:$0xff]
    %v5338 = vld [vmem:[#allocation13 + $0x48] sm:$0xff]
    %v5339 = vld [vmem:[#allocation13 + $0x50] sm:$0xff]
    %v5340 = vld [vmem:[#allocation13 + $0x58] sm:$0xff]
    %v5341 = vld [vmem:[#allocation13 + $0x60] sm:$0xff]
    %v5342 = vld [vmem:[#allocation13 + $0x68] sm:$0xff]
    %v5343 = vld [vmem:[#allocation13 + $0x70] sm:$0xff]
    %v5344 = vld [vmem:[#allocation13 + $0x78] sm:$0xff]
    %v5345 = vld [vmem:[#allocation13 + $0x80] sm:$0xff]
    %v5346 = vld [vmem:[#allocation13 + $0x88] sm:$0xff]
    %v5347 = vld [vmem:[#allocation13 + $0x90] sm:$0xff]
    %v5348 = vld [vmem:[#allocation13 + $0x98] sm:$0xff]
    %v5349 = vld [vmem:[#allocation13 + $0xa0] sm:$0xff]
    %v5350 = vld [vmem:[#allocation13 + $0xa8] sm:$0xff]
    %v5351 = vld [vmem:[#allocation13 + $0xb0] sm:$0xff]
    %v5352 = vld [vmem:[#allocation13 + $0xb8] sm:$0xff]
    %v5353 = vld [vmem:[#allocation13 + $0xc0] sm:$0xff]
    %v5354 = vld [vmem:[#allocation13 + $0xc8] sm:$0xff]
    %v5355 = vld [vmem:[#allocation13 + $0xd0] sm:$0xff]
    %v5356 = vld [vmem:[#allocation13 + $0xd8] sm:$0xff]
    %v5357 = vld [vmem:[#allocation13 + $0xe0] sm:$0xff]
    %v5358 = vld [vmem:[#allocation13 + $0xe8] sm:$0xff]
    %v5359 = vld [vmem:[#allocation13 + $0xf0] sm:$0xff]
    %v5360 = vld [vmem:[#allocation13 + $0xf8] sm:$0xff]
    %v5362 = vlaneseq
    %v5363 = vshrl.u32 %v5362, 7
    %v5364 = vsub.s32 0, %v5363
    %v5365 = vrot.slane %v4993, %v5364
    %v5366 = vlaneseq
    %v5367 = vshrl.u32 %v5366, 7
    %v5368 = vsub.s32 1, %v5367
    %v5369 = vrot.slane %v4993, %v5368
    %v5370 = vlaneseq
    %v5371 = vshrl.u32 %v5370, 7
    %v5372 = vsub.s32 2, %v5371
    %v5373 = vrot.slane %v4993, %v5372
    %v5374 = vlaneseq
    %v5375 = vshrl.u32 %v5374, 7
    %v5376 = vsub.s32 3, %v5375
    %v5377 = vrot.slane %v4993, %v5376
    %v5414 = vunpack.c.l.b16 %v5329
    %v5415 = vunpack.c.h.b16 %v5329
    %v5416 = vunpack.c.l.b16 %v5330
    %v5417 = vunpack.c.h.b16 %v5330
    %v5418 = vunpack.c.l.b16 %v5331
    %v5419 = vunpack.c.h.b16 %v5331
    %v5420 = vunpack.c.l.b16 %v5332
    %v5421 = vunpack.c.h.b16 %v5332
    %v5422 = vunpack.c.l.b16 %v5333
    %v5423 = vunpack.c.h.b16 %v5333
    %v5424 = vunpack.c.l.b16 %v5334
    %v5425 = vunpack.c.h.b16 %v5334
    %v5426 = vunpack.c.l.b16 %v5335
    %v5427 = vunpack.c.h.b16 %v5335
    %v5428 = vunpack.c.l.b16 %v5336
    %v5429 = vunpack.c.h.b16 %v5336
    %v5430 = vunpack.c.l.b16 %v5337
    %v5431 = vunpack.c.h.b16 %v5337
    %v5432 = vunpack.c.l.b16 %v5338
    %v5433 = vunpack.c.h.b16 %v5338
    %v5434 = vunpack.c.l.b16 %v5339
    %v5435 = vunpack.c.h.b16 %v5339
    %v5436 = vunpack.c.l.b16 %v5340
    %v5437 = vunpack.c.h.b16 %v5340
    %v5438 = vunpack.c.l.b16 %v5341
    %v5439 = vunpack.c.h.b16 %v5341
    %v5440 = vunpack.c.l.b16 %v5342
    %v5441 = vunpack.c.h.b16 %v5342
    %v5442 = vunpack.c.l.b16 %v5343
    %v5443 = vunpack.c.h.b16 %v5343
    %v5444 = vunpack.c.l.b16 %v5344
    %v5445 = vunpack.c.h.b16 %v5344
    %v5446 = vunpack.c.l.b16 %v5345
    %v5447 = vunpack.c.h.b16 %v5345
    %v5448 = vunpack.c.l.b16 %v5346
    %v5449 = vunpack.c.h.b16 %v5346
    %v5450 = vunpack.c.l.b16 %v5347
    %v5451 = vunpack.c.h.b16 %v5347
    %v5452 = vunpack.c.l.b16 %v5348
    %v5453 = vunpack.c.h.b16 %v5348
    %v5454 = vunpack.c.l.b16 %v5349
    %v5455 = vunpack.c.h.b16 %v5349
    %v5456 = vunpack.c.l.b16 %v5350
    %v5457 = vunpack.c.h.b16 %v5350
    %v5458 = vunpack.c.l.b16 %v5351
    %v5459 = vunpack.c.h.b16 %v5351
    %v5460 = vunpack.c.l.b16 %v5352
    %v5461 = vunpack.c.h.b16 %v5352
    %v5462 = vunpack.c.l.b16 %v5353
    %v5463 = vunpack.c.h.b16 %v5353
    %v5464 = vunpack.c.l.b16 %v5354
    %v5465 = vunpack.c.h.b16 %v5354
    %v5466 = vunpack.c.l.b16 %v5355
    %v5467 = vunpack.c.h.b16 %v5355
    %v5468 = vunpack.c.l.b16 %v5356
    %v5469 = vunpack.c.h.b16 %v5356
    %v5470 = vunpack.c.l.b16 %v5357
    %v5471 = vunpack.c.h.b16 %v5357
    %v5472 = vunpack.c.l.b16 %v5358
    %v5473 = vunpack.c.h.b16 %v5358
    %v5474 = vunpack.c.l.b16 %v5359
    %v5475 = vunpack.c.h.b16 %v5359
    %v5476 = vunpack.c.l.b16 %v5360
    %v5477 = vunpack.c.h.b16 %v5360
    %v5478 = vpack.c.b16 %v5418, %v5414
    %v5479 = vpack.c.b16 %v5419, %v5415
    %v5480 = vpack.c.b16 %v5420, %v5416
    %v5481 = vpack.c.b16 %v5421, %v5417
    %v5482 = vpack.c.b16 %v5426, %v5422
    %v5483 = vpack.c.b16 %v5427, %v5423
    %v5484 = vpack.c.b16 %v5428, %v5424
    %v5485 = vpack.c.b16 %v5429, %v5425
    %v5486 = vpack.c.b16 %v5434, %v5430
    %v5487 = vpack.c.b16 %v5435, %v5431
    %v5488 = vpack.c.b16 %v5436, %v5432
    %v5489 = vpack.c.b16 %v5437, %v5433
    %v5490 = vpack.c.b16 %v5442, %v5438
    %v5491 = vpack.c.b16 %v5443, %v5439
    %v5492 = vpack.c.b16 %v5444, %v5440
    %v5493 = vpack.c.b16 %v5445, %v5441
    %v5494 = vpack.c.b16 %v5450, %v5446
    %v5495 = vpack.c.b16 %v5451, %v5447
    %v5496 = vpack.c.b16 %v5452, %v5448
    %v5497 = vpack.c.b16 %v5453, %v5449
    %v5498 = vpack.c.b16 %v5458, %v5454
    %v5499 = vpack.c.b16 %v5459, %v5455
    %v5500 = vpack.c.b16 %v5460, %v5456
    %v5501 = vpack.c.b16 %v5461, %v5457
    %v5502 = vpack.c.b16 %v5466, %v5462
    %v5503 = vpack.c.b16 %v5467, %v5463
    %v5504 = vpack.c.b16 %v5468, %v5464
    %v5505 = vpack.c.b16 %v5469, %v5465
    %v5506 = vpack.c.b16 %v5474, %v5470
    %v5507 = vpack.c.b16 %v5475, %v5471
    %v5508 = vpack.c.b16 %v5476, %v5472
    %v5509 = vpack.c.b16 %v5477, %v5473
    %5542 = vmatprep.subr.bf16.mxu0 %v5507
    %5543 = vmatpush1.bf16.msra.mxu0 %v5506
    %5544 = vmatprep.subr.bf16.mxu0 %v5503
    %5545 = vmatpush1.bf16.msra.mxu0 %v5502
    %5546 = vmatprep.subr.bf16.mxu0 %v5499
    %5547 = vmatpush1.bf16.msra.mxu0 %v5498
    %5548 = vmatprep.subr.bf16.mxu0 %v5495
    %5549 = vmatpush1.bf16.msra.mxu0 %v5494
    %5550 = vmatprep.subr.bf16.mxu0 %v5491
    %5551 = vmatpush1.bf16.msra.mxu0 %v5490
    %5552 = vmatprep.subr.bf16.mxu0 %v5487
    %5553 = vmatpush1.bf16.msra.mxu0 %v5486
    %5554 = vmatprep.subr.bf16.mxu0 %v5483
    %5555 = vmatpush1.bf16.msra.mxu0 %v5482
    %5556 = vmatprep.subr.bf16.mxu0 %v5479
    %5557 = vmatpush1.bf16.msra.mxu0 %v5478
    %5558 = vmatprep.subr.bf16.mxu0 0
    %5559 = vmatpush2.bf16.msra.mxu0 0
    %5560 = vmatprep.subr.bf16.mxu0 0
    %5561 = vmatpush2.bf16.msra.mxu0 0
    %5562 = vmatprep.subr.bf16.mxu0 0
    %5563 = vmatpush2.bf16.msra.mxu0 0
    %5564 = vmatprep.subr.bf16.mxu0 0
    %5565 = vmatpush2.bf16.msra.mxu0 0
    %5566 = vmatprep.subr.bf16.mxu0 0
    %5567 = vmatpush2.bf16.msra.mxu0 0
    %5568 = vmatprep.subr.bf16.mxu0 0
    %5569 = vmatpush2.bf16.msra.mxu0 0
    %5570 = vmatprep.subr.bf16.mxu0 0
    %5571 = vmatpush2.bf16.msra.mxu0 0
    %5572 = vmatprep.subr.bf16.mxu0 0
    %5573 = vmatpush2.bf16.msra.mxu0 0
    %5574 = vmatprep.mubr.bf16.mxu0 0
    %5575 = vmatmul.mubr.bf16.gmra.mxu0 %v5328
    %v5576 = vpop.f32.mrf.mxu0
    %v5577 = vadd.f32 %v5365, %v5576
    %v5578 = vpop.f32.mrf.mxu0
    %v5579 = vadd.f32 %v5369, %v5578
    %v5580 = vpop.f32.mrf.mxu0
    %v5581 = vpop.f32.mrf.mxu0
    %5582 = vdwg.mxu0
    %5583 = vmatprep.subr.bf16.mxu0 %v5509
    %5584 = vmatpush1.bf16.msra.mxu0 %v5508
    %5585 = vmatprep.subr.bf16.mxu0 %v5505
    %5586 = vmatpush1.bf16.msra.mxu0 %v5504
    %5587 = vmatprep.subr.bf16.mxu0 %v5501
    %5588 = vmatpush1.bf16.msra.mxu0 %v5500
    %5589 = vmatprep.subr.bf16.mxu0 %v5497
    %5590 = vmatpush1.bf16.msra.mxu0 %v5496
    %5591 = vmatprep.subr.bf16.mxu0 %v5493
    %5592 = vmatpush1.bf16.msra.mxu0 %v5492
    %5593 = vmatprep.subr.bf16.mxu0 %v5489
    %5594 = vmatpush1.bf16.msra.mxu0 %v5488
    %5595 = vmatprep.subr.bf16.mxu0 %v5485
    %5596 = vmatpush1.bf16.msra.mxu0 %v5484
    %5597 = vmatprep.subr.bf16.mxu0 %v5481
    %5598 = vmatpush1.bf16.msra.mxu0 %v5480
    %5599 = vmatprep.subr.bf16.mxu0 0
    %5600 = vmatpush2.bf16.msra.mxu0 0
    %5601 = vmatprep.subr.bf16.mxu0 0
    %5602 = vmatpush2.bf16.msra.mxu0 0
    %5603 = vmatprep.subr.bf16.mxu0 0
    %5604 = vmatpush2.bf16.msra.mxu0 0
    %5605 = vmatprep.subr.bf16.mxu0 0
    %5606 = vmatpush2.bf16.msra.mxu0 0
    %5607 = vmatprep.subr.bf16.mxu0 0
    %5608 = vmatpush2.bf16.msra.mxu0 0
    %5609 = vmatprep.subr.bf16.mxu0 0
    %5610 = vmatpush2.bf16.msra.mxu0 0
    %5611 = vmatprep.subr.bf16.mxu0 0
    %5612 = vmatpush2.bf16.msra.mxu0 0
    %5613 = vmatprep.subr.bf16.mxu0 0
    %5614 = vmatpush2.bf16.msra.mxu0 0
    %5615 = vmatprep.mubr.bf16.mxu0 0
    %5616 = vmatmul.mubr.bf16.gmra.mxu0 %v5328
    %v5617 = vpop.f32.mrf.mxu0
    %v5618 = vadd.f32 %v5373, %v5617
    %v5619 = vpop.f32.mrf.mxu0
    %v5620 = vadd.f32 %v5377, %v5619
    %v5621 = vpop.f32.mrf.mxu0
    %v5622 = vpop.f32.mrf.mxu0
    %5623 = vdwg.mxu0
    %5624 = vst [vmem:[#allocation3] sm:$0xff] %v5577
    %5625 = vst [vmem:[#allocation3 + $0x8] sm:$0xff] %v5579
    %5626 = vst [vmem:[#allocation3 + $0x10] sm:$0xff] %v5618
    %5627 = vst [vmem:[#allocation3 + $0x18] sm:$0xff] %v5620
    %v5628 = vld [vmem:[#allocation2 + $0x20] sm:$0xff]
    %v5629 = vld [vmem:[#allocation2 + $0x28] sm:$0xff]
    %v5630 = vld [vmem:[#allocation2 + $0x30] sm:$0xff]
    %v5631 = vld [vmem:[#allocation2 + $0x38] sm:$0xff]
    %v5632 = vld [vmem:[#allocation12] sm:$0xff]
    %v5633 = vld [vmem:[#allocation12 + $0x8] sm:$0xff]
    %v5634 = vld [vmem:[#allocation12 + $0x10] sm:$0xff]
    %v5635 = vld [vmem:[#allocation12 + $0x18] sm:$0xff]
    %v5636 = vld [vmem:[#allocation12 + $0x20] sm:$0xff]
    %v5637 = vld [vmem:[#allocation12 + $0x28] sm:$0xff]
    %v5638 = vld [vmem:[#allocation12 + $0x30] sm:$0xff]
    %v5639 = vld [vmem:[#allocation12 + $0x38] sm:$0xff]
    %v5640 = vld [vmem:[#allocation12 + $0x40] sm:$0xff]
    %v5641 = vld [vmem:[#allocation12 + $0x48] sm:$0xff]
    %v5642 = vld [vmem:[#allocation12 + $0x50] sm:$0xff]
    %v5643 = vld [vmem:[#allocation12 + $0x58] sm:$0xff]
    %v5644 = vld [vmem:[#allocation12 + $0x60] sm:$0xff]
    %v5645 = vld [vmem:[#allocation12 + $0x68] sm:$0xff]
    %v5646 = vld [vmem:[#allocation12 + $0x70] sm:$0xff]
    %v5647 = vld [vmem:[#allocation12 + $0x78] sm:$0xff]
    %v5648 = vld [vmem:[#allocation12 + $0x80] sm:$0xff]
    %v5649 = vld [vmem:[#allocation12 + $0x88] sm:$0xff]
    %v5650 = vld [vmem:[#allocation12 + $0x90] sm:$0xff]
    %v5651 = vld [vmem:[#allocation12 + $0x98] sm:$0xff]
    %v5652 = vld [vmem:[#allocation12 + $0xa0] sm:$0xff]
    %v5653 = vld [vmem:[#allocation12 + $0xa8] sm:$0xff]
    %v5654 = vld [vmem:[#allocation12 + $0xb0] sm:$0xff]
    %v5655 = vld [vmem:[#allocation12 + $0xb8] sm:$0xff]
    %v5656 = vld [vmem:[#allocation12 + $0xc0] sm:$0xff]
    %v5657 = vld [vmem:[#allocation12 + $0xc8] sm:$0xff]
    %v5658 = vld [vmem:[#allocation12 + $0xd0] sm:$0xff]
    %v5659 = vld [vmem:[#allocation12 + $0xd8] sm:$0xff]
    %v5660 = vld [vmem:[#allocation12 + $0xe0] sm:$0xff]
    %v5661 = vld [vmem:[#allocation12 + $0xe8] sm:$0xff]
    %v5662 = vld [vmem:[#allocation12 + $0xf0] sm:$0xff]
    %v5663 = vld [vmem:[#allocation12 + $0xf8] sm:$0xff]
    %v5696 = vunpack.c.l.b16 %v5632
    %v5697 = vunpack.c.h.b16 %v5632
    %v5698 = vunpack.c.l.b16 %v5633
    %v5699 = vunpack.c.h.b16 %v5633
    %v5700 = vunpack.c.l.b16 %v5634
    %v5701 = vunpack.c.h.b16 %v5634
    %v5702 = vunpack.c.l.b16 %v5635
    %v5703 = vunpack.c.h.b16 %v5635
    %v5704 = vunpack.c.l.b16 %v5636
    %v5705 = vunpack.c.h.b16 %v5636
    %v5706 = vunpack.c.l.b16 %v5637
    %v5707 = vunpack.c.h.b16 %v5637
    %v5708 = vunpack.c.l.b16 %v5638
    %v5709 = vunpack.c.h.b16 %v5638
    %v5710 = vunpack.c.l.b16 %v5639
    %v5711 = vunpack.c.h.b16 %v5639
    %v5712 = vunpack.c.l.b16 %v5640
    %v5713 = vunpack.c.h.b16 %v5640
    %v5714 = vunpack.c.l.b16 %v5641
    %v5715 = vunpack.c.h.b16 %v5641
    %v5716 = vunpack.c.l.b16 %v5642
    %v5717 = vunpack.c.h.b16 %v5642
    %v5718 = vunpack.c.l.b16 %v5643
    %v5719 = vunpack.c.h.b16 %v5643
    %v5720 = vunpack.c.l.b16 %v5644
    %v5721 = vunpack.c.h.b16 %v5644
    %v5722 = vunpack.c.l.b16 %v5645
    %v5723 = vunpack.c.h.b16 %v5645
    %v5724 = vunpack.c.l.b16 %v5646
    %v5725 = vunpack.c.h.b16 %v5646
    %v5726 = vunpack.c.l.b16 %v5647
    %v5727 = vunpack.c.h.b16 %v5647
    %v5728 = vunpack.c.l.b16 %v5648
    %v5729 = vunpack.c.h.b16 %v5648
    %v5730 = vunpack.c.l.b16 %v5649
    %v5731 = vunpack.c.h.b16 %v5649
    %v5732 = vunpack.c.l.b16 %v5650
    %v5733 = vunpack.c.h.b16 %v5650
    %v5734 = vunpack.c.l.b16 %v5651
    %v5735 = vunpack.c.h.b16 %v5651
    %v5736 = vunpack.c.l.b16 %v5652
    %v5737 = vunpack.c.h.b16 %v5652
    %v5738 = vunpack.c.l.b16 %v5653
    %v5739 = vunpack.c.h.b16 %v5653
    %v5740 = vunpack.c.l.b16 %v5654
    %v5741 = vunpack.c.h.b16 %v5654
    %v5742 = vunpack.c.l.b16 %v5655
    %v5743 = vunpack.c.h.b16 %v5655
    %v5744 = vunpack.c.l.b16 %v5656
    %v5745 = vunpack.c.h.b16 %v5656
    %v5746 = vunpack.c.l.b16 %v5657
    %v5747 = vunpack.c.h.b16 %v5657
    %v5748 = vunpack.c.l.b16 %v5658
    %v5749 = vunpack.c.h.b16 %v5658
    %v5750 = vunpack.c.l.b16 %v5659
    %v5751 = vunpack.c.h.b16 %v5659
    %v5752 = vunpack.c.l.b16 %v5660
    %v5753 = vunpack.c.h.b16 %v5660
    %v5754 = vunpack.c.l.b16 %v5661
    %v5755 = vunpack.c.h.b16 %v5661
    %v5756 = vunpack.c.l.b16 %v5662
    %v5757 = vunpack.c.h.b16 %v5662
    %v5758 = vunpack.c.l.b16 %v5663
    %v5759 = vunpack.c.h.b16 %v5663
    %v5760 = vpack.c.b16 %v5700, %v5696
    %v5761 = vpack.c.b16 %v5701, %v5697
    %v5762 = vpack.c.b16 %v5702, %v5698
    %v5763 = vpack.c.b16 %v5703, %v5699
    %v5764 = vpack.c.b16 %v5708, %v5704
    %v5765 = vpack.c.b16 %v5709, %v5705
    %v5766 = vpack.c.b16 %v5710, %v5706
    %v5767 = vpack.c.b16 %v5711, %v5707
    %v5768 = vpack.c.b16 %v5716, %v5712
    %v5769 = vpack.c.b16 %v5717, %v5713
    %v5770 = vpack.c.b16 %v5718, %v5714
    %v5771 = vpack.c.b16 %v5719, %v5715
    %v5772 = vpack.c.b16 %v5724, %v5720
    %v5773 = vpack.c.b16 %v5725, %v5721
    %v5774 = vpack.c.b16 %v5726, %v5722
    %v5775 = vpack.c.b16 %v5727, %v5723
    %v5776 = vpack.c.b16 %v5732, %v5728
    %v5777 = vpack.c.b16 %v5733, %v5729
    %v5778 = vpack.c.b16 %v5734, %v5730
    %v5779 = vpack.c.b16 %v5735, %v5731
    %v5780 = vpack.c.b16 %v5740, %v5736
    %v5781 = vpack.c.b16 %v5741, %v5737
    %v5782 = vpack.c.b16 %v5742, %v5738
    %v5783 = vpack.c.b16 %v5743, %v5739
    %v5784 = vpack.c.b16 %v5748, %v5744
    %v5785 = vpack.c.b16 %v5749, %v5745
    %v5786 = vpack.c.b16 %v5750, %v5746
    %v5787 = vpack.c.b16 %v5751, %v5747
    %v5788 = vpack.c.b16 %v5756, %v5752
    %v5789 = vpack.c.b16 %v5757, %v5753
    %v5790 = vpack.c.b16 %v5758, %v5754
    %v5791 = vpack.c.b16 %v5759, %v5755
    %5824 = vmatprep.subr.bf16.mxu0 %v5789
    %5825 = vmatpush1.bf16.msra.mxu0 %v5788
    %5826 = vmatprep.subr.bf16.mxu0 %v5785
    %5827 = vmatpush1.bf16.msra.mxu0 %v5784
    %5828 = vmatprep.subr.bf16.mxu0 %v5781
    %5829 = vmatpush1.bf16.msra.mxu0 %v5780
    %5830 = vmatprep.subr.bf16.mxu0 %v5777
    %5831 = vmatpush1.bf16.msra.mxu0 %v5776
    %5832 = vmatprep.subr.bf16.mxu0 %v5773
    %5833 = vmatpush1.bf16.msra.mxu0 %v5772
    %5834 = vmatprep.subr.bf16.mxu0 %v5769
    %5835 = vmatpush1.bf16.msra.mxu0 %v5768
    %5836 = vmatprep.subr.bf16.mxu0 %v5765
    %5837 = vmatpush1.bf16.msra.mxu0 %v5764
    %5838 = vmatprep.subr.bf16.mxu0 %v5761
    %5839 = vmatpush1.bf16.msra.mxu0 %v5760
    %5840 = vmatprep.subr.bf16.mxu0 0
    %5841 = vmatpush2.bf16.msra.mxu0 0
    %5842 = vmatprep.subr.bf16.mxu0 0
    %5843 = vmatpush2.bf16.msra.mxu0 0
    %5844 = vmatprep.subr.bf16.mxu0 0
    %5845 = vmatpush2.bf16.msra.mxu0 0
    %5846 = vmatprep.subr.bf16.mxu0 0
    %5847 = vmatpush2.bf16.msra.mxu0 0
    %5848 = vmatprep.subr.bf16.mxu0 0
    %5849 = vmatpush2.bf16.msra.mxu0 0
    %5850 = vmatprep.subr.bf16.mxu0 0
    %5851 = vmatpush2.bf16.msra.mxu0 0
    %5852 = vmatprep.subr.bf16.mxu0 0
    %5853 = vmatpush2.bf16.msra.mxu0 0
    %5854 = vmatprep.subr.bf16.mxu0 0
    %5855 = vmatpush2.bf16.msra.mxu0 0
    %5856 = vmatprep.mubr.bf16.mxu0 0
    %5857 = vmatmul.mubr.bf16.gmra.mxu0 %v5295
    %v5858 = vpop.f32.mrf.mxu0
    %v5859 = vadd.f32 0.0, %v5858
    %v5860 = vpop.f32.mrf.mxu0
    %v5861 = vadd.f32 0.0, %v5860
    %v5862 = vpop.f32.mrf.mxu0
    %v5863 = vpop.f32.mrf.mxu0
    %5864 = vdwg.mxu0
    %5865 = vmatprep.subr.bf16.mxu0 %v5791
    %5866 = vmatpush1.bf16.msra.mxu0 %v5790
    %5867 = vmatprep.subr.bf16.mxu0 %v5787
    %5868 = vmatpush1.bf16.msra.mxu0 %v5786
    %5869 = vmatprep.subr.bf16.mxu0 %v5783
    %5870 = vmatpush1.bf16.msra.mxu0 %v5782
    %5871 = vmatprep.subr.bf16.mxu0 %v5779
    %5872 = vmatpush1.bf16.msra.mxu0 %v5778
    %5873 = vmatprep.subr.bf16.mxu0 %v5775
    %5874 = vmatpush1.bf16.msra.mxu0 %v5774
    %5875 = vmatprep.subr.bf16.mxu0 %v5771
    %5876 = vmatpush1.bf16.msra.mxu0 %v5770
    %5877 = vmatprep.subr.bf16.mxu0 %v5767
    %5878 = vmatpush1.bf16.msra.mxu0 %v5766
    %5879 = vmatprep.subr.bf16.mxu0 %v5763
    %5880 = vmatpush1.bf16.msra.mxu0 %v5762
    %5881 = vmatprep.subr.bf16.mxu0 0
    %5882 = vmatpush2.bf16.msra.mxu0 0
    %5883 = vmatprep.subr.bf16.mxu0 0
    %5884 = vmatpush2.bf16.msra.mxu0 0
    %5885 = vmatprep.subr.bf16.mxu0 0
    %5886 = vmatpush2.bf16.msra.mxu0 0
    %5887 = vmatprep.subr.bf16.mxu0 0
    %5888 = vmatpush2.bf16.msra.mxu0 0
    %5889 = vmatprep.subr.bf16.mxu0 0
    %5890 = vmatpush2.bf16.msra.mxu0 0
    %5891 = vmatprep.subr.bf16.mxu0 0
    %5892 = vmatpush2.bf16.msra.mxu0 0
    %5893 = vmatprep.subr.bf16.mxu0 0
    %5894 = vmatpush2.bf16.msra.mxu0 0
    %5895 = vmatprep.subr.bf16.mxu0 0
    %5896 = vmatpush2.bf16.msra.mxu0 0
    %5897 = vmatprep.mubr.bf16.mxu0 0
    %5898 = vmatmul.mubr.bf16.gmra.mxu0 %v5295
    %v5899 = vpop.f32.mrf.mxu0
    %v5900 = vadd.f32 0.0, %v5899
    %v5901 = vpop.f32.mrf.mxu0
    %v5902 = vadd.f32 0.0, %v5901
    %v5903 = vpop.f32.mrf.mxu0
    %v5904 = vpop.f32.mrf.mxu0
    %5905 = vdwg.mxu0
    %v5906 = vadd.f32 %v5628, %v5859
    %v5907 = vadd.f32 %v5629, %v5861
    %v5908 = vadd.f32 %v5630, %v5900
    %v5909 = vadd.f32 %v5631, %v5902
    %v5910 = vmul.f32 %v5906, 0.5
    %v5911 = vmul.f32 %v5907, 0.5
    %v5912 = vmul.f32 %v5908, 0.5
    %v5913 = vtanh.pop %v5910
    %v5914 = vtanh.pop %v5911
    %v5915 = vtanh.pop %v5912
    %v5916 = vmul.f32 %v5913, 0.5
    %v5917 = vmul.f32 %v5914, 0.5
    %v5918 = vmul.f32 %v5915, 0.5
    %v5919 = vadd.f32 %v5916, 0.5
    %v5920 = vadd.f32 %v5917, 0.5
    %v5921 = vadd.f32 %v5918, 0.5
    %v5922 = vtanh.pop %v5909
    %v5923 = vmul.f32 %v5920, %v5292
    %v5924 = vmul.f32 %v5919, %v5922
    %v5925 = vadd.f32 %v5923, %v5924
    %v5926 = vtanh.pop %v5925
    %v5927 = vmul.f32 %v5921, %v5926
    %v5928 = vpack.c.bf16 %v5927, %v5927
    %5929 = vadd.xlane.f32.xlu0 %v5927
    %v5930 = vpop.xlane.xlu0 %5929
    %v5931 = vmul.f32 %v5930, %v461
    %v5932 = vmul.f32 %v5927, %v5927
    %5933 = vadd.xlane.f32.xlu0 %v5932
    %v5934 = vpop.xlane.xlu0 %5933
    %v5935 = vmul.f32 %v5934, %v461
    %v5936 = vmul.f32 %v5931, %v5931
    %v5937 = vsub.f32 %v5935, %v5936
    %v5938 = vsub.f32 %v5927, %v5931
    %v5939 = vadd.f32 %v5937, 1e-05
    %v5940 = vrsqrt.pop %v5939
    %v5941 = vmul.f32 %v5938, %v5940
    %v5942 = vmul.f32 %v5941, %v5313
    %v5943 = vadd.f32 %v5942, %v5320
    %v5944 = vmul.f32 %v5943, 0.5
    %v5945 = vtanh.pop %v5944
    %v5946 = vmul.f32 %v5945, 0.5
    %v5947 = vadd.f32 %v5946, 0.5
    %v5948 = vmul.f32 %v5943, %v5947
    %v5949 = vpack.c.bf16 %v5948, %v5948
    %v5950 = vld [vmem:[#allocation13] sm:$0xff]
    %v5951 = vld [vmem:[#allocation13 + $0x8] sm:$0xff]
    %v5952 = vld [vmem:[#allocation13 + $0x10] sm:$0xff]
    %v5953 = vld [vmem:[#allocation13 + $0x18] sm:$0xff]
    %v5954 = vld [vmem:[#allocation13 + $0x20] sm:$0xff]
    %v5955 = vld [vmem:[#allocation13 + $0x28] sm:$0xff]
    %v5956 = vld [vmem:[#allocation13 + $0x30] sm:$0xff]
    %v5957 = vld [vmem:[#allocation13 + $0x38] sm:$0xff]
    %v5958 = vld [vmem:[#allocation13 + $0x40] sm:$0xff]
    %v5959 = vld [vmem:[#allocation13 + $0x48] sm:$0xff]
    %v5960 = vld [vmem:[#allocation13 + $0x50] sm:$0xff]
    %v5961 = vld [vmem:[#allocation13 + $0x58] sm:$0xff]
    %v5962 = vld [vmem:[#allocation13 + $0x60] sm:$0xff]
    %v5963 = vld [vmem:[#allocation13 + $0x68] sm:$0xff]
    %v5964 = vld [vmem:[#allocation13 + $0x70] sm:$0xff]
    %v5965 = vld [vmem:[#allocation13 + $0x78] sm:$0xff]
    %v5966 = vld [vmem:[#allocation13 + $0x80] sm:$0xff]
    %v5967 = vld [vmem:[#allocation13 + $0x88] sm:$0xff]
    %v5968 = vld [vmem:[#allocation13 + $0x90] sm:$0xff]
    %v5969 = vld [vmem:[#allocation13 + $0x98] sm:$0xff]
    %v5970 = vld [vmem:[#allocation13 + $0xa0] sm:$0xff]
    %v5971 = vld [vmem:[#allocation13 + $0xa8] sm:$0xff]
    %v5972 = vld [vmem:[#allocation13 + $0xb0] sm:$0xff]
    %v5973 = vld [vmem:[#allocation13 + $0xb8] sm:$0xff]
    %v5974 = vld [vmem:[#allocation13 + $0xc0] sm:$0xff]
    %v5975 = vld [vmem:[#allocation13 + $0xc8] sm:$0xff]
    %v5976 = vld [vmem:[#allocation13 + $0xd0] sm:$0xff]
    %v5977 = vld [vmem:[#allocation13 + $0xd8] sm:$0xff]
    %v5978 = vld [vmem:[#allocation13 + $0xe0] sm:$0xff]
    %v5979 = vld [vmem:[#allocation13 + $0xe8] sm:$0xff]
    %v5980 = vld [vmem:[#allocation13 + $0xf0] sm:$0xff]
    %v5981 = vld [vmem:[#allocation13 + $0xf8] sm:$0xff]
    %v6014 = vunpack.c.l.b16 %v5950
    %v6015 = vunpack.c.h.b16 %v5950
    %v6016 = vunpack.c.l.b16 %v5951
    %v6017 = vunpack.c.h.b16 %v5951
    %v6018 = vunpack.c.l.b16 %v5952
    %v6019 = vunpack.c.h.b16 %v5952
    %v6020 = vunpack.c.l.b16 %v5953
    %v6021 = vunpack.c.h.b16 %v5953
    %v6022 = vunpack.c.l.b16 %v5954
    %v6023 = vunpack.c.h.b16 %v5954
    %v6024 = vunpack.c.l.b16 %v5955
    %v6025 = vunpack.c.h.b16 %v5955
    %v6026 = vunpack.c.l.b16 %v5956
    %v6027 = vunpack.c.h.b16 %v5956
    %v6028 = vunpack.c.l.b16 %v5957
    %v6029 = vunpack.c.h.b16 %v5957
    %v6030 = vunpack.c.l.b16 %v5958
    %v6031 = vunpack.c.h.b16 %v5958
    %v6032 = vunpack.c.l.b16 %v5959
    %v6033 = vunpack.c.h.b16 %v5959
    %v6034 = vunpack.c.l.b16 %v5960
    %v6035 = vunpack.c.h.b16 %v5960
    %v6036 = vunpack.c.l.b16 %v5961
    %v6037 = vunpack.c.h.b16 %v5961
    %v6038 = vunpack.c.l.b16 %v5962
    %v6039 = vunpack.c.h.b16 %v5962
    %v6040 = vunpack.c.l.b16 %v5963
    %v6041 = vunpack.c.h.b16 %v5963
    %v6042 = vunpack.c.l.b16 %v5964
    %v6043 = vunpack.c.h.b16 %v5964
    %v6044 = vunpack.c.l.b16 %v5965
    %v6045 = vunpack.c.h.b16 %v5965
    %v6046 = vunpack.c.l.b16 %v5966
    %v6047 = vunpack.c.h.b16 %v5966
    %v6048 = vunpack.c.l.b16 %v5967
    %v6049 = vunpack.c.h.b16 %v5967
    %v6050 = vunpack.c.l.b16 %v5968
    %v6051 = vunpack.c.h.b16 %v5968
    %v6052 = vunpack.c.l.b16 %v5969
    %v6053 = vunpack.c.h.b16 %v5969
    %v6054 = vunpack.c.l.b16 %v5970
    %v6055 = vunpack.c.h.b16 %v5970
    %v6056 = vunpack.c.l.b16 %v5971
    %v6057 = vunpack.c.h.b16 %v5971
    %v6058 = vunpack.c.l.b16 %v5972
    %v6059 = vunpack.c.h.b16 %v5972
    %v6060 = vunpack.c.l.b16 %v5973
    %v6061 = vunpack.c.h.b16 %v5973
    %v6062 = vunpack.c.l.b16 %v5974
    %v6063 = vunpack.c.h.b16 %v5974
    %v6064 = vunpack.c.l.b16 %v5975
    %v6065 = vunpack.c.h.b16 %v5975
    %v6066 = vunpack.c.l.b16 %v5976
    %v6067 = vunpack.c.h.b16 %v5976
    %v6068 = vunpack.c.l.b16 %v5977
    %v6069 = vunpack.c.h.b16 %v5977
    %v6070 = vunpack.c.l.b16 %v5978
    %v6071 = vunpack.c.h.b16 %v5978
    %v6072 = vunpack.c.l.b16 %v5979
    %v6073 = vunpack.c.h.b16 %v5979
    %v6074 = vunpack.c.l.b16 %v5980
    %v6075 = vunpack.c.h.b16 %v5980
    %v6076 = vunpack.c.l.b16 %v5981
    %v6077 = vunpack.c.h.b16 %v5981
    %v6078 = vpack.c.b16 %v6018, %v6014
    %v6079 = vpack.c.b16 %v6019, %v6015
    %v6080 = vpack.c.b16 %v6020, %v6016
    %v6081 = vpack.c.b16 %v6021, %v6017
    %v6082 = vpack.c.b16 %v6026, %v6022
    %v6083 = vpack.c.b16 %v6027, %v6023
    %v6084 = vpack.c.b16 %v6028, %v6024
    %v6085 = vpack.c.b16 %v6029, %v6025
    %v6086 = vpack.c.b16 %v6034, %v6030
    %v6087 = vpack.c.b16 %v6035, %v6031
    %v6088 = vpack.c.b16 %v6036, %v6032
    %v6089 = vpack.c.b16 %v6037, %v6033
    %v6090 = vpack.c.b16 %v6042, %v6038
    %v6091 = vpack.c.b16 %v6043, %v6039
    %v6092 = vpack.c.b16 %v6044, %v6040
    %v6093 = vpack.c.b16 %v6045, %v6041
    %v6094 = vpack.c.b16 %v6050, %v6046
    %v6095 = vpack.c.b16 %v6051, %v6047
    %v6096 = vpack.c.b16 %v6052, %v6048
    %v6097 = vpack.c.b16 %v6053, %v6049
    %v6098 = vpack.c.b16 %v6058, %v6054
    %v6099 = vpack.c.b16 %v6059, %v6055
    %v6100 = vpack.c.b16 %v6060, %v6056
    %v6101 = vpack.c.b16 %v6061, %v6057
    %v6102 = vpack.c.b16 %v6066, %v6062
    %v6103 = vpack.c.b16 %v6067, %v6063
    %v6104 = vpack.c.b16 %v6068, %v6064
    %v6105 = vpack.c.b16 %v6069, %v6065
    %v6106 = vpack.c.b16 %v6074, %v6070
    %v6107 = vpack.c.b16 %v6075, %v6071
    %v6108 = vpack.c.b16 %v6076, %v6072
    %v6109 = vpack.c.b16 %v6077, %v6073
    %6142 = vmatprep.subr.bf16.mxu0 %v6107
    %6143 = vmatpush1.bf16.msra.mxu0 %v6106
    %6144 = vmatprep.subr.bf16.mxu0 %v6103
    %6145 = vmatpush1.bf16.msra.mxu0 %v6102
    %6146 = vmatprep.subr.bf16.mxu0 %v6099
    %6147 = vmatpush1.bf16.msra.mxu0 %v6098
    %6148 = vmatprep.subr.bf16.mxu0 %v6095
    %6149 = vmatpush1.bf16.msra.mxu0 %v6094
    %6150 = vmatprep.subr.bf16.mxu0 %v6091
    %6151 = vmatpush1.bf16.msra.mxu0 %v6090
    %6152 = vmatprep.subr.bf16.mxu0 %v6087
    %6153 = vmatpush1.bf16.msra.mxu0 %v6086
    %6154 = vmatprep.subr.bf16.mxu0 %v6083
    %6155 = vmatpush1.bf16.msra.mxu0 %v6082
    %6156 = vmatprep.subr.bf16.mxu0 %v6079
    %6157 = vmatpush1.bf16.msra.mxu0 %v6078
    %6158 = vmatprep.subr.bf16.mxu0 0
    %6159 = vmatpush2.bf16.msra.mxu0 0
    %6160 = vmatprep.subr.bf16.mxu0 0
    %6161 = vmatpush2.bf16.msra.mxu0 0
    %6162 = vmatprep.subr.bf16.mxu0 0
    %6163 = vmatpush2.bf16.msra.mxu0 0
    %6164 = vmatprep.subr.bf16.mxu0 0
    %6165 = vmatpush2.bf16.msra.mxu0 0
    %6166 = vmatprep.subr.bf16.mxu0 0
    %6167 = vmatpush2.bf16.msra.mxu0 0
    %6168 = vmatprep.subr.bf16.mxu0 0
    %6169 = vmatpush2.bf16.msra.mxu0 0
    %6170 = vmatprep.subr.bf16.mxu0 0
    %6171 = vmatpush2.bf16.msra.mxu0 0
    %6172 = vmatprep.subr.bf16.mxu0 0
    %6173 = vmatpush2.bf16.msra.mxu0 0
    %6174 = vmatprep.mubr.bf16.mxu0 0
    %6175 = vmatmul.mubr.bf16.gmra.mxu0 %v5949
    %v6176 = vpop.f32.mrf.mxu0
    %v6177 = vadd.f32 %v5365, %v6176
    %v6178 = vpop.f32.mrf.mxu0
    %v6179 = vadd.f32 %v5369, %v6178
    %v6180 = vpop.f32.mrf.mxu0
    %v6181 = vpop.f32.mrf.mxu0
    %6182 = vdwg.mxu0
    %6183 = vmatprep.subr.bf16.mxu0 %v6109
    %6184 = vmatpush1.bf16.msra.mxu0 %v6108
    %6185 = vmatprep.subr.bf16.mxu0 %v6105
    %6186 = vmatpush1.bf16.msra.mxu0 %v6104
    %6187 = vmatprep.subr.bf16.mxu0 %v6101
    %6188 = vmatpush1.bf16.msra.mxu0 %v6100
    %6189 = vmatprep.subr.bf16.mxu0 %v6097
    %6190 = vmatpush1.bf16.msra.mxu0 %v6096
    %6191 = vmatprep.subr.bf16.mxu0 %v6093
    %6192 = vmatpush1.bf16.msra.mxu0 %v6092
    %6193 = vmatprep.subr.bf16.mxu0 %v6089
    %6194 = vmatpush1.bf16.msra.mxu0 %v6088
    %6195 = vmatprep.subr.bf16.mxu0 %v6085
    %6196 = vmatpush1.bf16.msra.mxu0 %v6084
    %6197 = vmatprep.subr.bf16.mxu0 %v6081
    %6198 = vmatpush1.bf16.msra.mxu0 %v6080
    %6199 = vmatprep.subr.bf16.mxu0 0
    %6200 = vmatpush2.bf16.msra.mxu0 0
    %6201 = vmatprep.subr.bf16.mxu0 0
    %6202 = vmatpush2.bf16.msra.mxu0 0
    %6203 = vmatprep.subr.bf16.mxu0 0
    %6204 = vmatpush2.bf16.msra.mxu0 0
    %6205 = vmatprep.subr.bf16.mxu0 0
    %6206 = vmatpush2.bf16.msra.mxu0 0
    %6207 = vmatprep.subr.bf16.mxu0 0
    %6208 = vmatpush2.bf16.msra.mxu0 0
    %6209 = vmatprep.subr.bf16.mxu0 0
    %6210 = vmatpush2.bf16.msra.mxu0 0
    %6211 = vmatprep.subr.bf16.mxu0 0
    %6212 = vmatpush2.bf16.msra.mxu0 0
    %6213 = vmatprep.subr.bf16.mxu0 0
    %6214 = vmatpush2.bf16.msra.mxu0 0
    %6215 = vmatprep.mubr.bf16.mxu0 0
    %6216 = vmatmul.mubr.bf16.gmra.mxu0 %v5949
    %v6217 = vpop.f32.mrf.mxu0
    %v6218 = vadd.f32 %v5373, %v6217
    %v6219 = vpop.f32.mrf.mxu0
    %v6220 = vadd.f32 %v5377, %v6219
    %v6221 = vpop.f32.mrf.mxu0
    %v6222 = vpop.f32.mrf.mxu0
    %6223 = vdwg.mxu0
    %6224 = vst [vmem:[#allocation3 + $0x20] sm:$0xff] %v6177
    %6225 = vst [vmem:[#allocation3 + $0x28] sm:$0xff] %v6179
    %6226 = vst [vmem:[#allocation3 + $0x30] sm:$0xff] %v6218
    %6227 = vst [vmem:[#allocation3 + $0x38] sm:$0xff] %v6220
    %v6228 = vld [vmem:[#allocation2 + $0x40] sm:$0xff]
    %v6229 = vld [vmem:[#allocation2 + $0x48] sm:$0xff]
    %v6230 = vld [vmem:[#allocation2 + $0x50] sm:$0xff]
    %v6231 = vld [vmem:[#allocation2 + $0x58] sm:$0xff]
    %v6232 = vld [vmem:[#allocation12] sm:$0xff]
    %v6233 = vld [vmem:[#allocation12 + $0x8] sm:$0xff]
    %v6234 = vld [vmem:[#allocation12 + $0x10] sm:$0xff]
    %v6235 = vld [vmem:[#allocation12 + $0x18] sm:$0xff]
    %v6236 = vld [vmem:[#allocation12 + $0x20] sm:$0xff]
    %v6237 = vld [vmem:[#allocation12 + $0x28] sm:$0xff]
    %v6238 = vld [vmem:[#allocation12 + $0x30] sm:$0xff]
    %v6239 = vld [vmem:[#allocation12 + $0x38] sm:$0xff]
    %v6240 = vld [vmem:[#allocation12 + $0x40] sm:$0xff]
    %v6241 = vld [vmem:[#allocation12 + $0x48] sm:$0xff]
    %v6242 = vld [vmem:[#allocation12 + $0x50] sm:$0xff]
    %v6243 = vld [vmem:[#allocation12 + $0x58] sm:$0xff]
    %v6244 = vld [vmem:[#allocation12 + $0x60] sm:$0xff]
    %v6245 = vld [vmem:[#allocation12 + $0x68] sm:$0xff]
    %v6246 = vld [vmem:[#allocation12 + $0x70] sm:$0xff]
    %v6247 = vld [vmem:[#allocation12 + $0x78] sm:$0xff]
    %v6248 = vld [vmem:[#allocation12 + $0x80] sm:$0xff]
    %v6249 = vld [vmem:[#allocation12 + $0x88] sm:$0xff]
    %v6250 = vld [vmem:[#allocation12 + $0x90] sm:$0xff]
    %v6251 = vld [vmem:[#allocation12 + $0x98] sm:$0xff]
    %v6252 = vld [vmem:[#allocation12 + $0xa0] sm:$0xff]
    %v6253 = vld [vmem:[#allocation12 + $0xa8] sm:$0xff]
    %v6254 = vld [vmem:[#allocation12 + $0xb0] sm:$0xff]
    %v6255 = vld [vmem:[#allocation12 + $0xb8] sm:$0xff]
    %v6256 = vld [vmem:[#allocation12 + $0xc0] sm:$0xff]
    %v6257 = vld [vmem:[#allocation12 + $0xc8] sm:$0xff]
    %v6258 = vld [vmem:[#allocation12 + $0xd0] sm:$0xff]
    %v6259 = vld [vmem:[#allocation12 + $0xd8] sm:$0xff]
    %v6260 = vld [vmem:[#allocation12 + $0xe0] sm:$0xff]
    %v6261 = vld [vmem:[#allocation12 + $0xe8] sm:$0xff]
    %v6262 = vld [vmem:[#allocation12 + $0xf0] sm:$0xff]
    %v6263 = vld [vmem:[#allocation12 + $0xf8] sm:$0xff]
    %v6296 = vunpack.c.l.b16 %v6232
    %v6297 = vunpack.c.h.b16 %v6232
    %v6298 = vunpack.c.l.b16 %v6233
    %v6299 = vunpack.c.h.b16 %v6233
    %v6300 = vunpack.c.l.b16 %v6234
    %v6301 = vunpack.c.h.b16 %v6234
    %v6302 = vunpack.c.l.b16 %v6235
    %v6303 = vunpack.c.h.b16 %v6235
    %v6304 = vunpack.c.l.b16 %v6236
    %v6305 = vunpack.c.h.b16 %v6236
    %v6306 = vunpack.c.l.b16 %v6237
    %v6307 = vunpack.c.h.b16 %v6237
    %v6308 = vunpack.c.l.b16 %v6238
    %v6309 = vunpack.c.h.b16 %v6238
    %v6310 = vunpack.c.l.b16 %v6239
    %v6311 = vunpack.c.h.b16 %v6239
    %v6312 = vunpack.c.l.b16 %v6240
    %v6313 = vunpack.c.h.b16 %v6240
    %v6314 = vunpack.c.l.b16 %v6241
    %v6315 = vunpack.c.h.b16 %v6241
    %v6316 = vunpack.c.l.b16 %v6242
    %v6317 = vunpack.c.h.b16 %v6242
    %v6318 = vunpack.c.l.b16 %v6243
    %v6319 = vunpack.c.h.b16 %v6243
    %v6320 = vunpack.c.l.b16 %v6244
    %v6321 = vunpack.c.h.b16 %v6244
    %v6322 = vunpack.c.l.b16 %v6245
    %v6323 = vunpack.c.h.b16 %v6245
    %v6324 = vunpack.c.l.b16 %v6246
    %v6325 = vunpack.c.h.b16 %v6246
    %v6326 = vunpack.c.l.b16 %v6247
    %v6327 = vunpack.c.h.b16 %v6247
    %v6328 = vunpack.c.l.b16 %v6248
    %v6329 = vunpack.c.h.b16 %v6248
    %v6330 = vunpack.c.l.b16 %v6249
    %v6331 = vunpack.c.h.b16 %v6249
    %v6332 = vunpack.c.l.b16 %v6250
    %v6333 = vunpack.c.h.b16 %v6250
    %v6334 = vunpack.c.l.b16 %v6251
    %v6335 = vunpack.c.h.b16 %v6251
    %v6336 = vunpack.c.l.b16 %v6252
    %v6337 = vunpack.c.h.b16 %v6252
    %v6338 = vunpack.c.l.b16 %v6253
    %v6339 = vunpack.c.h.b16 %v6253
    %v6340 = vunpack.c.l.b16 %v6254
    %v6341 = vunpack.c.h.b16 %v6254
    %v6342 = vunpack.c.l.b16 %v6255
    %v6343 = vunpack.c.h.b16 %v6255
    %v6344 = vunpack.c.l.b16 %v6256
    %v6345 = vunpack.c.h.b16 %v6256
    %v6346 = vunpack.c.l.b16 %v6257
    %v6347 = vunpack.c.h.b16 %v6257
    %v6348 = vunpack.c.l.b16 %v6258
    %v6349 = vunpack.c.h.b16 %v6258
    %v6350 = vunpack.c.l.b16 %v6259
    %v6351 = vunpack.c.h.b16 %v6259
    %v6352 = vunpack.c.l.b16 %v6260
    %v6353 = vunpack.c.h.b16 %v6260
    %v6354 = vunpack.c.l.b16 %v6261
    %v6355 = vunpack.c.h.b16 %v6261
    %v6356 = vunpack.c.l.b16 %v6262
    %v6357 = vunpack.c.h.b16 %v6262
    %v6358 = vunpack.c.l.b16 %v6263
    %v6359 = vunpack.c.h.b16 %v6263
    %v6360 = vpack.c.b16 %v6300, %v6296
    %v6361 = vpack.c.b16 %v6301, %v6297
    %v6362 = vpack.c.b16 %v6302, %v6298
    %v6363 = vpack.c.b16 %v6303, %v6299
    %v6364 = vpack.c.b16 %v6308, %v6304
    %v6365 = vpack.c.b16 %v6309, %v6305
    %v6366 = vpack.c.b16 %v6310, %v6306
    %v6367 = vpack.c.b16 %v6311, %v6307
    %v6368 = vpack.c.b16 %v6316, %v6312
    %v6369 = vpack.c.b16 %v6317, %v6313
    %v6370 = vpack.c.b16 %v6318, %v6314
    %v6371 = vpack.c.b16 %v6319, %v6315
    %v6372 = vpack.c.b16 %v6324, %v6320
    %v6373 = vpack.c.b16 %v6325, %v6321
    %v6374 = vpack.c.b16 %v6326, %v6322
    %v6375 = vpack.c.b16 %v6327, %v6323
    %v6376 = vpack.c.b16 %v6332, %v6328
    %v6377 = vpack.c.b16 %v6333, %v6329
    %v6378 = vpack.c.b16 %v6334, %v6330
    %v6379 = vpack.c.b16 %v6335, %v6331
    %v6380 = vpack.c.b16 %v6340, %v6336
    %v6381 = vpack.c.b16 %v6341, %v6337
    %v6382 = vpack.c.b16 %v6342, %v6338
    %v6383 = vpack.c.b16 %v6343, %v6339
    %v6384 = vpack.c.b16 %v6348, %v6344
    %v6385 = vpack.c.b16 %v6349, %v6345
    %v6386 = vpack.c.b16 %v6350, %v6346
    %v6387 = vpack.c.b16 %v6351, %v6347
    %v6388 = vpack.c.b16 %v6356, %v6352
    %v6389 = vpack.c.b16 %v6357, %v6353
    %v6390 = vpack.c.b16 %v6358, %v6354
    %v6391 = vpack.c.b16 %v6359, %v6355
    %6424 = vmatprep.subr.bf16.mxu0 %v6389
    %6425 = vmatpush1.bf16.msra.mxu0 %v6388
    %6426 = vmatprep.subr.bf16.mxu0 %v6385
    %6427 = vmatpush1.bf16.msra.mxu0 %v6384
    %6428 = vmatprep.subr.bf16.mxu0 %v6381
    %6429 = vmatpush1.bf16.msra.mxu0 %v6380
    %6430 = vmatprep.subr.bf16.mxu0 %v6377
    %6431 = vmatpush1.bf16.msra.mxu0 %v6376
    %6432 = vmatprep.subr.bf16.mxu0 %v6373
    %6433 = vmatpush1.bf16.msra.mxu0 %v6372
    %6434 = vmatprep.subr.bf16.mxu0 %v6369
    %6435 = vmatpush1.bf16.msra.mxu0 %v6368
    %6436 = vmatprep.subr.bf16.mxu0 %v6365
    %6437 = vmatpush1.bf16.msra.mxu0 %v6364
    %6438 = vmatprep.subr.bf16.mxu0 %v6361
    %6439 = vmatpush1.bf16.msra.mxu0 %v6360
    %6440 = vmatprep.subr.bf16.mxu0 0
    %6441 = vmatpush2.bf16.msra.mxu0 0
    %6442 = vmatprep.subr.bf16.mxu0 0
    %6443 = vmatpush2.bf16.msra.mxu0 0
    %6444 = vmatprep.subr.bf16.mxu0 0
    %6445 = vmatpush2.bf16.msra.mxu0 0
    %6446 = vmatprep.subr.bf16.mxu0 0
    %6447 = vmatpush2.bf16.msra.mxu0 0
    %6448 = vmatprep.subr.bf16.mxu0 0
    %6449 = vmatpush2.bf16.msra.mxu0 0
    %6450 = vmatprep.subr.bf16.mxu0 0
    %6451 = vmatpush2.bf16.msra.mxu0 0
    %6452 = vmatprep.subr.bf16.mxu0 0
    %6453 = vmatpush2.bf16.msra.mxu0 0
    %6454 = vmatprep.subr.bf16.mxu0 0
    %6455 = vmatpush2.bf16.msra.mxu0 0
    %6456 = vmatprep.mubr.bf16.mxu0 0
    %6457 = vmatmul.mubr.bf16.gmra.mxu0 %v5928
    %v6458 = vpop.f32.mrf.mxu0
    %v6459 = vadd.f32 0.0, %v6458
    %v6460 = vpop.f32.mrf.mxu0
    %v6461 = vadd.f32 0.0, %v6460
    %v6462 = vpop.f32.mrf.mxu0
    %v6463 = vpop.f32.mrf.mxu0
    %6464 = vdwg.mxu0
    %6465 = vmatprep.subr.bf16.mxu0 %v6391
    %6466 = vmatpush1.bf16.msra.mxu0 %v6390
    %6467 = vmatprep.subr.bf16.mxu0 %v6387
    %6468 = vmatpush1.bf16.msra.mxu0 %v6386
    %6469 = vmatprep.subr.bf16.mxu0 %v6383
    %6470 = vmatpush1.bf16.msra.mxu0 %v6382
    %6471 = vmatprep.subr.bf16.mxu0 %v6379
    %6472 = vmatpush1.bf16.msra.mxu0 %v6378
    %6473 = vmatprep.subr.bf16.mxu0 %v6375
    %6474 = vmatpush1.bf16.msra.mxu0 %v6374
    %6475 = vmatprep.subr.bf16.mxu0 %v6371
    %6476 = vmatpush1.bf16.msra.mxu0 %v6370
    %6477 = vmatprep.subr.bf16.mxu0 %v6367
    %6478 = vmatpush1.bf16.msra.mxu0 %v6366
    %6479 = vmatprep.subr.bf16.mxu0 %v6363
    %6480 = vmatpush1.bf16.msra.mxu0 %v6362
    %6481 = vmatprep.subr.bf16.mxu0 0
    %6482 = vmatpush2.bf16.msra.mxu0 0
    %6483 = vmatprep.subr.bf16.mxu0 0
    %6484 = vmatpush2.bf16.msra.mxu0 0
    %6485 = vmatprep.subr.bf16.mxu0 0
    %6486 = vmatpush2.bf16.msra.mxu0 0
    %6487 = vmatprep.subr.bf16.mxu0 0
    %6488 = vmatpush2.bf16.msra.mxu0 0
    %6489 = vmatprep.subr.bf16.mxu0 0
    %6490 = vmatpush2.bf16.msra.mxu0 0
    %6491 = vmatprep.subr.bf16.mxu0 0
    %6492 = vmatpush2.bf16.msra.mxu0 0
    %6493 = vmatprep.subr.bf16.mxu0 0
    %6494 = vmatpush2.bf16.msra.mxu0 0
    %6495 = vmatprep.subr.bf16.mxu0 0
    %6496 = vmatpush2.bf16.msra.mxu0 0
    %6497 = vmatprep.mubr.bf16.mxu0 0
    %6498 = vmatmul.mubr.bf16.gmra.mxu0 %v5928
    %v6499 = vpop.f32.mrf.mxu0
    %v6500 = vadd.f32 0.0, %v6499
    %v6501 = vpop.f32.mrf.mxu0
    %v6502 = vadd.f32 0.0, %v6501
    %v6503 = vpop.f32.mrf.mxu0
    %v6504 = vpop.f32.mrf.mxu0
    %6505 = vdwg.mxu0
    %v6506 = vadd.f32 %v6228, %v6459
    %v6507 = vadd.f32 %v6229, %v6461
    %v6508 = vadd.f32 %v6230, %v6500
    %v6509 = vadd.f32 %v6231, %v6502
    %v6510 = vmul.f32 %v6506, 0.5
    %v6511 = vmul.f32 %v6507, 0.5
    %v6512 = vmul.f32 %v6508, 0.5
    %v6513 = vtanh.pop %v6510
    %v6514 = vtanh.pop %v6511
    %v6515 = vtanh.pop %v6512
    %v6516 = vmul.f32 %v6513, 0.5
    %v6517 = vmul.f32 %v6514, 0.5
    %v6518 = vmul.f32 %v6515, 0.5
    %v6519 = vadd.f32 %v6516, 0.5
    %v6520 = vadd.f32 %v6517, 0.5
    %v6521 = vadd.f32 %v6518, 0.5
    %v6522 = vtanh.pop %v6509
    %v6523 = vmul.f32 %v6520, %v5925
    %v6524 = vmul.f32 %v6519, %v6522
    %v6525 = vadd.f32 %v6523, %v6524
    %v6526 = vtanh.pop %v6525
    %v6527 = vmul.f32 %v6521, %v6526
    %v6528 = vpack.c.bf16 %v6527, %v6527
    %6529 = vadd.xlane.f32.xlu0 %v6527
    %v6530 = vpop.xlane.xlu0 %6529
    %v6531 = vmul.f32 %v6530, %v461
    %v6532 = vmul.f32 %v6527, %v6527
    %6533 = vadd.xlane.f32.xlu0 %v6532
    %v6534 = vpop.xlane.xlu0 %6533
    %v6535 = vmul.f32 %v6534, %v461
    %v6536 = vmul.f32 %v6531, %v6531
    %v6537 = vsub.f32 %v6535, %v6536
    %v6538 = vsub.f32 %v6527, %v6531
    %v6539 = vadd.f32 %v6537, 1e-05
    %v6540 = vrsqrt.pop %v6539
    %v6541 = vmul.f32 %v6538, %v6540
    %v6542 = vmul.f32 %v6541, %v5313
    %v6543 = vadd.f32 %v6542, %v5320
    %v6544 = vmul.f32 %v6543, 0.5
    %v6545 = vtanh.pop %v6544
    %v6546 = vmul.f32 %v6545, 0.5
    %v6547 = vadd.f32 %v6546, 0.5
    %v6548 = vmul.f32 %v6543, %v6547
    %v6549 = vpack.c.bf16 %v6548, %v6548
    %v6550 = vld [vmem:[#allocation13] sm:$0xff]
    %v6551 = vld [vmem:[#allocation13 + $0x8] sm:$0xff]
    %v6552 = vld [vmem:[#allocation13 + $0x10] sm:$0xff]
    %v6553 = vld [vmem:[#allocation13 + $0x18] sm:$0xff]
    %v6554 = vld [vmem:[#allocation13 + $0x20] sm:$0xff]
    %v6555 = vld [vmem:[#allocation13 + $0x28] sm:$0xff]
    %v6556 = vld [vmem:[#allocation13 + $0x30] sm:$0xff]
    %v6557 = vld [vmem:[#allocation13 + $0x38] sm:$0xff]
    %v6558 = vld [vmem:[#allocation13 + $0x40] sm:$0xff]
    %v6559 = vld [vmem:[#allocation13 + $0x48] sm:$0xff]
    %v6560 = vld [vmem:[#allocation13 + $0x50] sm:$0xff]
    %v6561 = vld [vmem:[#allocation13 + $0x58] sm:$0xff]
    %v6562 = vld [vmem:[#allocation13 + $0x60] sm:$0xff]
    %v6563 = vld [vmem:[#allocation13 + $0x68] sm:$0xff]
    %v6564 = vld [vmem:[#allocation13 + $0x70] sm:$0xff]
    %v6565 = vld [vmem:[#allocation13 + $0x78] sm:$0xff]
    %v6566 = vld [vmem:[#allocation13 + $0x80] sm:$0xff]
    %v6567 = vld [vmem:[#allocation13 + $0x88] sm:$0xff]
    %v6568 = vld [vmem:[#allocation13 + $0x90] sm:$0xff]
    %v6569 = vld [vmem:[#allocation13 + $0x98] sm:$0xff]
    %v6570 = vld [vmem:[#allocation13 + $0xa0] sm:$0xff]
    %v6571 = vld [vmem:[#allocation13 + $0xa8] sm:$0xff]
    %v6572 = vld [vmem:[#allocation13 + $0xb0] sm:$0xff]
    %v6573 = vld [vmem:[#allocation13 + $0xb8] sm:$0xff]
    %v6574 = vld [vmem:[#allocation13 + $0xc0] sm:$0xff]
    %v6575 = vld [vmem:[#allocation13 + $0xc8] sm:$0xff]
    %v6576 = vld [vmem:[#allocation13 + $0xd0] sm:$0xff]
    %v6577 = vld [vmem:[#allocation13 + $0xd8] sm:$0xff]
    %v6578 = vld [vmem:[#allocation13 + $0xe0] sm:$0xff]
    %v6579 = vld [vmem:[#allocation13 + $0xe8] sm:$0xff]
    %v6580 = vld [vmem:[#allocation13 + $0xf0] sm:$0xff]
    %v6581 = vld [vmem:[#allocation13 + $0xf8] sm:$0xff]
    %v6614 = vunpack.c.l.b16 %v6550
    %v6615 = vunpack.c.h.b16 %v6550
    %v6616 = vunpack.c.l.b16 %v6551
    %v6617 = vunpack.c.h.b16 %v6551
    %v6618 = vunpack.c.l.b16 %v6552
    %v6619 = vunpack.c.h.b16 %v6552
    %v6620 = vunpack.c.l.b16 %v6553
    %v6621 = vunpack.c.h.b16 %v6553
    %v6622 = vunpack.c.l.b16 %v6554
    %v6623 = vunpack.c.h.b16 %v6554
    %v6624 = vunpack.c.l.b16 %v6555
    %v6625 = vunpack.c.h.b16 %v6555
    %v6626 = vunpack.c.l.b16 %v6556
    %v6627 = vunpack.c.h.b16 %v6556
    %v6628 = vunpack.c.l.b16 %v6557
    %v6629 = vunpack.c.h.b16 %v6557
    %v6630 = vunpack.c.l.b16 %v6558
    %v6631 = vunpack.c.h.b16 %v6558
    %v6632 = vunpack.c.l.b16 %v6559
    %v6633 = vunpack.c.h.b16 %v6559
    %v6634 = vunpack.c.l.b16 %v6560
    %v6635 = vunpack.c.h.b16 %v6560
    %v6636 = vunpack.c.l.b16 %v6561
    %v6637 = vunpack.c.h.b16 %v6561
    %v6638 = vunpack.c.l.b16 %v6562
    %v6639 = vunpack.c.h.b16 %v6562
    %v6640 = vunpack.c.l.b16 %v6563
    %v6641 = vunpack.c.h.b16 %v6563
    %v6642 = vunpack.c.l.b16 %v6564
    %v6643 = vunpack.c.h.b16 %v6564
    %v6644 = vunpack.c.l.b16 %v6565
    %v6645 = vunpack.c.h.b16 %v6565
    %v6646 = vunpack.c.l.b16 %v6566
    %v6647 = vunpack.c.h.b16 %v6566
    %v6648 = vunpack.c.l.b16 %v6567
    %v6649 = vunpack.c.h.b16 %v6567
    %v6650 = vunpack.c.l.b16 %v6568
    %v6651 = vunpack.c.h.b16 %v6568
    %v6652 = vunpack.c.l.b16 %v6569
    %v6653 = vunpack.c.h.b16 %v6569
    %v6654 = vunpack.c.l.b16 %v6570
    %v6655 = vunpack.c.h.b16 %v6570
    %v6656 = vunpack.c.l.b16 %v6571
    %v6657 = vunpack.c.h.b16 %v6571
    %v6658 = vunpack.c.l.b16 %v6572
    %v6659 = vunpack.c.h.b16 %v6572
    %v6660 = vunpack.c.l.b16 %v6573
    %v6661 = vunpack.c.h.b16 %v6573
    %v6662 = vunpack.c.l.b16 %v6574
    %v6663 = vunpack.c.h.b16 %v6574
    %v6664 = vunpack.c.l.b16 %v6575
    %v6665 = vunpack.c.h.b16 %v6575
    %v6666 = vunpack.c.l.b16 %v6576
    %v6667 = vunpack.c.h.b16 %v6576
    %v6668 = vunpack.c.l.b16 %v6577
    %v6669 = vunpack.c.h.b16 %v6577
    %v6670 = vunpack.c.l.b16 %v6578
    %v6671 = vunpack.c.h.b16 %v6578
    %v6672 = vunpack.c.l.b16 %v6579
    %v6673 = vunpack.c.h.b16 %v6579
    %v6674 = vunpack.c.l.b16 %v6580
    %v6675 = vunpack.c.h.b16 %v6580
    %v6676 = vunpack.c.l.b16 %v6581
    %v6677 = vunpack.c.h.b16 %v6581
    %v6678 = vpack.c.b16 %v6618, %v6614
    %v6679 = vpack.c.b16 %v6619, %v6615
    %v6680 = vpack.c.b16 %v6620, %v6616
    %v6681 = vpack.c.b16 %v6621, %v6617
    %v6682 = vpack.c.b16 %v6626, %v6622
    %v6683 = vpack.c.b16 %v6627, %v6623
    %v6684 = vpack.c.b16 %v6628, %v6624
    %v6685 = vpack.c.b16 %v6629, %v6625
    %v6686 = vpack.c.b16 %v6634, %v6630
    %v6687 = vpack.c.b16 %v6635, %v6631
    %v6688 = vpack.c.b16 %v6636, %v6632
    %v6689 = vpack.c.b16 %v6637, %v6633
    %v6690 = vpack.c.b16 %v6642, %v6638
    %v6691 = vpack.c.b16 %v6643, %v6639
    %v6692 = vpack.c.b16 %v6644, %v6640
    %v6693 = vpack.c.b16 %v6645, %v6641
    %v6694 = vpack.c.b16 %v6650, %v6646
    %v6695 = vpack.c.b16 %v6651, %v6647
    %v6696 = vpack.c.b16 %v6652, %v6648
    %v6697 = vpack.c.b16 %v6653, %v6649
    %v6698 = vpack.c.b16 %v6658, %v6654
    %v6699 = vpack.c.b16 %v6659, %v6655
    %v6700 = vpack.c.b16 %v6660, %v6656
    %v6701 = vpack.c.b16 %v6661, %v6657
    %v6702 = vpack.c.b16 %v6666, %v6662
    %v6703 = vpack.c.b16 %v6667, %v6663
    %v6704 = vpack.c.b16 %v6668, %v6664
    %v6705 = vpack.c.b16 %v6669, %v6665
    %v6706 = vpack.c.b16 %v6674, %v6670
    %v6707 = vpack.c.b16 %v6675, %v6671
    %v6708 = vpack.c.b16 %v6676, %v6672
    %v6709 = vpack.c.b16 %v6677, %v6673
    %6742 = vmatprep.subr.bf16.mxu0 %v6707
    %6743 = vmatpush1.bf16.msra.mxu0 %v6706
    %6744 = vmatprep.subr.bf16.mxu0 %v6703
    %6745 = vmatpush1.bf16.msra.mxu0 %v6702
    %6746 = vmatprep.subr.bf16.mxu0 %v6699
    %6747 = vmatpush1.bf16.msra.mxu0 %v6698
    %6748 = vmatprep.subr.bf16.mxu0 %v6695
    %6749 = vmatpush1.bf16.msra.mxu0 %v6694
    %6750 = vmatprep.subr.bf16.mxu0 %v6691
    %6751 = vmatpush1.bf16.msra.mxu0 %v6690
    %6752 = vmatprep.subr.bf16.mxu0 %v6687
    %6753 = vmatpush1.bf16.msra.mxu0 %v6686
    %6754 = vmatprep.subr.bf16.mxu0 %v6683
    %6755 = vmatpush1.bf16.msra.mxu0 %v6682
    %6756 = vmatprep.subr.bf16.mxu0 %v6679
    %6757 = vmatpush1.bf16.msra.mxu0 %v6678
    %6758 = vmatprep.subr.bf16.mxu0 0
    %6759 = vmatpush2.bf16.msra.mxu0 0
    %6760 = vmatprep.subr.bf16.mxu0 0
    %6761 = vmatpush2.bf16.msra.mxu0 0
    %6762 = vmatprep.subr.bf16.mxu0 0
    %6763 = vmatpush2.bf16.msra.mxu0 0
    %6764 = vmatprep.subr.bf16.mxu0 0
    %6765 = vmatpush2.bf16.msra.mxu0 0
    %6766 = vmatprep.subr.bf16.mxu0 0
    %6767 = vmatpush2.bf16.msra.mxu0 0
    %6768 = vmatprep.subr.bf16.mxu0 0
    %6769 = vmatpush2.bf16.msra.mxu0 0
    %6770 = vmatprep.subr.bf16.mxu0 0
    %6771 = vmatpush2.bf16.msra.mxu0 0
    %6772 = vmatprep.subr.bf16.mxu0 0
    %6773 = vmatpush2.bf16.msra.mxu0 0
    %6774 = vmatprep.mubr.bf16.mxu0 0
    %6775 = vmatmul.mubr.bf16.gmra.mxu0 %v6549
    %v6776 = vpop.f32.mrf.mxu0
    %v6777 = vadd.f32 %v5365, %v6776
    %v6778 = vpop.f32.mrf.mxu0
    %v6779 = vadd.f32 %v5369, %v6778
    %v6780 = vpop.f32.mrf.mxu0
    %v6781 = vpop.f32.mrf.mxu0
    %6782 = vdwg.mxu0
    %6783 = vmatprep.subr.bf16.mxu0 %v6709
    %6784 = vmatpush1.bf16.msra.mxu0 %v6708
    %6785 = vmatprep.subr.bf16.mxu0 %v6705
    %6786 = vmatpush1.bf16.msra.mxu0 %v6704
    %6787 = vmatprep.subr.bf16.mxu0 %v6701
    %6788 = vmatpush1.bf16.msra.mxu0 %v6700
    %6789 = vmatprep.subr.bf16.mxu0 %v6697
    %6790 = vmatpush1.bf16.msra.mxu0 %v6696
    %6791 = vmatprep.subr.bf16.mxu0 %v6693
    %6792 = vmatpush1.bf16.msra.mxu0 %v6692
    %6793 = vmatprep.subr.bf16.mxu0 %v6689
    %6794 = vmatpush1.bf16.msra.mxu0 %v6688
    %6795 = vmatprep.subr.bf16.mxu0 %v6685
    %6796 = vmatpush1.bf16.msra.mxu0 %v6684
    %6797 = vmatprep.subr.bf16.mxu0 %v6681
    %6798 = vmatpush1.bf16.msra.mxu0 %v6680
    %6799 = vmatprep.subr.bf16.mxu0 0
    %6800 = vmatpush2.bf16.msra.mxu0 0
    %6801 = vmatprep.subr.bf16.mxu0 0
    %6802 = vmatpush2.bf16.msra.mxu0 0
    %6803 = vmatprep.subr.bf16.mxu0 0
    %6804 = vmatpush2.bf16.msra.mxu0 0
    %6805 = vmatprep.subr.bf16.mxu0 0
    %6806 = vmatpush2.bf16.msra.mxu0 0
    %6807 = vmatprep.subr.bf16.mxu0 0
    %6808 = vmatpush2.bf16.msra.mxu0 0
    %6809 = vmatprep.subr.bf16.mxu0 0
    %6810 = vmatpush2.bf16.msra.mxu0 0
    %6811 = vmatprep.subr.bf16.mxu0 0
    %6812 = vmatpush2.bf16.msra.mxu0 0
    %6813 = vmatprep.subr.bf16.mxu0 0
    %6814 = vmatpush2.bf16.msra.mxu0 0
    %6815 = vmatprep.mubr.bf16.mxu0 0
    %6816 = vmatmul.mubr.bf16.gmra.mxu0 %v6549
    %v6817 = vpop.f32.mrf.mxu0
    %v6818 = vadd.f32 %v5373, %v6817
    %v6819 = vpop.f32.mrf.mxu0
    %v6820 = vadd.f32 %v5377, %v6819
    %v6821 = vpop.f32.mrf.mxu0
    %v6822 = vpop.f32.mrf.mxu0
    %6823 = vdwg.mxu0
    %6824 = vst [vmem:[#allocation3 + $0x40] sm:$0xff] %v6777
    %6825 = vst [vmem:[#allocation3 + $0x48] sm:$0xff] %v6779
    %6826 = vst [vmem:[#allocation3 + $0x50] sm:$0xff] %v6818
    %6827 = vst [vmem:[#allocation3 + $0x58] sm:$0xff] %v6820
    %v6828 = vld [vmem:[#allocation2 + $0x60] sm:$0xff]
    %v6829 = vld [vmem:[#allocation2 + $0x68] sm:$0xff]
    %v6830 = vld [vmem:[#allocation2 + $0x70] sm:$0xff]
    %v6831 = vld [vmem:[#allocation2 + $0x78] sm:$0xff]
    %v6832 = vld [vmem:[#allocation12] sm:$0xff]
    %v6833 = vld [vmem:[#allocation12 + $0x8] sm:$0xff]
    %v6834 = vld [vmem:[#allocation12 + $0x10] sm:$0xff]
    %v6835 = vld [vmem:[#allocation12 + $0x18] sm:$0xff]
    %v6836 = vld [vmem:[#allocation12 + $0x20] sm:$0xff]
    %v6837 = vld [vmem:[#allocation12 + $0x28] sm:$0xff]
    %v6838 = vld [vmem:[#allocation12 + $0x30] sm:$0xff]
    %v6839 = vld [vmem:[#allocation12 + $0x38] sm:$0xff]
    %v6840 = vld [vmem:[#allocation12 + $0x40] sm:$0xff]
    %v6841 = vld [vmem:[#allocation12 + $0x48] sm:$0xff]
    %v6842 = vld [vmem:[#allocation12 + $0x50] sm:$0xff]
    %v6843 = vld [vmem:[#allocation12 + $0x58] sm:$0xff]
    %v6844 = vld [vmem:[#allocation12 + $0x60] sm:$0xff]
    %v6845 = vld [vmem:[#allocation12 + $0x68] sm:$0xff]
    %v6846 = vld [vmem:[#allocation12 + $0x70] sm:$0xff]
    %v6847 = vld [vmem:[#allocation12 + $0x78] sm:$0xff]
    %v6848 = vld [vmem:[#allocation12 + $0x80] sm:$0xff]
    %v6849 = vld [vmem:[#allocation12 + $0x88] sm:$0xff]
    %v6850 = vld [vmem:[#allocation12 + $0x90] sm:$0xff]
    %v6851 = vld [vmem:[#allocation12 + $0x98] sm:$0xff]
    %v6852 = vld [vmem:[#allocation12 + $0xa0] sm:$0xff]
    %v6853 = vld [vmem:[#allocation12 + $0xa8] sm:$0xff]
    %v6854 = vld [vmem:[#allocation12 + $0xb0] sm:$0xff]
    %v6855 = vld [vmem:[#allocation12 + $0xb8] sm:$0xff]
    %v6856 = vld [vmem:[#allocation12 + $0xc0] sm:$0xff]
    %v6857 = vld [vmem:[#allocation12 + $0xc8] sm:$0xff]
    %v6858 = vld [vmem:[#allocation12 + $0xd0] sm:$0xff]
    %v6859 = vld [vmem:[#allocation12 + $0xd8] sm:$0xff]
    %v6860 = vld [vmem:[#allocation12 + $0xe0] sm:$0xff]
    %v6861 = vld [vmem:[#allocation12 + $0xe8] sm:$0xff]
    %v6862 = vld [vmem:[#allocation12 + $0xf0] sm:$0xff]
    %v6863 = vld [vmem:[#allocation12 + $0xf8] sm:$0xff]
    %v6896 = vunpack.c.l.b16 %v6832
    %v6897 = vunpack.c.h.b16 %v6832
    %v6898 = vunpack.c.l.b16 %v6833
    %v6899 = vunpack.c.h.b16 %v6833
    %v6900 = vunpack.c.l.b16 %v6834
    %v6901 = vunpack.c.h.b16 %v6834
    %v6902 = vunpack.c.l.b16 %v6835
    %v6903 = vunpack.c.h.b16 %v6835
    %v6904 = vunpack.c.l.b16 %v6836
    %v6905 = vunpack.c.h.b16 %v6836
    %v6906 = vunpack.c.l.b16 %v6837
    %v6907 = vunpack.c.h.b16 %v6837
    %v6908 = vunpack.c.l.b16 %v6838
    %v6909 = vunpack.c.h.b16 %v6838
    %v6910 = vunpack.c.l.b16 %v6839
    %v6911 = vunpack.c.h.b16 %v6839
    %v6912 = vunpack.c.l.b16 %v6840
    %v6913 = vunpack.c.h.b16 %v6840
    %v6914 = vunpack.c.l.b16 %v6841
    %v6915 = vunpack.c.h.b16 %v6841
    %v6916 = vunpack.c.l.b16 %v6842
    %v6917 = vunpack.c.h.b16 %v6842
    %v6918 = vunpack.c.l.b16 %v6843
    %v6919 = vunpack.c.h.b16 %v6843
    %v6920 = vunpack.c.l.b16 %v6844
    %v6921 = vunpack.c.h.b16 %v6844
    %v6922 = vunpack.c.l.b16 %v6845
    %v6923 = vunpack.c.h.b16 %v6845
    %v6924 = vunpack.c.l.b16 %v6846
    %v6925 = vunpack.c.h.b16 %v6846
    %v6926 = vunpack.c.l.b16 %v6847
    %v6927 = vunpack.c.h.b16 %v6847
    %v6928 = vunpack.c.l.b16 %v6848
    %v6929 = vunpack.c.h.b16 %v6848
    %v6930 = vunpack.c.l.b16 %v6849
    %v6931 = vunpack.c.h.b16 %v6849
    %v6932 = vunpack.c.l.b16 %v6850
    %v6933 = vunpack.c.h.b16 %v6850
    %v6934 = vunpack.c.l.b16 %v6851
    %v6935 = vunpack.c.h.b16 %v6851
    %v6936 = vunpack.c.l.b16 %v6852
    %v6937 = vunpack.c.h.b16 %v6852
    %v6938 = vunpack.c.l.b16 %v6853
    %v6939 = vunpack.c.h.b16 %v6853
    %v6940 = vunpack.c.l.b16 %v6854
    %v6941 = vunpack.c.h.b16 %v6854
    %v6942 = vunpack.c.l.b16 %v6855
    %v6943 = vunpack.c.h.b16 %v6855
    %v6944 = vunpack.c.l.b16 %v6856
    %v6945 = vunpack.c.h.b16 %v6856
    %v6946 = vunpack.c.l.b16 %v6857
    %v6947 = vunpack.c.h.b16 %v6857
    %v6948 = vunpack.c.l.b16 %v6858
    %v6949 = vunpack.c.h.b16 %v6858
    %v6950 = vunpack.c.l.b16 %v6859
    %v6951 = vunpack.c.h.b16 %v6859
    %v6952 = vunpack.c.l.b16 %v6860
    %v6953 = vunpack.c.h.b16 %v6860
    %v6954 = vunpack.c.l.b16 %v6861
    %v6955 = vunpack.c.h.b16 %v6861
    %v6956 = vunpack.c.l.b16 %v6862
    %v6957 = vunpack.c.h.b16 %v6862
    %v6958 = vunpack.c.l.b16 %v6863
    %v6959 = vunpack.c.h.b16 %v6863
    %v6960 = vpack.c.b16 %v6900, %v6896
    %v6961 = vpack.c.b16 %v6901, %v6897
    %v6962 = vpack.c.b16 %v6902, %v6898
    %v6963 = vpack.c.b16 %v6903, %v6899
    %v6964 = vpack.c.b16 %v6908, %v6904
    %v6965 = vpack.c.b16 %v6909, %v6905
    %v6966 = vpack.c.b16 %v6910, %v6906
    %v6967 = vpack.c.b16 %v6911, %v6907
    %v6968 = vpack.c.b16 %v6916, %v6912
    %v6969 = vpack.c.b16 %v6917, %v6913
    %v6970 = vpack.c.b16 %v6918, %v6914
    %v6971 = vpack.c.b16 %v6919, %v6915
    %v6972 = vpack.c.b16 %v6924, %v6920
    %v6973 = vpack.c.b16 %v6925, %v6921
    %v6974 = vpack.c.b16 %v6926, %v6922
    %v6975 = vpack.c.b16 %v6927, %v6923
    %v6976 = vpack.c.b16 %v6932, %v6928
    %v6977 = vpack.c.b16 %v6933, %v6929
    %v6978 = vpack.c.b16 %v6934, %v6930
    %v6979 = vpack.c.b16 %v6935, %v6931
    %v6980 = vpack.c.b16 %v6940, %v6936
    %v6981 = vpack.c.b16 %v6941, %v6937
    %v6982 = vpack.c.b16 %v6942, %v6938
    %v6983 = vpack.c.b16 %v6943, %v6939
    %v6984 = vpack.c.b16 %v6948, %v6944
    %v6985 = vpack.c.b16 %v6949, %v6945
    %v6986 = vpack.c.b16 %v6950, %v6946
    %v6987 = vpack.c.b16 %v6951, %v6947
    %v6988 = vpack.c.b16 %v6956, %v6952
    %v6989 = vpack.c.b16 %v6957, %v6953
    %v6990 = vpack.c.b16 %v6958, %v6954
    %v6991 = vpack.c.b16 %v6959, %v6955
    %7024 = vmatprep.subr.bf16.mxu0 %v6989
    %7025 = vmatpush1.bf16.msra.mxu0 %v6988
    %7026 = vmatprep.subr.bf16.mxu0 %v6985
    %7027 = vmatpush1.bf16.msra.mxu0 %v6984
    %7028 = vmatprep.subr.bf16.mxu0 %v6981
    %7029 = vmatpush1.bf16.msra.mxu0 %v6980
    %7030 = vmatprep.subr.bf16.mxu0 %v6977
    %7031 = vmatpush1.bf16.msra.mxu0 %v6976
    %7032 = vmatprep.subr.bf16.mxu0 %v6973
    %7033 = vmatpush1.bf16.msra.mxu0 %v6972
    %7034 = vmatprep.subr.bf16.mxu0 %v6969
    %7035 = vmatpush1.bf16.msra.mxu0 %v6968
    %7036 = vmatprep.subr.bf16.mxu0 %v6965
    %7037 = vmatpush1.bf16.msra.mxu0 %v6964
    %7038 = vmatprep.subr.bf16.mxu0 %v6961
    %7039 = vmatpush1.bf16.msra.mxu0 %v6960
    %7040 = vmatprep.subr.bf16.mxu0 0
    %7041 = vmatpush2.bf16.msra.mxu0 0
    %7042 = vmatprep.subr.bf16.mxu0 0
    %7043 = vmatpush2.bf16.msra.mxu0 0
    %7044 = vmatprep.subr.bf16.mxu0 0
    %7045 = vmatpush2.bf16.msra.mxu0 0
    %7046 = vmatprep.subr.bf16.mxu0 0
    %7047 = vmatpush2.bf16.msra.mxu0 0
    %7048 = vmatprep.subr.bf16.mxu0 0
    %7049 = vmatpush2.bf16.msra.mxu0 0
    %7050 = vmatprep.subr.bf16.mxu0 0
    %7051 = vmatpush2.bf16.msra.mxu0 0
    %7052 = vmatprep.subr.bf16.mxu0 0
    %7053 = vmatpush2.bf16.msra.mxu0 0
    %7054 = vmatprep.subr.bf16.mxu0 0
    %7055 = vmatpush2.bf16.msra.mxu0 0
    %7056 = vmatprep.mubr.bf16.mxu0 0
    %7057 = vmatmul.mubr.bf16.gmra.mxu0 %v6528
    %v7058 = vpop.f32.mrf.mxu0
    %v7059 = vadd.f32 0.0, %v7058
    %v7060 = vpop.f32.mrf.mxu0
    %v7061 = vadd.f32 0.0, %v7060
    %v7062 = vpop.f32.mrf.mxu0
    %v7063 = vpop.f32.mrf.mxu0
    %7064 = vdwg.mxu0
    %7065 = vmatprep.subr.bf16.mxu0 %v6991
    %7066 = vmatpush1.bf16.msra.mxu0 %v6990
    %7067 = vmatprep.subr.bf16.mxu0 %v6987
    %7068 = vmatpush1.bf16.msra.mxu0 %v6986
    %7069 = vmatprep.subr.bf16.mxu0 %v6983
    %7070 = vmatpush1.bf16.msra.mxu0 %v6982
    %7071 = vmatprep.subr.bf16.mxu0 %v6979
    %7072 = vmatpush1.bf16.msra.mxu0 %v6978
    %7073 = vmatprep.subr.bf16.mxu0 %v6975
    %7074 = vmatpush1.bf16.msra.mxu0 %v6974
    %7075 = vmatprep.subr.bf16.mxu0 %v6971
    %7076 = vmatpush1.bf16.msra.mxu0 %v6970
    %7077 = vmatprep.subr.bf16.mxu0 %v6967
    %7078 = vmatpush1.bf16.msra.mxu0 %v6966
    %7079 = vmatprep.subr.bf16.mxu0 %v6963
    %7080 = vmatpush1.bf16.msra.mxu0 %v6962
    %7081 = vmatprep.subr.bf16.mxu0 0
    %7082 = vmatpush2.bf16.msra.mxu0 0
    %7083 = vmatprep.subr.bf16.mxu0 0
    %7084 = vmatpush2.bf16.msra.mxu0 0
    %7085 = vmatprep.subr.bf16.mxu0 0
    %7086 = vmatpush2.bf16.msra.mxu0 0
    %7087 = vmatprep.subr.bf16.mxu0 0
    %7088 = vmatpush2.bf16.msra.mxu0 0
    %7089 = vmatprep.subr.bf16.mxu0 0
    %7090 = vmatpush2.bf16.msra.mxu0 0
    %7091 = vmatprep.subr.bf16.mxu0 0
    %7092 = vmatpush2.bf16.msra.mxu0 0
    %7093 = vmatprep.subr.bf16.mxu0 0
    %7094 = vmatpush2.bf16.msra.mxu0 0
    %7095 = vmatprep.subr.bf16.mxu0 0
    %7096 = vmatpush2.bf16.msra.mxu0 0
    %7097 = vmatprep.mubr.bf16.mxu0 0
    %7098 = vmatmul.mubr.bf16.gmra.mxu0 %v6528
    %v7099 = vpop.f32.mrf.mxu0
    %v7100 = vadd.f32 0.0, %v7099
    %v7101 = vpop.f32.mrf.mxu0
    %v7102 = vadd.f32 0.0, %v7101
    %v7103 = vpop.f32.mrf.mxu0
    %v7104 = vpop.f32.mrf.mxu0
    %7105 = vdwg.mxu0
    %v7106 = vadd.f32 %v6828, %v7059
    %v7107 = vadd.f32 %v6829, %v7061
    %v7108 = vadd.f32 %v6830, %v7100
    %v7109 = vadd.f32 %v6831, %v7102
    %v7110 = vmul.f32 %v7106, 0.5
    %v7111 = vmul.f32 %v7107, 0.5
    %v7112 = vmul.f32 %v7108, 0.5
    %v7113 = vtanh.pop %v7110
    %v7114 = vtanh.pop %v7111
    %v7115 = vtanh.pop %v7112
    %v7116 = vmul.f32 %v7113, 0.5
    %v7117 = vmul.f32 %v7114, 0.5
    %v7118 = vmul.f32 %v7115, 0.5
    %v7119 = vadd.f32 %v7116, 0.5
    %v7120 = vadd.f32 %v7117, 0.5
    %v7121 = vadd.f32 %v7118, 0.5
    %v7122 = vtanh.pop %v7109
    %v7123 = vmul.f32 %v7120, %v6525
    %v7124 = vmul.f32 %v7119, %v7122
    %v7125 = vadd.f32 %v7123, %v7124
    %v7126 = vtanh.pop %v7125
    %v7127 = vmul.f32 %v7121, %v7126
    %v7128 = vpack.c.bf16 %v7127, %v7127
    %7129 = vadd.xlane.f32.xlu0 %v7127
    %v7130 = vpop.xlane.xlu0 %7129
    %v7131 = vmul.f32 %v7130, %v461
    %v7132 = vmul.f32 %v7127, %v7127
    %7133 = vadd.xlane.f32.xlu0 %v7132
    %v7134 = vpop.xlane.xlu0 %7133
    %v7135 = vmul.f32 %v7134, %v461
    %v7136 = vmul.f32 %v7131, %v7131
    %v7137 = vsub.f32 %v7135, %v7136
    %v7138 = vsub.f32 %v7127, %v7131
    %v7139 = vadd.f32 %v7137, 1e-05
    %v7140 = vrsqrt.pop %v7139
    %v7141 = vmul.f32 %v7138, %v7140
    %v7142 = vmul.f32 %v7141, %v5313
    %v7143 = vadd.f32 %v7142, %v5320
    %v7144 = vmul.f32 %v7143, 0.5
    %v7145 = vtanh.pop %v7144
    %v7146 = vmul.f32 %v7145, 0.5
    %v7147 = vadd.f32 %v7146, 0.5
    %v7148 = vmul.f32 %v7143, %v7147
    %v7149 = vpack.c.bf16 %v7148, %v7148
    %v7150 = vld [vmem:[#allocation13] sm:$0xff]
    %v7151 = vld [vmem:[#allocation13 + $0x8] sm:$0xff]
    %v7152 = vld [vmem:[#allocation13 + $0x10] sm:$0xff]
    %v7153 = vld [vmem:[#allocation13 + $0x18] sm:$0xff]
    %v7154 = vld [vmem:[#allocation13 + $0x20] sm:$0xff]
    %v7155 = vld [vmem:[#allocation13 + $0x28] sm:$0xff]
    %v7156 = vld [vmem:[#allocation13 + $0x30] sm:$0xff]
    %v7157 = vld [vmem:[#allocation13 + $0x38] sm:$0xff]
    %v7158 = vld [vmem:[#allocation13 + $0x40] sm:$0xff]
    %v7159 = vld [vmem:[#allocation13 + $0x48] sm:$0xff]
    %v7160 = vld [vmem:[#allocation13 + $0x50] sm:$0xff]
    %v7161 = vld [vmem:[#allocation13 + $0x58] sm:$0xff]
    %v7162 = vld [vmem:[#allocation13 + $0x60] sm:$0xff]
    %v7163 = vld [vmem:[#allocation13 + $0x68] sm:$0xff]
    %v7164 = vld [vmem:[#allocation13 + $0x70] sm:$0xff]
    %v7165 = vld [vmem:[#allocation13 + $0x78] sm:$0xff]
    %v7166 = vld [vmem:[#allocation13 + $0x80] sm:$0xff]
    %v7167 = vld [vmem:[#allocation13 + $0x88] sm:$0xff]
    %v7168 = vld [vmem:[#allocation13 + $0x90] sm:$0xff]
    %v7169 = vld [vmem:[#allocation13 + $0x98] sm:$0xff]
    %v7170 = vld [vmem:[#allocation13 + $0xa0] sm:$0xff]
    %v7171 = vld [vmem:[#allocation13 + $0xa8] sm:$0xff]
    %v7172 = vld [vmem:[#allocation13 + $0xb0] sm:$0xff]
    %v7173 = vld [vmem:[#allocation13 + $0xb8] sm:$0xff]
    %v7174 = vld [vmem:[#allocation13 + $0xc0] sm:$0xff]
    %v7175 = vld [vmem:[#allocation13 + $0xc8] sm:$0xff]
    %v7176 = vld [vmem:[#allocation13 + $0xd0] sm:$0xff]
    %v7177 = vld [vmem:[#allocation13 + $0xd8] sm:$0xff]
    %v7178 = vld [vmem:[#allocation13 + $0xe0] sm:$0xff]
    %v7179 = vld [vmem:[#allocation13 + $0xe8] sm:$0xff]
    %v7180 = vld [vmem:[#allocation13 + $0xf0] sm:$0xff]
    %v7181 = vld [vmem:[#allocation13 + $0xf8] sm:$0xff]
    %v7214 = vunpack.c.l.b16 %v7150
    %v7215 = vunpack.c.h.b16 %v7150
    %v7216 = vunpack.c.l.b16 %v7151
    %v7217 = vunpack.c.h.b16 %v7151
    %v7218 = vunpack.c.l.b16 %v7152
    %v7219 = vunpack.c.h.b16 %v7152
    %v7220 = vunpack.c.l.b16 %v7153
    %v7221 = vunpack.c.h.b16 %v7153
    %v7222 = vunpack.c.l.b16 %v7154
    %v7223 = vunpack.c.h.b16 %v7154
    %v7224 = vunpack.c.l.b16 %v7155
    %v7225 = vunpack.c.h.b16 %v7155
    %v7226 = vunpack.c.l.b16 %v7156
    %v7227 = vunpack.c.h.b16 %v7156
    %v7228 = vunpack.c.l.b16 %v7157
    %v7229 = vunpack.c.h.b16 %v7157
    %v7230 = vunpack.c.l.b16 %v7158
    %v7231 = vunpack.c.h.b16 %v7158
    %v7232 = vunpack.c.l.b16 %v7159
    %v7233 = vunpack.c.h.b16 %v7159
    %v7234 = vunpack.c.l.b16 %v7160
    %v7235 = vunpack.c.h.b16 %v7160
    %v7236 = vunpack.c.l.b16 %v7161
    %v7237 = vunpack.c.h.b16 %v7161
    %v7238 = vunpack.c.l.b16 %v7162
    %v7239 = vunpack.c.h.b16 %v7162
    %v7240 = vunpack.c.l.b16 %v7163
    %v7241 = vunpack.c.h.b16 %v7163
    %v7242 = vunpack.c.l.b16 %v7164
    %v7243 = vunpack.c.h.b16 %v7164
    %v7244 = vunpack.c.l.b16 %v7165
    %v7245 = vunpack.c.h.b16 %v7165
    %v7246 = vunpack.c.l.b16 %v7166
    %v7247 = vunpack.c.h.b16 %v7166
    %v7248 = vunpack.c.l.b16 %v7167
    %v7249 = vunpack.c.h.b16 %v7167
    %v7250 = vunpack.c.l.b16 %v7168
    %v7251 = vunpack.c.h.b16 %v7168
    %v7252 = vunpack.c.l.b16 %v7169
    %v7253 = vunpack.c.h.b16 %v7169
    %v7254 = vunpack.c.l.b16 %v7170
    %v7255 = vunpack.c.h.b16 %v7170
    %v7256 = vunpack.c.l.b16 %v7171
    %v7257 = vunpack.c.h.b16 %v7171
    %v7258 = vunpack.c.l.b16 %v7172
    %v7259 = vunpack.c.h.b16 %v7172
    %v7260 = vunpack.c.l.b16 %v7173
    %v7261 = vunpack.c.h.b16 %v7173
    %v7262 = vunpack.c.l.b16 %v7174
    %v7263 = vunpack.c.h.b16 %v7174
    %v7264 = vunpack.c.l.b16 %v7175
    %v7265 = vunpack.c.h.b16 %v7175
    %v7266 = vunpack.c.l.b16 %v7176
    %v7267 = vunpack.c.h.b16 %v7176
    %v7268 = vunpack.c.l.b16 %v7177
    %v7269 = vunpack.c.h.b16 %v7177
    %v7270 = vunpack.c.l.b16 %v7178
    %v7271 = vunpack.c.h.b16 %v7178
    %v7272 = vunpack.c.l.b16 %v7179
    %v7273 = vunpack.c.h.b16 %v7179
    %v7274 = vunpack.c.l.b16 %v7180
    %v7275 = vunpack.c.h.b16 %v7180
    %v7276 = vunpack.c.l.b16 %v7181
    %v7277 = vunpack.c.h.b16 %v7181
    %v7278 = vpack.c.b16 %v7218, %v7214
    %v7279 = vpack.c.b16 %v7219, %v7215
    %v7280 = vpack.c.b16 %v7220, %v7216
    %v7281 = vpack.c.b16 %v7221, %v7217
    %v7282 = vpack.c.b16 %v7226, %v7222
    %v7283 = vpack.c.b16 %v7227, %v7223
    %v7284 = vpack.c.b16 %v7228, %v7224
    %v7285 = vpack.c.b16 %v7229, %v7225
    %v7286 = vpack.c.b16 %v7234, %v7230
    %v7287 = vpack.c.b16 %v7235, %v7231
    %v7288 = vpack.c.b16 %v7236, %v7232
    %v7289 = vpack.c.b16 %v7237, %v7233
    %v7290 = vpack.c.b16 %v7242, %v7238
    %v7291 = vpack.c.b16 %v7243, %v7239
    %v7292 = vpack.c.b16 %v7244, %v7240
    %v7293 = vpack.c.b16 %v7245, %v7241
    %v7294 = vpack.c.b16 %v7250, %v7246
    %v7295 = vpack.c.b16 %v7251, %v7247
    %v7296 = vpack.c.b16 %v7252, %v7248
    %v7297 = vpack.c.b16 %v7253, %v7249
    %v7298 = vpack.c.b16 %v7258, %v7254
    %v7299 = vpack.c.b16 %v7259, %v7255
    %v7300 = vpack.c.b16 %v7260, %v7256
    %v7301 = vpack.c.b16 %v7261, %v7257
    %v7302 = vpack.c.b16 %v7266, %v7262
    %v7303 = vpack.c.b16 %v7267, %v7263
    %v7304 = vpack.c.b16 %v7268, %v7264
    %v7305 = vpack.c.b16 %v7269, %v7265
    %v7306 = vpack.c.b16 %v7274, %v7270
    %v7307 = vpack.c.b16 %v7275, %v7271
    %v7308 = vpack.c.b16 %v7276, %v7272
    %v7309 = vpack.c.b16 %v7277, %v7273
    %7342 = vmatprep.subr.bf16.mxu0 %v7307
    %7343 = vmatpush1.bf16.msra.mxu0 %v7306
    %7344 = vmatprep.subr.bf16.mxu0 %v7303
    %7345 = vmatpush1.bf16.msra.mxu0 %v7302
    %7346 = vmatprep.subr.bf16.mxu0 %v7299
    %7347 = vmatpush1.bf16.msra.mxu0 %v7298
    %7348 = vmatprep.subr.bf16.mxu0 %v7295
    %7349 = vmatpush1.bf16.msra.mxu0 %v7294
    %7350 = vmatprep.subr.bf16.mxu0 %v7291
    %7351 = vmatpush1.bf16.msra.mxu0 %v7290
    %7352 = vmatprep.subr.bf16.mxu0 %v7287
    %7353 = vmatpush1.bf16.msra.mxu0 %v7286
    %7354 = vmatprep.subr.bf16.mxu0 %v7283
    %7355 = vmatpush1.bf16.msra.mxu0 %v7282
    %7356 = vmatprep.subr.bf16.mxu0 %v7279
    %7357 = vmatpush1.bf16.msra.mxu0 %v7278
    %7358 = vmatprep.subr.bf16.mxu0 0
    %7359 = vmatpush2.bf16.msra.mxu0 0
    %7360 = vmatprep.subr.bf16.mxu0 0
    %7361 = vmatpush2.bf16.msra.mxu0 0
    %7362 = vmatprep.subr.bf16.mxu0 0
    %7363 = vmatpush2.bf16.msra.mxu0 0
    %7364 = vmatprep.subr.bf16.mxu0 0
    %7365 = vmatpush2.bf16.msra.mxu0 0
    %7366 = vmatprep.subr.bf16.mxu0 0
    %7367 = vmatpush2.bf16.msra.mxu0 0
    %7368 = vmatprep.subr.bf16.mxu0 0
    %7369 = vmatpush2.bf16.msra.mxu0 0
    %7370 = vmatprep.subr.bf16.mxu0 0
    %7371 = vmatpush2.bf16.msra.mxu0 0
    %7372 = vmatprep.subr.bf16.mxu0 0
    %7373 = vmatpush2.bf16.msra.mxu0 0
    %7374 = vmatprep.mubr.bf16.mxu0 0
    %7375 = vmatmul.mubr.bf16.gmra.mxu0 %v7149
    %v7376 = vpop.f32.mrf.mxu0
    %v7377 = vadd.f32 %v5365, %v7376
    %v7378 = vpop.f32.mrf.mxu0
    %v7379 = vadd.f32 %v5369, %v7378
    %v7380 = vpop.f32.mrf.mxu0
    %v7381 = vpop.f32.mrf.mxu0
    %7382 = vdwg.mxu0
    %7383 = vmatprep.subr.bf16.mxu0 %v7309
    %7384 = vmatpush1.bf16.msra.mxu0 %v7308
    %7385 = vmatprep.subr.bf16.mxu0 %v7305
    %7386 = vmatpush1.bf16.msra.mxu0 %v7304
    %7387 = vmatprep.subr.bf16.mxu0 %v7301
    %7388 = vmatpush1.bf16.msra.mxu0 %v7300
    %7389 = vmatprep.subr.bf16.mxu0 %v7297
    %7390 = vmatpush1.bf16.msra.mxu0 %v7296
    %7391 = vmatprep.subr.bf16.mxu0 %v7293
    %7392 = vmatpush1.bf16.msra.mxu0 %v7292
    %7393 = vmatprep.subr.bf16.mxu0 %v7289
    %7394 = vmatpush1.bf16.msra.mxu0 %v7288
    %7395 = vmatprep.subr.bf16.mxu0 %v7285
    %7396 = vmatpush1.bf16.msra.mxu0 %v7284
    %7397 = vmatprep.subr.bf16.mxu0 %v7281
    %7398 = vmatpush1.bf16.msra.mxu0 %v7280
    %7399 = vmatprep.subr.bf16.mxu0 0
    %7400 = vmatpush2.bf16.msra.mxu0 0
    %7401 = vmatprep.subr.bf16.mxu0 0
    %7402 = vmatpush2.bf16.msra.mxu0 0
    %7403 = vmatprep.subr.bf16.mxu0 0
    %7404 = vmatpush2.bf16.msra.mxu0 0
    %7405 = vmatprep.subr.bf16.mxu0 0
    %7406 = vmatpush2.bf16.msra.mxu0 0
    %7407 = vmatprep.subr.bf16.mxu0 0
    %7408 = vmatpush2.bf16.msra.mxu0 0
    %7409 = vmatprep.subr.bf16.mxu0 0
    %7410 = vmatpush2.bf16.msra.mxu0 0
    %7411 = vmatprep.subr.bf16.mxu0 0
    %7412 = vmatpush2.bf16.msra.mxu0 0
    %7413 = vmatprep.subr.bf16.mxu0 0
    %7414 = vmatpush2.bf16.msra.mxu0 0
    %7415 = vmatprep.mubr.bf16.mxu0 0
    %7416 = vmatmul.mubr.bf16.gmra.mxu0 %v7149
    %v7417 = vpop.f32.mrf.mxu0
    %v7418 = vadd.f32 %v5373, %v7417
    %v7419 = vpop.f32.mrf.mxu0
    %v7420 = vadd.f32 %v5377, %v7419
    %v7421 = vpop.f32.mrf.mxu0
    %v7422 = vpop.f32.mrf.mxu0
    %7423 = vdwg.mxu0
    %7424 = vst [vmem:[#allocation3 + $0x60] sm:$0xff] %v7377
    %7425 = vst [vmem:[#allocation3 + $0x68] sm:$0xff] %v7379
    %7426 = vst [vmem:[#allocation3 + $0x70] sm:$0xff] %v7418
    %7427 = vst [vmem:[#allocation3 + $0x78] sm:$0xff] %v7420
    %v7428 = vld [vmem:[#allocation2 + $0x80] sm:$0xff]
    %v7429 = vld [vmem:[#allocation2 + $0x88] sm:$0xff]
    %v7430 = vld [vmem:[#allocation2 + $0x90] sm:$0xff]
    %v7431 = vld [vmem:[#allocation2 + $0x98] sm:$0xff]
    %v7432 = vld [vmem:[#allocation12] sm:$0xff]
    %v7433 = vld [vmem:[#allocation12 + $0x8] sm:$0xff]
    %v7434 = vld [vmem:[#allocation12 + $0x10] sm:$0xff]
    %v7435 = vld [vmem:[#allocation12 + $0x18] sm:$0xff]
    %v7436 = vld [vmem:[#allocation12 + $0x20] sm:$0xff]
    %v7437 = vld [vmem:[#allocation12 + $0x28] sm:$0xff]
    %v7438 = vld [vmem:[#allocation12 + $0x30] sm:$0xff]
    %v7439 = vld [vmem:[#allocation12 + $0x38] sm:$0xff]
    %v7440 = vld [vmem:[#allocation12 + $0x40] sm:$0xff]
    %v7441 = vld [vmem:[#allocation12 + $0x48] sm:$0xff]
    %v7442 = vld [vmem:[#allocation12 + $0x50] sm:$0xff]
    %v7443 = vld [vmem:[#allocation12 + $0x58] sm:$0xff]
    %v7444 = vld [vmem:[#allocation12 + $0x60] sm:$0xff]
    %v7445 = vld [vmem:[#allocation12 + $0x68] sm:$0xff]
    %v7446 = vld [vmem:[#allocation12 + $0x70] sm:$0xff]
    %v7447 = vld [vmem:[#allocation12 + $0x78] sm:$0xff]
    %v7448 = vld [vmem:[#allocation12 + $0x80] sm:$0xff]
    %v7449 = vld [vmem:[#allocation12 + $0x88] sm:$0xff]
    %v7450 = vld [vmem:[#allocation12 + $0x90] sm:$0xff]
    %v7451 = vld [vmem:[#allocation12 + $0x98] sm:$0xff]
    %v7452 = vld [vmem:[#allocation12 + $0xa0] sm:$0xff]
    %v7453 = vld [vmem:[#allocation12 + $0xa8] sm:$0xff]
    %v7454 = vld [vmem:[#allocation12 + $0xb0] sm:$0xff]
    %v7455 = vld [vmem:[#allocation12 + $0xb8] sm:$0xff]
    %v7456 = vld [vmem:[#allocation12 + $0xc0] sm:$0xff]
    %v7457 = vld [vmem:[#allocation12 + $0xc8] sm:$0xff]
    %v7458 = vld [vmem:[#allocation12 + $0xd0] sm:$0xff]
    %v7459 = vld [vmem:[#allocation12 + $0xd8] sm:$0xff]
    %v7460 = vld [vmem:[#allocation12 + $0xe0] sm:$0xff]
    %v7461 = vld [vmem:[#allocation12 + $0xe8] sm:$0xff]
    %v7462 = vld [vmem:[#allocation12 + $0xf0] sm:$0xff]
    %v7463 = vld [vmem:[#allocation12 + $0xf8] sm:$0xff]
    %v7496 = vunpack.c.l.b16 %v7432
    %v7497 = vunpack.c.h.b16 %v7432
    %v7498 = vunpack.c.l.b16 %v7433
    %v7499 = vunpack.c.h.b16 %v7433
    %v7500 = vunpack.c.l.b16 %v7434
    %v7501 = vunpack.c.h.b16 %v7434
    %v7502 = vunpack.c.l.b16 %v7435
    %v7503 = vunpack.c.h.b16 %v7435
    %v7504 = vunpack.c.l.b16 %v7436
    %v7505 = vunpack.c.h.b16 %v7436
    %v7506 = vunpack.c.l.b16 %v7437
    %v7507 = vunpack.c.h.b16 %v7437
    %v7508 = vunpack.c.l.b16 %v7438
    %v7509 = vunpack.c.h.b16 %v7438
    %v7510 = vunpack.c.l.b16 %v7439
    %v7511 = vunpack.c.h.b16 %v7439
    %v7512 = vunpack.c.l.b16 %v7440
    %v7513 = vunpack.c.h.b16 %v7440
    %v7514 = vunpack.c.l.b16 %v7441
    %v7515 = vunpack.c.h.b16 %v7441
    %v7516 = vunpack.c.l.b16 %v7442
    %v7517 = vunpack.c.h.b16 %v7442
    %v7518 = vunpack.c.l.b16 %v7443
    %v7519 = vunpack.c.h.b16 %v7443
    %v7520 = vunpack.c.l.b16 %v7444
    %v7521 = vunpack.c.h.b16 %v7444
    %v7522 = vunpack.c.l.b16 %v7445
    %v7523 = vunpack.c.h.b16 %v7445
    %v7524 = vunpack.c.l.b16 %v7446
    %v7525 = vunpack.c.h.b16 %v7446
    %v7526 = vunpack.c.l.b16 %v7447
    %v7527 = vunpack.c.h.b16 %v7447
    %v7528 = vunpack.c.l.b16 %v7448
    %v7529 = vunpack.c.h.b16 %v7448
    %v7530 = vunpack.c.l.b16 %v7449
    %v7531 = vunpack.c.h.b16 %v7449
    %v7532 = vunpack.c.l.b16 %v7450
    %v7533 = vunpack.c.h.b16 %v7450
    %v7534 = vunpack.c.l.b16 %v7451
    %v7535 = vunpack.c.h.b16 %v7451
    %v7536 = vunpack.c.l.b16 %v7452
    %v7537 = vunpack.c.h.b16 %v7452
    %v7538 = vunpack.c.l.b16 %v7453
    %v7539 = vunpack.c.h.b16 %v7453
    %v7540 = vunpack.c.l.b16 %v7454
    %v7541 = vunpack.c.h.b16 %v7454
    %v7542 = vunpack.c.l.b16 %v7455
    %v7543 = vunpack.c.h.b16 %v7455
    %v7544 = vunpack.c.l.b16 %v7456
    %v7545 = vunpack.c.h.b16 %v7456
    %v7546 = vunpack.c.l.b16 %v7457
    %v7547 = vunpack.c.h.b16 %v7457
    %v7548 = vunpack.c.l.b16 %v7458
    %v7549 = vunpack.c.h.b16 %v7458
    %v7550 = vunpack.c.l.b16 %v7459
    %v7551 = vunpack.c.h.b16 %v7459
    %v7552 = vunpack.c.l.b16 %v7460
    %v7553 = vunpack.c.h.b16 %v7460
    %v7554 = vunpack.c.l.b16 %v7461
    %v7555 = vunpack.c.h.b16 %v7461
    %v7556 = vunpack.c.l.b16 %v7462
    %v7557 = vunpack.c.h.b16 %v7462
    %v7558 = vunpack.c.l.b16 %v7463
    %v7559 = vunpack.c.h.b16 %v7463
    %v7560 = vpack.c.b16 %v7500, %v7496
    %v7561 = vpack.c.b16 %v7501, %v7497
    %v7562 = vpack.c.b16 %v7502, %v7498
    %v7563 = vpack.c.b16 %v7503, %v7499
    %v7564 = vpack.c.b16 %v7508, %v7504
    %v7565 = vpack.c.b16 %v7509, %v7505
    %v7566 = vpack.c.b16 %v7510, %v7506
    %v7567 = vpack.c.b16 %v7511, %v7507
    %v7568 = vpack.c.b16 %v7516, %v7512
    %v7569 = vpack.c.b16 %v7517, %v7513
    %v7570 = vpack.c.b16 %v7518, %v7514
    %v7571 = vpack.c.b16 %v7519, %v7515
    %v7572 = vpack.c.b16 %v7524, %v7520
    %v7573 = vpack.c.b16 %v7525, %v7521
    %v7574 = vpack.c.b16 %v7526, %v7522
    %v7575 = vpack.c.b16 %v7527, %v7523
    %v7576 = vpack.c.b16 %v7532, %v7528
    %v7577 = vpack.c.b16 %v7533, %v7529
    %v7578 = vpack.c.b16 %v7534, %v7530
    %v7579 = vpack.c.b16 %v7535, %v7531
    %v7580 = vpack.c.b16 %v7540, %v7536
    %v7581 = vpack.c.b16 %v7541, %v7537
    %v7582 = vpack.c.b16 %v7542, %v7538
    %v7583 = vpack.c.b16 %v7543, %v7539
    %v7584 = vpack.c.b16 %v7548, %v7544
    %v7585 = vpack.c.b16 %v7549, %v7545
    %v7586 = vpack.c.b16 %v7550, %v7546
    %v7587 = vpack.c.b16 %v7551, %v7547
    %v7588 = vpack.c.b16 %v7556, %v7552
    %v7589 = vpack.c.b16 %v7557, %v7553
    %v7590 = vpack.c.b16 %v7558, %v7554
    %v7591 = vpack.c.b16 %v7559, %v7555
    %7624 = vmatprep.subr.bf16.mxu0 %v7589
    %7625 = vmatpush1.bf16.msra.mxu0 %v7588
    %7626 = vmatprep.subr.bf16.mxu0 %v7585
    %7627 = vmatpush1.bf16.msra.mxu0 %v7584
    %7628 = vmatprep.subr.bf16.mxu0 %v7581
    %7629 = vmatpush1.bf16.msra.mxu0 %v7580
    %7630 = vmatprep.subr.bf16.mxu0 %v7577
    %7631 = vmatpush1.bf16.msra.mxu0 %v7576
    %7632 = vmatprep.subr.bf16.mxu0 %v7573
    %7633 = vmatpush1.bf16.msra.mxu0 %v7572
    %7634 = vmatprep.subr.bf16.mxu0 %v7569
    %7635 = vmatpush1.bf16.msra.mxu0 %v7568
    %7636 = vmatprep.subr.bf16.mxu0 %v7565
    %7637 = vmatpush1.bf16.msra.mxu0 %v7564
    %7638 = vmatprep.subr.bf16.mxu0 %v7561
    %7639 = vmatpush1.bf16.msra.mxu0 %v7560
    %7640 = vmatprep.subr.bf16.mxu0 0
    %7641 = vmatpush2.bf16.msra.mxu0 0
    %7642 = vmatprep.subr.bf16.mxu0 0
    %7643 = vmatpush2.bf16.msra.mxu0 0
    %7644 = vmatprep.subr.bf16.mxu0 0
    %7645 = vmatpush2.bf16.msra.mxu0 0
    %7646 = vmatprep.subr.bf16.mxu0 0
    %7647 = vmatpush2.bf16.msra.mxu0 0
    %7648 = vmatprep.subr.bf16.mxu0 0
    %7649 = vmatpush2.bf16.msra.mxu0 0
    %7650 = vmatprep.subr.bf16.mxu0 0
    %7651 = vmatpush2.bf16.msra.mxu0 0
    %7652 = vmatprep.subr.bf16.mxu0 0
    %7653 = vmatpush2.bf16.msra.mxu0 0
    %7654 = vmatprep.subr.bf16.mxu0 0
    %7655 = vmatpush2.bf16.msra.mxu0 0
    %7656 = vmatprep.mubr.bf16.mxu0 0
    %7657 = vmatmul.mubr.bf16.gmra.mxu0 %v7128
    %v7658 = vpop.f32.mrf.mxu0
    %v7659 = vadd.f32 0.0, %v7658
    %v7660 = vpop.f32.mrf.mxu0
    %v7661 = vadd.f32 0.0, %v7660
    %v7662 = vpop.f32.mrf.mxu0
    %v7663 = vpop.f32.mrf.mxu0
    %7664 = vdwg.mxu0
    %7665 = vmatprep.subr.bf16.mxu0 %v7591
    %7666 = vmatpush1.bf16.msra.mxu0 %v7590
    %7667 = vmatprep.subr.bf16.mxu0 %v7587
    %7668 = vmatpush1.bf16.msra.mxu0 %v7586
    %7669 = vmatprep.subr.bf16.mxu0 %v7583
    %7670 = vmatpush1.bf16.msra.mxu0 %v7582
    %7671 = vmatprep.subr.bf16.mxu0 %v7579
    %7672 = vmatpush1.bf16.msra.mxu0 %v7578
    %7673 = vmatprep.subr.bf16.mxu0 %v7575
    %7674 = vmatpush1.bf16.msra.mxu0 %v7574
    %7675 = vmatprep.subr.bf16.mxu0 %v7571
    %7676 = vmatpush1.bf16.msra.mxu0 %v7570
    %7677 = vmatprep.subr.bf16.mxu0 %v7567
    %7678 = vmatpush1.bf16.msra.mxu0 %v7566
    %7679 = vmatprep.subr.bf16.mxu0 %v7563
    %7680 = vmatpush1.bf16.msra.mxu0 %v7562
    %7681 = vmatprep.subr.bf16.mxu0 0
    %7682 = vmatpush2.bf16.msra.mxu0 0
    %7683 = vmatprep.subr.bf16.mxu0 0
    %7684 = vmatpush2.bf16.msra.mxu0 0
    %7685 = vmatprep.subr.bf16.mxu0 0
    %7686 = vmatpush2.bf16.msra.mxu0 0
    %7687 = vmatprep.subr.bf16.mxu0 0
    %7688 = vmatpush2.bf16.msra.mxu0 0
    %7689 = vmatprep.subr.bf16.mxu0 0
    %7690 = vmatpush2.bf16.msra.mxu0 0
    %7691 = vmatprep.subr.bf16.mxu0 0
    %7692 = vmatpush2.bf16.msra.mxu0 0
    %7693 = vmatprep.subr.bf16.mxu0 0
    %7694 = vmatpush2.bf16.msra.mxu0 0
    %7695 = vmatprep.subr.bf16.mxu0 0
    %7696 = vmatpush2.bf16.msra.mxu0 0
    %7697 = vmatprep.mubr.bf16.mxu0 0
    %7698 = vmatmul.mubr.bf16.gmra.mxu0 %v7128
    %v7699 = vpop.f32.mrf.mxu0
    %v7700 = vadd.f32 0.0, %v7699
    %v7701 = vpop.f32.mrf.mxu0
    %v7702 = vadd.f32 0.0, %v7701
    %v7703 = vpop.f32.mrf.mxu0
    %v7704 = vpop.f32.mrf.mxu0
    %7705 = vdwg.mxu0
    %v7706 = vadd.f32 %v7428, %v7659
    %v7707 = vadd.f32 %v7429, %v7661
    %v7708 = vadd.f32 %v7430, %v7700
    %v7709 = vadd.f32 %v7431, %v7702
    %v7710 = vmul.f32 %v7706, 0.5
    %v7711 = vmul.f32 %v7707, 0.5
    %v7712 = vmul.f32 %v7708, 0.5
    %v7713 = vtanh.pop %v7710
    %v7714 = vtanh.pop %v7711
    %v7715 = vtanh.pop %v7712
    %v7716 = vmul.f32 %v7713, 0.5
    %v7717 = vmul.f32 %v7714, 0.5
    %v7718 = vmul.f32 %v7715, 0.5
    %v7719 = vadd.f32 %v7716, 0.5
    %v7720 = vadd.f32 %v7717, 0.5
    %v7721 = vadd.f32 %v7718, 0.5
    %v7722 = vtanh.pop %v7709
    %v7723 = vmul.f32 %v7720, %v7125
    %v7724 = vmul.f32 %v7719, %v7722
    %v7725 = vadd.f32 %v7723, %v7724
    %v7726 = vtanh.pop %v7725
    %v7727 = vmul.f32 %v7721, %v7726
    %v7728 = vpack.c.bf16 %v7727, %v7727
    %7729 = vadd.xlane.f32.xlu0 %v7727
    %v7730 = vpop.xlane.xlu0 %7729
    %v7731 = vmul.f32 %v7730, %v461
    %v7732 = vmul.f32 %v7727, %v7727
    %7733 = vadd.xlane.f32.xlu0 %v7732
    %v7734 = vpop.xlane.xlu0 %7733
    %v7735 = vmul.f32 %v7734, %v461
    %v7736 = vmul.f32 %v7731, %v7731
    %v7737 = vsub.f32 %v7735, %v7736
    %v7738 = vsub.f32 %v7727, %v7731
    %v7739 = vadd.f32 %v7737, 1e-05
    %v7740 = vrsqrt.pop %v7739
    %v7741 = vmul.f32 %v7738, %v7740
    %v7742 = vmul.f32 %v7741, %v5313
    %v7743 = vadd.f32 %v7742, %v5320
    %v7744 = vmul.f32 %v7743, 0.5
    %v7745 = vtanh.pop %v7744
    %v7746 = vmul.f32 %v7745, 0.5
    %v7747 = vadd.f32 %v7746, 0.5
    %v7748 = vmul.f32 %v7743, %v7747
    %v7749 = vpack.c.bf16 %v7748, %v7748
    %v7750 = vld [vmem:[#allocation13] sm:$0xff]
    %v7751 = vld [vmem:[#allocation13 + $0x8] sm:$0xff]
    %v7752 = vld [vmem:[#allocation13 + $0x10] sm:$0xff]
    %v7753 = vld [vmem:[#allocation13 + $0x18] sm:$0xff]
    %v7754 = vld [vmem:[#allocation13 + $0x20] sm:$0xff]
    %v7755 = vld [vmem:[#allocation13 + $0x28] sm:$0xff]
    %v7756 = vld [vmem:[#allocation13 + $0x30] sm:$0xff]
    %v7757 = vld [vmem:[#allocation13 + $0x38] sm:$0xff]
    %v7758 = vld [vmem:[#allocation13 + $0x40] sm:$0xff]
    %v7759 = vld [vmem:[#allocation13 + $0x48] sm:$0xff]
    %v7760 = vld [vmem:[#allocation13 + $0x50] sm:$0xff]
    %v7761 = vld [vmem:[#allocation13 + $0x58] sm:$0xff]
    %v7762 = vld [vmem:[#allocation13 + $0x60] sm:$0xff]
    %v7763 = vld [vmem:[#allocation13 + $0x68] sm:$0xff]
    %v7764 = vld [vmem:[#allocation13 + $0x70] sm:$0xff]
    %v7765 = vld [vmem:[#allocation13 + $0x78] sm:$0xff]
    %v7766 = vld [vmem:[#allocation13 + $0x80] sm:$0xff]
    %v7767 = vld [vmem:[#allocation13 + $0x88] sm:$0xff]
    %v7768 = vld [vmem:[#allocation13 + $0x90] sm:$0xff]
    %v7769 = vld [vmem:[#allocation13 + $0x98] sm:$0xff]
    %v7770 = vld [vmem:[#allocation13 + $0xa0] sm:$0xff]
    %v7771 = vld [vmem:[#allocation13 + $0xa8] sm:$0xff]
    %v7772 = vld [vmem:[#allocation13 + $0xb0] sm:$0xff]
    %v7773 = vld [vmem:[#allocation13 + $0xb8] sm:$0xff]
    %v7774 = vld [vmem:[#allocation13 + $0xc0] sm:$0xff]
    %v7775 = vld [vmem:[#allocation13 + $0xc8] sm:$0xff]
    %v7776 = vld [vmem:[#allocation13 + $0xd0] sm:$0xff]
    %v7777 = vld [vmem:[#allocation13 + $0xd8] sm:$0xff]
    %v7778 = vld [vmem:[#allocation13 + $0xe0] sm:$0xff]
    %v7779 = vld [vmem:[#allocation13 + $0xe8] sm:$0xff]
    %v7780 = vld [vmem:[#allocation13 + $0xf0] sm:$0xff]
    %v7781 = vld [vmem:[#allocation13 + $0xf8] sm:$0xff]
    %v7814 = vunpack.c.l.b16 %v7750
    %v7815 = vunpack.c.h.b16 %v7750
    %v7816 = vunpack.c.l.b16 %v7751
    %v7817 = vunpack.c.h.b16 %v7751
    %v7818 = vunpack.c.l.b16 %v7752
    %v7819 = vunpack.c.h.b16 %v7752
    %v7820 = vunpack.c.l.b16 %v7753
    %v7821 = vunpack.c.h.b16 %v7753
    %v7822 = vunpack.c.l.b16 %v7754
    %v7823 = vunpack.c.h.b16 %v7754
    %v7824 = vunpack.c.l.b16 %v7755
    %v7825 = vunpack.c.h.b16 %v7755
    %v7826 = vunpack.c.l.b16 %v7756
    %v7827 = vunpack.c.h.b16 %v7756
    %v7828 = vunpack.c.l.b16 %v7757
    %v7829 = vunpack.c.h.b16 %v7757
    %v7830 = vunpack.c.l.b16 %v7758
    %v7831 = vunpack.c.h.b16 %v7758
    %v7832 = vunpack.c.l.b16 %v7759
    %v7833 = vunpack.c.h.b16 %v7759
    %v7834 = vunpack.c.l.b16 %v7760
    %v7835 = vunpack.c.h.b16 %v7760
    %v7836 = vunpack.c.l.b16 %v7761
    %v7837 = vunpack.c.h.b16 %v7761
    %v7838 = vunpack.c.l.b16 %v7762
    %v7839 = vunpack.c.h.b16 %v7762
    %v7840 = vunpack.c.l.b16 %v7763
    %v7841 = vunpack.c.h.b16 %v7763
    %v7842 = vunpack.c.l.b16 %v7764
    %v7843 = vunpack.c.h.b16 %v7764
    %v7844 = vunpack.c.l.b16 %v7765
    %v7845 = vunpack.c.h.b16 %v7765
    %v7846 = vunpack.c.l.b16 %v7766
    %v7847 = vunpack.c.h.b16 %v7766
    %v7848 = vunpack.c.l.b16 %v7767
    %v7849 = vunpack.c.h.b16 %v7767
    %v7850 = vunpack.c.l.b16 %v7768
    %v7851 = vunpack.c.h.b16 %v7768
    %v7852 = vunpack.c.l.b16 %v7769
    %v7853 = vunpack.c.h.b16 %v7769
    %v7854 = vunpack.c.l.b16 %v7770
    %v7855 = vunpack.c.h.b16 %v7770
    %v7856 = vunpack.c.l.b16 %v7771
    %v7857 = vunpack.c.h.b16 %v7771
    %v7858 = vunpack.c.l.b16 %v7772
    %v7859 = vunpack.c.h.b16 %v7772
    %v7860 = vunpack.c.l.b16 %v7773
    %v7861 = vunpack.c.h.b16 %v7773
    %v7862 = vunpack.c.l.b16 %v7774
    %v7863 = vunpack.c.h.b16 %v7774
    %v7864 = vunpack.c.l.b16 %v7775
    %v7865 = vunpack.c.h.b16 %v7775
    %v7866 = vunpack.c.l.b16 %v7776
    %v7867 = vunpack.c.h.b16 %v7776
    %v7868 = vunpack.c.l.b16 %v7777
    %v7869 = vunpack.c.h.b16 %v7777
    %v7870 = vunpack.c.l.b16 %v7778
    %v7871 = vunpack.c.h.b16 %v7778
    %v7872 = vunpack.c.l.b16 %v7779
    %v7873 = vunpack.c.h.b16 %v7779
    %v7874 = vunpack.c.l.b16 %v7780
    %v7875 = vunpack.c.h.b16 %v7780
    %v7876 = vunpack.c.l.b16 %v7781
    %v7877 = vunpack.c.h.b16 %v7781
    %v7878 = vpack.c.b16 %v7818, %v7814
    %v7879 = vpack.c.b16 %v7819, %v7815
    %v7880 = vpack.c.b16 %v7820, %v7816
    %v7881 = vpack.c.b16 %v7821, %v7817
    %v7882 = vpack.c.b16 %v7826, %v7822
    %v7883 = vpack.c.b16 %v7827, %v7823
    %v7884 = vpack.c.b16 %v7828, %v7824
    %v7885 = vpack.c.b16 %v7829, %v7825
    %v7886 = vpack.c.b16 %v7834, %v7830
    %v7887 = vpack.c.b16 %v7835, %v7831
    %v7888 = vpack.c.b16 %v7836, %v7832
    %v7889 = vpack.c.b16 %v7837, %v7833
    %v7890 = vpack.c.b16 %v7842, %v7838
    %v7891 = vpack.c.b16 %v7843, %v7839
    %v7892 = vpack.c.b16 %v7844, %v7840
    %v7893 = vpack.c.b16 %v7845, %v7841
    %v7894 = vpack.c.b16 %v7850, %v7846
    %v7895 = vpack.c.b16 %v7851, %v7847
    %v7896 = vpack.c.b16 %v7852, %v7848
    %v7897 = vpack.c.b16 %v7853, %v7849
    %v7898 = vpack.c.b16 %v7858, %v7854
    %v7899 = vpack.c.b16 %v7859, %v7855
    %v7900 = vpack.c.b16 %v7860, %v7856
    %v7901 = vpack.c.b16 %v7861, %v7857
    %v7902 = vpack.c.b16 %v7866, %v7862
    %v7903 = vpack.c.b16 %v7867, %v7863
    %v7904 = vpack.c.b16 %v7868, %v7864
    %v7905 = vpack.c.b16 %v7869, %v7865
    %v7906 = vpack.c.b16 %v7874, %v7870
    %v7907 = vpack.c.b16 %v7875, %v7871
    %v7908 = vpack.c.b16 %v7876, %v7872
    %v7909 = vpack.c.b16 %v7877, %v7873
    %7942 = vmatprep.subr.bf16.mxu0 %v7907
    %7943 = vmatpush1.bf16.msra.mxu0 %v7906
    %7944 = vmatprep.subr.bf16.mxu0 %v7903
    %7945 = vmatpush1.bf16.msra.mxu0 %v7902
    %7946 = vmatprep.subr.bf16.mxu0 %v7899
    %7947 = vmatpush1.bf16.msra.mxu0 %v7898
    %7948 = vmatprep.subr.bf16.mxu0 %v7895
    %7949 = vmatpush1.bf16.msra.mxu0 %v7894
    %7950 = vmatprep.subr.bf16.mxu0 %v7891
    %7951 = vmatpush1.bf16.msra.mxu0 %v7890
    %7952 = vmatprep.subr.bf16.mxu0 %v7887
    %7953 = vmatpush1.bf16.msra.mxu0 %v7886
    %7954 = vmatprep.subr.bf16.mxu0 %v7883
    %7955 = vmatpush1.bf16.msra.mxu0 %v7882
    %7956 = vmatprep.subr.bf16.mxu0 %v7879
    %7957 = vmatpush1.bf16.msra.mxu0 %v7878
    %7958 = vmatprep.subr.bf16.mxu0 0
    %7959 = vmatpush2.bf16.msra.mxu0 0
    %7960 = vmatprep.subr.bf16.mxu0 0
    %7961 = vmatpush2.bf16.msra.mxu0 0
    %7962 = vmatprep.subr.bf16.mxu0 0
    %7963 = vmatpush2.bf16.msra.mxu0 0
    %7964 = vmatprep.subr.bf16.mxu0 0
    %7965 = vmatpush2.bf16.msra.mxu0 0
    %7966 = vmatprep.subr.bf16.mxu0 0
    %7967 = vmatpush2.bf16.msra.mxu0 0
    %7968 = vmatprep.subr.bf16.mxu0 0
    %7969 = vmatpush2.bf16.msra.mxu0 0
    %7970 = vmatprep.subr.bf16.mxu0 0
    %7971 = vmatpush2.bf16.msra.mxu0 0
    %7972 = vmatprep.subr.bf16.mxu0 0
    %7973 = vmatpush2.bf16.msra.mxu0 0
    %7974 = vmatprep.mubr.bf16.mxu0 0
    %7975 = vmatmul.mubr.bf16.gmra.mxu0 %v7749
    %v7976 = vpop.f32.mrf.mxu0
    %v7977 = vadd.f32 %v5365, %v7976
    %v7978 = vpop.f32.mrf.mxu0
    %v7979 = vadd.f32 %v5369, %v7978
    %v7980 = vpop.f32.mrf.mxu0
    %v7981 = vpop.f32.mrf.mxu0
    %7982 = vdwg.mxu0
    %7983 = vmatprep.subr.bf16.mxu0 %v7909
    %7984 = vmatpush1.bf16.msra.mxu0 %v7908
    %7985 = vmatprep.subr.bf16.mxu0 %v7905
    %7986 = vmatpush1.bf16.msra.mxu0 %v7904
    %7987 = vmatprep.subr.bf16.mxu0 %v7901
    %7988 = vmatpush1.bf16.msra.mxu0 %v7900
    %7989 = vmatprep.subr.bf16.mxu0 %v7897
    %7990 = vmatpush1.bf16.msra.mxu0 %v7896
    %7991 = vmatprep.subr.bf16.mxu0 %v7893
    %7992 = vmatpush1.bf16.msra.mxu0 %v7892
    %7993 = vmatprep.subr.bf16.mxu0 %v7889
    %7994 = vmatpush1.bf16.msra.mxu0 %v7888
    %7995 = vmatprep.subr.bf16.mxu0 %v7885
    %7996 = vmatpush1.bf16.msra.mxu0 %v7884
    %7997 = vmatprep.subr.bf16.mxu0 %v7881
    %7998 = vmatpush1.bf16.msra.mxu0 %v7880
    %7999 = vmatprep.subr.bf16.mxu0 0
    %8000 = vmatpush2.bf16.msra.mxu0 0
    %8001 = vmatprep.subr.bf16.mxu0 0
    %8002 = vmatpush2.bf16.msra.mxu0 0
    %8003 = vmatprep.subr.bf16.mxu0 0
    %8004 = vmatpush2.bf16.msra.mxu0 0
    %8005 = vmatprep.subr.bf16.mxu0 0
    %8006 = vmatpush2.bf16.msra.mxu0 0
    %8007 = vmatprep.subr.bf16.mxu0 0
    %8008 = vmatpush2.bf16.msra.mxu0 0
    %8009 = vmatprep.subr.bf16.mxu0 0
    %8010 = vmatpush2.bf16.msra.mxu0 0
    %8011 = vmatprep.subr.bf16.mxu0 0
    %8012 = vmatpush2.bf16.msra.mxu0 0
    %8013 = vmatprep.subr.bf16.mxu0 0
    %8014 = vmatpush2.bf16.msra.mxu0 0
    %8015 = vmatprep.mubr.bf16.mxu0 0
    %8016 = vmatmul.mubr.bf16.gmra.mxu0 %v7749
    %v8017 = vpop.f32.mrf.mxu0
    %v8018 = vadd.f32 %v5373, %v8017
    %v8019 = vpop.f32.mrf.mxu0
    %v8020 = vadd.f32 %v5377, %v8019
    %v8021 = vpop.f32.mrf.mxu0
    %v8022 = vpop.f32.mrf.mxu0
    %8023 = vdwg.mxu0
    %8024 = vst [vmem:[#allocation3 + $0x80] sm:$0xff] %v7977
    %8025 = vst [vmem:[#allocation3 + $0x88] sm:$0xff] %v7979
    %8026 = vst [vmem:[#allocation3 + $0x90] sm:$0xff] %v8018
    %8027 = vst [vmem:[#allocation3 + $0x98] sm:$0xff] %v8020
    %v8028 = vld [vmem:[#allocation2 + $0xa0] sm:$0xff]
    %v8029 = vld [vmem:[#allocation2 + $0xa8] sm:$0xff]
    %v8030 = vld [vmem:[#allocation2 + $0xb0] sm:$0xff]
    %v8031 = vld [vmem:[#allocation2 + $0xb8] sm:$0xff]
    %v8032 = vld [vmem:[#allocation12] sm:$0xff]
    %v8033 = vld [vmem:[#allocation12 + $0x8] sm:$0xff]
    %v8034 = vld [vmem:[#allocation12 + $0x10] sm:$0xff]
    %v8035 = vld [vmem:[#allocation12 + $0x18] sm:$0xff]
    %v8036 = vld [vmem:[#allocation12 + $0x20] sm:$0xff]
    %v8037 = vld [vmem:[#allocation12 + $0x28] sm:$0xff]
    %v8038 = vld [vmem:[#allocation12 + $0x30] sm:$0xff]
    %v8039 = vld [vmem:[#allocation12 + $0x38] sm:$0xff]
    %v8040 = vld [vmem:[#allocation12 + $0x40] sm:$0xff]
    %v8041 = vld [vmem:[#allocation12 + $0x48] sm:$0xff]
    %v8042 = vld [vmem:[#allocation12 + $0x50] sm:$0xff]
    %v8043 = vld [vmem:[#allocation12 + $0x58] sm:$0xff]
    %v8044 = vld [vmem:[#allocation12 + $0x60] sm:$0xff]
    %v8045 = vld [vmem:[#allocation12 + $0x68] sm:$0xff]
    %v8046 = vld [vmem:[#allocation12 + $0x70] sm:$0xff]
    %v8047 = vld [vmem:[#allocation12 + $0x78] sm:$0xff]
    %v8048 = vld [vmem:[#allocation12 + $0x80] sm:$0xff]
    %v8049 = vld [vmem:[#allocation12 + $0x88] sm:$0xff]
    %v8050 = vld [vmem:[#allocation12 + $0x90] sm:$0xff]
    %v8051 = vld [vmem:[#allocation12 + $0x98] sm:$0xff]
    %v8052 = vld [vmem:[#allocation12 + $0xa0] sm:$0xff]
    %v8053 = vld [vmem:[#allocation12 + $0xa8] sm:$0xff]
    %v8054 = vld [vmem:[#allocation12 + $0xb0] sm:$0xff]
    %v8055 = vld [vmem:[#allocation12 + $0xb8] sm:$0xff]
    %v8056 = vld [vmem:[#allocation12 + $0xc0] sm:$0xff]
    %v8057 = vld [vmem:[#allocation12 + $0xc8] sm:$0xff]
    %v8058 = vld [vmem:[#allocation12 + $0xd0] sm:$0xff]
    %v8059 = vld [vmem:[#allocation12 + $0xd8] sm:$0xff]
    %v8060 = vld [vmem:[#allocation12 + $0xe0] sm:$0xff]
    %v8061 = vld [vmem:[#allocation12 + $0xe8] sm:$0xff]
    %v8062 = vld [vmem:[#allocation12 + $0xf0] sm:$0xff]
    %v8063 = vld [vmem:[#allocation12 + $0xf8] sm:$0xff]
    %v8096 = vunpack.c.l.b16 %v8032
    %v8097 = vunpack.c.h.b16 %v8032
    %v8098 = vunpack.c.l.b16 %v8033
    %v8099 = vunpack.c.h.b16 %v8033
    %v8100 = vunpack.c.l.b16 %v8034
    %v8101 = vunpack.c.h.b16 %v8034
    %v8102 = vunpack.c.l.b16 %v8035
    %v8103 = vunpack.c.h.b16 %v8035
    %v8104 = vunpack.c.l.b16 %v8036
    %v8105 = vunpack.c.h.b16 %v8036
    %v8106 = vunpack.c.l.b16 %v8037
    %v8107 = vunpack.c.h.b16 %v8037
    %v8108 = vunpack.c.l.b16 %v8038
    %v8109 = vunpack.c.h.b16 %v8038
    %v8110 = vunpack.c.l.b16 %v8039
    %v8111 = vunpack.c.h.b16 %v8039
    %v8112 = vunpack.c.l.b16 %v8040
    %v8113 = vunpack.c.h.b16 %v8040
    %v8114 = vunpack.c.l.b16 %v8041
    %v8115 = vunpack.c.h.b16 %v8041
    %v8116 = vunpack.c.l.b16 %v8042
    %v8117 = vunpack.c.h.b16 %v8042
    %v8118 = vunpack.c.l.b16 %v8043
    %v8119 = vunpack.c.h.b16 %v8043
    %v8120 = vunpack.c.l.b16 %v8044
    %v8121 = vunpack.c.h.b16 %v8044
    %v8122 = vunpack.c.l.b16 %v8045
    %v8123 = vunpack.c.h.b16 %v8045
    %v8124 = vunpack.c.l.b16 %v8046
    %v8125 = vunpack.c.h.b16 %v8046
    %v8126 = vunpack.c.l.b16 %v8047
    %v8127 = vunpack.c.h.b16 %v8047
    %v8128 = vunpack.c.l.b16 %v8048
    %v8129 = vunpack.c.h.b16 %v8048
    %v8130 = vunpack.c.l.b16 %v8049
    %v8131 = vunpack.c.h.b16 %v8049
    %v8132 = vunpack.c.l.b16 %v8050
    %v8133 = vunpack.c.h.b16 %v8050
    %v8134 = vunpack.c.l.b16 %v8051
    %v8135 = vunpack.c.h.b16 %v8051
    %v8136 = vunpack.c.l.b16 %v8052
    %v8137 = vunpack.c.h.b16 %v8052
    %v8138 = vunpack.c.l.b16 %v8053
    %v8139 = vunpack.c.h.b16 %v8053
    %v8140 = vunpack.c.l.b16 %v8054
    %v8141 = vunpack.c.h.b16 %v8054
    %v8142 = vunpack.c.l.b16 %v8055
    %v8143 = vunpack.c.h.b16 %v8055
    %v8144 = vunpack.c.l.b16 %v8056
    %v8145 = vunpack.c.h.b16 %v8056
    %v8146 = vunpack.c.l.b16 %v8057
    %v8147 = vunpack.c.h.b16 %v8057
    %v8148 = vunpack.c.l.b16 %v8058
    %v8149 = vunpack.c.h.b16 %v8058
    %v8150 = vunpack.c.l.b16 %v8059
    %v8151 = vunpack.c.h.b16 %v8059
    %v8152 = vunpack.c.l.b16 %v8060
    %v8153 = vunpack.c.h.b16 %v8060
    %v8154 = vunpack.c.l.b16 %v8061
    %v8155 = vunpack.c.h.b16 %v8061
    %v8156 = vunpack.c.l.b16 %v8062
    %v8157 = vunpack.c.h.b16 %v8062
    %v8158 = vunpack.c.l.b16 %v8063
    %v8159 = vunpack.c.h.b16 %v8063
    %v8160 = vpack.c.b16 %v8100, %v8096
    %v8161 = vpack.c.b16 %v8101, %v8097
    %v8162 = vpack.c.b16 %v8102, %v8098
    %v8163 = vpack.c.b16 %v8103, %v8099
    %v8164 = vpack.c.b16 %v8108, %v8104
    %v8165 = vpack.c.b16 %v8109, %v8105
    %v8166 = vpack.c.b16 %v8110, %v8106
    %v8167 = vpack.c.b16 %v8111, %v8107
    %v8168 = vpack.c.b16 %v8116, %v8112
    %v8169 = vpack.c.b16 %v8117, %v8113
    %v8170 = vpack.c.b16 %v8118, %v8114
    %v8171 = vpack.c.b16 %v8119, %v8115
    %v8172 = vpack.c.b16 %v8124, %v8120
    %v8173 = vpack.c.b16 %v8125, %v8121
    %v8174 = vpack.c.b16 %v8126, %v8122
    %v8175 = vpack.c.b16 %v8127, %v8123
    %v8176 = vpack.c.b16 %v8132, %v8128
    %v8177 = vpack.c.b16 %v8133, %v8129
    %v8178 = vpack.c.b16 %v8134, %v8130
    %v8179 = vpack.c.b16 %v8135, %v8131
    %v8180 = vpack.c.b16 %v8140, %v8136
    %v8181 = vpack.c.b16 %v8141, %v8137
    %v8182 = vpack.c.b16 %v8142, %v8138
    %v8183 = vpack.c.b16 %v8143, %v8139
    %v8184 = vpack.c.b16 %v8148, %v8144
    %v8185 = vpack.c.b16 %v8149, %v8145
    %v8186 = vpack.c.b16 %v8150, %v8146
    %v8187 = vpack.c.b16 %v8151, %v8147
    %v8188 = vpack.c.b16 %v8156, %v8152
    %v8189 = vpack.c.b16 %v8157, %v8153
    %v8190 = vpack.c.b16 %v8158, %v8154
    %v8191 = vpack.c.b16 %v8159, %v8155
    %8224 = vmatprep.subr.bf16.mxu0 %v8189
    %8225 = vmatpush1.bf16.msra.mxu0 %v8188
    %8226 = vmatprep.subr.bf16.mxu0 %v8185
    %8227 = vmatpush1.bf16.msra.mxu0 %v8184
    %8228 = vmatprep.subr.bf16.mxu0 %v8181
    %8229 = vmatpush1.bf16.msra.mxu0 %v8180
    %8230 = vmatprep.subr.bf16.mxu0 %v8177
    %8231 = vmatpush1.bf16.msra.mxu0 %v8176
    %8232 = vmatprep.subr.bf16.mxu0 %v8173
    %8233 = vmatpush1.bf16.msra.mxu0 %v8172
    %8234 = vmatprep.subr.bf16.mxu0 %v8169
    %8235 = vmatpush1.bf16.msra.mxu0 %v8168
    %8236 = vmatprep.subr.bf16.mxu0 %v8165
    %8237 = vmatpush1.bf16.msra.mxu0 %v8164
    %8238 = vmatprep.subr.bf16.mxu0 %v8161
    %8239 = vmatpush1.bf16.msra.mxu0 %v8160
    %8240 = vmatprep.subr.bf16.mxu0 0
    %8241 = vmatpush2.bf16.msra.mxu0 0
    %8242 = vmatprep.subr.bf16.mxu0 0
    %8243 = vmatpush2.bf16.msra.mxu0 0
    %8244 = vmatprep.subr.bf16.mxu0 0
    %8245 = vmatpush2.bf16.msra.mxu0 0
    %8246 = vmatprep.subr.bf16.mxu0 0
    %8247 = vmatpush2.bf16.msra.mxu0 0
    %8248 = vmatprep.subr.bf16.mxu0 0
    %8249 = vmatpush2.bf16.msra.mxu0 0
    %8250 = vmatprep.subr.bf16.mxu0 0
    %8251 = vmatpush2.bf16.msra.mxu0 0
    %8252 = vmatprep.subr.bf16.mxu0 0
    %8253 = vmatpush2.bf16.msra.mxu0 0
    %8254 = vmatprep.subr.bf16.mxu0 0
    %8255 = vmatpush2.bf16.msra.mxu0 0
    %8256 = vmatprep.mubr.bf16.mxu0 0
    %8257 = vmatmul.mubr.bf16.gmra.mxu0 %v7728
    %v8258 = vpop.f32.mrf.mxu0
    %v8259 = vadd.f32 0.0, %v8258
    %v8260 = vpop.f32.mrf.mxu0
    %v8261 = vadd.f32 0.0, %v8260
    %v8262 = vpop.f32.mrf.mxu0
    %v8263 = vpop.f32.mrf.mxu0
    %8264 = vdwg.mxu0
    %8265 = vmatprep.subr.bf16.mxu0 %v8191
    %8266 = vmatpush1.bf16.msra.mxu0 %v8190
    %8267 = vmatprep.subr.bf16.mxu0 %v8187
    %8268 = vmatpush1.bf16.msra.mxu0 %v8186
    %8269 = vmatprep.subr.bf16.mxu0 %v8183
    %8270 = vmatpush1.bf16.msra.mxu0 %v8182
    %8271 = vmatprep.subr.bf16.mxu0 %v8179
    %8272 = vmatpush1.bf16.msra.mxu0 %v8178
    %8273 = vmatprep.subr.bf16.mxu0 %v8175
    %8274 = vmatpush1.bf16.msra.mxu0 %v8174
    %8275 = vmatprep.subr.bf16.mxu0 %v8171
    %8276 = vmatpush1.bf16.msra.mxu0 %v8170
    %8277 = vmatprep.subr.bf16.mxu0 %v8167
    %8278 = vmatpush1.bf16.msra.mxu0 %v8166
    %8279 = vmatprep.subr.bf16.mxu0 %v8163
    %8280 = vmatpush1.bf16.msra.mxu0 %v8162
    %8281 = vmatprep.subr.bf16.mxu0 0
    %8282 = vmatpush2.bf16.msra.mxu0 0
    %8283 = vmatprep.subr.bf16.mxu0 0
    %8284 = vmatpush2.bf16.msra.mxu0 0
    %8285 = vmatprep.subr.bf16.mxu0 0
    %8286 = vmatpush2.bf16.msra.mxu0 0
    %8287 = vmatprep.subr.bf16.mxu0 0
    %8288 = vmatpush2.bf16.msra.mxu0 0
    %8289 = vmatprep.subr.bf16.mxu0 0
    %8290 = vmatpush2.bf16.msra.mxu0 0
    %8291 = vmatprep.subr.bf16.mxu0 0
    %8292 = vmatpush2.bf16.msra.mxu0 0
    %8293 = vmatprep.subr.bf16.mxu0 0
    %8294 = vmatpush2.bf16.msra.mxu0 0
    %8295 = vmatprep.subr.bf16.mxu0 0
    %8296 = vmatpush2.bf16.msra.mxu0 0
    %8297 = vmatprep.mubr.bf16.mxu0 0
    %8298 = vmatmul.mubr.bf16.gmra.mxu0 %v7728
    %v8299 = vpop.f32.mrf.mxu0
    %v8300 = vadd.f32 0.0, %v8299
    %v8301 = vpop.f32.mrf.mxu0
    %v8302 = vadd.f32 0.0, %v8301
    %v8303 = vpop.f32.mrf.mxu0
    %v8304 = vpop.f32.mrf.mxu0
    %8305 = vdwg.mxu0
    %v8306 = vadd.f32 %v8028, %v8259
    %v8307 = vadd.f32 %v8029, %v8261
    %v8308 = vadd.f32 %v8030, %v8300
    %v8309 = vadd.f32 %v8031, %v8302
    %v8310 = vmul.f32 %v8306, 0.5
    %v8311 = vmul.f32 %v8307, 0.5
    %v8312 = vmul.f32 %v8308, 0.5
    %v8313 = vtanh.pop %v8310
    %v8314 = vtanh.pop %v8311
    %v8315 = vtanh.pop %v8312
    %v8316 = vmul.f32 %v8313, 0.5
    %v8317 = vmul.f32 %v8314, 0.5
    %v8318 = vmul.f32 %v8315, 0.5
    %v8319 = vadd.f32 %v8316, 0.5
    %v8320 = vadd.f32 %v8317, 0.5
    %v8321 = vadd.f32 %v8318, 0.5
    %v8322 = vtanh.pop %v8309
    %v8323 = vmul.f32 %v8320, %v7725
    %v8324 = vmul.f32 %v8319, %v8322
    %v8325 = vadd.f32 %v8323, %v8324
    %v8326 = vtanh.pop %v8325
    %v8327 = vmul.f32 %v8321, %v8326
    %v8328 = vpack.c.bf16 %v8327, %v8327
    %8329 = vadd.xlane.f32.xlu0 %v8327
    %v8330 = vpop.xlane.xlu0 %8329
    %v8331 = vmul.f32 %v8330, %v461
    %v8332 = vmul.f32 %v8327, %v8327
    %8333 = vadd.xlane.f32.xlu0 %v8332
    %v8334 = vpop.xlane.xlu0 %8333
    %v8335 = vmul.f32 %v8334, %v461
    %v8336 = vmul.f32 %v8331, %v8331
    %v8337 = vsub.f32 %v8335, %v8336
    %v8338 = vsub.f32 %v8327, %v8331
    %v8339 = vadd.f32 %v8337, 1e-05
    %v8340 = vrsqrt.pop %v8339
    %v8341 = vmul.f32 %v8338, %v8340
    %v8342 = vmul.f32 %v8341, %v5313
    %v8343 = vadd.f32 %v8342, %v5320
    %v8344 = vmul.f32 %v8343, 0.5
    %v8345 = vtanh.pop %v8344
    %v8346 = vmul.f32 %v8345, 0.5
    %v8347 = vadd.f32 %v8346, 0.5
    %v8348 = vmul.f32 %v8343, %v8347
    %v8349 = vpack.c.bf16 %v8348, %v8348
    %v8350 = vld [vmem:[#allocation13] sm:$0xff]
    %v8351 = vld [vmem:[#allocation13 + $0x8] sm:$0xff]
    %v8352 = vld [vmem:[#allocation13 + $0x10] sm:$0xff]
    %v8353 = vld [vmem:[#allocation13 + $0x18] sm:$0xff]
    %v8354 = vld [vmem:[#allocation13 + $0x20] sm:$0xff]
    %v8355 = vld [vmem:[#allocation13 + $0x28] sm:$0xff]
    %v8356 = vld [vmem:[#allocation13 + $0x30] sm:$0xff]
    %v8357 = vld [vmem:[#allocation13 + $0x38] sm:$0xff]
    %v8358 = vld [vmem:[#allocation13 + $0x40] sm:$0xff]
    %v8359 = vld [vmem:[#allocation13 + $0x48] sm:$0xff]
    %v8360 = vld [vmem:[#allocation13 + $0x50] sm:$0xff]
    %v8361 = vld [vmem:[#allocation13 + $0x58] sm:$0xff]
    %v8362 = vld [vmem:[#allocation13 + $0x60] sm:$0xff]
    %v8363 = vld [vmem:[#allocation13 + $0x68] sm:$0xff]
    %v8364 = vld [vmem:[#allocation13 + $0x70] sm:$0xff]
    %v8365 = vld [vmem:[#allocation13 + $0x78] sm:$0xff]
    %v8366 = vld [vmem:[#allocation13 + $0x80] sm:$0xff]
    %v8367 = vld [vmem:[#allocation13 + $0x88] sm:$0xff]
    %v8368 = vld [vmem:[#allocation13 + $0x90] sm:$0xff]
    %v8369 = vld [vmem:[#allocation13 + $0x98] sm:$0xff]
    %v8370 = vld [vmem:[#allocation13 + $0xa0] sm:$0xff]
    %v8371 = vld [vmem:[#allocation13 + $0xa8] sm:$0xff]
    %v8372 = vld [vmem:[#allocation13 + $0xb0] sm:$0xff]
    %v8373 = vld [vmem:[#allocation13 + $0xb8] sm:$0xff]
    %v8374 = vld [vmem:[#allocation13 + $0xc0] sm:$0xff]
    %v8375 = vld [vmem:[#allocation13 + $0xc8] sm:$0xff]
    %v8376 = vld [vmem:[#allocation13 + $0xd0] sm:$0xff]
    %v8377 = vld [vmem:[#allocation13 + $0xd8] sm:$0xff]
    %v8378 = vld [vmem:[#allocation13 + $0xe0] sm:$0xff]
    %v8379 = vld [vmem:[#allocation13 + $0xe8] sm:$0xff]
    %v8380 = vld [vmem:[#allocation13 + $0xf0] sm:$0xff]
    %v8381 = vld [vmem:[#allocation13 + $0xf8] sm:$0xff]
    %v8414 = vunpack.c.l.b16 %v8350
    %v8415 = vunpack.c.h.b16 %v8350
    %v8416 = vunpack.c.l.b16 %v8351
    %v8417 = vunpack.c.h.b16 %v8351
    %v8418 = vunpack.c.l.b16 %v8352
    %v8419 = vunpack.c.h.b16 %v8352
    %v8420 = vunpack.c.l.b16 %v8353
    %v8421 = vunpack.c.h.b16 %v8353
    %v8422 = vunpack.c.l.b16 %v8354
    %v8423 = vunpack.c.h.b16 %v8354
    %v8424 = vunpack.c.l.b16 %v8355
    %v8425 = vunpack.c.h.b16 %v8355
    %v8426 = vunpack.c.l.b16 %v8356
    %v8427 = vunpack.c.h.b16 %v8356
    %v8428 = vunpack.c.l.b16 %v8357
    %v8429 = vunpack.c.h.b16 %v8357
    %v8430 = vunpack.c.l.b16 %v8358
    %v8431 = vunpack.c.h.b16 %v8358
    %v8432 = vunpack.c.l.b16 %v8359
    %v8433 = vunpack.c.h.b16 %v8359
    %v8434 = vunpack.c.l.b16 %v8360
    %v8435 = vunpack.c.h.b16 %v8360
    %v8436 = vunpack.c.l.b16 %v8361
    %v8437 = vunpack.c.h.b16 %v8361
    %v8438 = vunpack.c.l.b16 %v8362
    %v8439 = vunpack.c.h.b16 %v8362
    %v8440 = vunpack.c.l.b16 %v8363
    %v8441 = vunpack.c.h.b16 %v8363
    %v8442 = vunpack.c.l.b16 %v8364
    %v8443 = vunpack.c.h.b16 %v8364
    %v8444 = vunpack.c.l.b16 %v8365
    %v8445 = vunpack.c.h.b16 %v8365
    %v8446 = vunpack.c.l.b16 %v8366
    %v8447 = vunpack.c.h.b16 %v8366
    %v8448 = vunpack.c.l.b16 %v8367
    %v8449 = vunpack.c.h.b16 %v8367
    %v8450 = vunpack.c.l.b16 %v8368
    %v8451 = vunpack.c.h.b16 %v8368
    %v8452 = vunpack.c.l.b16 %v8369
    %v8453 = vunpack.c.h.b16 %v8369
    %v8454 = vunpack.c.l.b16 %v8370
    %v8455 = vunpack.c.h.b16 %v8370
    %v8456 = vunpack.c.l.b16 %v8371
    %v8457 = vunpack.c.h.b16 %v8371
    %v8458 = vunpack.c.l.b16 %v8372
    %v8459 = vunpack.c.h.b16 %v8372
    %v8460 = vunpack.c.l.b16 %v8373
    %v8461 = vunpack.c.h.b16 %v8373
    %v8462 = vunpack.c.l.b16 %v8374
    %v8463 = vunpack.c.h.b16 %v8374
    %v8464 = vunpack.c.l.b16 %v8375
    %v8465 = vunpack.c.h.b16 %v8375
    %v8466 = vunpack.c.l.b16 %v8376
    %v8467 = vunpack.c.h.b16 %v8376
    %v8468 = vunpack.c.l.b16 %v8377
    %v8469 = vunpack.c.h.b16 %v8377
    %v8470 = vunpack.c.l.b16 %v8378
    %v8471 = vunpack.c.h.b16 %v8378
    %v8472 = vunpack.c.l.b16 %v8379
    %v8473 = vunpack.c.h.b16 %v8379
    %v8474 = vunpack.c.l.b16 %v8380
    %v8475 = vunpack.c.h.b16 %v8380
    %v8476 = vunpack.c.l.b16 %v8381
    %v8477 = vunpack.c.h.b16 %v8381
    %v8478 = vpack.c.b16 %v8418, %v8414
    %v8479 = vpack.c.b16 %v8419, %v8415
    %v8480 = vpack.c.b16 %v8420, %v8416
    %v8481 = vpack.c.b16 %v8421, %v8417
    %v8482 = vpack.c.b16 %v8426, %v8422
    %v8483 = vpack.c.b16 %v8427, %v8423
    %v8484 = vpack.c.b16 %v8428, %v8424
    %v8485 = vpack.c.b16 %v8429, %v8425
    %v8486 = vpack.c.b16 %v8434, %v8430
    %v8487 = vpack.c.b16 %v8435, %v8431
    %v8488 = vpack.c.b16 %v8436, %v8432
    %v8489 = vpack.c.b16 %v8437, %v8433
    %v8490 = vpack.c.b16 %v8442, %v8438
    %v8491 = vpack.c.b16 %v8443, %v8439
    %v8492 = vpack.c.b16 %v8444, %v8440
    %v8493 = vpack.c.b16 %v8445, %v8441
    %v8494 = vpack.c.b16 %v8450, %v8446
    %v8495 = vpack.c.b16 %v8451, %v8447
    %v8496 = vpack.c.b16 %v8452, %v8448
    %v8497 = vpack.c.b16 %v8453, %v8449
    %v8498 = vpack.c.b16 %v8458, %v8454
    %v8499 = vpack.c.b16 %v8459, %v8455
    %v8500 = vpack.c.b16 %v8460, %v8456
    %v8501 = vpack.c.b16 %v8461, %v8457
    %v8502 = vpack.c.b16 %v8466, %v8462
    %v8503 = vpack.c.b16 %v8467, %v8463
    %v8504 = vpack.c.b16 %v8468, %v8464
    %v8505 = vpack.c.b16 %v8469, %v8465
    %v8506 = vpack.c.b16 %v8474, %v8470
    %v8507 = vpack.c.b16 %v8475, %v8471
    %v8508 = vpack.c.b16 %v8476, %v8472
    %v8509 = vpack.c.b16 %v8477, %v8473
    %8542 = vmatprep.subr.bf16.mxu0 %v8507
    %8543 = vmatpush1.bf16.msra.mxu0 %v8506
    %8544 = vmatprep.subr.bf16.mxu0 %v8503
    %8545 = vmatpush1.bf16.msra.mxu0 %v8502
    %8546 = vmatprep.subr.bf16.mxu0 %v8499
    %8547 = vmatpush1.bf16.msra.mxu0 %v8498
    %8548 = vmatprep.subr.bf16.mxu0 %v8495
    %8549 = vmatpush1.bf16.msra.mxu0 %v8494
    %8550 = vmatprep.subr.bf16.mxu0 %v8491
    %8551 = vmatpush1.bf16.msra.mxu0 %v8490
    %8552 = vmatprep.subr.bf16.mxu0 %v8487
    %8553 = vmatpush1.bf16.msra.mxu0 %v8486
    %8554 = vmatprep.subr.bf16.mxu0 %v8483
    %8555 = vmatpush1.bf16.msra.mxu0 %v8482
    %8556 = vmatprep.subr.bf16.mxu0 %v8479
    %8557 = vmatpush1.bf16.msra.mxu0 %v8478
    %8558 = vmatprep.subr.bf16.mxu0 0
    %8559 = vmatpush2.bf16.msra.mxu0 0
    %8560 = vmatprep.subr.bf16.mxu0 0
    %8561 = vmatpush2.bf16.msra.mxu0 0
    %8562 = vmatprep.subr.bf16.mxu0 0
    %8563 = vmatpush2.bf16.msra.mxu0 0
    %8564 = vmatprep.subr.bf16.mxu0 0
    %8565 = vmatpush2.bf16.msra.mxu0 0
    %8566 = vmatprep.subr.bf16.mxu0 0
    %8567 = vmatpush2.bf16.msra.mxu0 0
    %8568 = vmatprep.subr.bf16.mxu0 0
    %8569 = vmatpush2.bf16.msra.mxu0 0
    %8570 = vmatprep.subr.bf16.mxu0 0
    %8571 = vmatpush2.bf16.msra.mxu0 0
    %8572 = vmatprep.subr.bf16.mxu0 0
    %8573 = vmatpush2.bf16.msra.mxu0 0
    %8574 = vmatprep.mubr.bf16.mxu0 0
    %8575 = vmatmul.mubr.bf16.gmra.mxu0 %v8349
    %v8576 = vpop.f32.mrf.mxu0
    %v8577 = vadd.f32 %v5365, %v8576
    %v8578 = vpop.f32.mrf.mxu0
    %v8579 = vadd.f32 %v5369, %v8578
    %v8580 = vpop.f32.mrf.mxu0
    %v8581 = vpop.f32.mrf.mxu0
    %8582 = vdwg.mxu0
    %8583 = vmatprep.subr.bf16.mxu0 %v8509
    %8584 = vmatpush1.bf16.msra.mxu0 %v8508
    %8585 = vmatprep.subr.bf16.mxu0 %v8505
    %8586 = vmatpush1.bf16.msra.mxu0 %v8504
    %8587 = vmatprep.subr.bf16.mxu0 %v8501
    %8588 = vmatpush1.bf16.msra.mxu0 %v8500
    %8589 = vmatprep.subr.bf16.mxu0 %v8497
    %8590 = vmatpush1.bf16.msra.mxu0 %v8496
    %8591 = vmatprep.subr.bf16.mxu0 %v8493
    %8592 = vmatpush1.bf16.msra.mxu0 %v8492
    %8593 = vmatprep.subr.bf16.mxu0 %v8489
    %8594 = vmatpush1.bf16.msra.mxu0 %v8488
    %8595 = vmatprep.subr.bf16.mxu0 %v8485
    %8596 = vmatpush1.bf16.msra.mxu0 %v8484
    %8597 = vmatprep.subr.bf16.mxu0 %v8481
    %8598 = vmatpush1.bf16.msra.mxu0 %v8480
    %8599 = vmatprep.subr.bf16.mxu0 0
    %8600 = vmatpush2.bf16.msra.mxu0 0
    %8601 = vmatprep.subr.bf16.mxu0 0
    %8602 = vmatpush2.bf16.msra.mxu0 0
    %8603 = vmatprep.subr.bf16.mxu0 0
    %8604 = vmatpush2.bf16.msra.mxu0 0
    %8605 = vmatprep.subr.bf16.mxu0 0
    %8606 = vmatpush2.bf16.msra.mxu0 0
    %8607 = vmatprep.subr.bf16.mxu0 0
    %8608 = vmatpush2.bf16.msra.mxu0 0
    %8609 = vmatprep.subr.bf16.mxu0 0
    %8610 = vmatpush2.bf16.msra.mxu0 0
    %8611 = vmatprep.subr.bf16.mxu0 0
    %8612 = vmatpush2.bf16.msra.mxu0 0
    %8613 = vmatprep.subr.bf16.mxu0 0
    %8614 = vmatpush2.bf16.msra.mxu0 0
    %8615 = vmatprep.mubr.bf16.mxu0 0
    %8616 = vmatmul.mubr.bf16.gmra.mxu0 %v8349
    %v8617 = vpop.f32.mrf.mxu0
    %v8618 = vadd.f32 %v5373, %v8617
    %v8619 = vpop.f32.mrf.mxu0
    %v8620 = vadd.f32 %v5377, %v8619
    %v8621 = vpop.f32.mrf.mxu0
    %v8622 = vpop.f32.mrf.mxu0
    %8623 = vdwg.mxu0
    %8624 = vst [vmem:[#allocation3 + $0xa0] sm:$0xff] %v8577
    %8625 = vst [vmem:[#allocation3 + $0xa8] sm:$0xff] %v8579
    %8626 = vst [vmem:[#allocation3 + $0xb0] sm:$0xff] %v8618
    %8627 = vst [vmem:[#allocation3 + $0xb8] sm:$0xff] %v8620
    %v8628 = vld [vmem:[#allocation2 + $0xc0] sm:$0xff]
    %v8629 = vld [vmem:[#allocation2 + $0xc8] sm:$0xff]
    %v8630 = vld [vmem:[#allocation2 + $0xd0] sm:$0xff]
    %v8631 = vld [vmem:[#allocation2 + $0xd8] sm:$0xff]
    %v8632 = vld [vmem:[#allocation12] sm:$0xff]
    %v8633 = vld [vmem:[#allocation12 + $0x8] sm:$0xff]
    %v8634 = vld [vmem:[#allocation12 + $0x10] sm:$0xff]
    %v8635 = vld [vmem:[#allocation12 + $0x18] sm:$0xff]
    %v8636 = vld [vmem:[#allocation12 + $0x20] sm:$0xff]
    %v8637 = vld [vmem:[#allocation12 + $0x28] sm:$0xff]
    %v8638 = vld [vmem:[#allocation12 + $0x30] sm:$0xff]
    %v8639 = vld [vmem:[#allocation12 + $0x38] sm:$0xff]
    %v8640 = vld [vmem:[#allocation12 + $0x40] sm:$0xff]
    %v8641 = vld [vmem:[#allocation12 + $0x48] sm:$0xff]
    %v8642 = vld [vmem:[#allocation12 + $0x50] sm:$0xff]
    %v8643 = vld [vmem:[#allocation12 + $0x58] sm:$0xff]
    %v8644 = vld [vmem:[#allocation12 + $0x60] sm:$0xff]
    %v8645 = vld [vmem:[#allocation12 + $0x68] sm:$0xff]
    %v8646 = vld [vmem:[#allocation12 + $0x70] sm:$0xff]
    %v8647 = vld [vmem:[#allocation12 + $0x78] sm:$0xff]
    %v8648 = vld [vmem:[#allocation12 + $0x80] sm:$0xff]
    %v8649 = vld [vmem:[#allocation12 + $0x88] sm:$0xff]
    %v8650 = vld [vmem:[#allocation12 + $0x90] sm:$0xff]
    %v8651 = vld [vmem:[#allocation12 + $0x98] sm:$0xff]
    %v8652 = vld [vmem:[#allocation12 + $0xa0] sm:$0xff]
    %v8653 = vld [vmem:[#allocation12 + $0xa8] sm:$0xff]
    %v8654 = vld [vmem:[#allocation12 + $0xb0] sm:$0xff]
    %v8655 = vld [vmem:[#allocation12 + $0xb8] sm:$0xff]
    %v8656 = vld [vmem:[#allocation12 + $0xc0] sm:$0xff]
    %v8657 = vld [vmem:[#allocation12 + $0xc8] sm:$0xff]
    %v8658 = vld [vmem:[#allocation12 + $0xd0] sm:$0xff]
    %v8659 = vld [vmem:[#allocation12 + $0xd8] sm:$0xff]
    %v8660 = vld [vmem:[#allocation12 + $0xe0] sm:$0xff]
    %v8661 = vld [vmem:[#allocation12 + $0xe8] sm:$0xff]
    %v8662 = vld [vmem:[#allocation12 + $0xf0] sm:$0xff]
    %v8663 = vld [vmem:[#allocation12 + $0xf8] sm:$0xff]
    %v8696 = vunpack.c.l.b16 %v8632
    %v8697 = vunpack.c.h.b16 %v8632
    %v8698 = vunpack.c.l.b16 %v8633
    %v8699 = vunpack.c.h.b16 %v8633
    %v8700 = vunpack.c.l.b16 %v8634
    %v8701 = vunpack.c.h.b16 %v8634
    %v8702 = vunpack.c.l.b16 %v8635
    %v8703 = vunpack.c.h.b16 %v8635
    %v8704 = vunpack.c.l.b16 %v8636
    %v8705 = vunpack.c.h.b16 %v8636
    %v8706 = vunpack.c.l.b16 %v8637
    %v8707 = vunpack.c.h.b16 %v8637
    %v8708 = vunpack.c.l.b16 %v8638
    %v8709 = vunpack.c.h.b16 %v8638
    %v8710 = vunpack.c.l.b16 %v8639
    %v8711 = vunpack.c.h.b16 %v8639
    %v8712 = vunpack.c.l.b16 %v8640
    %v8713 = vunpack.c.h.b16 %v8640
    %v8714 = vunpack.c.l.b16 %v8641
    %v8715 = vunpack.c.h.b16 %v8641
    %v8716 = vunpack.c.l.b16 %v8642
    %v8717 = vunpack.c.h.b16 %v8642
    %v8718 = vunpack.c.l.b16 %v8643
    %v8719 = vunpack.c.h.b16 %v8643
    %v8720 = vunpack.c.l.b16 %v8644
    %v8721 = vunpack.c.h.b16 %v8644
    %v8722 = vunpack.c.l.b16 %v8645
    %v8723 = vunpack.c.h.b16 %v8645
    %v8724 = vunpack.c.l.b16 %v8646
    %v8725 = vunpack.c.h.b16 %v8646
    %v8726 = vunpack.c.l.b16 %v8647
    %v8727 = vunpack.c.h.b16 %v8647
    %v8728 = vunpack.c.l.b16 %v8648
    %v8729 = vunpack.c.h.b16 %v8648
    %v8730 = vunpack.c.l.b16 %v8649
    %v8731 = vunpack.c.h.b16 %v8649
    %v8732 = vunpack.c.l.b16 %v8650
    %v8733 = vunpack.c.h.b16 %v8650
    %v8734 = vunpack.c.l.b16 %v8651
    %v8735 = vunpack.c.h.b16 %v8651
    %v8736 = vunpack.c.l.b16 %v8652
    %v8737 = vunpack.c.h.b16 %v8652
    %v8738 = vunpack.c.l.b16 %v8653
    %v8739 = vunpack.c.h.b16 %v8653
    %v8740 = vunpack.c.l.b16 %v8654
    %v8741 = vunpack.c.h.b16 %v8654
    %v8742 = vunpack.c.l.b16 %v8655
    %v8743 = vunpack.c.h.b16 %v8655
    %v8744 = vunpack.c.l.b16 %v8656
    %v8745 = vunpack.c.h.b16 %v8656
    %v8746 = vunpack.c.l.b16 %v8657
    %v8747 = vunpack.c.h.b16 %v8657
    %v8748 = vunpack.c.l.b16 %v8658
    %v8749 = vunpack.c.h.b16 %v8658
    %v8750 = vunpack.c.l.b16 %v8659
    %v8751 = vunpack.c.h.b16 %v8659
    %v8752 = vunpack.c.l.b16 %v8660
    %v8753 = vunpack.c.h.b16 %v8660
    %v8754 = vunpack.c.l.b16 %v8661
    %v8755 = vunpack.c.h.b16 %v8661
    %v8756 = vunpack.c.l.b16 %v8662
    %v8757 = vunpack.c.h.b16 %v8662
    %v8758 = vunpack.c.l.b16 %v8663
    %v8759 = vunpack.c.h.b16 %v8663
    %v8760 = vpack.c.b16 %v8700, %v8696
    %v8761 = vpack.c.b16 %v8701, %v8697
    %v8762 = vpack.c.b16 %v8702, %v8698
    %v8763 = vpack.c.b16 %v8703, %v8699
    %v8764 = vpack.c.b16 %v8708, %v8704
    %v8765 = vpack.c.b16 %v8709, %v8705
    %v8766 = vpack.c.b16 %v8710, %v8706
    %v8767 = vpack.c.b16 %v8711, %v8707
    %v8768 = vpack.c.b16 %v8716, %v8712
    %v8769 = vpack.c.b16 %v8717, %v8713
    %v8770 = vpack.c.b16 %v8718, %v8714
    %v8771 = vpack.c.b16 %v8719, %v8715
    %v8772 = vpack.c.b16 %v8724, %v8720
    %v8773 = vpack.c.b16 %v8725, %v8721
    %v8774 = vpack.c.b16 %v8726, %v8722
    %v8775 = vpack.c.b16 %v8727, %v8723
    %v8776 = vpack.c.b16 %v8732, %v8728
    %v8777 = vpack.c.b16 %v8733, %v8729
    %v8778 = vpack.c.b16 %v8734, %v8730
    %v8779 = vpack.c.b16 %v8735, %v8731
    %v8780 = vpack.c.b16 %v8740, %v8736
    %v8781 = vpack.c.b16 %v8741, %v8737
    %v8782 = vpack.c.b16 %v8742, %v8738
    %v8783 = vpack.c.b16 %v8743, %v8739
    %v8784 = vpack.c.b16 %v8748, %v8744
    %v8785 = vpack.c.b16 %v8749, %v8745
    %v8786 = vpack.c.b16 %v8750, %v8746
    %v8787 = vpack.c.b16 %v8751, %v8747
    %v8788 = vpack.c.b16 %v8756, %v8752
    %v8789 = vpack.c.b16 %v8757, %v8753
    %v8790 = vpack.c.b16 %v8758, %v8754
    %v8791 = vpack.c.b16 %v8759, %v8755
    %8824 = vmatprep.subr.bf16.mxu0 %v8789
    %8825 = vmatpush1.bf16.msra.mxu0 %v8788
    %8826 = vmatprep.subr.bf16.mxu0 %v8785
    %8827 = vmatpush1.bf16.msra.mxu0 %v8784
    %8828 = vmatprep.subr.bf16.mxu0 %v8781
    %8829 = vmatpush1.bf16.msra.mxu0 %v8780
    %8830 = vmatprep.subr.bf16.mxu0 %v8777
    %8831 = vmatpush1.bf16.msra.mxu0 %v8776
    %8832 = vmatprep.subr.bf16.mxu0 %v8773
    %8833 = vmatpush1.bf16.msra.mxu0 %v8772
    %8834 = vmatprep.subr.bf16.mxu0 %v8769
    %8835 = vmatpush1.bf16.msra.mxu0 %v8768
    %8836 = vmatprep.subr.bf16.mxu0 %v8765
    %8837 = vmatpush1.bf16.msra.mxu0 %v8764
    %8838 = vmatprep.subr.bf16.mxu0 %v8761
    %8839 = vmatpush1.bf16.msra.mxu0 %v8760
    %8840 = vmatprep.subr.bf16.mxu0 0
    %8841 = vmatpush2.bf16.msra.mxu0 0
    %8842 = vmatprep.subr.bf16.mxu0 0
    %8843 = vmatpush2.bf16.msra.mxu0 0
    %8844 = vmatprep.subr.bf16.mxu0 0
    %8845 = vmatpush2.bf16.msra.mxu0 0
    %8846 = vmatprep.subr.bf16.mxu0 0
    %8847 = vmatpush2.bf16.msra.mxu0 0
    %8848 = vmatprep.subr.bf16.mxu0 0
    %8849 = vmatpush2.bf16.msra.mxu0 0
    %8850 = vmatprep.subr.bf16.mxu0 0
    %8851 = vmatpush2.bf16.msra.mxu0 0
    %8852 = vmatprep.subr.bf16.mxu0 0
    %8853 = vmatpush2.bf16.msra.mxu0 0
    %8854 = vmatprep.subr.bf16.mxu0 0
    %8855 = vmatpush2.bf16.msra.mxu0 0
    %8856 = vmatprep.mubr.bf16.mxu0 0
    %8857 = vmatmul.mubr.bf16.gmra.mxu0 %v8328
    %v8858 = vpop.f32.mrf.mxu0
    %v8859 = vadd.f32 0.0, %v8858
    %v8860 = vpop.f32.mrf.mxu0
    %v8861 = vadd.f32 0.0, %v8860
    %v8862 = vpop.f32.mrf.mxu0
    %v8863 = vpop.f32.mrf.mxu0
    %8864 = vdwg.mxu0
    %8865 = vmatprep.subr.bf16.mxu0 %v8791
    %8866 = vmatpush1.bf16.msra.mxu0 %v8790
    %8867 = vmatprep.subr.bf16.mxu0 %v8787
    %8868 = vmatpush1.bf16.msra.mxu0 %v8786
    %8869 = vmatprep.subr.bf16.mxu0 %v8783
    %8870 = vmatpush1.bf16.msra.mxu0 %v8782
    %8871 = vmatprep.subr.bf16.mxu0 %v8779
    %8872 = vmatpush1.bf16.msra.mxu0 %v8778
    %8873 = vmatprep.subr.bf16.mxu0 %v8775
    %8874 = vmatpush1.bf16.msra.mxu0 %v8774
    %8875 = vmatprep.subr.bf16.mxu0 %v8771
    %8876 = vmatpush1.bf16.msra.mxu0 %v8770
    %8877 = vmatprep.subr.bf16.mxu0 %v8767
    %8878 = vmatpush1.bf16.msra.mxu0 %v8766
    %8879 = vmatprep.subr.bf16.mxu0 %v8763
    %8880 = vmatpush1.bf16.msra.mxu0 %v8762
    %8881 = vmatprep.subr.bf16.mxu0 0
    %8882 = vmatpush2.bf16.msra.mxu0 0
    %8883 = vmatprep.subr.bf16.mxu0 0
    %8884 = vmatpush2.bf16.msra.mxu0 0
    %8885 = vmatprep.subr.bf16.mxu0 0
    %8886 = vmatpush2.bf16.msra.mxu0 0
    %8887 = vmatprep.subr.bf16.mxu0 0
    %8888 = vmatpush2.bf16.msra.mxu0 0
    %8889 = vmatprep.subr.bf16.mxu0 0
    %8890 = vmatpush2.bf16.msra.mxu0 0
    %8891 = vmatprep.subr.bf16.mxu0 0
    %8892 = vmatpush2.bf16.msra.mxu0 0
    %8893 = vmatprep.subr.bf16.mxu0 0
    %8894 = vmatpush2.bf16.msra.mxu0 0
    %8895 = vmatprep.subr.bf16.mxu0 0
    %8896 = vmatpush2.bf16.msra.mxu0 0
    %8897 = vmatprep.mubr.bf16.mxu0 0
    %8898 = vmatmul.mubr.bf16.gmra.mxu0 %v8328
    %v8899 = vpop.f32.mrf.mxu0
    %v8900 = vadd.f32 0.0, %v8899
    %v8901 = vpop.f32.mrf.mxu0
    %v8902 = vadd.f32 0.0, %v8901
    %v8903 = vpop.f32.mrf.mxu0
    %v8904 = vpop.f32.mrf.mxu0
    %8905 = vdwg.mxu0
    %v8906 = vadd.f32 %v8628, %v8859
    %v8907 = vadd.f32 %v8629, %v8861
    %v8908 = vadd.f32 %v8630, %v8900
    %v8909 = vadd.f32 %v8631, %v8902
    %v8910 = vmul.f32 %v8906, 0.5
    %v8911 = vmul.f32 %v8907, 0.5
    %v8912 = vmul.f32 %v8908, 0.5
    %v8913 = vtanh.pop %v8910
    %v8914 = vtanh.pop %v8911
    %v8915 = vtanh.pop %v8912
    %v8916 = vmul.f32 %v8913, 0.5
    %v8917 = vmul.f32 %v8914, 0.5
    %v8918 = vmul.f32 %v8915, 0.5
    %v8919 = vadd.f32 %v8916, 0.5
    %v8920 = vadd.f32 %v8917, 0.5
    %v8921 = vadd.f32 %v8918, 0.5
    %v8922 = vtanh.pop %v8909
    %v8923 = vmul.f32 %v8920, %v8325
    %v8924 = vmul.f32 %v8919, %v8922
    %v8925 = vadd.f32 %v8923, %v8924
    %v8926 = vtanh.pop %v8925
    %v8927 = vmul.f32 %v8921, %v8926
    %v8928 = vpack.c.bf16 %v8927, %v8927
    %8929 = vadd.xlane.f32.xlu0 %v8927
    %v8930 = vpop.xlane.xlu0 %8929
    %v8931 = vmul.f32 %v8930, %v461
    %v8932 = vmul.f32 %v8927, %v8927
    %8933 = vadd.xlane.f32.xlu0 %v8932
    %v8934 = vpop.xlane.xlu0 %8933
    %v8935 = vmul.f32 %v8934, %v461
    %v8936 = vmul.f32 %v8931, %v8931
    %v8937 = vsub.f32 %v8935, %v8936
    %v8938 = vsub.f32 %v8927, %v8931
    %v8939 = vadd.f32 %v8937, 1e-05
    %v8940 = vrsqrt.pop %v8939
    %v8941 = vmul.f32 %v8938, %v8940
    %v8942 = vmul.f32 %v8941, %v5313
    %v8943 = vadd.f32 %v8942, %v5320
    %v8944 = vmul.f32 %v8943, 0.5
    %v8945 = vtanh.pop %v8944
    %v8946 = vmul.f32 %v8945, 0.5
    %v8947 = vadd.f32 %v8946, 0.5
    %v8948 = vmul.f32 %v8943, %v8947
    %v8949 = vpack.c.bf16 %v8948, %v8948
    %v8950 = vld [vmem:[#allocation13] sm:$0xff]
    %v8951 = vld [vmem:[#allocation13 + $0x8] sm:$0xff]
    %v8952 = vld [vmem:[#allocation13 + $0x10] sm:$0xff]
    %v8953 = vld [vmem:[#allocation13 + $0x18] sm:$0xff]
    %v8954 = vld [vmem:[#allocation13 + $0x20] sm:$0xff]
    %v8955 = vld [vmem:[#allocation13 + $0x28] sm:$0xff]
    %v8956 = vld [vmem:[#allocation13 + $0x30] sm:$0xff]
    %v8957 = vld [vmem:[#allocation13 + $0x38] sm:$0xff]
    %v8958 = vld [vmem:[#allocation13 + $0x40] sm:$0xff]
    %v8959 = vld [vmem:[#allocation13 + $0x48] sm:$0xff]
    %v8960 = vld [vmem:[#allocation13 + $0x50] sm:$0xff]
    %v8961 = vld [vmem:[#allocation13 + $0x58] sm:$0xff]
    %v8962 = vld [vmem:[#allocation13 + $0x60] sm:$0xff]
    %v8963 = vld [vmem:[#allocation13 + $0x68] sm:$0xff]
    %v8964 = vld [vmem:[#allocation13 + $0x70] sm:$0xff]
    %v8965 = vld [vmem:[#allocation13 + $0x78] sm:$0xff]
    %v8966 = vld [vmem:[#allocation13 + $0x80] sm:$0xff]
    %v8967 = vld [vmem:[#allocation13 + $0x88] sm:$0xff]
    %v8968 = vld [vmem:[#allocation13 + $0x90] sm:$0xff]
    %v8969 = vld [vmem:[#allocation13 + $0x98] sm:$0xff]
    %v8970 = vld [vmem:[#allocation13 + $0xa0] sm:$0xff]
    %v8971 = vld [vmem:[#allocation13 + $0xa8] sm:$0xff]
    %v8972 = vld [vmem:[#allocation13 + $0xb0] sm:$0xff]
    %v8973 = vld [vmem:[#allocation13 + $0xb8] sm:$0xff]
    %v8974 = vld [vmem:[#allocation13 + $0xc0] sm:$0xff]
    %v8975 = vld [vmem:[#allocation13 + $0xc8] sm:$0xff]
    %v8976 = vld [vmem:[#allocation13 + $0xd0] sm:$0xff]
    %v8977 = vld [vmem:[#allocation13 + $0xd8] sm:$0xff]
    %v8978 = vld [vmem:[#allocation13 + $0xe0] sm:$0xff]
    %v8979 = vld [vmem:[#allocation13 + $0xe8] sm:$0xff]
    %v8980 = vld [vmem:[#allocation13 + $0xf0] sm:$0xff]
    %v8981 = vld [vmem:[#allocation13 + $0xf8] sm:$0xff]
    %v9014 = vunpack.c.l.b16 %v8950
    %v9015 = vunpack.c.h.b16 %v8950
    %v9016 = vunpack.c.l.b16 %v8951
    %v9017 = vunpack.c.h.b16 %v8951
    %v9018 = vunpack.c.l.b16 %v8952
    %v9019 = vunpack.c.h.b16 %v8952
    %v9020 = vunpack.c.l.b16 %v8953
    %v9021 = vunpack.c.h.b16 %v8953
    %v9022 = vunpack.c.l.b16 %v8954
    %v9023 = vunpack.c.h.b16 %v8954
    %v9024 = vunpack.c.l.b16 %v8955
    %v9025 = vunpack.c.h.b16 %v8955
    %v9026 = vunpack.c.l.b16 %v8956
    %v9027 = vunpack.c.h.b16 %v8956
    %v9028 = vunpack.c.l.b16 %v8957
    %v9029 = vunpack.c.h.b16 %v8957
    %v9030 = vunpack.c.l.b16 %v8958
    %v9031 = vunpack.c.h.b16 %v8958
    %v9032 = vunpack.c.l.b16 %v8959
    %v9033 = vunpack.c.h.b16 %v8959
    %v9034 = vunpack.c.l.b16 %v8960
    %v9035 = vunpack.c.h.b16 %v8960
    %v9036 = vunpack.c.l.b16 %v8961
    %v9037 = vunpack.c.h.b16 %v8961
    %v9038 = vunpack.c.l.b16 %v8962
    %v9039 = vunpack.c.h.b16 %v8962
    %v9040 = vunpack.c.l.b16 %v8963
    %v9041 = vunpack.c.h.b16 %v8963
    %v9042 = vunpack.c.l.b16 %v8964
    %v9043 = vunpack.c.h.b16 %v8964
    %v9044 = vunpack.c.l.b16 %v8965
    %v9045 = vunpack.c.h.b16 %v8965
    %v9046 = vunpack.c.l.b16 %v8966
    %v9047 = vunpack.c.h.b16 %v8966
    %v9048 = vunpack.c.l.b16 %v8967
    %v9049 = vunpack.c.h.b16 %v8967
    %v9050 = vunpack.c.l.b16 %v8968
    %v9051 = vunpack.c.h.b16 %v8968
    %v9052 = vunpack.c.l.b16 %v8969
    %v9053 = vunpack.c.h.b16 %v8969
    %v9054 = vunpack.c.l.b16 %v8970
    %v9055 = vunpack.c.h.b16 %v8970
    %v9056 = vunpack.c.l.b16 %v8971
    %v9057 = vunpack.c.h.b16 %v8971
    %v9058 = vunpack.c.l.b16 %v8972
    %v9059 = vunpack.c.h.b16 %v8972
    %v9060 = vunpack.c.l.b16 %v8973
    %v9061 = vunpack.c.h.b16 %v8973
    %v9062 = vunpack.c.l.b16 %v8974
    %v9063 = vunpack.c.h.b16 %v8974
    %v9064 = vunpack.c.l.b16 %v8975
    %v9065 = vunpack.c.h.b16 %v8975
    %v9066 = vunpack.c.l.b16 %v8976
    %v9067 = vunpack.c.h.b16 %v8976
    %v9068 = vunpack.c.l.b16 %v8977
    %v9069 = vunpack.c.h.b16 %v8977
    %v9070 = vunpack.c.l.b16 %v8978
    %v9071 = vunpack.c.h.b16 %v8978
    %v9072 = vunpack.c.l.b16 %v8979
    %v9073 = vunpack.c.h.b16 %v8979
    %v9074 = vunpack.c.l.b16 %v8980
    %v9075 = vunpack.c.h.b16 %v8980
    %v9076 = vunpack.c.l.b16 %v8981
    %v9077 = vunpack.c.h.b16 %v8981
    %v9078 = vpack.c.b16 %v9018, %v9014
    %v9079 = vpack.c.b16 %v9019, %v9015
    %v9080 = vpack.c.b16 %v9020, %v9016
    %v9081 = vpack.c.b16 %v9021, %v9017
    %v9082 = vpack.c.b16 %v9026, %v9022
    %v9083 = vpack.c.b16 %v9027, %v9023
    %v9084 = vpack.c.b16 %v9028, %v9024
    %v9085 = vpack.c.b16 %v9029, %v9025
    %v9086 = vpack.c.b16 %v9034, %v9030
    %v9087 = vpack.c.b16 %v9035, %v9031
    %v9088 = vpack.c.b16 %v9036, %v9032
    %v9089 = vpack.c.b16 %v9037, %v9033
    %v9090 = vpack.c.b16 %v9042, %v9038
    %v9091 = vpack.c.b16 %v9043, %v9039
    %v9092 = vpack.c.b16 %v9044, %v9040
    %v9093 = vpack.c.b16 %v9045, %v9041
    %v9094 = vpack.c.b16 %v9050, %v9046
    %v9095 = vpack.c.b16 %v9051, %v9047
    %v9096 = vpack.c.b16 %v9052, %v9048
    %v9097 = vpack.c.b16 %v9053, %v9049
    %v9098 = vpack.c.b16 %v9058, %v9054
    %v9099 = vpack.c.b16 %v9059, %v9055
    %v9100 = vpack.c.b16 %v9060, %v9056
    %v9101 = vpack.c.b16 %v9061, %v9057
    %v9102 = vpack.c.b16 %v9066, %v9062
    %v9103 = vpack.c.b16 %v9067, %v9063
    %v9104 = vpack.c.b16 %v9068, %v9064
    %v9105 = vpack.c.b16 %v9069, %v9065
    %v9106 = vpack.c.b16 %v9074, %v9070
    %v9107 = vpack.c.b16 %v9075, %v9071
    %v9108 = vpack.c.b16 %v9076, %v9072
    %v9109 = vpack.c.b16 %v9077, %v9073
    %9142 = vmatprep.subr.bf16.mxu0 %v9107
    %9143 = vmatpush1.bf16.msra.mxu0 %v9106
    %9144 = vmatprep.subr.bf16.mxu0 %v9103
    %9145 = vmatpush1.bf16.msra.mxu0 %v9102
    %9146 = vmatprep.subr.bf16.mxu0 %v9099
    %9147 = vmatpush1.bf16.msra.mxu0 %v9098
    %9148 = vmatprep.subr.bf16.mxu0 %v9095
    %9149 = vmatpush1.bf16.msra.mxu0 %v9094
    %9150 = vmatprep.subr.bf16.mxu0 %v9091
    %9151 = vmatpush1.bf16.msra.mxu0 %v9090
    %9152 = vmatprep.subr.bf16.mxu0 %v9087
    %9153 = vmatpush1.bf16.msra.mxu0 %v9086
    %9154 = vmatprep.subr.bf16.mxu0 %v9083
    %9155 = vmatpush1.bf16.msra.mxu0 %v9082
    %9156 = vmatprep.subr.bf16.mxu0 %v9079
    %9157 = vmatpush1.bf16.msra.mxu0 %v9078
    %9158 = vmatprep.subr.bf16.mxu0 0
    %9159 = vmatpush2.bf16.msra.mxu0 0
    %9160 = vmatprep.subr.bf16.mxu0 0
    %9161 = vmatpush2.bf16.msra.mxu0 0
    %9162 = vmatprep.subr.bf16.mxu0 0
    %9163 = vmatpush2.bf16.msra.mxu0 0
    %9164 = vmatprep.subr.bf16.mxu0 0
    %9165 = vmatpush2.bf16.msra.mxu0 0
    %9166 = vmatprep.subr.bf16.mxu0 0
    %9167 = vmatpush2.bf16.msra.mxu0 0
    %9168 = vmatprep.subr.bf16.mxu0 0
    %9169 = vmatpush2.bf16.msra.mxu0 0
    %9170 = vmatprep.subr.bf16.mxu0 0
    %9171 = vmatpush2.bf16.msra.mxu0 0
    %9172 = vmatprep.subr.bf16.mxu0 0
    %9173 = vmatpush2.bf16.msra.mxu0 0
    %9174 = vmatprep.mubr.bf16.mxu0 0
    %9175 = vmatmul.mubr.bf16.gmra.mxu0 %v8949
    %v9176 = vpop.f32.mrf.mxu0
    %v9177 = vadd.f32 %v5365, %v9176
    %v9178 = vpop.f32.mrf.mxu0
    %v9179 = vadd.f32 %v5369, %v9178
    %v9180 = vpop.f32.mrf.mxu0
    %v9181 = vpop.f32.mrf.mxu0
    %9182 = vdwg.mxu0
    %9183 = vmatprep.subr.bf16.mxu0 %v9109
    %9184 = vmatpush1.bf16.msra.mxu0 %v9108
    %9185 = vmatprep.subr.bf16.mxu0 %v9105
    %9186 = vmatpush1.bf16.msra.mxu0 %v9104
    %9187 = vmatprep.subr.bf16.mxu0 %v9101
    %9188 = vmatpush1.bf16.msra.mxu0 %v9100
    %9189 = vmatprep.subr.bf16.mxu0 %v9097
    %9190 = vmatpush1.bf16.msra.mxu0 %v9096
    %9191 = vmatprep.subr.bf16.mxu0 %v9093
    %9192 = vmatpush1.bf16.msra.mxu0 %v9092
    %9193 = vmatprep.subr.bf16.mxu0 %v9089
    %9194 = vmatpush1.bf16.msra.mxu0 %v9088
    %9195 = vmatprep.subr.bf16.mxu0 %v9085
    %9196 = vmatpush1.bf16.msra.mxu0 %v9084
    %9197 = vmatprep.subr.bf16.mxu0 %v9081
    %9198 = vmatpush1.bf16.msra.mxu0 %v9080
    %9199 = vmatprep.subr.bf16.mxu0 0
    %9200 = vmatpush2.bf16.msra.mxu0 0
    %9201 = vmatprep.subr.bf16.mxu0 0
    %9202 = vmatpush2.bf16.msra.mxu0 0
    %9203 = vmatprep.subr.bf16.mxu0 0
    %9204 = vmatpush2.bf16.msra.mxu0 0
    %9205 = vmatprep.subr.bf16.mxu0 0
    %9206 = vmatpush2.bf16.msra.mxu0 0
    %9207 = vmatprep.subr.bf16.mxu0 0
    %9208 = vmatpush2.bf16.msra.mxu0 0
    %9209 = vmatprep.subr.bf16.mxu0 0
    %9210 = vmatpush2.bf16.msra.mxu0 0
    %9211 = vmatprep.subr.bf16.mxu0 0
    %9212 = vmatpush2.bf16.msra.mxu0 0
    %9213 = vmatprep.subr.bf16.mxu0 0
    %9214 = vmatpush2.bf16.msra.mxu0 0
    %9215 = vmatprep.mubr.bf16.mxu0 0
    %9216 = vmatmul.mubr.bf16.gmra.mxu0 %v8949
    %v9217 = vpop.f32.mrf.mxu0
    %v9218 = vadd.f32 %v5373, %v9217
    %v9219 = vpop.f32.mrf.mxu0
    %v9220 = vadd.f32 %v5377, %v9219
    %v9221 = vpop.f32.mrf.mxu0
    %v9222 = vpop.f32.mrf.mxu0
    %9223 = vdwg.mxu0
    %9224 = vst [vmem:[#allocation3 + $0xc0] sm:$0xff] %v9177
    %9225 = vst [vmem:[#allocation3 + $0xc8] sm:$0xff] %v9179
    %9226 = vst [vmem:[#allocation3 + $0xd0] sm:$0xff] %v9218
    %9227 = vst [vmem:[#allocation3 + $0xd8] sm:$0xff] %v9220
    %v9228 = vld [vmem:[#allocation2 + $0xe0] sm:$0xff]
    %v9229 = vld [vmem:[#allocation2 + $0xe8] sm:$0xff]
    %v9230 = vld [vmem:[#allocation2 + $0xf0] sm:$0xff]
    %v9231 = vld [vmem:[#allocation2 + $0xf8] sm:$0xff]
    %v9232 = vld [vmem:[#allocation12] sm:$0xff]
    %v9233 = vld [vmem:[#allocation12 + $0x8] sm:$0xff]
    %v9234 = vld [vmem:[#allocation12 + $0x10] sm:$0xff]
    %v9235 = vld [vmem:[#allocation12 + $0x18] sm:$0xff]
    %v9236 = vld [vmem:[#allocation12 + $0x20] sm:$0xff]
    %v9237 = vld [vmem:[#allocation12 + $0x28] sm:$0xff]
    %v9238 = vld [vmem:[#allocation12 + $0x30] sm:$0xff]
    %v9239 = vld [vmem:[#allocation12 + $0x38] sm:$0xff]
    %v9240 = vld [vmem:[#allocation12 + $0x40] sm:$0xff]
    %v9241 = vld [vmem:[#allocation12 + $0x48] sm:$0xff]
    %v9242 = vld [vmem:[#allocation12 + $0x50] sm:$0xff]
    %v9243 = vld [vmem:[#allocation12 + $0x58] sm:$0xff]
    %v9244 = vld [vmem:[#allocation12 + $0x60] sm:$0xff]
    %v9245 = vld [vmem:[#allocation12 + $0x68] sm:$0xff]
    %v9246 = vld [vmem:[#allocation12 + $0x70] sm:$0xff]
    %v9247 = vld [vmem:[#allocation12 + $0x78] sm:$0xff]
    %v9248 = vld [vmem:[#allocation12 + $0x80] sm:$0xff]
    %v9249 = vld [vmem:[#allocation12 + $0x88] sm:$0xff]
    %v9250 = vld [vmem:[#allocation12 + $0x90] sm:$0xff]
    %v9251 = vld [vmem:[#allocation12 + $0x98] sm:$0xff]
    %v9252 = vld [vmem:[#allocation12 + $0xa0] sm:$0xff]
    %v9253 = vld [vmem:[#allocation12 + $0xa8] sm:$0xff]
    %v9254 = vld [vmem:[#allocation12 + $0xb0] sm:$0xff]
    %v9255 = vld [vmem:[#allocation12 + $0xb8] sm:$0xff]
    %v9256 = vld [vmem:[#allocation12 + $0xc0] sm:$0xff]
    %v9257 = vld [vmem:[#allocation12 + $0xc8] sm:$0xff]
    %v9258 = vld [vmem:[#allocation12 + $0xd0] sm:$0xff]
    %v9259 = vld [vmem:[#allocation12 + $0xd8] sm:$0xff]
    %v9260 = vld [vmem:[#allocation12 + $0xe0] sm:$0xff]
    %v9261 = vld [vmem:[#allocation12 + $0xe8] sm:$0xff]
    %v9262 = vld [vmem:[#allocation12 + $0xf0] sm:$0xff]
    %v9263 = vld [vmem:[#allocation12 + $0xf8] sm:$0xff]
    %v9296 = vunpack.c.l.b16 %v9232
    %v9297 = vunpack.c.h.b16 %v9232
    %v9298 = vunpack.c.l.b16 %v9233
    %v9299 = vunpack.c.h.b16 %v9233
    %v9300 = vunpack.c.l.b16 %v9234
    %v9301 = vunpack.c.h.b16 %v9234
    %v9302 = vunpack.c.l.b16 %v9235
    %v9303 = vunpack.c.h.b16 %v9235
    %v9304 = vunpack.c.l.b16 %v9236
    %v9305 = vunpack.c.h.b16 %v9236
    %v9306 = vunpack.c.l.b16 %v9237
    %v9307 = vunpack.c.h.b16 %v9237
    %v9308 = vunpack.c.l.b16 %v9238
    %v9309 = vunpack.c.h.b16 %v9238
    %v9310 = vunpack.c.l.b16 %v9239
    %v9311 = vunpack.c.h.b16 %v9239
    %v9312 = vunpack.c.l.b16 %v9240
    %v9313 = vunpack.c.h.b16 %v9240
    %v9314 = vunpack.c.l.b16 %v9241
    %v9315 = vunpack.c.h.b16 %v9241
    %v9316 = vunpack.c.l.b16 %v9242
    %v9317 = vunpack.c.h.b16 %v9242
    %v9318 = vunpack.c.l.b16 %v9243
    %v9319 = vunpack.c.h.b16 %v9243
    %v9320 = vunpack.c.l.b16 %v9244
    %v9321 = vunpack.c.h.b16 %v9244
    %v9322 = vunpack.c.l.b16 %v9245
    %v9323 = vunpack.c.h.b16 %v9245
    %v9324 = vunpack.c.l.b16 %v9246
    %v9325 = vunpack.c.h.b16 %v9246
    %v9326 = vunpack.c.l.b16 %v9247
    %v9327 = vunpack.c.h.b16 %v9247
    %v9328 = vunpack.c.l.b16 %v9248
    %v9329 = vunpack.c.h.b16 %v9248
    %v9330 = vunpack.c.l.b16 %v9249
    %v9331 = vunpack.c.h.b16 %v9249
    %v9332 = vunpack.c.l.b16 %v9250
    %v9333 = vunpack.c.h.b16 %v9250
    %v9334 = vunpack.c.l.b16 %v9251
    %v9335 = vunpack.c.h.b16 %v9251
    %v9336 = vunpack.c.l.b16 %v9252
    %v9337 = vunpack.c.h.b16 %v9252
    %v9338 = vunpack.c.l.b16 %v9253
    %v9339 = vunpack.c.h.b16 %v9253
    %v9340 = vunpack.c.l.b16 %v9254
    %v9341 = vunpack.c.h.b16 %v9254
    %v9342 = vunpack.c.l.b16 %v9255
    %v9343 = vunpack.c.h.b16 %v9255
    %v9344 = vunpack.c.l.b16 %v9256
    %v9345 = vunpack.c.h.b16 %v9256
    %v9346 = vunpack.c.l.b16 %v9257
    %v9347 = vunpack.c.h.b16 %v9257
    %v9348 = vunpack.c.l.b16 %v9258
    %v9349 = vunpack.c.h.b16 %v9258
    %v9350 = vunpack.c.l.b16 %v9259
    %v9351 = vunpack.c.h.b16 %v9259
    %v9352 = vunpack.c.l.b16 %v9260
    %v9353 = vunpack.c.h.b16 %v9260
    %v9354 = vunpack.c.l.b16 %v9261
    %v9355 = vunpack.c.h.b16 %v9261
    %v9356 = vunpack.c.l.b16 %v9262
    %v9357 = vunpack.c.h.b16 %v9262
    %v9358 = vunpack.c.l.b16 %v9263
    %v9359 = vunpack.c.h.b16 %v9263
    %v9360 = vpack.c.b16 %v9300, %v9296
    %v9361 = vpack.c.b16 %v9301, %v9297
    %v9362 = vpack.c.b16 %v9302, %v9298
    %v9363 = vpack.c.b16 %v9303, %v9299
    %v9364 = vpack.c.b16 %v9308, %v9304
    %v9365 = vpack.c.b16 %v9309, %v9305
    %v9366 = vpack.c.b16 %v9310, %v9306
    %v9367 = vpack.c.b16 %v9311, %v9307
    %v9368 = vpack.c.b16 %v9316, %v9312
    %v9369 = vpack.c.b16 %v9317, %v9313
    %v9370 = vpack.c.b16 %v9318, %v9314
    %v9371 = vpack.c.b16 %v9319, %v9315
    %v9372 = vpack.c.b16 %v9324, %v9320
    %v9373 = vpack.c.b16 %v9325, %v9321
    %v9374 = vpack.c.b16 %v9326, %v9322
    %v9375 = vpack.c.b16 %v9327, %v9323
    %v9376 = vpack.c.b16 %v9332, %v9328
    %v9377 = vpack.c.b16 %v9333, %v9329
    %v9378 = vpack.c.b16 %v9334, %v9330
    %v9379 = vpack.c.b16 %v9335, %v9331
    %v9380 = vpack.c.b16 %v9340, %v9336
    %v9381 = vpack.c.b16 %v9341, %v9337
    %v9382 = vpack.c.b16 %v9342, %v9338
    %v9383 = vpack.c.b16 %v9343, %v9339
    %v9384 = vpack.c.b16 %v9348, %v9344
    %v9385 = vpack.c.b16 %v9349, %v9345
    %v9386 = vpack.c.b16 %v9350, %v9346
    %v9387 = vpack.c.b16 %v9351, %v9347
    %v9388 = vpack.c.b16 %v9356, %v9352
    %v9389 = vpack.c.b16 %v9357, %v9353
    %v9390 = vpack.c.b16 %v9358, %v9354
    %v9391 = vpack.c.b16 %v9359, %v9355
    %9424 = vmatprep.subr.bf16.mxu0 %v9389
    %9425 = vmatpush1.bf16.msra.mxu0 %v9388
    %9426 = vmatprep.subr.bf16.mxu0 %v9385
    %9427 = vmatpush1.bf16.msra.mxu0 %v9384
    %9428 = vmatprep.subr.bf16.mxu0 %v9381
    %9429 = vmatpush1.bf16.msra.mxu0 %v9380
    %9430 = vmatprep.subr.bf16.mxu0 %v9377
    %9431 = vmatpush1.bf16.msra.mxu0 %v9376
    %9432 = vmatprep.subr.bf16.mxu0 %v9373
    %9433 = vmatpush1.bf16.msra.mxu0 %v9372
    %9434 = vmatprep.subr.bf16.mxu0 %v9369
    %9435 = vmatpush1.bf16.msra.mxu0 %v9368
    %9436 = vmatprep.subr.bf16.mxu0 %v9365
    %9437 = vmatpush1.bf16.msra.mxu0 %v9364
    %9438 = vmatprep.subr.bf16.mxu0 %v9361
    %9439 = vmatpush1.bf16.msra.mxu0 %v9360
    %9440 = vmatprep.subr.bf16.mxu0 0
    %9441 = vmatpush2.bf16.msra.mxu0 0
    %9442 = vmatprep.subr.bf16.mxu0 0
    %9443 = vmatpush2.bf16.msra.mxu0 0
    %9444 = vmatprep.subr.bf16.mxu0 0
    %9445 = vmatpush2.bf16.msra.mxu0 0
    %9446 = vmatprep.subr.bf16.mxu0 0
    %9447 = vmatpush2.bf16.msra.mxu0 0
    %9448 = vmatprep.subr.bf16.mxu0 0
    %9449 = vmatpush2.bf16.msra.mxu0 0
    %9450 = vmatprep.subr.bf16.mxu0 0
    %9451 = vmatpush2.bf16.msra.mxu0 0
    %9452 = vmatprep.subr.bf16.mxu0 0
    %9453 = vmatpush2.bf16.msra.mxu0 0
    %9454 = vmatprep.subr.bf16.mxu0 0
    %9455 = vmatpush2.bf16.msra.mxu0 0
    %9456 = vmatprep.mubr.bf16.mxu0 0
    %9457 = vmatmul.mubr.bf16.gmra.mxu0 %v8928
    %v9458 = vpop.f32.mrf.mxu0
    %v9459 = vadd.f32 0.0, %v9458
    %v9460 = vpop.f32.mrf.mxu0
    %v9461 = vadd.f32 0.0, %v9460
    %v9462 = vpop.f32.mrf.mxu0
    %v9463 = vpop.f32.mrf.mxu0
    %9464 = vdwg.mxu0
    %9465 = vmatprep.subr.bf16.mxu0 %v9391
    %9466 = vmatpush1.bf16.msra.mxu0 %v9390
    %9467 = vmatprep.subr.bf16.mxu0 %v9387
    %9468 = vmatpush1.bf16.msra.mxu0 %v9386
    %9469 = vmatprep.subr.bf16.mxu0 %v9383
    %9470 = vmatpush1.bf16.msra.mxu0 %v9382
    %9471 = vmatprep.subr.bf16.mxu0 %v9379
    %9472 = vmatpush1.bf16.msra.mxu0 %v9378
    %9473 = vmatprep.subr.bf16.mxu0 %v9375
    %9474 = vmatpush1.bf16.msra.mxu0 %v9374
    %9475 = vmatprep.subr.bf16.mxu0 %v9371
    %9476 = vmatpush1.bf16.msra.mxu0 %v9370
    %9477 = vmatprep.subr.bf16.mxu0 %v9367
    %9478 = vmatpush1.bf16.msra.mxu0 %v9366
    %9479 = vmatprep.subr.bf16.mxu0 %v9363
    %9480 = vmatpush1.bf16.msra.mxu0 %v9362
    %9481 = vmatprep.subr.bf16.mxu0 0
    %9482 = vmatpush2.bf16.msra.mxu0 0
    %9483 = vmatprep.subr.bf16.mxu0 0
    %9484 = vmatpush2.bf16.msra.mxu0 0
    %9485 = vmatprep.subr.bf16.mxu0 0
    %9486 = vmatpush2.bf16.msra.mxu0 0
    %9487 = vmatprep.subr.bf16.mxu0 0
    %9488 = vmatpush2.bf16.msra.mxu0 0
    %9489 = vmatprep.subr.bf16.mxu0 0
    %9490 = vmatpush2.bf16.msra.mxu0 0
    %9491 = vmatprep.subr.bf16.mxu0 0
    %9492 = vmatpush2.bf16.msra.mxu0 0
    %9493 = vmatprep.subr.bf16.mxu0 0
    %9494 = vmatpush2.bf16.msra.mxu0 0
    %9495 = vmatprep.subr.bf16.mxu0 0
    %9496 = vmatpush2.bf16.msra.mxu0 0
    %9497 = vmatprep.mubr.bf16.mxu0 0
    %9498 = vmatmul.mubr.bf16.gmra.mxu0 %v8928
    %v9499 = vpop.f32.mrf.mxu0
    %v9500 = vadd.f32 0.0, %v9499
    %v9501 = vpop.f32.mrf.mxu0
    %v9502 = vadd.f32 0.0, %v9501
    %v9503 = vpop.f32.mrf.mxu0
    %v9504 = vpop.f32.mrf.mxu0
    %9505 = vdwg.mxu0
    %v9506 = vadd.f32 %v9228, %v9459
    %v9507 = vadd.f32 %v9229, %v9461
    %v9508 = vadd.f32 %v9230, %v9500
    %v9509 = vadd.f32 %v9231, %v9502
    %v9510 = vmul.f32 %v9506, 0.5
    %v9511 = vmul.f32 %v9507, 0.5
    %v9512 = vmul.f32 %v9508, 0.5
    %v9513 = vtanh.pop %v9510
    %v9514 = vtanh.pop %v9511
    %v9515 = vtanh.pop %v9512
    %v9516 = vmul.f32 %v9513, 0.5
    %v9517 = vmul.f32 %v9514, 0.5
    %v9518 = vmul.f32 %v9515, 0.5
    %v9519 = vadd.f32 %v9516, 0.5
    %v9520 = vadd.f32 %v9517, 0.5
    %v9521 = vadd.f32 %v9518, 0.5
    %v9522 = vtanh.pop %v9509
    %v9523 = vmul.f32 %v9520, %v8925
    %v9524 = vmul.f32 %v9519, %v9522
    %v9525 = vadd.f32 %v9523, %v9524
    %v9526 = vtanh.pop %v9525
    %v9527 = vmul.f32 %v9521, %v9526
    %9528 = vadd.xlane.f32.xlu0 %v9527
    %v9529 = vpop.xlane.xlu0 %9528
    %v9530 = vmul.f32 %v9529, %v461
    %v9531 = vmul.f32 %v9527, %v9527
    %9532 = vadd.xlane.f32.xlu0 %v9531
    %v9533 = vpop.xlane.xlu0 %9532
    %v9534 = vmul.f32 %v9533, %v461
    %v9535 = vmul.f32 %v9530, %v9530
    %v9536 = vsub.f32 %v9534, %v9535
    %v9537 = vsub.f32 %v9527, %v9530
    %v9538 = vadd.f32 %v9536, 1e-05
    %v9539 = vrsqrt.pop %v9538
    %v9540 = vmul.f32 %v9537, %v9539
    %v9541 = vmul.f32 %v9540, %v5313
    %v9542 = vadd.f32 %v9541, %v5320
    %v9543 = vmul.f32 %v9542, 0.5
    %v9544 = vtanh.pop %v9543
    %v9545 = vmul.f32 %v9544, 0.5
    %v9546 = vadd.f32 %v9545, 0.5
    %v9547 = vmul.f32 %v9542, %v9546
    %v9548 = vpack.c.bf16 %v9547, %v9547
    %v9549 = vld [vmem:[#allocation13] sm:$0xff]
    %v9550 = vld [vmem:[#allocation13 + $0x8] sm:$0xff]
    %v9551 = vld [vmem:[#allocation13 + $0x10] sm:$0xff]
    %v9552 = vld [vmem:[#allocation13 + $0x18] sm:$0xff]
    %v9553 = vld [vmem:[#allocation13 + $0x20] sm:$0xff]
    %v9554 = vld [vmem:[#allocation13 + $0x28] sm:$0xff]
    %v9555 = vld [vmem:[#allocation13 + $0x30] sm:$0xff]
    %v9556 = vld [vmem:[#allocation13 + $0x38] sm:$0xff]
    %v9557 = vld [vmem:[#allocation13 + $0x40] sm:$0xff]
    %v9558 = vld [vmem:[#allocation13 + $0x48] sm:$0xff]
    %v9559 = vld [vmem:[#allocation13 + $0x50] sm:$0xff]
    %v9560 = vld [vmem:[#allocation13 + $0x58] sm:$0xff]
    %v9561 = vld [vmem:[#allocation13 + $0x60] sm:$0xff]
    %v9562 = vld [vmem:[#allocation13 + $0x68] sm:$0xff]
    %v9563 = vld [vmem:[#allocation13 + $0x70] sm:$0xff]
    %v9564 = vld [vmem:[#allocation13 + $0x78] sm:$0xff]
    %v9565 = vld [vmem:[#allocation13 + $0x80] sm:$0xff]
    %v9566 = vld [vmem:[#allocation13 + $0x88] sm:$0xff]
    %v9567 = vld [vmem:[#allocation13 + $0x90] sm:$0xff]
    %v9568 = vld [vmem:[#allocation13 + $0x98] sm:$0xff]
    %v9569 = vld [vmem:[#allocation13 + $0xa0] sm:$0xff]
    %v9570 = vld [vmem:[#allocation13 + $0xa8] sm:$0xff]
    %v9571 = vld [vmem:[#allocation13 + $0xb0] sm:$0xff]
    %v9572 = vld [vmem:[#allocation13 + $0xb8] sm:$0xff]
    %v9573 = vld [vmem:[#allocation13 + $0xc0] sm:$0xff]
    %v9574 = vld [vmem:[#allocation13 + $0xc8] sm:$0xff]
    %v9575 = vld [vmem:[#allocation13 + $0xd0] sm:$0xff]
    %v9576 = vld [vmem:[#allocation13 + $0xd8] sm:$0xff]
    %v9577 = vld [vmem:[#allocation13 + $0xe0] sm:$0xff]
    %v9578 = vld [vmem:[#allocation13 + $0xe8] sm:$0xff]
    %v9579 = vld [vmem:[#allocation13 + $0xf0] sm:$0xff]
    %v9580 = vld [vmem:[#allocation13 + $0xf8] sm:$0xff]
    %v9613 = vunpack.c.l.b16 %v9549
    %v9614 = vunpack.c.h.b16 %v9549
    %v9615 = vunpack.c.l.b16 %v9550
    %v9616 = vunpack.c.h.b16 %v9550
    %v9617 = vunpack.c.l.b16 %v9551
    %v9618 = vunpack.c.h.b16 %v9551
    %v9619 = vunpack.c.l.b16 %v9552
    %v9620 = vunpack.c.h.b16 %v9552
    %v9621 = vunpack.c.l.b16 %v9553
    %v9622 = vunpack.c.h.b16 %v9553
    %v9623 = vunpack.c.l.b16 %v9554
    %v9624 = vunpack.c.h.b16 %v9554
    %v9625 = vunpack.c.l.b16 %v9555
    %v9626 = vunpack.c.h.b16 %v9555
    %v9627 = vunpack.c.l.b16 %v9556
    %v9628 = vunpack.c.h.b16 %v9556
    %v9629 = vunpack.c.l.b16 %v9557
    %v9630 = vunpack.c.h.b16 %v9557
    %v9631 = vunpack.c.l.b16 %v9558
    %v9632 = vunpack.c.h.b16 %v9558
    %v9633 = vunpack.c.l.b16 %v9559
    %v9634 = vunpack.c.h.b16 %v9559
    %v9635 = vunpack.c.l.b16 %v9560
    %v9636 = vunpack.c.h.b16 %v9560
    %v9637 = vunpack.c.l.b16 %v9561
    %v9638 = vunpack.c.h.b16 %v9561
    %v9639 = vunpack.c.l.b16 %v9562
    %v9640 = vunpack.c.h.b16 %v9562
    %v9641 = vunpack.c.l.b16 %v9563
    %v9642 = vunpack.c.h.b16 %v9563
    %v9643 = vunpack.c.l.b16 %v9564
    %v9644 = vunpack.c.h.b16 %v9564
    %v9645 = vunpack.c.l.b16 %v9565
    %v9646 = vunpack.c.h.b16 %v9565
    %v9647 = vunpack.c.l.b16 %v9566
    %v9648 = vunpack.c.h.b16 %v9566
    %v9649 = vunpack.c.l.b16 %v9567
    %v9650 = vunpack.c.h.b16 %v9567
    %v9651 = vunpack.c.l.b16 %v9568
    %v9652 = vunpack.c.h.b16 %v9568
    %v9653 = vunpack.c.l.b16 %v9569
    %v9654 = vunpack.c.h.b16 %v9569
    %v9655 = vunpack.c.l.b16 %v9570
    %v9656 = vunpack.c.h.b16 %v9570
    %v9657 = vunpack.c.l.b16 %v9571
    %v9658 = vunpack.c.h.b16 %v9571
    %v9659 = vunpack.c.l.b16 %v9572
    %v9660 = vunpack.c.h.b16 %v9572
    %v9661 = vunpack.c.l.b16 %v9573
    %v9662 = vunpack.c.h.b16 %v9573
    %v9663 = vunpack.c.l.b16 %v9574
    %v9664 = vunpack.c.h.b16 %v9574
    %v9665 = vunpack.c.l.b16 %v9575
    %v9666 = vunpack.c.h.b16 %v9575
    %v9667 = vunpack.c.l.b16 %v9576
    %v9668 = vunpack.c.h.b16 %v9576
    %v9669 = vunpack.c.l.b16 %v9577
    %v9670 = vunpack.c.h.b16 %v9577
    %v9671 = vunpack.c.l.b16 %v9578
    %v9672 = vunpack.c.h.b16 %v9578
    %v9673 = vunpack.c.l.b16 %v9579
    %v9674 = vunpack.c.h.b16 %v9579
    %v9675 = vunpack.c.l.b16 %v9580
    %v9676 = vunpack.c.h.b16 %v9580
    %v9677 = vpack.c.b16 %v9617, %v9613
    %v9678 = vpack.c.b16 %v9618, %v9614
    %v9679 = vpack.c.b16 %v9619, %v9615
    %v9680 = vpack.c.b16 %v9620, %v9616
    %v9681 = vpack.c.b16 %v9625, %v9621
    %v9682 = vpack.c.b16 %v9626, %v9622
    %v9683 = vpack.c.b16 %v9627, %v9623
    %v9684 = vpack.c.b16 %v9628, %v9624
    %v9685 = vpack.c.b16 %v9633, %v9629
    %v9686 = vpack.c.b16 %v9634, %v9630
    %v9687 = vpack.c.b16 %v9635, %v9631
    %v9688 = vpack.c.b16 %v9636, %v9632
    %v9689 = vpack.c.b16 %v9641, %v9637
    %v9690 = vpack.c.b16 %v9642, %v9638
    %v9691 = vpack.c.b16 %v9643, %v9639
    %v9692 = vpack.c.b16 %v9644, %v9640
    %v9693 = vpack.c.b16 %v9649, %v9645
    %v9694 = vpack.c.b16 %v9650, %v9646
    %v9695 = vpack.c.b16 %v9651, %v9647
    %v9696 = vpack.c.b16 %v9652, %v9648
    %v9697 = vpack.c.b16 %v9657, %v9653
    %v9698 = vpack.c.b16 %v9658, %v9654
    %v9699 = vpack.c.b16 %v9659, %v9655
    %v9700 = vpack.c.b16 %v9660, %v9656
    %v9701 = vpack.c.b16 %v9665, %v9661
    %v9702 = vpack.c.b16 %v9666, %v9662
    %v9703 = vpack.c.b16 %v9667, %v9663
    %v9704 = vpack.c.b16 %v9668, %v9664
    %v9705 = vpack.c.b16 %v9673, %v9669
    %v9706 = vpack.c.b16 %v9674, %v9670
    %v9707 = vpack.c.b16 %v9675, %v9671
    %v9708 = vpack.c.b16 %v9676, %v9672
    %9741 = vmatprep.subr.bf16.mxu0 %v9706
    %9742 = vmatpush1.bf16.msra.mxu0 %v9705
    %9743 = vmatprep.subr.bf16.mxu0 %v9702
    %9744 = vmatpush1.bf16.msra.mxu0 %v9701
    %9745 = vmatprep.subr.bf16.mxu0 %v9698
    %9746 = vmatpush1.bf16.msra.mxu0 %v9697
    %9747 = vmatprep.subr.bf16.mxu0 %v9694
    %9748 = vmatpush1.bf16.msra.mxu0 %v9693
    %9749 = vmatprep.subr.bf16.mxu0 %v9690
    %9750 = vmatpush1.bf16.msra.mxu0 %v9689
    %9751 = vmatprep.subr.bf16.mxu0 %v9686
    %9752 = vmatpush1.bf16.msra.mxu0 %v9685
    %9753 = vmatprep.subr.bf16.mxu0 %v9682
    %9754 = vmatpush1.bf16.msra.mxu0 %v9681
    %9755 = vmatprep.subr.bf16.mxu0 %v9678
    %9756 = vmatpush1.bf16.msra.mxu0 %v9677
    %9757 = vmatprep.subr.bf16.mxu0 0
    %9758 = vmatpush2.bf16.msra.mxu0 0
    %9759 = vmatprep.subr.bf16.mxu0 0
    %9760 = vmatpush2.bf16.msra.mxu0 0
    %9761 = vmatprep.subr.bf16.mxu0 0
    %9762 = vmatpush2.bf16.msra.mxu0 0
    %9763 = vmatprep.subr.bf16.mxu0 0
    %9764 = vmatpush2.bf16.msra.mxu0 0
    %9765 = vmatprep.subr.bf16.mxu0 0
    %9766 = vmatpush2.bf16.msra.mxu0 0
    %9767 = vmatprep.subr.bf16.mxu0 0
    %9768 = vmatpush2.bf16.msra.mxu0 0
    %9769 = vmatprep.subr.bf16.mxu0 0
    %9770 = vmatpush2.bf16.msra.mxu0 0
    %9771 = vmatprep.subr.bf16.mxu0 0
    %9772 = vmatpush2.bf16.msra.mxu0 0
    %9773 = vmatprep.mubr.bf16.mxu0 0
    %9774 = vmatmul.mubr.bf16.gmra.mxu0 %v9548
    %v9775 = vpop.f32.mrf.mxu0
    %v9776 = vadd.f32 %v5365, %v9775
    %v9777 = vpop.f32.mrf.mxu0
    %v9778 = vadd.f32 %v5369, %v9777
    %v9779 = vpop.f32.mrf.mxu0
    %v9780 = vpop.f32.mrf.mxu0
    %9781 = vdwg.mxu0
    %9782 = vmatprep.subr.bf16.mxu0 %v9708
    %9783 = vmatpush1.bf16.msra.mxu0 %v9707
    %9784 = vmatprep.subr.bf16.mxu0 %v9704
    %9785 = vmatpush1.bf16.msra.mxu0 %v9703
    %9786 = vmatprep.subr.bf16.mxu0 %v9700
    %9787 = vmatpush1.bf16.msra.mxu0 %v9699
    %9788 = vmatprep.subr.bf16.mxu0 %v9696
    %9789 = vmatpush1.bf16.msra.mxu0 %v9695
    %9790 = vmatprep.subr.bf16.mxu0 %v9692
    %9791 = vmatpush1.bf16.msra.mxu0 %v9691
    %9792 = vmatprep.subr.bf16.mxu0 %v9688
    %9793 = vmatpush1.bf16.msra.mxu0 %v9687
    %9794 = vmatprep.subr.bf16.mxu0 %v9684
    %9795 = vmatpush1.bf16.msra.mxu0 %v9683
    %9796 = vmatprep.subr.bf16.mxu0 %v9680
    %9797 = vmatpush1.bf16.msra.mxu0 %v9679
    %9798 = vmatprep.subr.bf16.mxu0 0
    %9799 = vmatpush2.bf16.msra.mxu0 0
    %9800 = vmatprep.subr.bf16.mxu0 0
    %9801 = vmatpush2.bf16.msra.mxu0 0
    %9802 = vmatprep.subr.bf16.mxu0 0
    %9803 = vmatpush2.bf16.msra.mxu0 0
    %9804 = vmatprep.subr.bf16.mxu0 0
    %9805 = vmatpush2.bf16.msra.mxu0 0
    %9806 = vmatprep.subr.bf16.mxu0 0
    %9807 = vmatpush2.bf16.msra.mxu0 0
    %9808 = vmatprep.subr.bf16.mxu0 0
    %9809 = vmatpush2.bf16.msra.mxu0 0
    %9810 = vmatprep.subr.bf16.mxu0 0
    %9811 = vmatpush2.bf16.msra.mxu0 0
    %9812 = vmatprep.subr.bf16.mxu0 0
    %9813 = vmatpush2.bf16.msra.mxu0 0
    %9814 = vmatprep.mubr.bf16.mxu0 0
    %9815 = vmatmul.mubr.bf16.gmra.mxu0 %v9548
    %v9816 = vpop.f32.mrf.mxu0
    %v9817 = vadd.f32 %v5373, %v9816
    %v9818 = vpop.f32.mrf.mxu0
    %v9819 = vadd.f32 %v5377, %v9818
    %v9820 = vpop.f32.mrf.mxu0
    %v9821 = vpop.f32.mrf.mxu0
    %9822 = vdwg.mxu0
    %9823 = vst [vmem:[#allocation3 + $0xe0] sm:$0xff] %v9776
    %9824 = vst [vmem:[#allocation3 + $0xe8] sm:$0xff] %v9778
    %9825 = vst [vmem:[#allocation3 + $0xf0] sm:$0xff] %v9817
    %9826 = vst [vmem:[#allocation3 + $0xf8] sm:$0xff] %v9819
    %v9827 = vpack.c.bf16 %v9527, %v9527
    %v9828 = vld [vmem:[#allocation3] sm:$0xff]
    %v9829 = vld [vmem:[#allocation3 + $0x8] sm:$0xff]
    %v9830 = vld [vmem:[#allocation3 + $0x10] sm:$0xff]
    %v9831 = vld [vmem:[#allocation3 + $0x18] sm:$0xff]
    %v9832 = vld [vmem:[#allocation15] sm:$0xff]
    %v9833 = vld [vmem:[#allocation15 + $0x8] sm:$0xff]
    %v9834 = vld [vmem:[#allocation15 + $0x10] sm:$0xff]
    %v9835 = vld [vmem:[#allocation15 + $0x18] sm:$0xff]
    %v9836 = vld [vmem:[#allocation15 + $0x20] sm:$0xff]
    %v9837 = vld [vmem:[#allocation15 + $0x28] sm:$0xff]
    %v9838 = vld [vmem:[#allocation15 + $0x30] sm:$0xff]
    %v9839 = vld [vmem:[#allocation15 + $0x38] sm:$0xff]
    %v9840 = vld [vmem:[#allocation15 + $0x40] sm:$0xff]
    %v9841 = vld [vmem:[#allocation15 + $0x48] sm:$0xff]
    %v9842 = vld [vmem:[#allocation15 + $0x50] sm:$0xff]
    %v9843 = vld [vmem:[#allocation15 + $0x58] sm:$0xff]
    %v9844 = vld [vmem:[#allocation15 + $0x60] sm:$0xff]
    %v9845 = vld [vmem:[#allocation15 + $0x68] sm:$0xff]
    %v9846 = vld [vmem:[#allocation15 + $0x70] sm:$0xff]
    %v9847 = vld [vmem:[#allocation15 + $0x78] sm:$0xff]
    %v9848 = vld [vmem:[#allocation15 + $0x80] sm:$0xff]
    %v9849 = vld [vmem:[#allocation15 + $0x88] sm:$0xff]
    %v9850 = vld [vmem:[#allocation15 + $0x90] sm:$0xff]
    %v9851 = vld [vmem:[#allocation15 + $0x98] sm:$0xff]
    %v9852 = vld [vmem:[#allocation15 + $0xa0] sm:$0xff]
    %v9853 = vld [vmem:[#allocation15 + $0xa8] sm:$0xff]
    %v9854 = vld [vmem:[#allocation15 + $0xb0] sm:$0xff]
    %v9855 = vld [vmem:[#allocation15 + $0xb8] sm:$0xff]
    %v9856 = vld [vmem:[#allocation15 + $0xc0] sm:$0xff]
    %v9857 = vld [vmem:[#allocation15 + $0xc8] sm:$0xff]
    %v9858 = vld [vmem:[#allocation15 + $0xd0] sm:$0xff]
    %v9859 = vld [vmem:[#allocation15 + $0xd8] sm:$0xff]
    %v9860 = vld [vmem:[#allocation15 + $0xe0] sm:$0xff]
    %v9861 = vld [vmem:[#allocation15 + $0xe8] sm:$0xff]
    %v9862 = vld [vmem:[#allocation15 + $0xf0] sm:$0xff]
    %v9863 = vld [vmem:[#allocation15 + $0xf8] sm:$0xff]
    %v9896 = vunpack.c.l.b16 %v9832
    %v9897 = vunpack.c.h.b16 %v9832
    %v9898 = vunpack.c.l.b16 %v9833
    %v9899 = vunpack.c.h.b16 %v9833
    %v9900 = vunpack.c.l.b16 %v9834
    %v9901 = vunpack.c.h.b16 %v9834
    %v9902 = vunpack.c.l.b16 %v9835
    %v9903 = vunpack.c.h.b16 %v9835
    %v9904 = vunpack.c.l.b16 %v9836
    %v9905 = vunpack.c.h.b16 %v9836
    %v9906 = vunpack.c.l.b16 %v9837
    %v9907 = vunpack.c.h.b16 %v9837
    %v9908 = vunpack.c.l.b16 %v9838
    %v9909 = vunpack.c.h.b16 %v9838
    %v9910 = vunpack.c.l.b16 %v9839
    %v9911 = vunpack.c.h.b16 %v9839
    %v9912 = vunpack.c.l.b16 %v9840
    %v9913 = vunpack.c.h.b16 %v9840
    %v9914 = vunpack.c.l.b16 %v9841
    %v9915 = vunpack.c.h.b16 %v9841
    %v9916 = vunpack.c.l.b16 %v9842
    %v9917 = vunpack.c.h.b16 %v9842
    %v9918 = vunpack.c.l.b16 %v9843
    %v9919 = vunpack.c.h.b16 %v9843
    %v9920 = vunpack.c.l.b16 %v9844
    %v9921 = vunpack.c.h.b16 %v9844
    %v9922 = vunpack.c.l.b16 %v9845
    %v9923 = vunpack.c.h.b16 %v9845
    %v9924 = vunpack.c.l.b16 %v9846
    %v9925 = vunpack.c.h.b16 %v9846
    %v9926 = vunpack.c.l.b16 %v9847
    %v9927 = vunpack.c.h.b16 %v9847
    %v9928 = vunpack.c.l.b16 %v9848
    %v9929 = vunpack.c.h.b16 %v9848
    %v9930 = vunpack.c.l.b16 %v9849
    %v9931 = vunpack.c.h.b16 %v9849
    %v9932 = vunpack.c.l.b16 %v9850
    %v9933 = vunpack.c.h.b16 %v9850
    %v9934 = vunpack.c.l.b16 %v9851
    %v9935 = vunpack.c.h.b16 %v9851
    %v9936 = vunpack.c.l.b16 %v9852
    %v9937 = vunpack.c.h.b16 %v9852
    %v9938 = vunpack.c.l.b16 %v9853
    %v9939 = vunpack.c.h.b16 %v9853
    %v9940 = vunpack.c.l.b16 %v9854
    %v9941 = vunpack.c.h.b16 %v9854
    %v9942 = vunpack.c.l.b16 %v9855
    %v9943 = vunpack.c.h.b16 %v9855
    %v9944 = vunpack.c.l.b16 %v9856
    %v9945 = vunpack.c.h.b16 %v9856
    %v9946 = vunpack.c.l.b16 %v9857
    %v9947 = vunpack.c.h.b16 %v9857
    %v9948 = vunpack.c.l.b16 %v9858
    %v9949 = vunpack.c.h.b16 %v9858
    %v9950 = vunpack.c.l.b16 %v9859
    %v9951 = vunpack.c.h.b16 %v9859
    %v9952 = vunpack.c.l.b16 %v9860
    %v9953 = vunpack.c.h.b16 %v9860
    %v9954 = vunpack.c.l.b16 %v9861
    %v9955 = vunpack.c.h.b16 %v9861
    %v9956 = vunpack.c.l.b16 %v9862
    %v9957 = vunpack.c.h.b16 %v9862
    %v9958 = vunpack.c.l.b16 %v9863
    %v9959 = vunpack.c.h.b16 %v9863
    %v9960 = vpack.c.b16 %v9900, %v9896
    %v9961 = vpack.c.b16 %v9901, %v9897
    %v9962 = vpack.c.b16 %v9902, %v9898
    %v9963 = vpack.c.b16 %v9903, %v9899
    %v9964 = vpack.c.b16 %v9908, %v9904
    %v9965 = vpack.c.b16 %v9909, %v9905
    %v9966 = vpack.c.b16 %v9910, %v9906
    %v9967 = vpack.c.b16 %v9911, %v9907
    %v9968 = vpack.c.b16 %v9916, %v9912
    %v9969 = vpack.c.b16 %v9917, %v9913
    %v9970 = vpack.c.b16 %v9918, %v9914
    %v9971 = vpack.c.b16 %v9919, %v9915
    %v9972 = vpack.c.b16 %v9924, %v9920
    %v9973 = vpack.c.b16 %v9925, %v9921
    %v9974 = vpack.c.b16 %v9926, %v9922
    %v9975 = vpack.c.b16 %v9927, %v9923
    %v9976 = vpack.c.b16 %v9932, %v9928
    %v9977 = vpack.c.b16 %v9933, %v9929
    %v9978 = vpack.c.b16 %v9934, %v9930
    %v9979 = vpack.c.b16 %v9935, %v9931
    %v9980 = vpack.c.b16 %v9940, %v9936
    %v9981 = vpack.c.b16 %v9941, %v9937
    %v9982 = vpack.c.b16 %v9942, %v9938
    %v9983 = vpack.c.b16 %v9943, %v9939
    %v9984 = vpack.c.b16 %v9948, %v9944
    %v9985 = vpack.c.b16 %v9949, %v9945
    %v9986 = vpack.c.b16 %v9950, %v9946
    %v9987 = vpack.c.b16 %v9951, %v9947
    %v9988 = vpack.c.b16 %v9956, %v9952
    %v9989 = vpack.c.b16 %v9957, %v9953
    %v9990 = vpack.c.b16 %v9958, %v9954
    %v9991 = vpack.c.b16 %v9959, %v9955
    %10024 = vmatprep.subr.bf16.mxu0 %v9989
    %10025 = vmatpush1.bf16.msra.mxu0 %v9988
    %10026 = vmatprep.subr.bf16.mxu0 %v9985
    %10027 = vmatpush1.bf16.msra.mxu0 %v9984
    %10028 = vmatprep.subr.bf16.mxu0 %v9981
    %10029 = vmatpush1.bf16.msra.mxu0 %v9980
    %10030 = vmatprep.subr.bf16.mxu0 %v9977
    %10031 = vmatpush1.bf16.msra.mxu0 %v9976
    %10032 = vmatprep.subr.bf16.mxu0 %v9973
    %10033 = vmatpush1.bf16.msra.mxu0 %v9972
    %10034 = vmatprep.subr.bf16.mxu0 %v9969
    %10035 = vmatpush1.bf16.msra.mxu0 %v9968
    %10036 = vmatprep.subr.bf16.mxu0 %v9965
    %10037 = vmatpush1.bf16.msra.mxu0 %v9964
    %10038 = vmatprep.subr.bf16.mxu0 %v9961
    %10039 = vmatpush1.bf16.msra.mxu0 %v9960
    %10040 = vmatprep.subr.bf16.mxu0 0
    %10041 = vmatpush2.bf16.msra.mxu0 0
    %10042 = vmatprep.subr.bf16.mxu0 0
    %10043 = vmatpush2.bf16.msra.mxu0 0
    %10044 = vmatprep.subr.bf16.mxu0 0
    %10045 = vmatpush2.bf16.msra.mxu0 0
    %10046 = vmatprep.subr.bf16.mxu0 0
    %10047 = vmatpush2.bf16.msra.mxu0 0
    %10048 = vmatprep.subr.bf16.mxu0 0
    %10049 = vmatpush2.bf16.msra.mxu0 0
    %10050 = vmatprep.subr.bf16.mxu0 0
    %10051 = vmatpush2.bf16.msra.mxu0 0
    %10052 = vmatprep.subr.bf16.mxu0 0
    %10053 = vmatpush2.bf16.msra.mxu0 0
    %10054 = vmatprep.subr.bf16.mxu0 0
    %10055 = vmatpush2.bf16.msra.mxu0 0
    %10056 = vmatprep.mubr.bf16.mxu0 0
    %10057 = vmatmul.mubr.bf16.gmra.mxu0 %v9827
    %v10058 = vpop.f32.mrf.mxu0
    %v10059 = vadd.f32 0.0, %v10058
    %v10060 = vpop.f32.mrf.mxu0
    %v10061 = vadd.f32 0.0, %v10060
    %v10062 = vpop.f32.mrf.mxu0
    %v10063 = vpop.f32.mrf.mxu0
    %10064 = vdwg.mxu0
    %10065 = vmatprep.subr.bf16.mxu0 %v9991
    %10066 = vmatpush1.bf16.msra.mxu0 %v9990
    %10067 = vmatprep.subr.bf16.mxu0 %v9987
    %10068 = vmatpush1.bf16.msra.mxu0 %v9986
    %10069 = vmatprep.subr.bf16.mxu0 %v9983
    %10070 = vmatpush1.bf16.msra.mxu0 %v9982
    %10071 = vmatprep.subr.bf16.mxu0 %v9979
    %10072 = vmatpush1.bf16.msra.mxu0 %v9978
    %10073 = vmatprep.subr.bf16.mxu0 %v9975
    %10074 = vmatpush1.bf16.msra.mxu0 %v9974
    %10075 = vmatprep.subr.bf16.mxu0 %v9971
    %10076 = vmatpush1.bf16.msra.mxu0 %v9970
    %10077 = vmatprep.subr.bf16.mxu0 %v9967
    %10078 = vmatpush1.bf16.msra.mxu0 %v9966
    %10079 = vmatprep.subr.bf16.mxu0 %v9963
    %10080 = vmatpush1.bf16.msra.mxu0 %v9962
    %10081 = vmatprep.subr.bf16.mxu0 0
    %10082 = vmatpush2.bf16.msra.mxu0 0
    %10083 = vmatprep.subr.bf16.mxu0 0
    %10084 = vmatpush2.bf16.msra.mxu0 0
    %10085 = vmatprep.subr.bf16.mxu0 0
    %10086 = vmatpush2.bf16.msra.mxu0 0
    %10087 = vmatprep.subr.bf16.mxu0 0
    %10088 = vmatpush2.bf16.msra.mxu0 0
    %10089 = vmatprep.subr.bf16.mxu0 0
    %10090 = vmatpush2.bf16.msra.mxu0 0
    %10091 = vmatprep.subr.bf16.mxu0 0
    %10092 = vmatpush2.bf16.msra.mxu0 0
    %10093 = vmatprep.subr.bf16.mxu0 0
    %10094 = vmatpush2.bf16.msra.mxu0 0
    %10095 = vmatprep.subr.bf16.mxu0 0
    %10096 = vmatpush2.bf16.msra.mxu0 0
    %10097 = vmatprep.mubr.bf16.mxu0 0
    %10098 = vmatmul.mubr.bf16.gmra.mxu0 %v9827
    %v10099 = vpop.f32.mrf.mxu0
    %v10100 = vadd.f32 0.0, %v10099
    %v10101 = vpop.f32.mrf.mxu0
    %v10102 = vadd.f32 0.0, %v10101
    %v10103 = vpop.f32.mrf.mxu0
    %v10104 = vpop.f32.mrf.mxu0
    %10105 = vdwg.mxu0
    %v10106 = vadd.f32 %v9828, %v10059
    %v10107 = vadd.f32 %v9829, %v10061
    %v10108 = vadd.f32 %v9830, %v10100
    %v10109 = vadd.f32 %v9831, %v10102
    %v10110 = vmul.f32 %v10106, 0.5
    %v10111 = vmul.f32 %v10107, 0.5
    %v10112 = vmul.f32 %v10108, 0.5
    %v10113 = vtanh.pop %v10110
    %v10114 = vtanh.pop %v10111
    %v10115 = vtanh.pop %v10112
    %v10116 = vmul.f32 %v10113, 0.5
    %v10117 = vmul.f32 %v10114, 0.5
    %v10118 = vmul.f32 %v10115, 0.5
    %v10119 = vadd.f32 %v10116, 0.5
    %v10120 = vadd.f32 %v10117, 0.5
    %v10121 = vadd.f32 %v10118, 0.5
    %v10122 = vtanh.pop %v10109
    %v10123 = vmul.f32 %v10120, %v9525
    %v10124 = vmul.f32 %v10119, %v10122
    %v10125 = vadd.f32 %v10123, %v10124
    %v10126 = vtanh.pop %v10125
    %v10127 = vmul.f32 %v10121, %v10126
    %v10128 = vpack.c.bf16 %v10127, %v10127
    %v10129 = vld [vmem:[#allocation3 + $0x20] sm:$0xff]
    %v10130 = vld [vmem:[#allocation3 + $0x28] sm:$0xff]
    %v10131 = vld [vmem:[#allocation3 + $0x30] sm:$0xff]
    %v10132 = vld [vmem:[#allocation3 + $0x38] sm:$0xff]
    %10133 = vmatprep.subr.bf16.mxu0 %v9989
    %10134 = vmatpush1.bf16.msra.mxu0 %v9988
    %10135 = vmatprep.subr.bf16.mxu0 %v9985
    %10136 = vmatpush1.bf16.msra.mxu0 %v9984
    %10137 = vmatprep.subr.bf16.mxu0 %v9981
    %10138 = vmatpush1.bf16.msra.mxu0 %v9980
    %10139 = vmatprep.subr.bf16.mxu0 %v9977
    %10140 = vmatpush1.bf16.msra.mxu0 %v9976
    %10141 = vmatprep.subr.bf16.mxu0 %v9973
    %10142 = vmatpush1.bf16.msra.mxu0 %v9972
    %10143 = vmatprep.subr.bf16.mxu0 %v9969
    %10144 = vmatpush1.bf16.msra.mxu0 %v9968
    %10145 = vmatprep.subr.bf16.mxu0 %v9965
    %10146 = vmatpush1.bf16.msra.mxu0 %v9964
    %10147 = vmatprep.subr.bf16.mxu0 %v9961
    %10148 = vmatpush1.bf16.msra.mxu0 %v9960
    %10149 = vmatprep.subr.bf16.mxu0 0
    %10150 = vmatpush2.bf16.msra.mxu0 0
    %10151 = vmatprep.subr.bf16.mxu0 0
    %10152 = vmatpush2.bf16.msra.mxu0 0
    %10153 = vmatprep.subr.bf16.mxu0 0
    %10154 = vmatpush2.bf16.msra.mxu0 0
    %10155 = vmatprep.subr.bf16.mxu0 0
    %10156 = vmatpush2.bf16.msra.mxu0 0
    %10157 = vmatprep.subr.bf16.mxu0 0
    %10158 = vmatpush2.bf16.msra.mxu0 0
    %10159 = vmatprep.subr.bf16.mxu0 0
    %10160 = vmatpush2.bf16.msra.mxu0 0
    %10161 = vmatprep.subr.bf16.mxu0 0
    %10162 = vmatpush2.bf16.msra.mxu0 0
    %10163 = vmatprep.subr.bf16.mxu0 0
    %10164 = vmatpush2.bf16.msra.mxu0 0
    %10165 = vmatprep.mubr.bf16.mxu0 0
    %10166 = vmatmul.mubr.bf16.gmra.mxu0 %v10128
    %v10167 = vpop.f32.mrf.mxu0
    %v10168 = vadd.f32 0.0, %v10167
    %v10169 = vpop.f32.mrf.mxu0
    %v10170 = vadd.f32 0.0, %v10169
    %v10171 = vpop.f32.mrf.mxu0
    %v10172 = vpop.f32.mrf.mxu0
    %10173 = vdwg.mxu0
    %10174 = vmatprep.subr.bf16.mxu0 %v9991
    %10175 = vmatpush1.bf16.msra.mxu0 %v9990
    %10176 = vmatprep.subr.bf16.mxu0 %v9987
    %10177 = vmatpush1.bf16.msra.mxu0 %v9986
    %10178 = vmatprep.subr.bf16.mxu0 %v9983
    %10179 = vmatpush1.bf16.msra.mxu0 %v9982
    %10180 = vmatprep.subr.bf16.mxu0 %v9979
    %10181 = vmatpush1.bf16.msra.mxu0 %v9978
    %10182 = vmatprep.subr.bf16.mxu0 %v9975
    %10183 = vmatpush1.bf16.msra.mxu0 %v9974
    %10184 = vmatprep.subr.bf16.mxu0 %v9971
    %10185 = vmatpush1.bf16.msra.mxu0 %v9970
    %10186 = vmatprep.subr.bf16.mxu0 %v9967
    %10187 = vmatpush1.bf16.msra.mxu0 %v9966
    %10188 = vmatprep.subr.bf16.mxu0 %v9963
    %10189 = vmatpush1.bf16.msra.mxu0 %v9962
    %10190 = vmatprep.subr.bf16.mxu0 0
    %10191 = vmatpush2.bf16.msra.mxu0 0
    %10192 = vmatprep.subr.bf16.mxu0 0
    %10193 = vmatpush2.bf16.msra.mxu0 0
    %10194 = vmatprep.subr.bf16.mxu0 0
    %10195 = vmatpush2.bf16.msra.mxu0 0
    %10196 = vmatprep.subr.bf16.mxu0 0
    %10197 = vmatpush2.bf16.msra.mxu0 0
    %10198 = vmatprep.subr.bf16.mxu0 0
    %10199 = vmatpush2.bf16.msra.mxu0 0
    %10200 = vmatprep.subr.bf16.mxu0 0
    %10201 = vmatpush2.bf16.msra.mxu0 0
    %10202 = vmatprep.subr.bf16.mxu0 0
    %10203 = vmatpush2.bf16.msra.mxu0 0
    %10204 = vmatprep.subr.bf16.mxu0 0
    %10205 = vmatpush2.bf16.msra.mxu0 0
    %10206 = vmatprep.mubr.bf16.mxu0 0
    %10207 = vmatmul.mubr.bf16.gmra.mxu0 %v10128
    %v10208 = vpop.f32.mrf.mxu0
    %v10209 = vadd.f32 0.0, %v10208
    %v10210 = vpop.f32.mrf.mxu0
    %v10211 = vadd.f32 0.0, %v10210
    %v10212 = vpop.f32.mrf.mxu0
    %v10213 = vpop.f32.mrf.mxu0
    %10214 = vdwg.mxu0
    %v10215 = vadd.f32 %v10129, %v10168
    %v10216 = vadd.f32 %v10130, %v10170
    %v10217 = vadd.f32 %v10131, %v10209
    %v10218 = vadd.f32 %v10132, %v10211
    %v10219 = vmul.f32 %v10215, 0.5
    %v10220 = vmul.f32 %v10216, 0.5
    %v10221 = vmul.f32 %v10217, 0.5
    %v10222 = vtanh.pop %v10219
    %v10223 = vtanh.pop %v10220
    %v10224 = vtanh.pop %v10221
    %v10225 = vmul.f32 %v10222, 0.5
    %v10226 = vmul.f32 %v10223, 0.5
    %v10227 = vmul.f32 %v10224, 0.5
    %v10228 = vadd.f32 %v10225, 0.5
    %v10229 = vadd.f32 %v10226, 0.5
    %v10230 = vadd.f32 %v10227, 0.5
    %v10231 = vtanh.pop %v10218
    %v10232 = vmul.f32 %v10229, %v10125
    %v10233 = vmul.f32 %v10228, %v10231
    %v10234 = vadd.f32 %v10232, %v10233
    %v10235 = vtanh.pop %v10234
    %v10236 = vmul.f32 %v10230, %v10235
    %v10237 = vpack.c.bf16 %v10236, %v10236
    %v10238 = vld [vmem:[#allocation3 + $0x40] sm:$0xff]
    %v10239 = vld [vmem:[#allocation3 + $0x48] sm:$0xff]
    %v10240 = vld [vmem:[#allocation3 + $0x50] sm:$0xff]
    %v10241 = vld [vmem:[#allocation3 + $0x58] sm:$0xff]
    %10242 = vmatprep.subr.bf16.mxu0 %v9989
    %10243 = vmatpush1.bf16.msra.mxu0 %v9988
    %10244 = vmatprep.subr.bf16.mxu0 %v9985
    %10245 = vmatpush1.bf16.msra.mxu0 %v9984
    %10246 = vmatprep.subr.bf16.mxu0 %v9981
    %10247 = vmatpush1.bf16.msra.mxu0 %v9980
    %10248 = vmatprep.subr.bf16.mxu0 %v9977
    %10249 = vmatpush1.bf16.msra.mxu0 %v9976
    %10250 = vmatprep.subr.bf16.mxu0 %v9973
    %10251 = vmatpush1.bf16.msra.mxu0 %v9972
    %10252 = vmatprep.subr.bf16.mxu0 %v9969
    %10253 = vmatpush1.bf16.msra.mxu0 %v9968
    %10254 = vmatprep.subr.bf16.mxu0 %v9965
    %10255 = vmatpush1.bf16.msra.mxu0 %v9964
    %10256 = vmatprep.subr.bf16.mxu0 %v9961
    %10257 = vmatpush1.bf16.msra.mxu0 %v9960
    %10258 = vmatprep.subr.bf16.mxu0 0
    %10259 = vmatpush2.bf16.msra.mxu0 0
    %10260 = vmatprep.subr.bf16.mxu0 0
    %10261 = vmatpush2.bf16.msra.mxu0 0
    %10262 = vmatprep.subr.bf16.mxu0 0
    %10263 = vmatpush2.bf16.msra.mxu0 0
    %10264 = vmatprep.subr.bf16.mxu0 0
    %10265 = vmatpush2.bf16.msra.mxu0 0
    %10266 = vmatprep.subr.bf16.mxu0 0
    %10267 = vmatpush2.bf16.msra.mxu0 0
    %10268 = vmatprep.subr.bf16.mxu0 0
    %10269 = vmatpush2.bf16.msra.mxu0 0
    %10270 = vmatprep.subr.bf16.mxu0 0
    %10271 = vmatpush2.bf16.msra.mxu0 0
    %10272 = vmatprep.subr.bf16.mxu0 0
    %10273 = vmatpush2.bf16.msra.mxu0 0
    %10274 = vmatprep.mubr.bf16.mxu0 0
    %10275 = vmatmul.mubr.bf16.gmra.mxu0 %v10237
    %v10276 = vpop.f32.mrf.mxu0
    %v10277 = vadd.f32 0.0, %v10276
    %v10278 = vpop.f32.mrf.mxu0
    %v10279 = vadd.f32 0.0, %v10278
    %v10280 = vpop.f32.mrf.mxu0
    %v10281 = vpop.f32.mrf.mxu0
    %10282 = vdwg.mxu0
    %10283 = vmatprep.subr.bf16.mxu0 %v9991
    %10284 = vmatpush1.bf16.msra.mxu0 %v9990
    %10285 = vmatprep.subr.bf16.mxu0 %v9987
    %10286 = vmatpush1.bf16.msra.mxu0 %v9986
    %10287 = vmatprep.subr.bf16.mxu0 %v9983
    %10288 = vmatpush1.bf16.msra.mxu0 %v9982
    %10289 = vmatprep.subr.bf16.mxu0 %v9979
    %10290 = vmatpush1.bf16.msra.mxu0 %v9978
    %10291 = vmatprep.subr.bf16.mxu0 %v9975
    %10292 = vmatpush1.bf16.msra.mxu0 %v9974
    %10293 = vmatprep.subr.bf16.mxu0 %v9971
    %10294 = vmatpush1.bf16.msra.mxu0 %v9970
    %10295 = vmatprep.subr.bf16.mxu0 %v9967
    %10296 = vmatpush1.bf16.msra.mxu0 %v9966
    %10297 = vmatprep.subr.bf16.mxu0 %v9963
    %10298 = vmatpush1.bf16.msra.mxu0 %v9962
    %10299 = vmatprep.subr.bf16.mxu0 0
    %10300 = vmatpush2.bf16.msra.mxu0 0
    %10301 = vmatprep.subr.bf16.mxu0 0
    %10302 = vmatpush2.bf16.msra.mxu0 0
    %10303 = vmatprep.subr.bf16.mxu0 0
    %10304 = vmatpush2.bf16.msra.mxu0 0
    %10305 = vmatprep.subr.bf16.mxu0 0
    %10306 = vmatpush2.bf16.msra.mxu0 0
    %10307 = vmatprep.subr.bf16.mxu0 0
    %10308 = vmatpush2.bf16.msra.mxu0 0
    %10309 = vmatprep.subr.bf16.mxu0 0
    %10310 = vmatpush2.bf16.msra.mxu0 0
    %10311 = vmatprep.subr.bf16.mxu0 0
    %10312 = vmatpush2.bf16.msra.mxu0 0
    %10313 = vmatprep.subr.bf16.mxu0 0
    %10314 = vmatpush2.bf16.msra.mxu0 0
    %10315 = vmatprep.mubr.bf16.mxu0 0
    %10316 = vmatmul.mubr.bf16.gmra.mxu0 %v10237
    %v10317 = vpop.f32.mrf.mxu0
    %v10318 = vadd.f32 0.0, %v10317
    %v10319 = vpop.f32.mrf.mxu0
    %v10320 = vadd.f32 0.0, %v10319
    %v10321 = vpop.f32.mrf.mxu0
    %v10322 = vpop.f32.mrf.mxu0
    %10323 = vdwg.mxu0
    %v10324 = vadd.f32 %v10238, %v10277
    %v10325 = vadd.f32 %v10239, %v10279
    %v10326 = vadd.f32 %v10240, %v10318
    %v10327 = vadd.f32 %v10241, %v10320
    %v10328 = vmul.f32 %v10324, 0.5
    %v10329 = vmul.f32 %v10325, 0.5
    %v10330 = vmul.f32 %v10326, 0.5
    %v10331 = vtanh.pop %v10328
    %v10332 = vtanh.pop %v10329
    %v10333 = vtanh.pop %v10330
    %v10334 = vmul.f32 %v10331, 0.5
    %v10335 = vmul.f32 %v10332, 0.5
    %v10336 = vmul.f32 %v10333, 0.5
    %v10337 = vadd.f32 %v10334, 0.5
    %v10338 = vadd.f32 %v10335, 0.5
    %v10339 = vadd.f32 %v10336, 0.5
    %v10340 = vtanh.pop %v10327
    %v10341 = vmul.f32 %v10338, %v10234
    %v10342 = vmul.f32 %v10337, %v10340
    %v10343 = vadd.f32 %v10341, %v10342
    %v10344 = vtanh.pop %v10343
    %v10345 = vmul.f32 %v10339, %v10344
    %v10346 = vpack.c.bf16 %v10345, %v10345
    %v10347 = vld [vmem:[#allocation3 + $0x60] sm:$0xff]
    %v10348 = vld [vmem:[#allocation3 + $0x68] sm:$0xff]
    %v10349 = vld [vmem:[#allocation3 + $0x70] sm:$0xff]
    %v10350 = vld [vmem:[#allocation3 + $0x78] sm:$0xff]
    %10351 = vmatprep.subr.bf16.mxu0 %v9989
    %10352 = vmatpush1.bf16.msra.mxu0 %v9988
    %10353 = vmatprep.subr.bf16.mxu0 %v9985
    %10354 = vmatpush1.bf16.msra.mxu0 %v9984
    %10355 = vmatprep.subr.bf16.mxu0 %v9981
    %10356 = vmatpush1.bf16.msra.mxu0 %v9980
    %10357 = vmatprep.subr.bf16.mxu0 %v9977
    %10358 = vmatpush1.bf16.msra.mxu0 %v9976
    %10359 = vmatprep.subr.bf16.mxu0 %v9973
    %10360 = vmatpush1.bf16.msra.mxu0 %v9972
    %10361 = vmatprep.subr.bf16.mxu0 %v9969
    %10362 = vmatpush1.bf16.msra.mxu0 %v9968
    %10363 = vmatprep.subr.bf16.mxu0 %v9965
    %10364 = vmatpush1.bf16.msra.mxu0 %v9964
    %10365 = vmatprep.subr.bf16.mxu0 %v9961
    %10366 = vmatpush1.bf16.msra.mxu0 %v9960
    %10367 = vmatprep.subr.bf16.mxu0 0
    %10368 = vmatpush2.bf16.msra.mxu0 0
    %10369 = vmatprep.subr.bf16.mxu0 0
    %10370 = vmatpush2.bf16.msra.mxu0 0
    %10371 = vmatprep.subr.bf16.mxu0 0
    %10372 = vmatpush2.bf16.msra.mxu0 0
    %10373 = vmatprep.subr.bf16.mxu0 0
    %10374 = vmatpush2.bf16.msra.mxu0 0
    %10375 = vmatprep.subr.bf16.mxu0 0
    %10376 = vmatpush2.bf16.msra.mxu0 0
    %10377 = vmatprep.subr.bf16.mxu0 0
    %10378 = vmatpush2.bf16.msra.mxu0 0
    %10379 = vmatprep.subr.bf16.mxu0 0
    %10380 = vmatpush2.bf16.msra.mxu0 0
    %10381 = vmatprep.subr.bf16.mxu0 0
    %10382 = vmatpush2.bf16.msra.mxu0 0
    %10383 = vmatprep.mubr.bf16.mxu0 0
    %10384 = vmatmul.mubr.bf16.gmra.mxu0 %v10346
    %v10385 = vpop.f32.mrf.mxu0
    %v10386 = vadd.f32 0.0, %v10385
    %v10387 = vpop.f32.mrf.mxu0
    %v10388 = vadd.f32 0.0, %v10387
    %v10389 = vpop.f32.mrf.mxu0
    %v10390 = vpop.f32.mrf.mxu0
    %10391 = vdwg.mxu0
    %10392 = vmatprep.subr.bf16.mxu0 %v9991
    %10393 = vmatpush1.bf16.msra.mxu0 %v9990
    %10394 = vmatprep.subr.bf16.mxu0 %v9987
    %10395 = vmatpush1.bf16.msra.mxu0 %v9986
    %10396 = vmatprep.subr.bf16.mxu0 %v9983
    %10397 = vmatpush1.bf16.msra.mxu0 %v9982
    %10398 = vmatprep.subr.bf16.mxu0 %v9979
    %10399 = vmatpush1.bf16.msra.mxu0 %v9978
    %10400 = vmatprep.subr.bf16.mxu0 %v9975
    %10401 = vmatpush1.bf16.msra.mxu0 %v9974
    %10402 = vmatprep.subr.bf16.mxu0 %v9971
    %10403 = vmatpush1.bf16.msra.mxu0 %v9970
    %10404 = vmatprep.subr.bf16.mxu0 %v9967
    %10405 = vmatpush1.bf16.msra.mxu0 %v9966
    %10406 = vmatprep.subr.bf16.mxu0 %v9963
    %10407 = vmatpush1.bf16.msra.mxu0 %v9962
    %10408 = vmatprep.subr.bf16.mxu0 0
    %10409 = vmatpush2.bf16.msra.mxu0 0
    %10410 = vmatprep.subr.bf16.mxu0 0
    %10411 = vmatpush2.bf16.msra.mxu0 0
    %10412 = vmatprep.subr.bf16.mxu0 0
    %10413 = vmatpush2.bf16.msra.mxu0 0
    %10414 = vmatprep.subr.bf16.mxu0 0
    %10415 = vmatpush2.bf16.msra.mxu0 0
    %10416 = vmatprep.subr.bf16.mxu0 0
    %10417 = vmatpush2.bf16.msra.mxu0 0
    %10418 = vmatprep.subr.bf16.mxu0 0
    %10419 = vmatpush2.bf16.msra.mxu0 0
    %10420 = vmatprep.subr.bf16.mxu0 0
    %10421 = vmatpush2.bf16.msra.mxu0 0
    %10422 = vmatprep.subr.bf16.mxu0 0
    %10423 = vmatpush2.bf16.msra.mxu0 0
    %10424 = vmatprep.mubr.bf16.mxu0 0
    %10425 = vmatmul.mubr.bf16.gmra.mxu0 %v10346
    %v10426 = vpop.f32.mrf.mxu0
    %v10427 = vadd.f32 0.0, %v10426
    %v10428 = vpop.f32.mrf.mxu0
    %v10429 = vadd.f32 0.0, %v10428
    %v10430 = vpop.f32.mrf.mxu0
    %v10431 = vpop.f32.mrf.mxu0
    %10432 = vdwg.mxu0
    %v10433 = vadd.f32 %v10347, %v10386
    %v10434 = vadd.f32 %v10348, %v10388
    %v10435 = vadd.f32 %v10349, %v10427
    %v10436 = vadd.f32 %v10350, %v10429
    %v10437 = vmul.f32 %v10433, 0.5
    %v10438 = vmul.f32 %v10434, 0.5
    %v10439 = vmul.f32 %v10435, 0.5
    %v10440 = vtanh.pop %v10437
    %v10441 = vtanh.pop %v10438
    %v10442 = vtanh.pop %v10439
    %v10443 = vmul.f32 %v10440, 0.5
    %v10444 = vmul.f32 %v10441, 0.5
    %v10445 = vmul.f32 %v10442, 0.5
    %v10446 = vadd.f32 %v10443, 0.5
    %v10447 = vadd.f32 %v10444, 0.5
    %v10448 = vadd.f32 %v10445, 0.5
    %v10449 = vtanh.pop %v10436
    %v10450 = vmul.f32 %v10447, %v10343
    %v10451 = vmul.f32 %v10446, %v10449
    %v10452 = vadd.f32 %v10450, %v10451
    %v10453 = vtanh.pop %v10452
    %v10454 = vmul.f32 %v10448, %v10453
    %v10455 = vpack.c.bf16 %v10454, %v10454
    %v10456 = vld [vmem:[#allocation3 + $0x80] sm:$0xff]
    %v10457 = vld [vmem:[#allocation3 + $0x88] sm:$0xff]
    %v10458 = vld [vmem:[#allocation3 + $0x90] sm:$0xff]
    %v10459 = vld [vmem:[#allocation3 + $0x98] sm:$0xff]
    %10460 = vmatprep.subr.bf16.mxu0 %v9989
    %10461 = vmatpush1.bf16.msra.mxu0 %v9988
    %10462 = vmatprep.subr.bf16.mxu0 %v9985
    %10463 = vmatpush1.bf16.msra.mxu0 %v9984
    %10464 = vmatprep.subr.bf16.mxu0 %v9981
    %10465 = vmatpush1.bf16.msra.mxu0 %v9980
    %10466 = vmatprep.subr.bf16.mxu0 %v9977
    %10467 = vmatpush1.bf16.msra.mxu0 %v9976
    %10468 = vmatprep.subr.bf16.mxu0 %v9973
    %10469 = vmatpush1.bf16.msra.mxu0 %v9972
    %10470 = vmatprep.subr.bf16.mxu0 %v9969
    %10471 = vmatpush1.bf16.msra.mxu0 %v9968
    %10472 = vmatprep.subr.bf16.mxu0 %v9965
    %10473 = vmatpush1.bf16.msra.mxu0 %v9964
    %10474 = vmatprep.subr.bf16.mxu0 %v9961
    %10475 = vmatpush1.bf16.msra.mxu0 %v9960
    %10476 = vmatprep.subr.bf16.mxu0 0
    %10477 = vmatpush2.bf16.msra.mxu0 0
    %10478 = vmatprep.subr.bf16.mxu0 0
    %10479 = vmatpush2.bf16.msra.mxu0 0
    %10480 = vmatprep.subr.bf16.mxu0 0
    %10481 = vmatpush2.bf16.msra.mxu0 0
    %10482 = vmatprep.subr.bf16.mxu0 0
    %10483 = vmatpush2.bf16.msra.mxu0 0
    %10484 = vmatprep.subr.bf16.mxu0 0
    %10485 = vmatpush2.bf16.msra.mxu0 0
    %10486 = vmatprep.subr.bf16.mxu0 0
    %10487 = vmatpush2.bf16.msra.mxu0 0
    %10488 = vmatprep.subr.bf16.mxu0 0
    %10489 = vmatpush2.bf16.msra.mxu0 0
    %10490 = vmatprep.subr.bf16.mxu0 0
    %10491 = vmatpush2.bf16.msra.mxu0 0
    %10492 = vmatprep.mubr.bf16.mxu0 0
    %10493 = vmatmul.mubr.bf16.gmra.mxu0 %v10455
    %v10494 = vpop.f32.mrf.mxu0
    %v10495 = vadd.f32 0.0, %v10494
    %v10496 = vpop.f32.mrf.mxu0
    %v10497 = vadd.f32 0.0, %v10496
    %v10498 = vpop.f32.mrf.mxu0
    %v10499 = vpop.f32.mrf.mxu0
    %10500 = vdwg.mxu0
    %10501 = vmatprep.subr.bf16.mxu0 %v9991
    %10502 = vmatpush1.bf16.msra.mxu0 %v9990
    %10503 = vmatprep.subr.bf16.mxu0 %v9987
    %10504 = vmatpush1.bf16.msra.mxu0 %v9986
    %10505 = vmatprep.subr.bf16.mxu0 %v9983
    %10506 = vmatpush1.bf16.msra.mxu0 %v9982
    %10507 = vmatprep.subr.bf16.mxu0 %v9979
    %10508 = vmatpush1.bf16.msra.mxu0 %v9978
    %10509 = vmatprep.subr.bf16.mxu0 %v9975
    %10510 = vmatpush1.bf16.msra.mxu0 %v9974
    %10511 = vmatprep.subr.bf16.mxu0 %v9971
    %10512 = vmatpush1.bf16.msra.mxu0 %v9970
    %10513 = vmatprep.subr.bf16.mxu0 %v9967
    %10514 = vmatpush1.bf16.msra.mxu0 %v9966
    %10515 = vmatprep.subr.bf16.mxu0 %v9963
    %10516 = vmatpush1.bf16.msra.mxu0 %v9962
    %10517 = vmatprep.subr.bf16.mxu0 0
    %10518 = vmatpush2.bf16.msra.mxu0 0
    %10519 = vmatprep.subr.bf16.mxu0 0
    %10520 = vmatpush2.bf16.msra.mxu0 0
    %10521 = vmatprep.subr.bf16.mxu0 0
    %10522 = vmatpush2.bf16.msra.mxu0 0
    %10523 = vmatprep.subr.bf16.mxu0 0
    %10524 = vmatpush2.bf16.msra.mxu0 0
    %10525 = vmatprep.subr.bf16.mxu0 0
    %10526 = vmatpush2.bf16.msra.mxu0 0
    %10527 = vmatprep.subr.bf16.mxu0 0
    %10528 = vmatpush2.bf16.msra.mxu0 0
    %10529 = vmatprep.subr.bf16.mxu0 0
    %10530 = vmatpush2.bf16.msra.mxu0 0
    %10531 = vmatprep.subr.bf16.mxu0 0
    %10532 = vmatpush2.bf16.msra.mxu0 0
    %10533 = vmatprep.mubr.bf16.mxu0 0
    %10534 = vmatmul.mubr.bf16.gmra.mxu0 %v10455
    %v10535 = vpop.f32.mrf.mxu0
    %v10536 = vadd.f32 0.0, %v10535
    %v10537 = vpop.f32.mrf.mxu0
    %v10538 = vadd.f32 0.0, %v10537
    %v10539 = vpop.f32.mrf.mxu0
    %v10540 = vpop.f32.mrf.mxu0
    %10541 = vdwg.mxu0
    %v10542 = vadd.f32 %v10456, %v10495
    %v10543 = vadd.f32 %v10457, %v10497
    %v10544 = vadd.f32 %v10458, %v10536
    %v10545 = vadd.f32 %v10459, %v10538
    %v10546 = vmul.f32 %v10542, 0.5
    %v10547 = vmul.f32 %v10543, 0.5
    %v10548 = vmul.f32 %v10544, 0.5
    %v10549 = vtanh.pop %v10546
    %v10550 = vtanh.pop %v10547
    %v10551 = vtanh.pop %v10548
    %v10552 = vmul.f32 %v10549, 0.5
    %v10553 = vmul.f32 %v10550, 0.5
    %v10554 = vmul.f32 %v10551, 0.5
    %v10555 = vadd.f32 %v10552, 0.5
    %v10556 = vadd.f32 %v10553, 0.5
    %v10557 = vadd.f32 %v10554, 0.5
    %v10558 = vtanh.pop %v10545
    %v10559 = vmul.f32 %v10556, %v10452
    %v10560 = vmul.f32 %v10555, %v10558
    %v10561 = vadd.f32 %v10559, %v10560
    %v10562 = vtanh.pop %v10561
    %v10563 = vmul.f32 %v10557, %v10562
    %v10564 = vpack.c.bf16 %v10563, %v10563
    %v10565 = vld [vmem:[#allocation3 + $0xa0] sm:$0xff]
    %v10566 = vld [vmem:[#allocation3 + $0xa8] sm:$0xff]
    %v10567 = vld [vmem:[#allocation3 + $0xb0] sm:$0xff]
    %v10568 = vld [vmem:[#allocation3 + $0xb8] sm:$0xff]
    %10569 = vmatprep.subr.bf16.mxu0 %v9989
    %10570 = vmatpush1.bf16.msra.mxu0 %v9988
    %10571 = vmatprep.subr.bf16.mxu0 %v9985
    %10572 = vmatpush1.bf16.msra.mxu0 %v9984
    %10573 = vmatprep.subr.bf16.mxu0 %v9981
    %10574 = vmatpush1.bf16.msra.mxu0 %v9980
    %10575 = vmatprep.subr.bf16.mxu0 %v9977
    %10576 = vmatpush1.bf16.msra.mxu0 %v9976
    %10577 = vmatprep.subr.bf16.mxu0 %v9973
    %10578 = vmatpush1.bf16.msra.mxu0 %v9972
    %10579 = vmatprep.subr.bf16.mxu0 %v9969
    %10580 = vmatpush1.bf16.msra.mxu0 %v9968
    %10581 = vmatprep.subr.bf16.mxu0 %v9965
    %10582 = vmatpush1.bf16.msra.mxu0 %v9964
    %10583 = vmatprep.subr.bf16.mxu0 %v9961
    %10584 = vmatpush1.bf16.msra.mxu0 %v9960
    %10585 = vmatprep.subr.bf16.mxu0 0
    %10586 = vmatpush2.bf16.msra.mxu0 0
    %10587 = vmatprep.subr.bf16.mxu0 0
    %10588 = vmatpush2.bf16.msra.mxu0 0
    %10589 = vmatprep.subr.bf16.mxu0 0
    %10590 = vmatpush2.bf16.msra.mxu0 0
    %10591 = vmatprep.subr.bf16.mxu0 0
    %10592 = vmatpush2.bf16.msra.mxu0 0
    %10593 = vmatprep.subr.bf16.mxu0 0
    %10594 = vmatpush2.bf16.msra.mxu0 0
    %10595 = vmatprep.subr.bf16.mxu0 0
    %10596 = vmatpush2.bf16.msra.mxu0 0
    %10597 = vmatprep.subr.bf16.mxu0 0
    %10598 = vmatpush2.bf16.msra.mxu0 0
    %10599 = vmatprep.subr.bf16.mxu0 0
    %10600 = vmatpush2.bf16.msra.mxu0 0
    %10601 = vmatprep.mubr.bf16.mxu0 0
    %10602 = vmatmul.mubr.bf16.gmra.mxu0 %v10564
    %v10603 = vpop.f32.mrf.mxu0
    %v10604 = vadd.f32 0.0, %v10603
    %v10605 = vpop.f32.mrf.mxu0
    %v10606 = vadd.f32 0.0, %v10605
    %v10607 = vpop.f32.mrf.mxu0
    %v10608 = vpop.f32.mrf.mxu0
    %10609 = vdwg.mxu0
    %10610 = vmatprep.subr.bf16.mxu0 %v9991
    %10611 = vmatpush1.bf16.msra.mxu0 %v9990
    %10612 = vmatprep.subr.bf16.mxu0 %v9987
    %10613 = vmatpush1.bf16.msra.mxu0 %v9986
    %10614 = vmatprep.subr.bf16.mxu0 %v9983
    %10615 = vmatpush1.bf16.msra.mxu0 %v9982
    %10616 = vmatprep.subr.bf16.mxu0 %v9979
    %10617 = vmatpush1.bf16.msra.mxu0 %v9978
    %10618 = vmatprep.subr.bf16.mxu0 %v9975
    %10619 = vmatpush1.bf16.msra.mxu0 %v9974
    %10620 = vmatprep.subr.bf16.mxu0 %v9971
    %10621 = vmatpush1.bf16.msra.mxu0 %v9970
    %10622 = vmatprep.subr.bf16.mxu0 %v9967
    %10623 = vmatpush1.bf16.msra.mxu0 %v9966
    %10624 = vmatprep.subr.bf16.mxu0 %v9963
    %10625 = vmatpush1.bf16.msra.mxu0 %v9962
    %10626 = vmatprep.subr.bf16.mxu0 0
    %10627 = vmatpush2.bf16.msra.mxu0 0
    %10628 = vmatprep.subr.bf16.mxu0 0
    %10629 = vmatpush2.bf16.msra.mxu0 0
    %10630 = vmatprep.subr.bf16.mxu0 0
    %10631 = vmatpush2.bf16.msra.mxu0 0
    %10632 = vmatprep.subr.bf16.mxu0 0
    %10633 = vmatpush2.bf16.msra.mxu0 0
    %10634 = vmatprep.subr.bf16.mxu0 0
    %10635 = vmatpush2.bf16.msra.mxu0 0
    %10636 = vmatprep.subr.bf16.mxu0 0
    %10637 = vmatpush2.bf16.msra.mxu0 0
    %10638 = vmatprep.subr.bf16.mxu0 0
    %10639 = vmatpush2.bf16.msra.mxu0 0
    %10640 = vmatprep.subr.bf16.mxu0 0
    %10641 = vmatpush2.bf16.msra.mxu0 0
    %10642 = vmatprep.mubr.bf16.mxu0 0
    %10643 = vmatmul.mubr.bf16.gmra.mxu0 %v10564
    %v10644 = vpop.f32.mrf.mxu0
    %v10645 = vadd.f32 0.0, %v10644
    %v10646 = vpop.f32.mrf.mxu0
    %v10647 = vadd.f32 0.0, %v10646
    %v10648 = vpop.f32.mrf.mxu0
    %v10649 = vpop.f32.mrf.mxu0
    %10650 = vdwg.mxu0
    %v10651 = vadd.f32 %v10565, %v10604
    %v10652 = vadd.f32 %v10566, %v10606
    %v10653 = vadd.f32 %v10567, %v10645
    %v10654 = vadd.f32 %v10568, %v10647
    %v10655 = vmul.f32 %v10651, 0.5
    %v10656 = vmul.f32 %v10652, 0.5
    %v10657 = vmul.f32 %v10653, 0.5
    %v10658 = vtanh.pop %v10655
    %v10659 = vtanh.pop %v10656
    %v10660 = vtanh.pop %v10657
    %v10661 = vmul.f32 %v10658, 0.5
    %v10662 = vmul.f32 %v10659, 0.5
    %v10663 = vmul.f32 %v10660, 0.5
    %v10664 = vadd.f32 %v10661, 0.5
    %v10665 = vadd.f32 %v10662, 0.5
    %v10666 = vadd.f32 %v10663, 0.5
    %v10667 = vtanh.pop %v10654
    %v10668 = vmul.f32 %v10665, %v10561
    %v10669 = vmul.f32 %v10664, %v10667
    %v10670 = vadd.f32 %v10668, %v10669
    %v10671 = vtanh.pop %v10670
    %v10672 = vmul.f32 %v10666, %v10671
    %v10673 = vpack.c.bf16 %v10672, %v10672
    %v10674 = vld [vmem:[#allocation3 + $0xc0] sm:$0xff]
    %v10675 = vld [vmem:[#allocation3 + $0xc8] sm:$0xff]
    %v10676 = vld [vmem:[#allocation3 + $0xd0] sm:$0xff]
    %v10677 = vld [vmem:[#allocation3 + $0xd8] sm:$0xff]
    %10678 = vmatprep.subr.bf16.mxu0 %v9989
    %10679 = vmatpush1.bf16.msra.mxu0 %v9988
    %10680 = vmatprep.subr.bf16.mxu0 %v9985
    %10681 = vmatpush1.bf16.msra.mxu0 %v9984
    %10682 = vmatprep.subr.bf16.mxu0 %v9981
    %10683 = vmatpush1.bf16.msra.mxu0 %v9980
    %10684 = vmatprep.subr.bf16.mxu0 %v9977
    %10685 = vmatpush1.bf16.msra.mxu0 %v9976
    %10686 = vmatprep.subr.bf16.mxu0 %v9973
    %10687 = vmatpush1.bf16.msra.mxu0 %v9972
    %10688 = vmatprep.subr.bf16.mxu0 %v9969
    %10689 = vmatpush1.bf16.msra.mxu0 %v9968
    %10690 = vmatprep.subr.bf16.mxu0 %v9965
    %10691 = vmatpush1.bf16.msra.mxu0 %v9964
    %10692 = vmatprep.subr.bf16.mxu0 %v9961
    %10693 = vmatpush1.bf16.msra.mxu0 %v9960
    %10694 = vmatprep.subr.bf16.mxu0 0
    %10695 = vmatpush2.bf16.msra.mxu0 0
    %10696 = vmatprep.subr.bf16.mxu0 0
    %10697 = vmatpush2.bf16.msra.mxu0 0
    %10698 = vmatprep.subr.bf16.mxu0 0
    %10699 = vmatpush2.bf16.msra.mxu0 0
    %10700 = vmatprep.subr.bf16.mxu0 0
    %10701 = vmatpush2.bf16.msra.mxu0 0
    %10702 = vmatprep.subr.bf16.mxu0 0
    %10703 = vmatpush2.bf16.msra.mxu0 0
    %10704 = vmatprep.subr.bf16.mxu0 0
    %10705 = vmatpush2.bf16.msra.mxu0 0
    %10706 = vmatprep.subr.bf16.mxu0 0
    %10707 = vmatpush2.bf16.msra.mxu0 0
    %10708 = vmatprep.subr.bf16.mxu0 0
    %10709 = vmatpush2.bf16.msra.mxu0 0
    %10710 = vmatprep.mubr.bf16.mxu0 0
    %10711 = vmatmul.mubr.bf16.gmra.mxu0 %v10673
    %v10712 = vpop.f32.mrf.mxu0
    %v10713 = vadd.f32 0.0, %v10712
    %v10714 = vpop.f32.mrf.mxu0
    %v10715 = vadd.f32 0.0, %v10714
    %v10716 = vpop.f32.mrf.mxu0
    %v10717 = vpop.f32.mrf.mxu0
    %10718 = vdwg.mxu0
    %10719 = vmatprep.subr.bf16.mxu0 %v9991
    %10720 = vmatpush1.bf16.msra.mxu0 %v9990
    %10721 = vmatprep.subr.bf16.mxu0 %v9987
    %10722 = vmatpush1.bf16.msra.mxu0 %v9986
    %10723 = vmatprep.subr.bf16.mxu0 %v9983
    %10724 = vmatpush1.bf16.msra.mxu0 %v9982
    %10725 = vmatprep.subr.bf16.mxu0 %v9979
    %10726 = vmatpush1.bf16.msra.mxu0 %v9978
    %10727 = vmatprep.subr.bf16.mxu0 %v9975
    %10728 = vmatpush1.bf16.msra.mxu0 %v9974
    %10729 = vmatprep.subr.bf16.mxu0 %v9971
    %10730 = vmatpush1.bf16.msra.mxu0 %v9970
    %10731 = vmatprep.subr.bf16.mxu0 %v9967
    %10732 = vmatpush1.bf16.msra.mxu0 %v9966
    %10733 = vmatprep.subr.bf16.mxu0 %v9963
    %10734 = vmatpush1.bf16.msra.mxu0 %v9962
    %10735 = vmatprep.subr.bf16.mxu0 0
    %10736 = vmatpush2.bf16.msra.mxu0 0
    %10737 = vmatprep.subr.bf16.mxu0 0
    %10738 = vmatpush2.bf16.msra.mxu0 0
    %10739 = vmatprep.subr.bf16.mxu0 0
    %10740 = vmatpush2.bf16.msra.mxu0 0
    %10741 = vmatprep.subr.bf16.mxu0 0
    %10742 = vmatpush2.bf16.msra.mxu0 0
    %10743 = vmatprep.subr.bf16.mxu0 0
    %10744 = vmatpush2.bf16.msra.mxu0 0
    %10745 = vmatprep.subr.bf16.mxu0 0
    %10746 = vmatpush2.bf16.msra.mxu0 0
    %10747 = vmatprep.subr.bf16.mxu0 0
    %10748 = vmatpush2.bf16.msra.mxu0 0
    %10749 = vmatprep.subr.bf16.mxu0 0
    %10750 = vmatpush2.bf16.msra.mxu0 0
    %10751 = vmatprep.mubr.bf16.mxu0 0
    %10752 = vmatmul.mubr.bf16.gmra.mxu0 %v10673
    %v10753 = vpop.f32.mrf.mxu0
    %v10754 = vadd.f32 0.0, %v10753
    %v10755 = vpop.f32.mrf.mxu0
    %v10756 = vadd.f32 0.0, %v10755
    %v10757 = vpop.f32.mrf.mxu0
    %v10758 = vpop.f32.mrf.mxu0
    %10759 = vdwg.mxu0
    %v10760 = vadd.f32 %v10674, %v10713
    %v10761 = vadd.f32 %v10675, %v10715
    %v10762 = vadd.f32 %v10676, %v10754
    %v10763 = vadd.f32 %v10677, %v10756
    %v10764 = vmul.f32 %v10760, 0.5
    %v10765 = vmul.f32 %v10761, 0.5
    %v10766 = vmul.f32 %v10762, 0.5
    %v10767 = vtanh.pop %v10764
    %v10768 = vtanh.pop %v10765
    %v10769 = vtanh.pop %v10766
    %v10770 = vmul.f32 %v10767, 0.5
    %v10771 = vmul.f32 %v10768, 0.5
    %v10772 = vmul.f32 %v10769, 0.5
    %v10773 = vadd.f32 %v10770, 0.5
    %v10774 = vadd.f32 %v10771, 0.5
    %v10775 = vadd.f32 %v10772, 0.5
    %v10776 = vtanh.pop %v10763
    %v10777 = vmul.f32 %v10774, %v10670
    %v10778 = vmul.f32 %v10773, %v10776
    %v10779 = vadd.f32 %v10777, %v10778
    %v10780 = vtanh.pop %v10779
    %v10781 = vmul.f32 %v10775, %v10780
    %v10782 = vpack.c.bf16 %v10781, %v10781
    %v10783 = vld [vmem:[#allocation3 + $0xe0] sm:$0xff]
    %v10784 = vld [vmem:[#allocation3 + $0xe8] sm:$0xff]
    %v10785 = vld [vmem:[#allocation3 + $0xf0] sm:$0xff]
    %v10786 = vld [vmem:[#allocation3 + $0xf8] sm:$0xff]
    %10787 = vmatprep.subr.bf16.mxu0 %v9989
    %10788 = vmatpush1.bf16.msra.mxu0 %v9988
    %10789 = vmatprep.subr.bf16.mxu0 %v9985
    %10790 = vmatpush1.bf16.msra.mxu0 %v9984
    %10791 = vmatprep.subr.bf16.mxu0 %v9981
    %10792 = vmatpush1.bf16.msra.mxu0 %v9980
    %10793 = vmatprep.subr.bf16.mxu0 %v9977
    %10794 = vmatpush1.bf16.msra.mxu0 %v9976
    %10795 = vmatprep.subr.bf16.mxu0 %v9973
    %10796 = vmatpush1.bf16.msra.mxu0 %v9972
    %10797 = vmatprep.subr.bf16.mxu0 %v9969
    %10798 = vmatpush1.bf16.msra.mxu0 %v9968
    %10799 = vmatprep.subr.bf16.mxu0 %v9965
    %10800 = vmatpush1.bf16.msra.mxu0 %v9964
    %10801 = vmatprep.subr.bf16.mxu0 %v9961
    %10802 = vmatpush1.bf16.msra.mxu0 %v9960
    %10803 = vmatprep.subr.bf16.mxu0 0
    %10804 = vmatpush2.bf16.msra.mxu0 0
    %10805 = vmatprep.subr.bf16.mxu0 0
    %10806 = vmatpush2.bf16.msra.mxu0 0
    %10807 = vmatprep.subr.bf16.mxu0 0
    %10808 = vmatpush2.bf16.msra.mxu0 0
    %10809 = vmatprep.subr.bf16.mxu0 0
    %10810 = vmatpush2.bf16.msra.mxu0 0
    %10811 = vmatprep.subr.bf16.mxu0 0
    %10812 = vmatpush2.bf16.msra.mxu0 0
    %10813 = vmatprep.subr.bf16.mxu0 0
    %10814 = vmatpush2.bf16.msra.mxu0 0
    %10815 = vmatprep.subr.bf16.mxu0 0
    %10816 = vmatpush2.bf16.msra.mxu0 0
    %10817 = vmatprep.subr.bf16.mxu0 0
    %10818 = vmatpush2.bf16.msra.mxu0 0
    %10819 = vmatprep.mubr.bf16.mxu0 0
    %10820 = vmatmul.mubr.bf16.gmra.mxu0 %v10782
    %v10821 = vpop.f32.mrf.mxu0
    %v10822 = vadd.f32 0.0, %v10821
    %v10823 = vpop.f32.mrf.mxu0
    %v10824 = vadd.f32 0.0, %v10823
    %v10825 = vpop.f32.mrf.mxu0
    %v10826 = vpop.f32.mrf.mxu0
    %10827 = vdwg.mxu0
    %10828 = vmatprep.subr.bf16.mxu0 %v9991
    %10829 = vmatpush1.bf16.msra.mxu0 %v9990
    %10830 = vmatprep.subr.bf16.mxu0 %v9987
    %10831 = vmatpush1.bf16.msra.mxu0 %v9986
    %10832 = vmatprep.subr.bf16.mxu0 %v9983
    %10833 = vmatpush1.bf16.msra.mxu0 %v9982
    %10834 = vmatprep.subr.bf16.mxu0 %v9979
    %10835 = vmatpush1.bf16.msra.mxu0 %v9978
    %10836 = vmatprep.subr.bf16.mxu0 %v9975
    %10837 = vmatpush1.bf16.msra.mxu0 %v9974
    %10838 = vmatprep.subr.bf16.mxu0 %v9971
    %10839 = vmatpush1.bf16.msra.mxu0 %v9970
    %10840 = vmatprep.subr.bf16.mxu0 %v9967
    %10841 = vmatpush1.bf16.msra.mxu0 %v9966
    %10842 = vmatprep.subr.bf16.mxu0 %v9963
    %10843 = vmatpush1.bf16.msra.mxu0 %v9962
    %10844 = vmatprep.subr.bf16.mxu0 0
    %10845 = vmatpush2.bf16.msra.mxu0 0
    %10846 = vmatprep.subr.bf16.mxu0 0
    %10847 = vmatpush2.bf16.msra.mxu0 0
    %10848 = vmatprep.subr.bf16.mxu0 0
    %10849 = vmatpush2.bf16.msra.mxu0 0
    %10850 = vmatprep.subr.bf16.mxu0 0
    %10851 = vmatpush2.bf16.msra.mxu0 0
    %10852 = vmatprep.subr.bf16.mxu0 0
    %10853 = vmatpush2.bf16.msra.mxu0 0
    %10854 = vmatprep.subr.bf16.mxu0 0
    %10855 = vmatpush2.bf16.msra.mxu0 0
    %10856 = vmatprep.subr.bf16.mxu0 0
    %10857 = vmatpush2.bf16.msra.mxu0 0
    %10858 = vmatprep.subr.bf16.mxu0 0
    %10859 = vmatpush2.bf16.msra.mxu0 0
    %10860 = vmatprep.mubr.bf16.mxu0 0
    %10861 = vmatmul.mubr.bf16.gmra.mxu0 %v10782
    %v10862 = vpop.f32.mrf.mxu0
    %v10863 = vadd.f32 0.0, %v10862
    %v10864 = vpop.f32.mrf.mxu0
    %v10865 = vadd.f32 0.0, %v10864
    %v10866 = vpop.f32.mrf.mxu0
    %v10867 = vpop.f32.mrf.mxu0
    %10868 = vdwg.mxu0
    %v10869 = vadd.f32 %v10783, %v10822
    %v10870 = vadd.f32 %v10784, %v10824
    %v10871 = vadd.f32 %v10785, %v10863
    %v10872 = vadd.f32 %v10786, %v10865
    %v10873 = vmul.f32 %v10869, 0.5
    %v10874 = vmul.f32 %v10870, 0.5
    %v10875 = vmul.f32 %v10871, 0.5
    %v10876 = vtanh.pop %v10873
    %v10877 = vtanh.pop %v10874
    %v10878 = vtanh.pop %v10875
    %v10879 = vmul.f32 %v10876, 0.5
    %v10880 = vmul.f32 %v10877, 0.5
    %v10881 = vmul.f32 %v10878, 0.5
    %v10882 = vadd.f32 %v10879, 0.5
    %v10883 = vadd.f32 %v10880, 0.5
    %v10884 = vadd.f32 %v10881, 0.5
    %v10885 = vtanh.pop %v10872
    %v10886 = vmul.f32 %v10883, %v10779
    %v10887 = vmul.f32 %v10882, %v10885
    %v10888 = vadd.f32 %v10886, %v10887
    %v10889 = vtanh.pop %v10888
    %v10890 = vmul.f32 %v10884, %v10889
    %v10891 = vld [vmem:[%s12] sm:$0x1]
    %v10892 = vld [vmem:[%s13] sm:$0x1]
    %10893 = vadd.xlane.f32.xlu0 %v10890
    %v10894 = vpop.xlane.xlu0 %10893
    %v10895 = vmul.f32 %v10894, %v461
    %v10896 = vmul.f32 %v10890, %v10890
    %10897 = vadd.xlane.f32.xlu0 %v10896
    %v10898 = vpop.xlane.xlu0 %10897
    %v10899 = vmul.f32 %v10898, %v461
    %v10900 = vmul.f32 %v10895, %v10895
    %v10901 = vsub.f32 %v10899, %v10900
    %v10902 = vsub.f32 %v10890, %v10895
    %v10903 = vadd.f32 %v10901, 1e-05
    %v10904 = vrsqrt.pop %v10903
    %v10905 = vmul.f32 %v10902, %v10904
    %v10907 = vlaneseq
    %v10908 = vshrl.u32 %v10907, 7
    %v10909 = vsub.s32 0, %v10908
    %v10910 = vrot.slane %v10891, %v10909
    %v10912 = vmul.f32 %v10905, %v10910
    %v10914 = vlaneseq
    %v10915 = vshrl.u32 %v10914, 7
    %v10916 = vsub.s32 0, %v10915
    %v10917 = vrot.slane %v10892, %v10916
    %v10919 = vadd.f32 %v10912, %v10917
    %v10920 = vmul.f32 %v10919, 0.5
    %v10921 = vtanh.pop %v10920
    %v10922 = vmul.f32 %v10921, 0.5
    %v10923 = vadd.f32 %v10922, 0.5
    %v10924 = vmul.f32 %v10919, %v10923
    %v10925 = vld [vmem:[%s14] sm:$0x1]
    %v10926 = vld [vmem:[%s15] sm:$0x1]
    %10927 = vadd.xlane.f32.xlu0 %v10924
    %v10928 = vpop.xlane.xlu0 %10927
    %v10929 = vmul.f32 %v10928, %v461
    %v10930 = vmul.f32 %v10924, %v10924
    %10931 = vadd.xlane.f32.xlu0 %v10930
    %v10932 = vpop.xlane.xlu0 %10931
    %v10933 = vmul.f32 %v10932, %v461
    %v10934 = vmul.f32 %v10929, %v10929
    %v10935 = vsub.f32 %v10933, %v10934
    %v10936 = vsub.f32 %v10924, %v10929
    %v10937 = vadd.f32 %v10935, 1e-05
    %v10938 = vrsqrt.pop %v10937
    %v10939 = vmul.f32 %v10936, %v10938
    %v10941 = vlaneseq
    %v10942 = vshrl.u32 %v10941, 7
    %v10943 = vsub.s32 0, %v10942
    %v10944 = vrot.slane %v10925, %v10943
    %v10946 = vmul.f32 %v10939, %v10944
    %v10948 = vlaneseq
    %v10949 = vshrl.u32 %v10948, 7
    %v10950 = vsub.s32 0, %v10949
    %v10951 = vrot.slane %v10926, %v10950
    %v10953 = vadd.f32 %v10946, %v10951
    %v10954 = vmul.f32 %v10953, 0.5
    %v10955 = vtanh.pop %v10954
    %v10956 = vmul.f32 %v10955, 0.5
    %v10957 = vadd.f32 %v10956, 0.5
    %v10958 = vmul.f32 %v10953, %v10957
    %v10959 = vld [vmem:[%s16] sm:$0x1]
    %v10961 = vlaneseq
    %v10962 = vshrl.u32 %v10961, 7
    %v10963 = vsub.s32 0, %v10962
    %v10964 = vrot.slane %v10959, %v10963
    %v10966 = vmul.f32 %v10958, %v10964
    %10967 = vadd.xlane.f32.xlu0 %v10966
    %v10968 = vpop.xlane.xlu0 %10967
    %v10969 = vld [vmem:[#allocation4] sm:$0x1]
    %v10971 = vlaneseq
    %v10972 = vshrl.u32 %v10971, 7
    %v10973 = vsub.s32 0, %v10972
    %v10974 = vrot.slane %v10969, %v10973
    %v10976 = vadd.f32 %v10968, %v10974
    %vm10977 = vcmask 7168
    %10978 = vst.msk [vmem:[%s18] sm:$0xff] %vm10977, %v10976
    // Predicated region
    $region102: #{tpu_custom_call.1} parent=1 // pred_check
      _
    $region103: #{tpu_custom_call.1} parent=1 // pred_check_branch
      %10980 = sbr.rel (0) target = $region105
    $region104: #{tpu_custom_call.1} parent=1 // pred_region
      _
    $region105: #{tpu_custom_call.1} parent=1 // pred_fallthru
      _
    // Predicated region
    $region106: #{tpu_custom_call.1} parent=1 // pred_check
      _
    $region107: #{tpu_custom_call.1} parent=1 // pred_check_branch
      %10982 = sbr.rel (0) target = $region109
    $region108: #{tpu_custom_call.1} parent=1 // pred_region
      _
    $region109: #{tpu_custom_call.1} parent=1 // pred_fallthru
      _
    %10983 = vsyncpa [#allocation6], 1
    %10984 = vsyncpa [#allocation8], 1
    %10985 = vsyncpa [#allocation11], 1
    %10986 = vsyncpa [#allocation14], 1

</llo_original>
